<compile_context>
chip_gen: v6e
topology: v6e:2x2x1
jax: 0.10.0
libtpu: 0.0.40
codegen_flags: <defaults>
</compile_context>

<pallas_src>
import functools

import jax
import jax.numpy as jnp
from jax.experimental import pallas as pl
from jax.experimental.pallas import tpu as pltpu


# ----------------------------------------------------------------------------
# Pallas kernels
# ----------------------------------------------------------------------------

def _first_step_kernel(x_ref, m_ref, o_ref):
    """y0 = x @ M_first  (folded A_real backward + scaleBackward)."""
    o_ref[...] = jnp.dot(x_ref[...].astype(jnp.bfloat16), m_ref[...],
                         preferred_element_type=jnp.float32)


def _fused_unet_kernel(*refs, width, hw, cb1, cb2, cb3, with_chain):
    """Fused 3-layer 3x3 conv stack (UNet stand-in) and, if with_chain, the
    folded POCS linear chain plus the +y_0 residual — all in one kernel.

    Activation layout: (channels*batch, Hn*Wn); spatial index p = h*W + w lives
    on the lane axis (256 lanes), channels*batch on sublanes.  3x3 taps are
    realised as pltpu.roll lane shifts + precomputed boundary masks; channel
    mixing uses kron(W_tap, I_B) matrices precomputed at init.
    """
    if with_chain:
        (y_ref, y0_ref, mask_ref, w1_ref, b1_ref, w2_ref, b2_ref,
         w3_ref, b3_ref, mchain_ref, o_ref) = refs
    else:
        (y_ref, mask_ref, w1_ref, b1_ref, w2_ref, b2_ref,
         w3_ref, b3_ref, o_ref) = refs

    def conv3x3(x, w_ref, b_ref, cout, relu):
        acc = jnp.zeros((cout, hw), jnp.float32)
        for tap in range(9):                      # static unroll (9 taps)
            di, dj = tap // 3 - 1, tap % 3 - 1
            d = di * width + dj
            if d == 0:
                sh = x                             # centre tap: no shift/mask
            else:
                sh = pltpu.roll(x, shift=(-d) % hw, axis=1) * mask_ref[tap]
            acc = acc + jnp.dot(w_ref[tap], sh,
                                preferred_element_type=jnp.float32)
        acc = acc + b_ref[...]
        if relu:
            acc = jnp.maximum(acc, 0.0)
        return acc

    y = y_ref[...]                                 # (B, HW) f32
    h = conv3x3(y, w1_ref, b1_ref, cb1, True)      # (hidden*B, HW)
    h = conv3x3(h, w2_ref, b2_ref, cb2, True)      # (hidden*B, HW)
    u = conv3x3(h, w3_ref, b3_ref, cb3, False)     # (B, HW)

    if with_chain:
        # scaleFwd -> A_art -> filter -> A_art^T -> scaleBwd, folded into one
        # bf16 256x256 matrix, plus the y_n = POCSStep(y_n) + y_0 residual.
        out = jnp.dot(u.astype(jnp.bfloat16), mchain_ref[...],
                      preferred_element_type=jnp.float32) + y0_ref[...]
    else:
        out = u
    o_ref[...] = out


def _full_block(a):
    """Whole-array BlockSpec (arrays here are tiny; everything fits VMEM)."""
    nd = a.ndim
    return pl.BlockSpec(a.shape, lambda i, _nd=nd: (0,) * _nd)


# ----------------------------------------------------------------------------
# Init-time helpers (constant precompute only, not on the forward hot path)
# ----------------------------------------------------------------------------

def interp_matrix(n_out, n_in):
    """Bilinear resampling matrix (n_out, n_in), deterministic."""
    pos = jnp.linspace(0.0, n_in - 1.0, n_out)
    lo = jnp.floor(pos).astype(jnp.int32)
    hi = jnp.minimum(lo + 1, n_in - 1)
    frac = pos - lo.astype(jnp.float32)
    M = jnp.zeros((n_out, n_in), jnp.float32)
    M = M.at[jnp.arange(n_out), lo].add(1.0 - frac)
    M = M.at[jnp.arange(n_out), hi].add(frac)
    return M


# ----------------------------------------------------------------------------
# POCSNet in JAX/Pallas
# ----------------------------------------------------------------------------

class POCSNetPallas:
    def __init__(self, key, *, Kgrid, NNgrid, n_sensors, n_time, itters,
                 batch, hidden=4, ntaps=5):
        self.Kx, self.Ky = Kgrid
        self.Hn, self.Wn = NNgrid
        self.Ns, self.Nt = n_sensors, n_time
        self.itters = itters
        self.B = batch
        self.hidden = hidden
        Nk = self.Kx * self.Ky
        Nm = self.Ns * self.Nt
        HW = self.Hn * self.Wn
        self.HW = HW

        keys = jax.random.split(key, 2 + itters + 1)
        kit = iter(keys)

        # kWaveWrapper stand-ins: dense linear acoustic operators.
        # TODO(synk): real kww.kWaveWrapper runs a k-Wave PDE forward/adjoint
        # solve; approximated by fixed dense linear operators A_real / A_art.
        A_real = jax.random.normal(next(kit), (Nm, Nk), jnp.float32) / jnp.sqrt(Nk)
        A_art = jax.random.normal(next(kit), (Nm, Nk), jnp.float32) / jnp.sqrt(Nk)

        # Scaler stand-in: separable bilinear resampling between Kgrid / NNgrid,
        # folded to full (row-major) operators via Kronecker products.
        S_bwd = jnp.kron(interp_matrix(self.Hn, self.Kx),
                         interp_matrix(self.Wn, self.Ky))      # (HW, Nk)
        S_fwd = jnp.kron(interp_matrix(self.Kx, self.Hn),
                         interp_matrix(self.Ky, self.Wn))      # (Nk, HW)

        # filterStep: 'same' cross-correlation along time as a banded matrix.
        # TODO(synk): original filter / filterPadding unspecified; fixed 5-tap
        # symmetric kernel applied identically to every sensor trace.
        filt = jnp.array([-0.1, 0.25, 0.7, 0.25, -0.1], jnp.float32)[:ntaps]
        pad = ntaps // 2
        t = jnp.arange(self.Nt)
        idx = t[None, :] - t[:, None] + pad
        F_t = jnp.where((idx >= 0) & (idx < ntaps),
                        filt[jnp.clip(idx, 0, ntaps - 1)], 0.0)  # (Nt, Nt)
        F_big = jnp.kron(jnp.eye(self.Ns, dtype=jnp.float32), F_t)  # (Nm, Nm)

        # Fold the fixed linear chains once (applied as row-vector @ matrix).
        #   firstStep : y0  = x @ A_real @ S_bwd^T
        #   POCS chain: y'  = u @ S_fwd^T @ A_art^T @ F^T @ A_art @ S_bwd^T
        self.M_first = (A_real @ S_bwd.T).astype(jnp.bfloat16)            # (Nm, HW)
        self.M_chain = (S_fwd.T @ A_art.T @ F_big.T @ A_art
                        @ S_bwd.T).astype(jnp.bfloat16)                   # (HW, HW)

        # Precomputed boundary masks for the in-kernel 3x3 taps: (9, 1, HW).
        hh = jnp.arange(self.Hn)
        ww = jnp.arange(self.Wn)
        masks = []
        for tap in range(9):
            di, dj = tap // 3 - 1, tap % 3 - 1
            mh = ((hh + di >= 0) & (hh + di < self.Hn)).astype(jnp.float32)
            mw = ((ww + dj >= 0) & (ww + dj < self.Wn)).astype(jnp.float32)
            masks.append((mh[:, None] * mw[None, :]).reshape(1, HW))
        self.masks = jnp.stack(masks, axis=0)                             # (9,1,HW)

        # proxLayers: UNet(1,1) per iteration + N_end.
        # TODO(synk): UNET.UNet source is external; stand-in is a 3-layer conv
        # stack (1->hidden->hidden->1, 3x3, ReLU) instead of a full UNet.
        def make_unet(k):
            k1, k2, k3 = jax.random.split(k, 3)
            return dict(
                w1=0.3 * jax.random.normal(k1, (hidden, 1, 3, 3), jnp.float32),
                b1=jnp.zeros((hidden,), jnp.float32),
                w2=0.3 * jax.random.normal(k2, (hidden, hidden, 3, 3), jnp.float32),
                b2=jnp.zeros((hidden,), jnp.float32),
                w3=0.3 * jax.random.normal(k3, (1, hidden, 3, 3), jnp.float32),
                b3=jnp.zeros((1,), jnp.float32),
            )

        # Pack weights for the (channels*batch, HW) lane-dense in-kernel layout:
        # per tap, W_tap (Cout,Cin) -> kron(W_tap, I_B) (Cout*B, Cin*B); biases
        # repeated over batch -> (C*B, 1).  All constant reshapes done at init.
        eyeB = jnp.eye(batch, dtype=jnp.float32)

        def pack_w(w):
            return jnp.stack([jnp.kron(w[:, :, i, j], eyeB)
                              for i in range(3) for j in range(3)], axis=0)

        def pack_b(b):
            return jnp.repeat(b, batch)[:, None]

        def kron_pack(p):
            return (pack_w(p["w1"]), pack_b(p["b1"]),
                    pack_w(p["w2"]), pack_b(p["b2"]),
                    pack_w(p["w3"]), pack_b(p["b3"]))

        self.prox = [kron_pack(make_unet(next(kit))) for _ in range(itters)]
        self.prox_end = kron_pack(make_unet(next(kit)))

    # ---- Pallas call wrappers (whole-array blocks, everything in VMEM) -----

    def _first_step(self, xf):
        B = xf.shape[0]
        return pl.pallas_call(
            _first_step_kernel,
            out_shape=jax.ShapeDtypeStruct((B, self.HW), jnp.float32),
            grid=(1,),
            in_specs=[_full_block(xf), _full_block(self.M_first)],
            out_specs=pl.BlockSpec((B, self.HW), lambda i: (0, 0)),
        )(xf, self.M_first)

    def _fused(self, y, params, y0=None):
        """One fused pallas_call: UNet stand-in, optionally followed by the
        folded POCS linear chain and the +y_0 residual."""
        B = y.shape[0]
        with_chain = y0 is not None
        w1, b1, w2, b2, w3, b3 = params
        kern = functools.partial(
            _fused_unet_kernel, width=self.Wn, hw=self.HW,
            cb1=self.hidden * B, cb2=self.hidden * B, cb3=B,
            with_chain=with_chain)
        if with_chain:
            args = (y, y0, self.masks, w1, b1, w2, b2, w3, b3, self.M_chain)
        else:
            args = (y, self.masks, w1, b1, w2, b2, w3, b3)
        return pl.pallas_call(
            kern,
            out_shape=jax.ShapeDtypeStruct((B, self.HW), jnp.float32),
            grid=(1,),
            in_specs=[_full_block(a) for a in args],
            out_specs=pl.BlockSpec((B, self.HW), lambda i: (0, 0)),
        )(*args)

    # ---- forward: 1 + itters + 1 pallas_calls total -------------------------

    def forward(self, x):
        """x: sensor-domain input (B, Ns, Nt) -> image (B, 1, Hn, Wn)."""
        B = x.shape[0]
        xf = x.reshape(B, self.Ns * self.Nt).astype(jnp.float32)
        y0 = self._first_step(xf)                        # firstStep
        yn = y0
        for i in range(self.itters):
            yn = self._fused(yn, self.prox[i], y0=y0)    # POCSStep + y_0
        out = self._fused(yn, self.prox_end)             # lastStep (N_end)
        return out.reshape(B, 1, self.Hn, self.Wn)


# ----------------------------------------------------------------------------

if __name__ == "__main__":
    B, Ns, Nt = 2, 8, 32
    Kgrid, NNgrid = (12, 12), (16, 16)
    itters = 2

    root = jax.random.PRNGKey(0)
    k_params, k_x = jax.random.split(root)

    net = POCSNetPallas(k_params, Kgrid=Kgrid, NNgrid=NNgrid,
                        n_sensors=Ns, n_time=Nt, itters=itters, batch=B)

    x = jax.random.normal(k_x, (B, Ns, Nt), jnp.float32)

    fwd = jax.jit(net.forward)
    y = fwd(x)
    jax.block_until_ready(y)

    assert y.shape == (B, 1, NNgrid[0], NNgrid[1]), y.shape
    assert bool(jnp.all(jnp.isfinite(y)))
    print("KERNEL_OK")
</pallas_src>

<mosaic_0001>
module attributes {stable_mosaic.version = 11 : i64} {
  func.func @_first_step_kernel(%arg0: i32, %arg1: memref<2x256xf32, #tpu.memory_space<vmem>>, %arg2: memref<256x256xbf16, #tpu.memory_space<vmem>>, %arg3: memref<2x256xf32, #tpu.memory_space<vmem>>) attributes {dimension_semantics = [#tpu.dimension_semantics<arbitrary>], iteration_bounds = array<i64: 1>, scalar_prefetch = 0 : i64, scratch_operands = 0 : i64, tpu.core_type = #tpu.core_type<tc>, window_params = [{pipeline_mode = #tpu.pipeline_mode<synchronous>, transform_indices = @transform_0, window_bounds = array<i64: 2, 256>}, {pipeline_mode = #tpu.pipeline_mode<synchronous>, transform_indices = @transform_1, window_bounds = array<i64: 256, 256>}, {pipeline_mode = #tpu.pipeline_mode<synchronous>, transform_indices = @transform_2, window_bounds = array<i64: 2, 256>}]} {
    %c0 = arith.constant 0 : index
    %c0_0 = arith.constant 0 : index
    %0 = vector.load %arg1[%c0, %c0_0] : memref<2x256xf32, #tpu.memory_space<vmem>>, vector<2x256xf32>
    %1 = arith.truncf %0 : vector<2x256xf32> to vector<2x256xbf16>
    %c0_1 = arith.constant 0 : index
    %c0_2 = arith.constant 0 : index
    %2 = vector.load %arg2[%c0_1, %c0_2] : memref<256x256xbf16, #tpu.memory_space<vmem>>, vector<256x256xbf16>
    %cst = arith.constant dense<0.000000e+00> : vector<2x256xf32>
    %3 = tpu.matmul %1, %2, %cst {dimension_numbers = #tpu.dot_dimension_numbers<[1], [0], [0], [1], [0, 0, 1, 1], [], []>} : vector<2x256xbf16>, vector<256x256xbf16>, vector<2x256xf32> -> vector<2x256xf32>
    %c0_3 = arith.constant 0 : index
    %c0_4 = arith.constant 0 : index
    %4 = vector.load %arg3[%c0_3, %c0_4] : memref<2x256xf32, #tpu.memory_space<vmem>>, vector<2x256xf32>
    tpu.vector_store %arg3[%c0_3, %c0_4], %3 {strides = array<i32>} : memref<2x256xf32, #tpu.memory_space<vmem>>, vector<2x256xf32>,
    return
  }
  func.func @transform_0(%arg0: i32) -> (i32, i32) {
    %c0_i32 = arith.constant 0 : i32
    %c0_i32_0 = arith.constant 0 : i32
    %c0_i32_1 = arith.constant 0 : i32
    return %c0_i32, %c0_i32_0 : i32, i32
  }
  func.func @transform_1(%arg0: i32) -> (i32, i32) {
    %c0_i32 = arith.constant 0 : i32
    %c0_i32_0 = arith.constant 0 : i32
    %c0_i32_1 = arith.constant 0 : i32
    return %c0_i32, %c0_i32_0 : i32, i32
  }
  func.func @transform_2(%arg0: i32) -> (i32, i32) {
    %c0_i32 = arith.constant 0 : i32
    %c0_i32_0 = arith.constant 0 : i32
    %c0_i32_1 = arith.constant 0 : i32
    return %c0_i32, %c0_i32_0 : i32, i32
  }
}

module attributes {stable_mosaic.version = 11 : i64} {
  func.func @_fused_unet_kernel(%arg0: i32, %arg1: memref<2x256xf32, #tpu.memory_space<vmem>>, %arg2: memref<2x256xf32, #tpu.memory_space<vmem>>, %arg3: memref<9x1x256xf32, #tpu.memory_space<vmem>>, %arg4: memref<9x8x2xf32, #tpu.memory_space<vmem>>, %arg5: memref<8x1xf32, #tpu.memory_space<vmem>>, %arg6: memref<9x8x8xf32, #tpu.memory_space<vmem>>, %arg7: memref<8x1xf32, #tpu.memory_space<vmem>>, %arg8: memref<9x2x8xf32, #tpu.memory_space<vmem>>, %arg9: memref<2x1xf32, #tpu.memory_space<vmem>>, %arg10: memref<256x256xbf16, #tpu.memory_space<vmem>>, %arg11: memref<2x256xf32, #tpu.memory_space<vmem>>) attributes {dimension_semantics = [#tpu.dimension_semantics<arbitrary>], iteration_bounds = array<i64: 1>, scalar_prefetch = 0 : i64, scratch_operands = 0 : i64, tpu.core_type = #tpu.core_type<tc>, window_params = [{pipeline_mode = #tpu.pipeline_mode<synchronous>, transform_indices = @transform_0, window_bounds = array<i64: 2, 256>}, {pipeline_mode = #tpu.pipeline_mode<synchronous>, transform_indices = @transform_1, window_bounds = array<i64: 2, 256>}, {pipeline_mode = #tpu.pipeline_mode<synchronous>, transform_indices = @transform_2, window_bounds = array<i64: 9, 1, 256>}, {pipeline_mode = #tpu.pipeline_mode<synchronous>, transform_indices = @transform_3, window_bounds = array<i64: 9, 8, 2>}, {pipeline_mode = #tpu.pipeline_mode<synchronous>, transform_indices = @transform_4, window_bounds = array<i64: 8, 1>}, {pipeline_mode = #tpu.pipeline_mode<synchronous>, transform_indices = @transform_5, window_bounds = array<i64: 9, 8, 8>}, {pipeline_mode = #tpu.pipeline_mode<synchronous>, transform_indices = @transform_6, window_bounds = array<i64: 8, 1>}, {pipeline_mode = #tpu.pipeline_mode<synchronous>, transform_indices = @transform_7, window_bounds = array<i64: 9, 2, 8>}, {pipeline_mode = #tpu.pipeline_mode<synchronous>, transform_indices = @transform_8, window_bounds = array<i64: 2, 1>}, {pipeline_mode = #tpu.pipeline_mode<synchronous>, transform_indices = @transform_9, window_bounds = array<i64: 256, 256>}, {pipeline_mode = #tpu.pipeline_mode<synchronous>, transform_indices = @transform_10, window_bounds = array<i64: 2, 256>}]} {
    %c0 = arith.constant 0 : index
    %c0_0 = arith.constant 0 : index
    %0 = vector.load %arg1[%c0, %c0_0] : memref<2x256xf32, #tpu.memory_space<vmem>>, vector<2x256xf32>
    %cst = arith.constant 0.000000e+00 : f32
    %1 = vector.broadcast %cst : f32 to vector<8x256xf32>
    %c17_i32 = arith.constant 17 : i32
    %2 = tpu.dynamic_rotate %0 by %c17_i32 dim 1 : vector<2x256xf32>, i32 -> vector<2x256xf32>
    %c0_1 = arith.constant 0 : index
    %c0_2 = arith.constant 0 : index
    %c0_3 = arith.constant 0 : index
    %3 = vector.load %arg3[%c0_1, %c0_2, %c0_3] : memref<9x1x256xf32, #tpu.memory_space<vmem>>, vector<1x1x256xf32>
    %4 = vector.shape_cast %3 : vector<1x1x256xf32> to vector<1x256xf32>
    %5 = vector.broadcast %4 : vector<1x256xf32> to vector<2x256xf32>
    %6 = arith.mulf %2, %5 : vector<2x256xf32>
    %c0_4 = arith.constant 0 : index
    %c0_5 = arith.constant 0 : index
    %c0_6 = arith.constant 0 : index
    %7 = vector.load %arg4[%c0_4, %c0_5, %c0_6] : memref<9x8x2xf32, #tpu.memory_space<vmem>>, vector<1x8x2xf32>
    %8 = vector.shape_cast %7 : vector<1x8x2xf32> to vector<8x2xf32>
    %cst_7 = arith.constant dense<0.000000e+00> : vector<8x256xf32>
    %9 = tpu.matmul %8, %6, %cst_7 {dimension_numbers = #tpu.dot_dimension_numbers<[1], [0], [0], [1], [0, 0, 1, 1], [], []>} : vector<8x2xf32>, vector<2x256xf32>, vector<8x256xf32> -> vector<8x256xf32>
    %10 = arith.addf %1, %9 : vector<8x256xf32>
    %c16_i32 = arith.constant 16 : i32
    %11 = tpu.dynamic_rotate %0 by %c16_i32 dim 1 : vector<2x256xf32>, i32 -> vector<2x256xf32>
    %c1 = arith.constant 1 : index
    %c0_8 = arith.constant 0 : index
    %c0_9 = arith.constant 0 : index
    %12 = vector.load %arg3[%c1, %c0_8, %c0_9] : memref<9x1x256xf32, #tpu.memory_space<vmem>>, vector<1x1x256xf32>
    %13 = vector.shape_cast %12 : vector<1x1x256xf32> to vector<1x256xf32>
    %14 = vector.broadcast %13 : vector<1x256xf32> to vector<2x256xf32>
    %15 = arith.mulf %11, %14 : vector<2x256xf32>
    %c1_10 = arith.constant 1 : index
    %c0_11 = arith.constant 0 : index
    %c0_12 = arith.constant 0 : index
    %16 = vector.load %arg4[%c1_10, %c0_11, %c0_12] : memref<9x8x2xf32, #tpu.memory_space<vmem>>, vector<1x8x2xf32>
    %17 = vector.shape_cast %16 : vector<1x8x2xf32> to vector<8x2xf32>
    %cst_13 = arith.constant dense<0.000000e+00> : vector<8x256xf32>
    %18 = tpu.matmul %17, %15, %cst_13 {dimension_numbers = #tpu.dot_dimension_numbers<[1], [0], [0], [1], [0, 0, 1, 1], [], []>} : vector<8x2xf32>, vector<2x256xf32>, vector<8x256xf32> -> vector<8x256xf32>
    %19 = arith.addf %10, %18 : vector<8x256xf32>
    %c15_i32 = arith.constant 15 : i32
    %20 = tpu.dynamic_rotate %0 by %c15_i32 dim 1 : vector<2x256xf32>, i32 -> vector<2x256xf32>
    %c2 = arith.constant 2 : index
    %c0_14 = arith.constant 0 : index
    %c0_15 = arith.constant 0 : index
    %21 = vector.load %arg3[%c2, %c0_14, %c0_15] : memref<9x1x256xf32, #tpu.memory_space<vmem>>, vector<1x1x256xf32>
    %22 = vector.shape_cast %21 : vector<1x1x256xf32> to vector<1x256xf32>
    %23 = vector.broadcast %22 : vector<1x256xf32> to vector<2x256xf32>
    %24 = arith.mulf %20, %23 : vector<2x256xf32>
    %c2_16 = arith.constant 2 : index
    %c0_17 = arith.constant 0 : index
    %c0_18 = arith.constant 0 : index
    %25 = vector.load %arg4[%c2_16, %c0_17, %c0_18] : memref<9x8x2xf32, #tpu.memory_space<vmem>>, vector<1x8x2xf32>
    %26 = vector.shape_cast %25 : vector<1x8x2xf32> to vector<8x2xf32>
    %cst_19 = arith.constant dense<0.000000e+00> : vector<8x256xf32>
    %27 = tpu.matmul %26, %24, %cst_19 {dimension_numbers = #tpu.dot_dimension_numbers<[1], [0], [0], [1], [0, 0, 1, 1], [], []>} : vector<8x2xf32>, vector<2x256xf32>, vector<8x256xf32> -> vector<8x256xf32>
    %28 = arith.addf %19, %27 : vector<8x256xf32>
    %c1_i32 = arith.constant 1 : i32
    %29 = tpu.dynamic_rotate %0 by %c1_i32 dim 1 : vector<2x256xf32>, i32 -> vector<2x256xf32>
    %c3 = arith.constant 3 : index
    %c0_20 = arith.constant 0 : index
    %c0_21 = arith.constant 0 : index
    %30 = vector.load %arg3[%c3, %c0_20, %c0_21] : memref<9x1x256xf32, #tpu.memory_space<vmem>>, vector<1x1x256xf32>
    %31 = vector.shape_cast %30 : vector<1x1x256xf32> to vector<1x256xf32>
    %32 = vector.broadcast %31 : vector<1x256xf32> to vector<2x256xf32>
    %33 = arith.mulf %29, %32 : vector<2x256xf32>
    %c3_22 = arith.constant 3 : index
    %c0_23 = arith.constant 0 : index
    %c0_24 = arith.constant 0 : index
    %34 = vector.load %arg4[%c3_22, %c0_23, %c0_24] : memref<9x8x2xf32, #tpu.memory_space<vmem>>, vector<1x8x2xf32>
    %35 = vector.shape_cast %34 : vector<1x8x2xf32> to vector<8x2xf32>
    %cst_25 = arith.constant dense<0.000000e+00> : vector<8x256xf32>
    %36 = tpu.matmul %35, %33, %cst_25 {dimension_numbers = #tpu.dot_dimension_numbers<[1], [0], [0], [1], [0, 0, 1, 1], [], []>} : vector<8x2xf32>, vector<2x256xf32>, vector<8x256xf32> -> vector<8x256xf32>
    %37 = arith.addf %28, %36 : vector<8x256xf32>
    %c4 = arith.constant 4 : index
    %c0_26 = arith.constant 0 : index
    %c0_27 = arith.constant 0 : index
    %38 = vector.load %arg4[%c4, %c0_26, %c0_27] : memref<9x8x2xf32, #tpu.memory_space<vmem>>, vector<1x8x2xf32>
    %39 = vector.shape_cast %38 : vector<1x8x2xf32> to vector<8x2xf32>
    %cst_28 = arith.constant dense<0.000000e+00> : vector<8x256xf32>
    %40 = tpu.matmul %39, %0, %cst_28 {dimension_numbers = #tpu.dot_dimension_numbers<[1], [0], [0], [1], [0, 0, 1, 1], [], []>} : vector<8x2xf32>, vector<2x256xf32>, vector<8x256xf32> -> vector<8x256xf32>
    %41 = arith.addf %37, %40 : vector<8x256xf32>
    %c255_i32 = arith.constant 255 : i32
    %42 = tpu.dynamic_rotate %0 by %c255_i32 dim 1 : vector<2x256xf32>, i32 -> vector<2x256xf32>
    %c5 = arith.constant 5 : index
    %c0_29 = arith.constant 0 : index
    %c0_30 = arith.constant 0 : index
    %43 = vector.load %arg3[%c5, %c0_29, %c0_30] : memref<9x1x256xf32, #tpu.memory_space<vmem>>, vector<1x1x256xf32>
    %44 = vector.shape_cast %43 : vector<1x1x256xf32> to vector<1x256xf32>
    %45 = vector.broadcast %44 : vector<1x256xf32> to vector<2x256xf32>
    %46 = arith.mulf %42, %45 : vector<2x256xf32>
    %c5_31 = arith.constant 5 : index
    %c0_32 = arith.constant 0 : index
    %c0_33 = arith.constant 0 : index
    %47 = vector.load %arg4[%c5_31, %c0_32, %c0_33] : memref<9x8x2xf32, #tpu.memory_space<vmem>>, vector<1x8x2xf32>
    %48 = vector.shape_cast %47 : vector<1x8x2xf32> to vector<8x2xf32>
    %cst_34 = arith.constant dense<0.000000e+00> : vector<8x256xf32>
    %49 = tpu.matmul %48, %46, %cst_34 {dimension_numbers = #tpu.dot_dimension_numbers<[1], [0], [0], [1], [0, 0, 1, 1], [], []>} : vector<8x2xf32>, vector<2x256xf32>, vector<8x256xf32> -> vector<8x256xf32>
    %50 = arith.addf %41, %49 : vector<8x256xf32>
    %c241_i32 = arith.constant 241 : i32
    %51 = tpu.dynamic_rotate %0 by %c241_i32 dim 1 : vector<2x256xf32>, i32 -> vector<2x256xf32>
    %c6 = arith.constant 6 : index
    %c0_35 = arith.constant 0 : index
    %c0_36 = arith.constant 0 : index
    %52 = vector.load %arg3[%c6, %c0_35, %c0_36] : memref<9x1x256xf32, #tpu.memory_space<vmem>>, vector<1x1x256xf32>
    %53 = vector.shape_cast %52 : vector<1x1x256xf32> to vector<1x256xf32>
    %54 = vector.broadcast %53 : vector<1x256xf32> to vector<2x256xf32>
    %55 = arith.mulf %51, %54 : vector<2x256xf32>
    %c6_37 = arith.constant 6 : index
    %c0_38 = arith.constant 0 : index
    %c0_39 = arith.constant 0 : index
    %56 = vector.load %arg4[%c6_37, %c0_38, %c0_39] : memref<9x8x2xf32, #tpu.memory_space<vmem>>, vector<1x8x2xf32>
    %57 = vector.shape_cast %56 : vector<1x8x2xf32> to vector<8x2xf32>
    %cst_40 = arith.constant dense<0.000000e+00> : vector<8x256xf32>
    %58 = tpu.matmul %57, %55, %cst_40 {dimension_numbers = #tpu.dot_dimension_numbers<[1], [0], [0], [1], [0, 0, 1, 1], [], []>} : vector<8x2xf32>, vector<2x256xf32>, vector<8x256xf32> -> vector<8x256xf32>
    %59 = arith.addf %50, %58 : vector<8x256xf32>
    %c240_i32 = arith.constant 240 : i32
    %60 = tpu.dynamic_rotate %0 by %c240_i32 dim 1 : vector<2x256xf32>, i32 -> vector<2x256xf32>
    %c7 = arith.constant 7 : index
    %c0_41 = arith.constant 0 : index
    %c0_42 = arith.constant 0 : index
    %61 = vector.load %arg3[%c7, %c0_41, %c0_42] : memref<9x1x256xf32, #tpu.memory_space<vmem>>, vector<1x1x256xf32>
    %62 = vector.shape_cast %61 : vector<1x1x256xf32> to vector<1x256xf32>
    %63 = vector.broadcast %62 : vector<1x256xf32> to vector<2x256xf32>
    %64 = arith.mulf %60, %63 : vector<2x256xf32>
    %c7_43 = arith.constant 7 : index
    %c0_44 = arith.constant 0 : index
    %c0_45 = arith.constant 0 : index
    %65 = vector.load %arg4[%c7_43, %c0_44, %c0_45] : memref<9x8x2xf32, #tpu.memory_space<vmem>>, vector<1x8x2xf32>
    %66 = vector.shape_cast %65 : vector<1x8x2xf32> to vector<8x2xf32>
    %cst_46 = arith.constant dense<0.000000e+00> : vector<8x256xf32>
    %67 = tpu.matmul %66, %64, %cst_46 {dimension_numbers = #tpu.dot_dimension_numbers<[1], [0], [0], [1], [0, 0, 1, 1], [], []>} : vector<8x2xf32>, vector<2x256xf32>, vector<8x256xf32> -> vector<8x256xf32>
    %68 = arith.addf %59, %67 : vector<8x256xf32>
    %c239_i32 = arith.constant 239 : i32
    %69 = tpu.dynamic_rotate %0 by %c239_i32 dim 1 : vector<2x256xf32>, i32 -> vector<2x256xf32>
    %c8 = arith.constant 8 : index
    %c0_47 = arith.constant 0 : index
    %c0_48 = arith.constant 0 : index
    %70 = vector.load %arg3[%c8, %c0_47, %c0_48] : memref<9x1x256xf32, #tpu.memory_space<vmem>>, vector<1x1x256xf32>
    %71 = vector.shape_cast %70 : vector<1x1x256xf32> to vector<1x256xf32>
    %72 = vector.broadcast %71 : vector<1x256xf32> to vector<2x256xf32>
    %73 = arith.mulf %69, %72 : vector<2x256xf32>
    %c8_49 = arith.constant 8 : index
    %c0_50 = arith.constant 0 : index
    %c0_51 = arith.constant 0 : index
    %74 = vector.load %arg4[%c8_49, %c0_50, %c0_51] : memref<9x8x2xf32, #tpu.memory_space<vmem>>, vector<1x8x2xf32>
    %75 = vector.shape_cast %74 : vector<1x8x2xf32> to vector<8x2xf32>
    %cst_52 = arith.constant dense<0.000000e+00> : vector<8x256xf32>
    %76 = tpu.matmul %75, %73, %cst_52 {dimension_numbers = #tpu.dot_dimension_numbers<[1], [0], [0], [1], [0, 0, 1, 1], [], []>} : vector<8x2xf32>, vector<2x256xf32>, vector<8x256xf32> -> vector<8x256xf32>
    %77 = arith.addf %68, %76 : vector<8x256xf32>
    %c0_53 = arith.constant 0 : index
    %c0_54 = arith.constant 0 : index
    %78 = vector.load %arg5[%c0_53, %c0_54] : memref<8x1xf32, #tpu.memory_space<vmem>>, vector<8x1xf32>
    %79 = vector.broadcast %78 : vector<8x1xf32> to vector<8x256xf32>
    %80 = arith.addf %77, %79 : vector<8x256xf32>
    %cst_55 = arith.constant 0.000000e+00 : f32
    %81 = vector.broadcast %cst_55 : f32 to vector<8x256xf32>
    %82 = arith.maximumf %80, %81 : vector<8x256xf32>
    %cst_56 = arith.constant 0.000000e+00 : f32
    %83 = vector.broadcast %cst_56 : f32 to vector<8x256xf32>
    %c17_i32_57 = arith.constant 17 : i32
    %84 = tpu.dynamic_rotate %82 by %c17_i32_57 dim 1 : vector<8x256xf32>, i32 -> vector<8x256xf32>
    %c0_58 = arith.constant 0 : index
    %c0_59 = arith.constant 0 : index
    %c0_60 = arith.constant 0 : index
    %85 = vector.load %arg3[%c0_58, %c0_59, %c0_60] : memref<9x1x256xf32, #tpu.memory_space<vmem>>, vector<1x1x256xf32>
    %86 = vector.shape_cast %85 : vector<1x1x256xf32> to vector<1x256xf32>
    %87 = vector.broadcast %86 : vector<1x256xf32> to vector<8x256xf32>
    %88 = arith.mulf %84, %87 : vector<8x256xf32>
    %c0_61 = arith.constant 0 : index
    %c0_62 = arith.constant 0 : index
    %c0_63 = arith.constant 0 : index
    %89 = vector.load %arg6[%c0_61, %c0_62, %c0_63] : memref<9x8x8xf32, #tpu.memory_space<vmem>>, vector<1x8x8xf32>
    %90 = vector.shape_cast %89 : vector<1x8x8xf32> to vector<8x8xf32>
    %cst_64 = arith.constant dense<0.000000e+00> : vector<8x256xf32>
    %91 = tpu.matmul %90, %88, %cst_64 {dimension_numbers = #tpu.dot_dimension_numbers<[1], [0], [0], [1], [0, 0, 1, 1], [], []>} : vector<8x8xf32>, vector<8x256xf32>, vector<8x256xf32> -> vector<8x256xf32>
    %92 = arith.addf %83, %91 : vector<8x256xf32>
    %c16_i32_65 = arith.constant 16 : i32
    %93 = tpu.dynamic_rotate %82 by %c16_i32_65 dim 1 : vector<8x256xf32>, i32 -> vector<8x256xf32>
    %c1_66 = arith.constant 1 : index
    %c0_67 = arith.constant 0 : index
    %c0_68 = arith.constant 0 : index
    %94 = vector.load %arg3[%c1_66, %c0_67, %c0_68] : memref<9x1x256xf32, #tpu.memory_space<vmem>>, vector<1x1x256xf32>
    %95 = vector.shape_cast %94 : vector<1x1x256xf32> to vector<1x256xf32>
    %96 = vector.broadcast %95 : vector<1x256xf32> to vector<8x256xf32>
    %97 = arith.mulf %93, %96 : vector<8x256xf32>
    %c1_69 = arith.constant 1 : index
    %c0_70 = arith.constant 0 : index
    %c0_71 = arith.constant 0 : index
    %98 = vector.load %arg6[%c1_69, %c0_70, %c0_71] : memref<9x8x8xf32, #tpu.memory_space<vmem>>, vector<1x8x8xf32>
    %99 = vector.shape_cast %98 : vector<1x8x8xf32> to vector<8x8xf32>
    %cst_72 = arith.constant dense<0.000000e+00> : vector<8x256xf32>
    %100 = tpu.matmul %99, %97, %cst_72 {dimension_numbers = #tpu.dot_dimension_numbers<[1], [0], [0], [1], [0, 0, 1, 1], [], []>} : vector<8x8xf32>, vector<8x256xf32>, vector<8x256xf32> -> vector<8x256xf32>
    %101 = arith.addf %92, %100 : vector<8x256xf32>
    %c15_i32_73 = arith.constant 15 : i32
    %102 = tpu.dynamic_rotate %82 by %c15_i32_73 dim 1 : vector<8x256xf32>, i32 -> vector<8x256xf32>
    %c2_74 = arith.constant 2 : index
    %c0_75 = arith.constant 0 : index
    %c0_76 = arith.constant 0 : index
    %103 = vector.load %arg3[%c2_74, %c0_75, %c0_76] : memref<9x1x256xf32, #tpu.memory_space<vmem>>, vector<1x1x256xf32>
    %104 = vector.shape_cast %103 : vector<1x1x256xf32> to vector<1x256xf32>
    %105 = vector.broadcast %104 : vector<1x256xf32> to vector<8x256xf32>
    %106 = arith.mulf %102, %105 : vector<8x256xf32>
    %c2_77 = arith.constant 2 : index
    %c0_78 = arith.constant 0 : index
    %c0_79 = arith.constant 0 : index
    %107 = vector.load %arg6[%c2_77, %c0_78, %c0_79] : memref<9x8x8xf32, #tpu.memory_space<vmem>>, vector<1x8x8xf32>
    %108 = vector.shape_cast %107 : vector<1x8x8xf32> to vector<8x8xf32>
    %cst_80 = arith.constant dense<0.000000e+00> : vector<8x256xf32>
    %109 = tpu.matmul %108, %106, %cst_80 {dimension_numbers = #tpu.dot_dimension_numbers<[1], [0], [0], [1], [0, 0, 1, 1], [], []>} : vector<8x8xf32>, vector<8x256xf32>, vector<8x256xf32> -> vector<8x256xf32>
    %110 = arith.addf %101, %109 : vector<8x256xf32>
    %c1_i32_81 = arith.constant 1 : i32
    %111 = tpu.dynamic_rotate %82 by %c1_i32_81 dim 1 : vector<8x256xf32>, i32 -> vector<8x256xf32>
    %c3_82 = arith.constant 3 : index
    %c0_83 = arith.constant 0 : index
    %c0_84 = arith.constant 0 : index
    %112 = vector.load %arg3[%c3_82, %c0_83, %c0_84] : memref<9x1x256xf32, #tpu.memory_space<vmem>>, vector<1x1x256xf32>
    %113 = vector.shape_cast %112 : vector<1x1x256xf32> to vector<1x256xf32>
    %114 = vector.broadcast %113 : vector<1x256xf32> to vector<8x256xf32>
    %115 = arith.mulf %111, %114 : vector<8x256xf32>
    %c3_85 = arith.constant 3 : index
    %c0_86 = arith.constant 0 : index
    %c0_87 = arith.constant 0 : index
    %116 = vector.load %arg6[%c3_85, %c0_86, %c0_87] : memref<9x8x8xf32, #tpu.memory_space<vmem>>, vector<1x8x8xf32>
    %117 = vector.shape_cast %116 : vector<1x8x8xf32> to vector<8x8xf32>
    %cst_88 = arith.constant dense<0.000000e+00> : vector<8x256xf32>
    %118 = tpu.matmul %117, %115, %cst_88 {dimension_numbers = #tpu.dot_dimension_numbers<[1], [0], [0], [1], [0, 0, 1, 1], [], []>} : vector<8x8xf32>, vector<8x256xf32>, vector<8x256xf32> -> vector<8x256xf32>
    %119 = arith.addf %110, %118 : vector<8x256xf32>
    %c4_89 = arith.constant 4 : index
    %c0_90 = arith.constant 0 : index
    %c0_91 = arith.constant 0 : index
    %120 = vector.load %arg6[%c4_89, %c0_90, %c0_91] : memref<9x8x8xf32, #tpu.memory_space<vmem>>, vector<1x8x8xf32>
    %121 = vector.shape_cast %120 : vector<1x8x8xf32> to vector<8x8xf32>
    %cst_92 = arith.constant dense<0.000000e+00> : vector<8x256xf32>
    %122 = tpu.matmul %121, %82, %cst_92 {dimension_numbers = #tpu.dot_dimension_numbers<[1], [0], [0], [1], [0, 0, 1, 1], [], []>} : vector<8x8xf32>, vector<8x256xf32>, vector<8x256xf32> -> vector<8x256xf32>
    %123 = arith.addf %119, %122 : vector<8x256xf32>
    %c255_i32_93 = arith.constant 255 : i32
    %124 = tpu.dynamic_rotate %82 by %c255_i32_93 dim 1 : vector<8x256xf32>, i32 -> vector<8x256xf32>
    %c5_94 = arith.constant 5 : index
    %c0_95 = arith.constant 0 : index
    %c0_96 = arith.constant 0 : index
    %125 = vector.load %arg3[%c5_94, %c0_95, %c0_96] : memref<9x1x256xf32, #tpu.memory_space<vmem>>, vector<1x1x256xf32>
    %126 = vector.shape_cast %125 : vector<1x1x256xf32> to vector<1x256xf32>
    %127 = vector.broadcast %126 : vector<1x256xf32> to vector<8x256xf32>
    %128 = arith.mulf %124, %127 : vector<8x256xf32>
    %c5_97 = arith.constant 5 : index
    %c0_98 = arith.constant 0 : index
    %c0_99 = arith.constant 0 : index
    %129 = vector.load %arg6[%c5_97, %c0_98, %c0_99] : memref<9x8x8xf32, #tpu.memory_space<vmem>>, vector<1x8x8xf32>
    %130 = vector.shape_cast %129 : vector<1x8x8xf32> to vector<8x8xf32>
    %cst_100 = arith.constant dense<0.000000e+00> : vector<8x256xf32>
    %131 = tpu.matmul %130, %128, %cst_100 {dimension_numbers = #tpu.dot_dimension_numbers<[1], [0], [0], [1], [0, 0, 1, 1], [], []>} : vector<8x8xf32>, vector<8x256xf32>, vector<8x256xf32> -> vector<8x256xf32>
    %132 = arith.addf %123, %131 : vector<8x256xf32>
    %c241_i32_101 = arith.constant 241 : i32
    %133 = tpu.dynamic_rotate %82 by %c241_i32_101 dim 1 : vector<8x256xf32>, i32 -> vector<8x256xf32>
    %c6_102 = arith.constant 6 : index
    %c0_103 = arith.constant 0 : index
    %c0_104 = arith.constant 0 : index
    %134 = vector.load %arg3[%c6_102, %c0_103, %c0_104] : memref<9x1x256xf32, #tpu.memory_space<vmem>>, vector<1x1x256xf32>
    %135 = vector.shape_cast %134 : vector<1x1x256xf32> to vector<1x256xf32>
    %136 = vector.broadcast %135 : vector<1x256xf32> to vector<8x256xf32>
    %137 = arith.mulf %133, %136 : vector<8x256xf32>
    %c6_105 = arith.constant 6 : index
    %c0_106 = arith.constant 0 : index
    %c0_107 = arith.constant 0 : index
    %138 = vector.load %arg6[%c6_105, %c0_106, %c0_107] : memref<9x8x8xf32, #tpu.memory_space<vmem>>, vector<1x8x8xf32>
    %139 = vector.shape_cast %138 : vector<1x8x8xf32> to vector<8x8xf32>
    %cst_108 = arith.constant dense<0.000000e+00> : vector<8x256xf32>
    %140 = tpu.matmul %139, %137, %cst_108 {dimension_numbers = #tpu.dot_dimension_numbers<[1], [0], [0], [1], [0, 0, 1, 1], [], []>} : vector<8x8xf32>, vector<8x256xf32>, vector<8x256xf32> -> vector<8x256xf32>
    %141 = arith.addf %132, %140 : vector<8x256xf32>
    %c240_i32_109 = arith.constant 240 : i32
    %142 = tpu.dynamic_rotate %82 by %c240_i32_109 dim 1 : vector<8x256xf32>, i32 -> vector<8x256xf32>
    %c7_110 = arith.constant 7 : index
    %c0_111 = arith.constant 0 : index
    %c0_112 = arith.constant 0 : index
    %143 = vector.load %arg3[%c7_110, %c0_111, %c0_112] : memref<9x1x256xf32, #tpu.memory_space<vmem>>, vector<1x1x256xf32>
    %144 = vector.shape_cast %143 : vector<1x1x256xf32> to vector<1x256xf32>
    %145 = vector.broadcast %144 : vector<1x256xf32> to vector<8x256xf32>
    %146 = arith.mulf %142, %145 : vector<8x256xf32>
    %c7_113 = arith.constant 7 : index
    %c0_114 = arith.constant 0 : index
    %c0_115 = arith.constant 0 : index
    %147 = vector.load %arg6[%c7_113, %c0_114, %c0_115] : memref<9x8x8xf32, #tpu.memory_space<vmem>>, vector<1x8x8xf32>
    %148 = vector.shape_cast %147 : vector<1x8x8xf32> to vector<8x8xf32>
    %cst_116 = arith.constant dense<0.000000e+00> : vector<8x256xf32>
    %149 = tpu.matmul %148, %146, %cst_116 {dimension_numbers = #tpu.dot_dimension_numbers<[1], [0], [0], [1], [0, 0, 1, 1], [], []>} : vector<8x8xf32>, vector<8x256xf32>, vector<8x256xf32> -> vector<8x256xf32>
    %150 = arith.addf %141, %149 : vector<8x256xf32>
    %c239_i32_117 = arith.constant 239 : i32
    %151 = tpu.dynamic_rotate %82 by %c239_i32_117 dim 1 : vector<8x256xf32>, i32 -> vector<8x256xf32>
    %c8_118 = arith.constant 8 : index
    %c0_119 = arith.constant 0 : index
    %c0_120 = arith.constant 0 : index
    %152 = vector.load %arg3[%c8_118, %c0_119, %c0_120] : memref<9x1x256xf32, #tpu.memory_space<vmem>>, vector<1x1x256xf32>
    %153 = vector.shape_cast %152 : vector<1x1x256xf32> to vector<1x256xf32>
    %154 = vector.broadcast %153 : vector<1x256xf32> to vector<8x256xf32>
    %155 = arith.mulf %151, %154 : vector<8x256xf32>
    %c8_121 = arith.constant 8 : index
    %c0_122 = arith.constant 0 : index
    %c0_123 = arith.constant 0 : index
    %156 = vector.load %arg6[%c8_121, %c0_122, %c0_123] : memref<9x8x8xf32, #tpu.memory_space<vmem>>, vector<1x8x8xf32>
    %157 = vector.shape_cast %156 : vector<1x8x8xf32> to vector<8x8xf32>
    %cst_124 = arith.constant dense<0.000000e+00> : vector<8x256xf32>
    %158 = tpu.matmul %157, %155, %cst_124 {dimension_numbers = #tpu.dot_dimension_numbers<[1], [0], [0], [1], [0, 0, 1, 1], [], []>} : vector<8x8xf32>, vector<8x256xf32>, vector<8x256xf32> -> vector<8x256xf32>
    %159 = arith.addf %150, %158 : vector<8x256xf32>
    %c0_125 = arith.constant 0 : index
    %c0_126 = arith.constant 0 : index
    %160 = vector.load %arg7[%c0_125, %c0_126] : memref<8x1xf32, #tpu.memory_space<vmem>>, vector<8x1xf32>
    %161 = vector.broadcast %160 : vector<8x1xf32> to vector<8x256xf32>
    %162 = arith.addf %159, %161 : vector<8x256xf32>
    %cst_127 = arith.constant 0.000000e+00 : f32
    %163 = vector.broadcast %cst_127 : f32 to vector<8x256xf32>
    %164 = arith.maximumf %162, %163 : vector<8x256xf32>
    %cst_128 = arith.constant 0.000000e+00 : f32
    %165 = vector.broadcast %cst_128 : f32 to vector<2x256xf32>
    %c17_i32_129 = arith.constant 17 : i32
    %166 = tpu.dynamic_rotate %164 by %c17_i32_129 dim 1 : vector<8x256xf32>, i32 -> vector<8x256xf32>
    %c0_130 = arith.constant 0 : index
    %c0_131 = arith.constant 0 : index
    %c0_132 = arith.constant 0 : index
    %167 = vector.load %arg3[%c0_130, %c0_131, %c0_132] : memref<9x1x256xf32, #tpu.memory_space<vmem>>, vector<1x1x256xf32>
    %168 = vector.shape_cast %167 : vector<1x1x256xf32> to vector<1x256xf32>
    %169 = vector.broadcast %168 : vector<1x256xf32> to vector<8x256xf32>
    %170 = arith.mulf %166, %169 : vector<8x256xf32>
    %c0_133 = arith.constant 0 : index
    %c0_134 = arith.constant 0 : index
    %c0_135 = arith.constant 0 : index
    %171 = vector.load %arg8[%c0_133, %c0_134, %c0_135] : memref<9x2x8xf32, #tpu.memory_space<vmem>>, vector<1x2x8xf32>
    %172 = vector.shape_cast %171 : vector<1x2x8xf32> to vector<2x8xf32>
    %cst_136 = arith.constant dense<0.000000e+00> : vector<2x256xf32>
    %173 = tpu.matmul %172, %170, %cst_136 {dimension_numbers = #tpu.dot_dimension_numbers<[1], [0], [0], [1], [0, 0, 1, 1], [], []>} : vector<2x8xf32>, vector<8x256xf32>, vector<2x256xf32> -> vector<2x256xf32>
    %174 = arith.addf %165, %173 : vector<2x256xf32>
    %c16_i32_137 = arith.constant 16 : i32
    %175 = tpu.dynamic_rotate %164 by %c16_i32_137 dim 1 : vector<8x256xf32>, i32 -> vector<8x256xf32>
    %c1_138 = arith.constant 1 : index
    %c0_139 = arith.constant 0 : index
    %c0_140 = arith.constant 0 : index
    %176 = vector.load %arg3[%c1_138, %c0_139, %c0_140] : memref<9x1x256xf32, #tpu.memory_space<vmem>>, vector<1x1x256xf32>
    %177 = vector.shape_cast %176 : vector<1x1x256xf32> to vector<1x256xf32>
    %178 = vector.broadcast %177 : vector<1x256xf32> to vector<8x256xf32>
    %179 = arith.mulf %175, %178 : vector<8x256xf32>
    %c1_141 = arith.constant 1 : index
    %c0_142 = arith.constant 0 : index
    %c0_143 = arith.constant 0 : index
    %180 = vector.load %arg8[%c1_141, %c0_142, %c0_143] : memref<9x2x8xf32, #tpu.memory_space<vmem>>, vector<1x2x8xf32>
    %181 = vector.shape_cast %180 : vector<1x2x8xf32> to vector<2x8xf32>
    %cst_144 = arith.constant dense<0.000000e+00> : vector<2x256xf32>
    %182 = tpu.matmul %181, %179, %cst_144 {dimension_numbers = #tpu.dot_dimension_numbers<[1], [0], [0], [1], [0, 0, 1, 1], [], []>} : vector<2x8xf32>, vector<8x256xf32>, vector<2x256xf32> -> vector<2x256xf32>
    %183 = arith.addf %174, %182 : vector<2x256xf32>
    %c15_i32_145 = arith.constant 15 : i32
    %184 = tpu.dynamic_rotate %164 by %c15_i32_145 dim 1 : vector<8x256xf32>, i32 -> vector<8x256xf32>
    %c2_146 = arith.constant 2 : index
    %c0_147 = arith.constant 0 : index
    %c0_148 = arith.constant 0 : index
    %185 = vector.load %arg3[%c2_146, %c0_147, %c0_148] : memref<9x1x256xf32, #tpu.memory_space<vmem>>, vector<1x1x256xf32>
    %186 = vector.shape_cast %185 : vector<1x1x256xf32> to vector<1x256xf32>
    %187 = vector.broadcast %186 : vector<1x256xf32> to vector<8x256xf32>
    %188 = arith.mulf %184, %187 : vector<8x256xf32>
    %c2_149 = arith.constant 2 : index
    %c0_150 = arith.constant 0 : index
    %c0_151 = arith.constant 0 : index
    %189 = vector.load %arg8[%c2_149, %c0_150, %c0_151] : memref<9x2x8xf32, #tpu.memory_space<vmem>>, vector<1x2x8xf32>
    %190 = vector.shape_cast %189 : vector<1x2x8xf32> to vector<2x8xf32>
    %cst_152 = arith.constant dense<0.000000e+00> : vector<2x256xf32>
    %191 = tpu.matmul %190, %188, %cst_152 {dimension_numbers = #tpu.dot_dimension_numbers<[1], [0], [0], [1], [0, 0, 1, 1], [], []>} : vector<2x8xf32>, vector<8x256xf32>, vector<2x256xf32> -> vector<2x256xf32>
    %192 = arith.addf %183, %191 : vector<2x256xf32>
    %c1_i32_153 = arith.constant 1 : i32
    %193 = tpu.dynamic_rotate %164 by %c1_i32_153 dim 1 : vector<8x256xf32>, i32 -> vector<8x256xf32>
    %c3_154 = arith.constant 3 : index
    %c0_155 = arith.constant 0 : index
    %c0_156 = arith.constant 0 : index
    %194 = vector.load %arg3[%c3_154, %c0_155, %c0_156] : memref<9x1x256xf32, #tpu.memory_space<vmem>>, vector<1x1x256xf32>
    %195 = vector.shape_cast %194 : vector<1x1x256xf32> to vector<1x256xf32>
    %196 = vector.broadcast %195 : vector<1x256xf32> to vector<8x256xf32>
    %197 = arith.mulf %193, %196 : vector<8x256xf32>
    %c3_157 = arith.constant 3 : index
    %c0_158 = arith.constant 0 : index
    %c0_159 = arith.constant 0 : index
    %198 = vector.load %arg8[%c3_157, %c0_158, %c0_159] : memref<9x2x8xf32, #tpu.memory_space<vmem>>, vector<1x2x8xf32>
    %199 = vector.shape_cast %198 : vector<1x2x8xf32> to vector<2x8xf32>
    %cst_160 = arith.constant dense<0.000000e+00> : vector<2x256xf32>
    %200 = tpu.matmul %199, %197, %cst_160 {dimension_numbers = #tpu.dot_dimension_numbers<[1], [0], [0], [1], [0, 0, 1, 1], [], []>} : vector<2x8xf32>, vector<8x256xf32>, vector<2x256xf32> -> vector<2x256xf32>
    %201 = arith.addf %192, %200 : vector<2x256xf32>
    %c4_161 = arith.constant 4 : index
    %c0_162 = arith.constant 0 : index
    %c0_163 = arith.constant 0 : index
    %202 = vector.load %arg8[%c4_161, %c0_162, %c0_163] : memref<9x2x8xf32, #tpu.memory_space<vmem>>, vector<1x2x8xf32>
    %203 = vector.shape_cast %202 : vector<1x2x8xf32> to vector<2x8xf32>
    %cst_164 = arith.constant dense<0.000000e+00> : vector<2x256xf32>
    %204 = tpu.matmul %203, %164, %cst_164 {dimension_numbers = #tpu.dot_dimension_numbers<[1], [0], [0], [1], [0, 0, 1, 1], [], []>} : vector<2x8xf32>, vector<8x256xf32>, vector<2x256xf32> -> vector<2x256xf32>
    %205 = arith.addf %201, %204 : vector<2x256xf32>
    %c255_i32_165 = arith.constant 255 : i32
    %206 = tpu.dynamic_rotate %164 by %c255_i32_165 dim 1 : vector<8x256xf32>, i32 -> vector<8x256xf32>
    %c5_166 = arith.constant 5 : index
    %c0_167 = arith.constant 0 : index
    %c0_168 = arith.constant 0 : index
    %207 = vector.load %arg3[%c5_166, %c0_167, %c0_168] : memref<9x1x256xf32, #tpu.memory_space<vmem>>, vector<1x1x256xf32>
    %208 = vector.shape_cast %207 : vector<1x1x256xf32> to vector<1x256xf32>
    %209 = vector.broadcast %208 : vector<1x256xf32> to vector<8x256xf32>
    %210 = arith.mulf %206, %209 : vector<8x256xf32>
    %c5_169 = arith.constant 5 : index
    %c0_170 = arith.constant 0 : index
    %c0_171 = arith.constant 0 : index
    %211 = vector.load %arg8[%c5_169, %c0_170, %c0_171] : memref<9x2x8xf32, #tpu.memory_space<vmem>>, vector<1x2x8xf32>
    %212 = vector.shape_cast %211 : vector<1x2x8xf32> to vector<2x8xf32>
    %cst_172 = arith.constant dense<0.000000e+00> : vector<2x256xf32>
    %213 = tpu.matmul %212, %210, %cst_172 {dimension_numbers = #tpu.dot_dimension_numbers<[1], [0], [0], [1], [0, 0, 1, 1], [], []>} : vector<2x8xf32>, vector<8x256xf32>, vector<2x256xf32> -> vector<2x256xf32>
    %214 = arith.addf %205, %213 : vector<2x256xf32>
    %c241_i32_173 = arith.constant 241 : i32
    %215 = tpu.dynamic_rotate %164 by %c241_i32_173 dim 1 : vector<8x256xf32>, i32 -> vector<8x256xf32>
    %c6_174 = arith.constant 6 : index
    %c0_175 = arith.constant 0 : index
    %c0_176 = arith.constant 0 : index
    %216 = vector.load %arg3[%c6_174, %c0_175, %c0_176] : memref<9x1x256xf32, #tpu.memory_space<vmem>>, vector<1x1x256xf32>
    %217 = vector.shape_cast %216 : vector<1x1x256xf32> to vector<1x256xf32>
    %218 = vector.broadcast %217 : vector<1x256xf32> to vector<8x256xf32>
    %219 = arith.mulf %215, %218 : vector<8x256xf32>
    %c6_177 = arith.constant 6 : index
    %c0_178 = arith.constant 0 : index
    %c0_179 = arith.constant 0 : index
    %220 = vector.load %arg8[%c6_177, %c0_178, %c0_179] : memref<9x2x8xf32, #tpu.memory_space<vmem>>, vector<1x2x8xf32>
    %221 = vector.shape_cast %220 : vector<1x2x8xf32> to vector<2x8xf32>
    %cst_180 = arith.constant dense<0.000000e+00> : vector<2x256xf32>
    %222 = tpu.matmul %221, %219, %cst_180 {dimension_numbers = #tpu.dot_dimension_numbers<[1], [0], [0], [1], [0, 0, 1, 1], [], []>} : vector<2x8xf32>, vector<8x256xf32>, vector<2x256xf32> -> vector<2x256xf32>
    %223 = arith.addf %214, %222 : vector<2x256xf32>
    %c240_i32_181 = arith.constant 240 : i32
    %224 = tpu.dynamic_rotate %164 by %c240_i32_181 dim 1 : vector<8x256xf32>, i32 -> vector<8x256xf32>
    %c7_182 = arith.constant 7 : index
    %c0_183 = arith.constant 0 : index
    %c0_184 = arith.constant 0 : index
    %225 = vector.load %arg3[%c7_182, %c0_183, %c0_184] : memref<9x1x256xf32, #tpu.memory_space<vmem>>, vector<1x1x256xf32>
    %226 = vector.shape_cast %225 : vector<1x1x256xf32> to vector<1x256xf32>
    %227 = vector.broadcast %226 : vector<1x256xf32> to vector<8x256xf32>
    %228 = arith.mulf %224, %227 : vector<8x256xf32>
    %c7_185 = arith.constant 7 : index
    %c0_186 = arith.constant 0 : index
    %c0_187 = arith.constant 0 : index
    %229 = vector.load %arg8[%c7_185, %c0_186, %c0_187] : memref<9x2x8xf32, #tpu.memory_space<vmem>>, vector<1x2x8xf32>
    %230 = vector.shape_cast %229 : vector<1x2x8xf32> to vector<2x8xf32>
    %cst_188 = arith.constant dense<0.000000e+00> : vector<2x256xf32>
    %231 = tpu.matmul %230, %228, %cst_188 {dimension_numbers = #tpu.dot_dimension_numbers<[1], [0], [0], [1], [0, 0, 1, 1], [], []>} : vector<2x8xf32>, vector<8x256xf32>, vector<2x256xf32> -> vector<2x256xf32>
    %232 = arith.addf %223, %231 : vector<2x256xf32>
    %c239_i32_189 = arith.constant 239 : i32
    %233 = tpu.dynamic_rotate %164 by %c239_i32_189 dim 1 : vector<8x256xf32>, i32 -> vector<8x256xf32>
    %c8_190 = arith.constant 8 : index
    %c0_191 = arith.constant 0 : index
    %c0_192 = arith.constant 0 : index
    %234 = vector.load %arg3[%c8_190, %c0_191, %c0_192] : memref<9x1x256xf32, #tpu.memory_space<vmem>>, vector<1x1x256xf32>
    %235 = vector.shape_cast %234 : vector<1x1x256xf32> to vector<1x256xf32>
    %236 = vector.broadcast %235 : vector<1x256xf32> to vector<8x256xf32>
    %237 = arith.mulf %233, %236 : vector<8x256xf32>
    %c8_193 = arith.constant 8 : index
    %c0_194 = arith.constant 0 : index
    %c0_195 = arith.constant 0 : index
    %238 = vector.load %arg8[%c8_193, %c0_194, %c0_195] : memref<9x2x8xf32, #tpu.memory_space<vmem>>, vector<1x2x8xf32>
    %239 = vector.shape_cast %238 : vector<1x2x8xf32> to vector<2x8xf32>
    %cst_196 = arith.constant dense<0.000000e+00> : vector<2x256xf32>
    %240 = tpu.matmul %239, %237, %cst_196 {dimension_numbers = #tpu.dot_dimension_numbers<[1], [0], [0], [1], [0, 0, 1, 1], [], []>} : vector<2x8xf32>, vector<8x256xf32>, vector<2x256xf32> -> vector<2x256xf32>
    %241 = arith.addf %232, %240 : vector<2x256xf32>
    %c0_197 = arith.constant 0 : index
    %c0_198 = arith.constant 0 : index
    %242 = vector.load %arg9[%c0_197, %c0_198] : memref<2x1xf32, #tpu.memory_space<vmem>>, vector<2x1xf32>
    %243 = vector.broadcast %242 : vector<2x1xf32> to vector<2x256xf32>
    %244 = arith.addf %241, %243 : vector<2x256xf32>
    %245 = arith.truncf %244 : vector<2x256xf32> to vector<2x256xbf16>
    %c0_199 = arith.constant 0 : index
    %c0_200 = arith.constant 0 : index
    %246 = vector.load %arg10[%c0_199, %c0_200] : memref<256x256xbf16, #tpu.memory_space<vmem>>, vector<256x256xbf16>
    %cst_201 = arith.constant dense<0.000000e+00> : vector<2x256xf32>
    %247 = tpu.matmul %245, %246, %cst_201 {dimension_numbers = #tpu.dot_dimension_numbers<[1], [0], [0], [1], [0, 0, 1, 1], [], []>} : vector<2x256xbf16>, vector<256x256xbf16>, vector<2x256xf32> -> vector<2x256xf32>
    %c0_202 = arith.constant 0 : index
    %c0_203 = arith.constant 0 : index
    %248 = vector.load %arg2[%c0_202, %c0_203] : memref<2x256xf32, #tpu.memory_space<vmem>>, vector<2x256xf32>
    %249 = arith.addf %247, %248 : vector<2x256xf32>
    %c0_204 = arith.constant 0 : index
    %c0_205 = arith.constant 0 : index
    %250 = vector.load %arg11[%c0_204, %c0_205] : memref<2x256xf32, #tpu.memory_space<vmem>>, vector<2x256xf32>
    tpu.vector_store %arg11[%c0_204, %c0_205], %249 {strides = array<i32>} : memref<2x256xf32, #tpu.memory_space<vmem>>, vector<2x256xf32>,
    return
  }
  func.func @transform_0(%arg0: i32) -> (i32, i32) {
    %c0_i32 = arith.constant 0 : i32
    %c0_i32_0 = arith.constant 0 : i32
    %c0_i32_1 = arith.constant 0 : i32
    return %c0_i32, %c0_i32_0 : i32, i32
  }
  func.func @transform_1(%arg0: i32) -> (i32, i32) {
    %c0_i32 = arith.constant 0 : i32
    %c0_i32_0 = arith.constant 0 : i32
    %c0_i32_1 = arith.constant 0 : i32
    return %c0_i32, %c0_i32_0 : i32, i32
  }
  func.func @transform_2(%arg0: i32) -> (i32, i32, i32) {
    %c0_i32 = arith.constant 0 : i32
    %c0_i32_0 = arith.constant 0 : i32
    %c0_i32_1 = arith.constant 0 : i32
    %c0_i32_2 = arith.constant 0 : i32
    return %c0_i32, %c0_i32_0, %c0_i32_1 : i32, i32, i32
  }
  func.func @transform_3(%arg0: i32) -> (i32, i32, i32) {
    %c0_i32 = arith.constant 0 : i32
    %c0_i32_0 = arith.constant 0 : i32
    %c0_i32_1 = arith.constant 0 : i32
    %c0_i32_2 = arith.constant 0 : i32
    return %c0_i32, %c0_i32_0, %c0_i32_1 : i32, i32, i32
  }
  func.func @transform_4(%arg0: i32) -> (i32, i32) {
    %c0_i32 = arith.constant 0 : i32
    %c0_i32_0 = arith.constant 0 : i32
    %c0_i32_1 = arith.constant 0 : i32
    return %c0_i32, %c0_i32_0 : i32, i32
  }
  func.func @transform_5(%arg0: i32) -> (i32, i32, i32) {
    %c0_i32 = arith.constant 0 : i32
    %c0_i32_0 = arith.constant 0 : i32
    %c0_i32_1 = arith.constant 0 : i32
    %c0_i32_2 = arith.constant 0 : i32
    return %c0_i32, %c0_i32_0, %c0_i32_1 : i32, i32, i32
  }
  func.func @transform_6(%arg0: i32) -> (i32, i32) {
    %c0_i32 = arith.constant 0 : i32
    %c0_i32_0 = arith.constant 0 : i32
    %c0_i32_1 = arith.constant 0 : i32
    return %c0_i32, %c0_i32_0 : i32, i32
  }
  func.func @transform_7(%arg0: i32) -> (i32, i32, i32) {
    %c0_i32 = arith.constant 0 : i32
    %c0_i32_0 = arith.constant 0 : i32
    %c0_i32_1 = arith.constant 0 : i32
    %c0_i32_2 = arith.constant 0 : i32
    return %c0_i32, %c0_i32_0, %c0_i32_1 : i32, i32, i32
  }
  func.func @transform_8(%arg0: i32) -> (i32, i32) {
    %c0_i32 = arith.constant 0 : i32
    %c0_i32_0 = arith.constant 0 : i32
    %c0_i32_1 = arith.constant 0 : i32
    return %c0_i32, %c0_i32_0 : i32, i32
  }
  func.func @transform_9(%arg0: i32) -> (i32, i32) {
    %c0_i32 = arith.constant 0 : i32
    %c0_i32_0 = arith.constant 0 : i32
    %c0_i32_1 = arith.constant 0 : i32
    return %c0_i32, %c0_i32_0 : i32, i32
  }
  func.func @transform_10(%arg0: i32) -> (i32, i32) {
    %c0_i32 = arith.constant 0 : i32
    %c0_i32_0 = arith.constant 0 : i32
    %c0_i32_1 = arith.constant 0 : i32
    return %c0_i32, %c0_i32_0 : i32, i32
  }
}

module attributes {stable_mosaic.version = 11 : i64} {
  func.func @_fused_unet_kernel(%arg0: i32, %arg1: memref<2x256xf32, #tpu.memory_space<vmem>>, %arg2: memref<9x1x256xf32, #tpu.memory_space<vmem>>, %arg3: memref<9x8x2xf32, #tpu.memory_space<vmem>>, %arg4: memref<8x1xf32, #tpu.memory_space<vmem>>, %arg5: memref<9x8x8xf32, #tpu.memory_space<vmem>>, %arg6: memref<8x1xf32, #tpu.memory_space<vmem>>, %arg7: memref<9x2x8xf32, #tpu.memory_space<vmem>>, %arg8: memref<2x1xf32, #tpu.memory_space<vmem>>, %arg9: memref<2x256xf32, #tpu.memory_space<vmem>>) attributes {dimension_semantics = [#tpu.dimension_semantics<arbitrary>], iteration_bounds = array<i64: 1>, scalar_prefetch = 0 : i64, scratch_operands = 0 : i64, tpu.core_type = #tpu.core_type<tc>, window_params = [{pipeline_mode = #tpu.pipeline_mode<synchronous>, transform_indices = @transform_0, window_bounds = array<i64: 2, 256>}, {pipeline_mode = #tpu.pipeline_mode<synchronous>, transform_indices = @transform_1, window_bounds = array<i64: 9, 1, 256>}, {pipeline_mode = #tpu.pipeline_mode<synchronous>, transform_indices = @transform_2, window_bounds = array<i64: 9, 8, 2>}, {pipeline_mode = #tpu.pipeline_mode<synchronous>, transform_indices = @transform_3, window_bounds = array<i64: 8, 1>}, {pipeline_mode = #tpu.pipeline_mode<synchronous>, transform_indices = @transform_4, window_bounds = array<i64: 9, 8, 8>}, {pipeline_mode = #tpu.pipeline_mode<synchronous>, transform_indices = @transform_5, window_bounds = array<i64: 8, 1>}, {pipeline_mode = #tpu.pipeline_mode<synchronous>, transform_indices = @transform_6, window_bounds = array<i64: 9, 2, 8>}, {pipeline_mode = #tpu.pipeline_mode<synchronous>, transform_indices = @transform_7, window_bounds = array<i64: 2, 1>}, {pipeline_mode = #tpu.pipeline_mode<synchronous>, transform_indices = @transform_8, window_bounds = array<i64: 2, 256>}]} {
    %c0 = arith.constant 0 : index
    %c0_0 = arith.constant 0 : index
    %0 = vector.load %arg1[%c0, %c0_0] : memref<2x256xf32, #tpu.memory_space<vmem>>, vector<2x256xf32>
    %cst = arith.constant 0.000000e+00 : f32
    %1 = vector.broadcast %cst : f32 to vector<8x256xf32>
    %c17_i32 = arith.constant 17 : i32
    %2 = tpu.dynamic_rotate %0 by %c17_i32 dim 1 : vector<2x256xf32>, i32 -> vector<2x256xf32>
    %c0_1 = arith.constant 0 : index
    %c0_2 = arith.constant 0 : index
    %c0_3 = arith.constant 0 : index
    %3 = vector.load %arg2[%c0_1, %c0_2, %c0_3] : memref<9x1x256xf32, #tpu.memory_space<vmem>>, vector<1x1x256xf32>
    %4 = vector.shape_cast %3 : vector<1x1x256xf32> to vector<1x256xf32>
    %5 = vector.broadcast %4 : vector<1x256xf32> to vector<2x256xf32>
    %6 = arith.mulf %2, %5 : vector<2x256xf32>
    %c0_4 = arith.constant 0 : index
    %c0_5 = arith.constant 0 : index
    %c0_6 = arith.constant 0 : index
    %7 = vector.load %arg3[%c0_4, %c0_5, %c0_6] : memref<9x8x2xf32, #tpu.memory_space<vmem>>, vector<1x8x2xf32>
    %8 = vector.shape_cast %7 : vector<1x8x2xf32> to vector<8x2xf32>
    %cst_7 = arith.constant dense<0.000000e+00> : vector<8x256xf32>
    %9 = tpu.matmul %8, %6, %cst_7 {dimension_numbers = #tpu.dot_dimension_numbers<[1], [0], [0], [1], [0, 0, 1, 1], [], []>} : vector<8x2xf32>, vector<2x256xf32>, vector<8x256xf32> -> vector<8x256xf32>
    %10 = arith.addf %1, %9 : vector<8x256xf32>
    %c16_i32 = arith.constant 16 : i32
    %11 = tpu.dynamic_rotate %0 by %c16_i32 dim 1 : vector<2x256xf32>, i32 -> vector<2x256xf32>
    %c1 = arith.constant 1 : index
    %c0_8 = arith.constant 0 : index
    %c0_9 = arith.constant 0 : index
    %12 = vector.load %arg2[%c1, %c0_8, %c0_9] : memref<9x1x256xf32, #tpu.memory_space<vmem>>, vector<1x1x256xf32>
    %13 = vector.shape_cast %12 : vector<1x1x256xf32> to vector<1x256xf32>
    %14 = vector.broadcast %13 : vector<1x256xf32> to vector<2x256xf32>
    %15 = arith.mulf %11, %14 : vector<2x256xf32>
    %c1_10 = arith.constant 1 : index
    %c0_11 = arith.constant 0 : index
    %c0_12 = arith.constant 0 : index
    %16 = vector.load %arg3[%c1_10, %c0_11, %c0_12] : memref<9x8x2xf32, #tpu.memory_space<vmem>>, vector<1x8x2xf32>
    %17 = vector.shape_cast %16 : vector<1x8x2xf32> to vector<8x2xf32>
    %cst_13 = arith.constant dense<0.000000e+00> : vector<8x256xf32>
    %18 = tpu.matmul %17, %15, %cst_13 {dimension_numbers = #tpu.dot_dimension_numbers<[1], [0], [0], [1], [0, 0, 1, 1], [], []>} : vector<8x2xf32>, vector<2x256xf32>, vector<8x256xf32> -> vector<8x256xf32>
    %19 = arith.addf %10, %18 : vector<8x256xf32>
    %c15_i32 = arith.constant 15 : i32
    %20 = tpu.dynamic_rotate %0 by %c15_i32 dim 1 : vector<2x256xf32>, i32 -> vector<2x256xf32>
    %c2 = arith.constant 2 : index
    %c0_14 = arith.constant 0 : index
    %c0_15 = arith.constant 0 : index
    %21 = vector.load %arg2[%c2, %c0_14, %c0_15] : memref<9x1x256xf32, #tpu.memory_space<vmem>>, vector<1x1x256xf32>
    %22 = vector.shape_cast %21 : vector<1x1x256xf32> to vector<1x256xf32>
    %23 = vector.broadcast %22 : vector<1x256xf32> to vector<2x256xf32>
    %24 = arith.mulf %20, %23 : vector<2x256xf32>
    %c2_16 = arith.constant 2 : index
    %c0_17 = arith.constant 0 : index
    %c0_18 = arith.constant 0 : index
    %25 = vector.load %arg3[%c2_16, %c0_17, %c0_18] : memref<9x8x2xf32, #tpu.memory_space<vmem>>, vector<1x8x2xf32>
    %26 = vector.shape_cast %25 : vector<1x8x2xf32> to vector<8x2xf32>
    %cst_19 = arith.constant dense<0.000000e+00> : vector<8x256xf32>
    %27 = tpu.matmul %26, %24, %cst_19 {dimension_numbers = #tpu.dot_dimension_numbers<[1], [0], [0], [1], [0, 0, 1, 1], [], []>} : vector<8x2xf32>, vector<2x256xf32>, vector<8x256xf32> -> vector<8x256xf32>
    %28 = arith.addf %19, %27 : vector<8x256xf32>
    %c1_i32 = arith.constant 1 : i32
    %29 = tpu.dynamic_rotate %0 by %c1_i32 dim 1 : vector<2x256xf32>, i32 -> vector<2x256xf32>
    %c3 = arith.constant 3 : index
    %c0_20 = arith.constant 0 : index
    %c0_21 = arith.constant 0 : index
    %30 = vector.load %arg2[%c3, %c0_20, %c0_21] : memref<9x1x256xf32, #tpu.memory_space<vmem>>, vector<1x1x256xf32>
    %31 = vector.shape_cast %30 : vector<1x1x256xf32> to vector<1x256xf32>
    %32 = vector.broadcast %31 : vector<1x256xf32> to vector<2x256xf32>
    %33 = arith.mulf %29, %32 : vector<2x256xf32>
    %c3_22 = arith.constant 3 : index
    %c0_23 = arith.constant 0 : index
    %c0_24 = arith.constant 0 : index
    %34 = vector.load %arg3[%c3_22, %c0_23, %c0_24] : memref<9x8x2xf32, #tpu.memory_space<vmem>>, vector<1x8x2xf32>
    %35 = vector.shape_cast %34 : vector<1x8x2xf32> to vector<8x2xf32>
    %cst_25 = arith.constant dense<0.000000e+00> : vector<8x256xf32>
    %36 = tpu.matmul %35, %33, %cst_25 {dimension_numbers = #tpu.dot_dimension_numbers<[1], [0], [0], [1], [0, 0, 1, 1], [], []>} : vector<8x2xf32>, vector<2x256xf32>, vector<8x256xf32> -> vector<8x256xf32>
    %37 = arith.addf %28, %36 : vector<8x256xf32>
    %c4 = arith.constant 4 : index
    %c0_26 = arith.constant 0 : index
    %c0_27 = arith.constant 0 : index
    %38 = vector.load %arg3[%c4, %c0_26, %c0_27] : memref<9x8x2xf32, #tpu.memory_space<vmem>>, vector<1x8x2xf32>
    %39 = vector.shape_cast %38 : vector<1x8x2xf32> to vector<8x2xf32>
    %cst_28 = arith.constant dense<0.000000e+00> : vector<8x256xf32>
    %40 = tpu.matmul %39, %0, %cst_28 {dimension_numbers = #tpu.dot_dimension_numbers<[1], [0], [0], [1], [0, 0, 1, 1], [], []>} : vector<8x2xf32>, vector<2x256xf32>, vector<8x256xf32> -> vector<8x256xf32>
    %41 = arith.addf %37, %40 : vector<8x256xf32>
    %c255_i32 = arith.constant 255 : i32
    %42 = tpu.dynamic_rotate %0 by %c255_i32 dim 1 : vector<2x256xf32>, i32 -> vector<2x256xf32>
    %c5 = arith.constant 5 : index
    %c0_29 = arith.constant 0 : index
    %c0_30 = arith.constant 0 : index
    %43 = vector.load %arg2[%c5, %c0_29, %c0_30] : memref<9x1x256xf32, #tpu.memory_space<vmem>>, vector<1x1x256xf32>
    %44 = vector.shape_cast %43 : vector<1x1x256xf32> to vector<1x256xf32>
    %45 = vector.broadcast %44 : vector<1x256xf32> to vector<2x256xf32>
    %46 = arith.mulf %42, %45 : vector<2x256xf32>
    %c5_31 = arith.constant 5 : index
    %c0_32 = arith.constant 0 : index
    %c0_33 = arith.constant 0 : index
    %47 = vector.load %arg3[%c5_31, %c0_32, %c0_33] : memref<9x8x2xf32, #tpu.memory_space<vmem>>, vector<1x8x2xf32>
    %48 = vector.shape_cast %47 : vector<1x8x2xf32> to vector<8x2xf32>
    %cst_34 = arith.constant dense<0.000000e+00> : vector<8x256xf32>
    %49 = tpu.matmul %48, %46, %cst_34 {dimension_numbers = #tpu.dot_dimension_numbers<[1], [0], [0], [1], [0, 0, 1, 1], [], []>} : vector<8x2xf32>, vector<2x256xf32>, vector<8x256xf32> -> vector<8x256xf32>
    %50 = arith.addf %41, %49 : vector<8x256xf32>
    %c241_i32 = arith.constant 241 : i32
    %51 = tpu.dynamic_rotate %0 by %c241_i32 dim 1 : vector<2x256xf32>, i32 -> vector<2x256xf32>
    %c6 = arith.constant 6 : index
    %c0_35 = arith.constant 0 : index
    %c0_36 = arith.constant 0 : index
    %52 = vector.load %arg2[%c6, %c0_35, %c0_36] : memref<9x1x256xf32, #tpu.memory_space<vmem>>, vector<1x1x256xf32>
    %53 = vector.shape_cast %52 : vector<1x1x256xf32> to vector<1x256xf32>
    %54 = vector.broadcast %53 : vector<1x256xf32> to vector<2x256xf32>
    %55 = arith.mulf %51, %54 : vector<2x256xf32>
    %c6_37 = arith.constant 6 : index
    %c0_38 = arith.constant 0 : index
    %c0_39 = arith.constant 0 : index
    %56 = vector.load %arg3[%c6_37, %c0_38, %c0_39] : memref<9x8x2xf32, #tpu.memory_space<vmem>>, vector<1x8x2xf32>
    %57 = vector.shape_cast %56 : vector<1x8x2xf32> to vector<8x2xf32>
    %cst_40 = arith.constant dense<0.000000e+00> : vector<8x256xf32>
    %58 = tpu.matmul %57, %55, %cst_40 {dimension_numbers = #tpu.dot_dimension_numbers<[1], [0], [0], [1], [0, 0, 1, 1], [], []>} : vector<8x2xf32>, vector<2x256xf32>, vector<8x256xf32> -> vector<8x256xf32>
    %59 = arith.addf %50, %58 : vector<8x256xf32>
    %c240_i32 = arith.constant 240 : i32
    %60 = tpu.dynamic_rotate %0 by %c240_i32 dim 1 : vector<2x256xf32>, i32 -> vector<2x256xf32>
    %c7 = arith.constant 7 : index
    %c0_41 = arith.constant 0 : index
    %c0_42 = arith.constant 0 : index
    %61 = vector.load %arg2[%c7, %c0_41, %c0_42] : memref<9x1x256xf32, #tpu.memory_space<vmem>>, vector<1x1x256xf32>
    %62 = vector.shape_cast %61 : vector<1x1x256xf32> to vector<1x256xf32>
    %63 = vector.broadcast %62 : vector<1x256xf32> to vector<2x256xf32>
    %64 = arith.mulf %60, %63 : vector<2x256xf32>
    %c7_43 = arith.constant 7 : index
    %c0_44 = arith.constant 0 : index
    %c0_45 = arith.constant 0 : index
    %65 = vector.load %arg3[%c7_43, %c0_44, %c0_45] : memref<9x8x2xf32, #tpu.memory_space<vmem>>, vector<1x8x2xf32>
    %66 = vector.shape_cast %65 : vector<1x8x2xf32> to vector<8x2xf32>
    %cst_46 = arith.constant dense<0.000000e+00> : vector<8x256xf32>
    %67 = tpu.matmul %66, %64, %cst_46 {dimension_numbers = #tpu.dot_dimension_numbers<[1], [0], [0], [1], [0, 0, 1, 1], [], []>} : vector<8x2xf32>, vector<2x256xf32>, vector<8x256xf32> -> vector<8x256xf32>
    %68 = arith.addf %59, %67 : vector<8x256xf32>
    %c239_i32 = arith.constant 239 : i32
    %69 = tpu.dynamic_rotate %0 by %c239_i32 dim 1 : vector<2x256xf32>, i32 -> vector<2x256xf32>
    %c8 = arith.constant 8 : index
    %c0_47 = arith.constant 0 : index
    %c0_48 = arith.constant 0 : index
    %70 = vector.load %arg2[%c8, %c0_47, %c0_48] : memref<9x1x256xf32, #tpu.memory_space<vmem>>, vector<1x1x256xf32>
    %71 = vector.shape_cast %70 : vector<1x1x256xf32> to vector<1x256xf32>
    %72 = vector.broadcast %71 : vector<1x256xf32> to vector<2x256xf32>
    %73 = arith.mulf %69, %72 : vector<2x256xf32>
    %c8_49 = arith.constant 8 : index
    %c0_50 = arith.constant 0 : index
    %c0_51 = arith.constant 0 : index
    %74 = vector.load %arg3[%c8_49, %c0_50, %c0_51] : memref<9x8x2xf32, #tpu.memory_space<vmem>>, vector<1x8x2xf32>
    %75 = vector.shape_cast %74 : vector<1x8x2xf32> to vector<8x2xf32>
    %cst_52 = arith.constant dense<0.000000e+00> : vector<8x256xf32>
    %76 = tpu.matmul %75, %73, %cst_52 {dimension_numbers = #tpu.dot_dimension_numbers<[1], [0], [0], [1], [0, 0, 1, 1], [], []>} : vector<8x2xf32>, vector<2x256xf32>, vector<8x256xf32> -> vector<8x256xf32>
    %77 = arith.addf %68, %76 : vector<8x256xf32>
    %c0_53 = arith.constant 0 : index
    %c0_54 = arith.constant 0 : index
    %78 = vector.load %arg4[%c0_53, %c0_54] : memref<8x1xf32, #tpu.memory_space<vmem>>, vector<8x1xf32>
    %79 = vector.broadcast %78 : vector<8x1xf32> to vector<8x256xf32>
    %80 = arith.addf %77, %79 : vector<8x256xf32>
    %cst_55 = arith.constant 0.000000e+00 : f32
    %81 = vector.broadcast %cst_55 : f32 to vector<8x256xf32>
    %82 = arith.maximumf %80, %81 : vector<8x256xf32>
    %cst_56 = arith.constant 0.000000e+00 : f32
    %83 = vector.broadcast %cst_56 : f32 to vector<8x256xf32>
    %c17_i32_57 = arith.constant 17 : i32
    %84 = tpu.dynamic_rotate %82 by %c17_i32_57 dim 1 : vector<8x256xf32>, i32 -> vector<8x256xf32>
    %c0_58 = arith.constant 0 : index
    %c0_59 = arith.constant 0 : index
    %c0_60 = arith.constant 0 : index
    %85 = vector.load %arg2[%c0_58, %c0_59, %c0_60] : memref<9x1x256xf32, #tpu.memory_space<vmem>>, vector<1x1x256xf32>
    %86 = vector.shape_cast %85 : vector<1x1x256xf32> to vector<1x256xf32>
    %87 = vector.broadcast %86 : vector<1x256xf32> to vector<8x256xf32>
    %88 = arith.mulf %84, %87 : vector<8x256xf32>
    %c0_61 = arith.constant 0 : index
    %c0_62 = arith.constant 0 : index
    %c0_63 = arith.constant 0 : index
    %89 = vector.load %arg5[%c0_61, %c0_62, %c0_63] : memref<9x8x8xf32, #tpu.memory_space<vmem>>, vector<1x8x8xf32>
    %90 = vector.shape_cast %89 : vector<1x8x8xf32> to vector<8x8xf32>
    %cst_64 = arith.constant dense<0.000000e+00> : vector<8x256xf32>
    %91 = tpu.matmul %90, %88, %cst_64 {dimension_numbers = #tpu.dot_dimension_numbers<[1], [0], [0], [1], [0, 0, 1, 1], [], []>} : vector<8x8xf32>, vector<8x256xf32>, vector<8x256xf32> -> vector<8x256xf32>
    %92 = arith.addf %83, %91 : vector<8x256xf32>
    %c16_i32_65 = arith.constant 16 : i32
    %93 = tpu.dynamic_rotate %82 by %c16_i32_65 dim 1 : vector<8x256xf32>, i32 -> vector<8x256xf32>
    %c1_66 = arith.constant 1 : index
    %c0_67 = arith.constant 0 : index
    %c0_68 = arith.constant 0 : index
    %94 = vector.load %arg2[%c1_66, %c0_67, %c0_68] : memref<9x1x256xf32, #tpu.memory_space<vmem>>, vector<1x1x256xf32>
    %95 = vector.shape_cast %94 : vector<1x1x256xf32> to vector<1x256xf32>
    %96 = vector.broadcast %95 : vector<1x256xf32> to vector<8x256xf32>
    %97 = arith.mulf %93, %96 : vector<8x256xf32>
    %c1_69 = arith.constant 1 : index
    %c0_70 = arith.constant 0 : index
    %c0_71 = arith.constant 0 : index
    %98 = vector.load %arg5[%c1_69, %c0_70, %c0_71] : memref<9x8x8xf32, #tpu.memory_space<vmem>>, vector<1x8x8xf32>
    %99 = vector.shape_cast %98 : vector<1x8x8xf32> to vector<8x8xf32>
    %cst_72 = arith.constant dense<0.000000e+00> : vector<8x256xf32>
    %100 = tpu.matmul %99, %97, %cst_72 {dimension_numbers = #tpu.dot_dimension_numbers<[1], [0], [0], [1], [0, 0, 1, 1], [], []>} : vector<8x8xf32>, vector<8x256xf32>, vector<8x256xf32> -> vector<8x256xf32>
    %101 = arith.addf %92, %100 : vector<8x256xf32>
    %c15_i32_73 = arith.constant 15 : i32
    %102 = tpu.dynamic_rotate %82 by %c15_i32_73 dim 1 : vector<8x256xf32>, i32 -> vector<8x256xf32>
    %c2_74 = arith.constant 2 : index
    %c0_75 = arith.constant 0 : index
    %c0_76 = arith.constant 0 : index
    %103 = vector.load %arg2[%c2_74, %c0_75, %c0_76] : memref<9x1x256xf32, #tpu.memory_space<vmem>>, vector<1x1x256xf32>
    %104 = vector.shape_cast %103 : vector<1x1x256xf32> to vector<1x256xf32>
    %105 = vector.broadcast %104 : vector<1x256xf32> to vector<8x256xf32>
    %106 = arith.mulf %102, %105 : vector<8x256xf32>
    %c2_77 = arith.constant 2 : index
    %c0_78 = arith.constant 0 : index
    %c0_79 = arith.constant 0 : index
    %107 = vector.load %arg5[%c2_77, %c0_78, %c0_79] : memref<9x8x8xf32, #tpu.memory_space<vmem>>, vector<1x8x8xf32>
    %108 = vector.shape_cast %107 : vector<1x8x8xf32> to vector<8x8xf32>
    %cst_80 = arith.constant dense<0.000000e+00> : vector<8x256xf32>
    %109 = tpu.matmul %108, %106, %cst_80 {dimension_numbers = #tpu.dot_dimension_numbers<[1], [0], [0], [1], [0, 0, 1, 1], [], []>} : vector<8x8xf32>, vector<8x256xf32>, vector<8x256xf32> -> vector<8x256xf32>
    %110 = arith.addf %101, %109 : vector<8x256xf32>
    %c1_i32_81 = arith.constant 1 : i32
    %111 = tpu.dynamic_rotate %82 by %c1_i32_81 dim 1 : vector<8x256xf32>, i32 -> vector<8x256xf32>
    %c3_82 = arith.constant 3 : index
    %c0_83 = arith.constant 0 : index
    %c0_84 = arith.constant 0 : index
    %112 = vector.load %arg2[%c3_82, %c0_83, %c0_84] : memref<9x1x256xf32, #tpu.memory_space<vmem>>, vector<1x1x256xf32>
    %113 = vector.shape_cast %112 : vector<1x1x256xf32> to vector<1x256xf32>
    %114 = vector.broadcast %113 : vector<1x256xf32> to vector<8x256xf32>
    %115 = arith.mulf %111, %114 : vector<8x256xf32>
    %c3_85 = arith.constant 3 : index
    %c0_86 = arith.constant 0 : index
    %c0_87 = arith.constant 0 : index
    %116 = vector.load %arg5[%c3_85, %c0_86, %c0_87] : memref<9x8x8xf32, #tpu.memory_space<vmem>>, vector<1x8x8xf32>
    %117 = vector.shape_cast %116 : vector<1x8x8xf32> to vector<8x8xf32>
    %cst_88 = arith.constant dense<0.000000e+00> : vector<8x256xf32>
    %118 = tpu.matmul %117, %115, %cst_88 {dimension_numbers = #tpu.dot_dimension_numbers<[1], [0], [0], [1], [0, 0, 1, 1], [], []>} : vector<8x8xf32>, vector<8x256xf32>, vector<8x256xf32> -> vector<8x256xf32>
    %119 = arith.addf %110, %118 : vector<8x256xf32>
    %c4_89 = arith.constant 4 : index
    %c0_90 = arith.constant 0 : index
    %c0_91 = arith.constant 0 : index
    %120 = vector.load %arg5[%c4_89, %c0_90, %c0_91] : memref<9x8x8xf32, #tpu.memory_space<vmem>>, vector<1x8x8xf32>
    %121 = vector.shape_cast %120 : vector<1x8x8xf32> to vector<8x8xf32>
    %cst_92 = arith.constant dense<0.000000e+00> : vector<8x256xf32>
    %122 = tpu.matmul %121, %82, %cst_92 {dimension_numbers = #tpu.dot_dimension_numbers<[1], [0], [0], [1], [0, 0, 1, 1], [], []>} : vector<8x8xf32>, vector<8x256xf32>, vector<8x256xf32> -> vector<8x256xf32>
    %123 = arith.addf %119, %122 : vector<8x256xf32>
    %c255_i32_93 = arith.constant 255 : i32
    %124 = tpu.dynamic_rotate %82 by %c255_i32_93 dim 1 : vector<8x256xf32>, i32 -> vector<8x256xf32>
    %c5_94 = arith.constant 5 : index
    %c0_95 = arith.constant 0 : index
    %c0_96 = arith.constant 0 : index
    %125 = vector.load %arg2[%c5_94, %c0_95, %c0_96] : memref<9x1x256xf32, #tpu.memory_space<vmem>>, vector<1x1x256xf32>
    %126 = vector.shape_cast %125 : vector<1x1x256xf32> to vector<1x256xf32>
    %127 = vector.broadcast %126 : vector<1x256xf32> to vector<8x256xf32>
    %128 = arith.mulf %124, %127 : vector<8x256xf32>
    %c5_97 = arith.constant 5 : index
    %c0_98 = arith.constant 0 : index
    %c0_99 = arith.constant 0 : index
    %129 = vector.load %arg5[%c5_97, %c0_98, %c0_99] : memref<9x8x8xf32, #tpu.memory_space<vmem>>, vector<1x8x8xf32>
    %130 = vector.shape_cast %129 : vector<1x8x8xf32> to vector<8x8xf32>
    %cst_100 = arith.constant dense<0.000000e+00> : vector<8x256xf32>
    %131 = tpu.matmul %130, %128, %cst_100 {dimension_numbers = #tpu.dot_dimension_numbers<[1], [0], [0], [1], [0, 0, 1, 1], [], []>} : vector<8x8xf32>, vector<8x256xf32>, vector<8x256xf32> -> vector<8x256xf32>
    %132 = arith.addf %123, %131 : vector<8x256xf32>
    %c241_i32_101 = arith.constant 241 : i32
    %133 = tpu.dynamic_rotate %82 by %c241_i32_101 dim 1 : vector<8x256xf32>, i32 -> vector<8x256xf32>
    %c6_102 = arith.constant 6 : index
    %c0_103 = arith.constant 0 : index
    %c0_104 = arith.constant 0 : index
    %134 = vector.load %arg2[%c6_102, %c0_103, %c0_104] : memref<9x1x256xf32, #tpu.memory_space<vmem>>, vector<1x1x256xf32>
    %135 = vector.shape_cast %134 : vector<1x1x256xf32> to vector<1x256xf32>
    %136 = vector.broadcast %135 : vector<1x256xf32> to vector<8x256xf32>
    %137 = arith.mulf %133, %136 : vector<8x256xf32>
    %c6_105 = arith.constant 6 : index
    %c0_106 = arith.constant 0 : index
    %c0_107 = arith.constant 0 : index
    %138 = vector.load %arg5[%c6_105, %c0_106, %c0_107] : memref<9x8x8xf32, #tpu.memory_space<vmem>>, vector<1x8x8xf32>
    %139 = vector.shape_cast %138 : vector<1x8x8xf32> to vector<8x8xf32>
    %cst_108 = arith.constant dense<0.000000e+00> : vector<8x256xf32>
    %140 = tpu.matmul %139, %137, %cst_108 {dimension_numbers = #tpu.dot_dimension_numbers<[1], [0], [0], [1], [0, 0, 1, 1], [], []>} : vector<8x8xf32>, vector<8x256xf32>, vector<8x256xf32> -> vector<8x256xf32>
    %141 = arith.addf %132, %140 : vector<8x256xf32>
    %c240_i32_109 = arith.constant 240 : i32
    %142 = tpu.dynamic_rotate %82 by %c240_i32_109 dim 1 : vector<8x256xf32>, i32 -> vector<8x256xf32>
    %c7_110 = arith.constant 7 : index
    %c0_111 = arith.constant 0 : index
    %c0_112 = arith.constant 0 : index
    %143 = vector.load %arg2[%c7_110, %c0_111, %c0_112] : memref<9x1x256xf32, #tpu.memory_space<vmem>>, vector<1x1x256xf32>
    %144 = vector.shape_cast %143 : vector<1x1x256xf32> to vector<1x256xf32>
    %145 = vector.broadcast %144 : vector<1x256xf32> to vector<8x256xf32>
    %146 = arith.mulf %142, %145 : vector<8x256xf32>
    %c7_113 = arith.constant 7 : index
    %c0_114 = arith.constant 0 : index
    %c0_115 = arith.constant 0 : index
    %147 = vector.load %arg5[%c7_113, %c0_114, %c0_115] : memref<9x8x8xf32, #tpu.memory_space<vmem>>, vector<1x8x8xf32>
    %148 = vector.shape_cast %147 : vector<1x8x8xf32> to vector<8x8xf32>
    %cst_116 = arith.constant dense<0.000000e+00> : vector<8x256xf32>
    %149 = tpu.matmul %148, %146, %cst_116 {dimension_numbers = #tpu.dot_dimension_numbers<[1], [0], [0], [1], [0, 0, 1, 1], [], []>} : vector<8x8xf32>, vector<8x256xf32>, vector<8x256xf32> -> vector<8x256xf32>
    %150 = arith.addf %141, %149 : vector<8x256xf32>
    %c239_i32_117 = arith.constant 239 : i32
    %151 = tpu.dynamic_rotate %82 by %c239_i32_117 dim 1 : vector<8x256xf32>, i32 -> vector<8x256xf32>
    %c8_118 = arith.constant 8 : index
    %c0_119 = arith.constant 0 : index
    %c0_120 = arith.constant 0 : index
    %152 = vector.load %arg2[%c8_118, %c0_119, %c0_120] : memref<9x1x256xf32, #tpu.memory_space<vmem>>, vector<1x1x256xf32>
    %153 = vector.shape_cast %152 : vector<1x1x256xf32> to vector<1x256xf32>
    %154 = vector.broadcast %153 : vector<1x256xf32> to vector<8x256xf32>
    %155 = arith.mulf %151, %154 : vector<8x256xf32>
    %c8_121 = arith.constant 8 : index
    %c0_122 = arith.constant 0 : index
    %c0_123 = arith.constant 0 : index
    %156 = vector.load %arg5[%c8_121, %c0_122, %c0_123] : memref<9x8x8xf32, #tpu.memory_space<vmem>>, vector<1x8x8xf32>
    %157 = vector.shape_cast %156 : vector<1x8x8xf32> to vector<8x8xf32>
    %cst_124 = arith.constant dense<0.000000e+00> : vector<8x256xf32>
    %158 = tpu.matmul %157, %155, %cst_124 {dimension_numbers = #tpu.dot_dimension_numbers<[1], [0], [0], [1], [0, 0, 1, 1], [], []>} : vector<8x8xf32>, vector<8x256xf32>, vector<8x256xf32> -> vector<8x256xf32>
    %159 = arith.addf %150, %158 : vector<8x256xf32>
    %c0_125 = arith.constant 0 : index
    %c0_126 = arith.constant 0 : index
    %160 = vector.load %arg6[%c0_125, %c0_126] : memref<8x1xf32, #tpu.memory_space<vmem>>, vector<8x1xf32>
    %161 = vector.broadcast %160 : vector<8x1xf32> to vector<8x256xf32>
    %162 = arith.addf %159, %161 : vector<8x256xf32>
    %cst_127 = arith.constant 0.000000e+00 : f32
    %163 = vector.broadcast %cst_127 : f32 to vector<8x256xf32>
    %164 = arith.maximumf %162, %163 : vector<8x256xf32>
    %cst_128 = arith.constant 0.000000e+00 : f32
    %165 = vector.broadcast %cst_128 : f32 to vector<2x256xf32>
    %c17_i32_129 = arith.constant 17 : i32
    %166 = tpu.dynamic_rotate %164 by %c17_i32_129 dim 1 : vector<8x256xf32>, i32 -> vector<8x256xf32>
    %c0_130 = arith.constant 0 : index
    %c0_131 = arith.constant 0 : index
    %c0_132 = arith.constant 0 : index
    %167 = vector.load %arg2[%c0_130, %c0_131, %c0_132] : memref<9x1x256xf32, #tpu.memory_space<vmem>>, vector<1x1x256xf32>
    %168 = vector.shape_cast %167 : vector<1x1x256xf32> to vector<1x256xf32>
    %169 = vector.broadcast %168 : vector<1x256xf32> to vector<8x256xf32>
    %170 = arith.mulf %166, %169 : vector<8x256xf32>
    %c0_133 = arith.constant 0 : index
    %c0_134 = arith.constant 0 : index
    %c0_135 = arith.constant 0 : index
    %171 = vector.load %arg7[%c0_133, %c0_134, %c0_135] : memref<9x2x8xf32, #tpu.memory_space<vmem>>, vector<1x2x8xf32>
    %172 = vector.shape_cast %171 : vector<1x2x8xf32> to vector<2x8xf32>
    %cst_136 = arith.constant dense<0.000000e+00> : vector<2x256xf32>
    %173 = tpu.matmul %172, %170, %cst_136 {dimension_numbers = #tpu.dot_dimension_numbers<[1], [0], [0], [1], [0, 0, 1, 1], [], []>} : vector<2x8xf32>, vector<8x256xf32>, vector<2x256xf32> -> vector<2x256xf32>
    %174 = arith.addf %165, %173 : vector<2x256xf32>
    %c16_i32_137 = arith.constant 16 : i32
    %175 = tpu.dynamic_rotate %164 by %c16_i32_137 dim 1 : vector<8x256xf32>, i32 -> vector<8x256xf32>
    %c1_138 = arith.constant 1 : index
    %c0_139 = arith.constant 0 : index
    %c0_140 = arith.constant 0 : index
    %176 = vector.load %arg2[%c1_138, %c0_139, %c0_140] : memref<9x1x256xf32, #tpu.memory_space<vmem>>, vector<1x1x256xf32>
    %177 = vector.shape_cast %176 : vector<1x1x256xf32> to vector<1x256xf32>
    %178 = vector.broadcast %177 : vector<1x256xf32> to vector<8x256xf32>
    %179 = arith.mulf %175, %178 : vector<8x256xf32>
    %c1_141 = arith.constant 1 : index
    %c0_142 = arith.constant 0 : index
    %c0_143 = arith.constant 0 : index
    %180 = vector.load %arg7[%c1_141, %c0_142, %c0_143] : memref<9x2x8xf32, #tpu.memory_space<vmem>>, vector<1x2x8xf32>
    %181 = vector.shape_cast %180 : vector<1x2x8xf32> to vector<2x8xf32>
    %cst_144 = arith.constant dense<0.000000e+00> : vector<2x256xf32>
    %182 = tpu.matmul %181, %179, %cst_144 {dimension_numbers = #tpu.dot_dimension_numbers<[1], [0], [0], [1], [0, 0, 1, 1], [], []>} : vector<2x8xf32>, vector<8x256xf32>, vector<2x256xf32> -> vector<2x256xf32>
    %183 = arith.addf %174, %182 : vector<2x256xf32>
    %c15_i32_145 = arith.constant 15 : i32
    %184 = tpu.dynamic_rotate %164 by %c15_i32_145 dim 1 : vector<8x256xf32>, i32 -> vector<8x256xf32>
    %c2_146 = arith.constant 2 : index
    %c0_147 = arith.constant 0 : index
    %c0_148 = arith.constant 0 : index
    %185 = vector.load %arg2[%c2_146, %c0_147, %c0_148] : memref<9x1x256xf32, #tpu.memory_space<vmem>>, vector<1x1x256xf32>
    %186 = vector.shape_cast %185 : vector<1x1x256xf32> to vector<1x256xf32>
    %187 = vector.broadcast %186 : vector<1x256xf32> to vector<8x256xf32>
    %188 = arith.mulf %184, %187 : vector<8x256xf32>
    %c2_149 = arith.constant 2 : index
    %c0_150 = arith.constant 0 : index
    %c0_151 = arith.constant 0 : index
    %189 = vector.load %arg7[%c2_149, %c0_150, %c0_151] : memref<9x2x8xf32, #tpu.memory_space<vmem>>, vector<1x2x8xf32>
    %190 = vector.shape_cast %189 : vector<1x2x8xf32> to vector<2x8xf32>
    %cst_152 = arith.constant dense<0.000000e+00> : vector<2x256xf32>
    %191 = tpu.matmul %190, %188, %cst_152 {dimension_numbers = #tpu.dot_dimension_numbers<[1], [0], [0], [1], [0, 0, 1, 1], [], []>} : vector<2x8xf32>, vector<8x256xf32>, vector<2x256xf32> -> vector<2x256xf32>
    %192 = arith.addf %183, %191 : vector<2x256xf32>
    %c1_i32_153 = arith.constant 1 : i32
    %193 = tpu.dynamic_rotate %164 by %c1_i32_153 dim 1 : vector<8x256xf32>, i32 -> vector<8x256xf32>
    %c3_154 = arith.constant 3 : index
    %c0_155 = arith.constant 0 : index
    %c0_156 = arith.constant 0 : index
    %194 = vector.load %arg2[%c3_154, %c0_155, %c0_156] : memref<9x1x256xf32, #tpu.memory_space<vmem>>, vector<1x1x256xf32>
    %195 = vector.shape_cast %194 : vector<1x1x256xf32> to vector<1x256xf32>
    %196 = vector.broadcast %195 : vector<1x256xf32> to vector<8x256xf32>
    %197 = arith.mulf %193, %196 : vector<8x256xf32>
    %c3_157 = arith.constant 3 : index
    %c0_158 = arith.constant 0 : index
    %c0_159 = arith.constant 0 : index
    %198 = vector.load %arg7[%c3_157, %c0_158, %c0_159] : memref<9x2x8xf32, #tpu.memory_space<vmem>>, vector<1x2x8xf32>
    %199 = vector.shape_cast %198 : vector<1x2x8xf32> to vector<2x8xf32>
    %cst_160 = arith.constant dense<0.000000e+00> : vector<2x256xf32>
    %200 = tpu.matmul %199, %197, %cst_160 {dimension_numbers = #tpu.dot_dimension_numbers<[1], [0], [0], [1], [0, 0, 1, 1], [], []>} : vector<2x8xf32>, vector<8x256xf32>, vector<2x256xf32> -> vector<2x256xf32>
    %201 = arith.addf %192, %200 : vector<2x256xf32>
    %c4_161 = arith.constant 4 : index
    %c0_162 = arith.constant 0 : index
    %c0_163 = arith.constant 0 : index
    %202 = vector.load %arg7[%c4_161, %c0_162, %c0_163] : memref<9x2x8xf32, #tpu.memory_space<vmem>>, vector<1x2x8xf32>
    %203 = vector.shape_cast %202 : vector<1x2x8xf32> to vector<2x8xf32>
    %cst_164 = arith.constant dense<0.000000e+00> : vector<2x256xf32>
    %204 = tpu.matmul %203, %164, %cst_164 {dimension_numbers = #tpu.dot_dimension_numbers<[1], [0], [0], [1], [0, 0, 1, 1], [], []>} : vector<2x8xf32>, vector<8x256xf32>, vector<2x256xf32> -> vector<2x256xf32>
    %205 = arith.addf %201, %204 : vector<2x256xf32>
    %c255_i32_165 = arith.constant 255 : i32
    %206 = tpu.dynamic_rotate %164 by %c255_i32_165 dim 1 : vector<8x256xf32>, i32 -> vector<8x256xf32>
    %c5_166 = arith.constant 5 : index
    %c0_167 = arith.constant 0 : index
    %c0_168 = arith.constant 0 : index
    %207 = vector.load %arg2[%c5_166, %c0_167, %c0_168] : memref<9x1x256xf32, #tpu.memory_space<vmem>>, vector<1x1x256xf32>
    %208 = vector.shape_cast %207 : vector<1x1x256xf32> to vector<1x256xf32>
    %209 = vector.broadcast %208 : vector<1x256xf32> to vector<8x256xf32>
    %210 = arith.mulf %206, %209 : vector<8x256xf32>
    %c5_169 = arith.constant 5 : index
    %c0_170 = arith.constant 0 : index
    %c0_171 = arith.constant 0 : index
    %211 = vector.load %arg7[%c5_169, %c0_170, %c0_171] : memref<9x2x8xf32, #tpu.memory_space<vmem>>, vector<1x2x8xf32>
    %212 = vector.shape_cast %211 : vector<1x2x8xf32> to vector<2x8xf32>
    %cst_172 = arith.constant dense<0.000000e+00> : vector<2x256xf32>
    %213 = tpu.matmul %212, %210, %cst_172 {dimension_numbers = #tpu.dot_dimension_numbers<[1], [0], [0], [1], [0, 0, 1, 1], [], []>} : vector<2x8xf32>, vector<8x256xf32>, vector<2x256xf32> -> vector<2x256xf32>
    %214 = arith.addf %205, %213 : vector<2x256xf32>
    %c241_i32_173 = arith.constant 241 : i32
    %215 = tpu.dynamic_rotate %164 by %c241_i32_173 dim 1 : vector<8x256xf32>, i32 -> vector<8x256xf32>
    %c6_174 = arith.constant 6 : index
    %c0_175 = arith.constant 0 : index
    %c0_176 = arith.constant 0 : index
    %216 = vector.load %arg2[%c6_174, %c0_175, %c0_176] : memref<9x1x256xf32, #tpu.memory_space<vmem>>, vector<1x1x256xf32>
    %217 = vector.shape_cast %216 : vector<1x1x256xf32> to vector<1x256xf32>
    %218 = vector.broadcast %217 : vector<1x256xf32> to vector<8x256xf32>
    %219 = arith.mulf %215, %218 : vector<8x256xf32>
    %c6_177 = arith.constant 6 : index
    %c0_178 = arith.constant 0 : index
    %c0_179 = arith.constant 0 : index
    %220 = vector.load %arg7[%c6_177, %c0_178, %c0_179] : memref<9x2x8xf32, #tpu.memory_space<vmem>>, vector<1x2x8xf32>
    %221 = vector.shape_cast %220 : vector<1x2x8xf32> to vector<2x8xf32>
    %cst_180 = arith.constant dense<0.000000e+00> : vector<2x256xf32>
    %222 = tpu.matmul %221, %219, %cst_180 {dimension_numbers = #tpu.dot_dimension_numbers<[1], [0], [0], [1], [0, 0, 1, 1], [], []>} : vector<2x8xf32>, vector<8x256xf32>, vector<2x256xf32> -> vector<2x256xf32>
    %223 = arith.addf %214, %222 : vector<2x256xf32>
    %c240_i32_181 = arith.constant 240 : i32
    %224 = tpu.dynamic_rotate %164 by %c240_i32_181 dim 1 : vector<8x256xf32>, i32 -> vector<8x256xf32>
    %c7_182 = arith.constant 7 : index
    %c0_183 = arith.constant 0 : index
    %c0_184 = arith.constant 0 : index
    %225 = vector.load %arg2[%c7_182, %c0_183, %c0_184] : memref<9x1x256xf32, #tpu.memory_space<vmem>>, vector<1x1x256xf32>
    %226 = vector.shape_cast %225 : vector<1x1x256xf32> to vector<1x256xf32>
    %227 = vector.broadcast %226 : vector<1x256xf32> to vector<8x256xf32>
    %228 = arith.mulf %224, %227 : vector<8x256xf32>
    %c7_185 = arith.constant 7 : index
    %c0_186 = arith.constant 0 : index
    %c0_187 = arith.constant 0 : index
    %229 = vector.load %arg7[%c7_185, %c0_186, %c0_187] : memref<9x2x8xf32, #tpu.memory_space<vmem>>, vector<1x2x8xf32>
    %230 = vector.shape_cast %229 : vector<1x2x8xf32> to vector<2x8xf32>
    %cst_188 = arith.constant dense<0.000000e+00> : vector<2x256xf32>
    %231 = tpu.matmul %230, %228, %cst_188 {dimension_numbers = #tpu.dot_dimension_numbers<[1], [0], [0], [1], [0, 0, 1, 1], [], []>} : vector<2x8xf32>, vector<8x256xf32>, vector<2x256xf32> -> vector<2x256xf32>
    %232 = arith.addf %223, %231 : vector<2x256xf32>
    %c239_i32_189 = arith.constant 239 : i32
    %233 = tpu.dynamic_rotate %164 by %c239_i32_189 dim 1 : vector<8x256xf32>, i32 -> vector<8x256xf32>
    %c8_190 = arith.constant 8 : index
    %c0_191 = arith.constant 0 : index
    %c0_192 = arith.constant 0 : index
    %234 = vector.load %arg2[%c8_190, %c0_191, %c0_192] : memref<9x1x256xf32, #tpu.memory_space<vmem>>, vector<1x1x256xf32>
    %235 = vector.shape_cast %234 : vector<1x1x256xf32> to vector<1x256xf32>
    %236 = vector.broadcast %235 : vector<1x256xf32> to vector<8x256xf32>
    %237 = arith.mulf %233, %236 : vector<8x256xf32>
    %c8_193 = arith.constant 8 : index
    %c0_194 = arith.constant 0 : index
    %c0_195 = arith.constant 0 : index
    %238 = vector.load %arg7[%c8_193, %c0_194, %c0_195] : memref<9x2x8xf32, #tpu.memory_space<vmem>>, vector<1x2x8xf32>
    %239 = vector.shape_cast %238 : vector<1x2x8xf32> to vector<2x8xf32>
    %cst_196 = arith.constant dense<0.000000e+00> : vector<2x256xf32>
    %240 = tpu.matmul %239, %237, %cst_196 {dimension_numbers = #tpu.dot_dimension_numbers<[1], [0], [0], [1], [0, 0, 1, 1], [], []>} : vector<2x8xf32>, vector<8x256xf32>, vector<2x256xf32> -> vector<2x256xf32>
    %241 = arith.addf %232, %240 : vector<2x256xf32>
    %c0_197 = arith.constant 0 : index
    %c0_198 = arith.constant 0 : index
    %242 = vector.load %arg8[%c0_197, %c0_198] : memref<2x1xf32, #tpu.memory_space<vmem>>, vector<2x1xf32>
    %243 = vector.broadcast %242 : vector<2x1xf32> to vector<2x256xf32>
    %244 = arith.addf %241, %243 : vector<2x256xf32>
    %c0_199 = arith.constant 0 : index
    %c0_200 = arith.constant 0 : index
    %245 = vector.load %arg9[%c0_199, %c0_200] : memref<2x256xf32, #tpu.memory_space<vmem>>, vector<2x256xf32>
    tpu.vector_store %arg9[%c0_199, %c0_200], %244 {strides = array<i32>} : memref<2x256xf32, #tpu.memory_space<vmem>>, vector<2x256xf32>,
    return
  }
  func.func @transform_0(%arg0: i32) -> (i32, i32) {
    %c0_i32 = arith.constant 0 : i32
    %c0_i32_0 = arith.constant 0 : i32
    %c0_i32_1 = arith.constant 0 : i32
    return %c0_i32, %c0_i32_0 : i32, i32
  }
  func.func @transform_1(%arg0: i32) -> (i32, i32, i32) {
    %c0_i32 = arith.constant 0 : i32
    %c0_i32_0 = arith.constant 0 : i32
    %c0_i32_1 = arith.constant 0 : i32
    %c0_i32_2 = arith.constant 0 : i32
    return %c0_i32, %c0_i32_0, %c0_i32_1 : i32, i32, i32
  }
  func.func @transform_2(%arg0: i32) -> (i32, i32, i32) {
    %c0_i32 = arith.constant 0 : i32
    %c0_i32_0 = arith.constant 0 : i32
    %c0_i32_1 = arith.constant 0 : i32
    %c0_i32_2 = arith.constant 0 : i32
    return %c0_i32, %c0_i32_0, %c0_i32_1 : i32, i32, i32
  }
  func.func @transform_3(%arg0: i32) -> (i32, i32) {
    %c0_i32 = arith.constant 0 : i32
    %c0_i32_0 = arith.constant 0 : i32
    %c0_i32_1 = arith.constant 0 : i32
    return %c0_i32, %c0_i32_0 : i32, i32
  }
  func.func @transform_4(%arg0: i32) -> (i32, i32, i32) {
    %c0_i32 = arith.constant 0 : i32
    %c0_i32_0 = arith.constant 0 : i32
    %c0_i32_1 = arith.constant 0 : i32
    %c0_i32_2 = arith.constant 0 : i32
    return %c0_i32, %c0_i32_0, %c0_i32_1 : i32, i32, i32
  }
  func.func @transform_5(%arg0: i32) -> (i32, i32) {
    %c0_i32 = arith.constant 0 : i32
    %c0_i32_0 = arith.constant 0 : i32
    %c0_i32_1 = arith.constant 0 : i32
    return %c0_i32, %c0_i32_0 : i32, i32
  }
  func.func @transform_6(%arg0: i32) -> (i32, i32, i32) {
    %c0_i32 = arith.constant 0 : i32
    %c0_i32_0 = arith.constant 0 : i32
    %c0_i32_1 = arith.constant 0 : i32
    %c0_i32_2 = arith.constant 0 : i32
    return %c0_i32, %c0_i32_0, %c0_i32_1 : i32, i32, i32
  }
  func.func @transform_7(%arg0: i32) -> (i32, i32) {
    %c0_i32 = arith.constant 0 : i32
    %c0_i32_0 = arith.constant 0 : i32
    %c0_i32_1 = arith.constant 0 : i32
    return %c0_i32, %c0_i32_0 : i32, i32
  }
  func.func @transform_8(%arg0: i32) -> (i32, i32) {
    %c0_i32 = arith.constant 0 : i32
    %c0_i32_0 = arith.constant 0 : i32
    %c0_i32_1 = arith.constant 0 : i32
    return %c0_i32, %c0_i32_0 : i32, i32
  }
}

module attributes {stable_mosaic.version = 11 : i64} {
  func.func @_fused_unet_kernel(%arg0: i32, %arg1: memref<2x256xf32, #tpu.memory_space<vmem>>, %arg2: memref<2x256xf32, #tpu.memory_space<vmem>>, %arg3: memref<9x1x256xf32, #tpu.memory_space<vmem>>, %arg4: memref<9x8x2xf32, #tpu.memory_space<vmem>>, %arg5: memref<8x1xf32, #tpu.memory_space<vmem>>, %arg6: memref<9x8x8xf32, #tpu.memory_space<vmem>>, %arg7: memref<8x1xf32, #tpu.memory_space<vmem>>, %arg8: memref<9x2x8xf32, #tpu.memory_space<vmem>>, %arg9: memref<2x1xf32, #tpu.memory_space<vmem>>, %arg10: memref<256x256xbf16, #tpu.memory_space<vmem>>, %arg11: memref<2x256xf32, #tpu.memory_space<vmem>>) attributes {dimension_semantics = [#tpu.dimension_semantics<arbitrary>], iteration_bounds = array<i64: 1>, scalar_prefetch = 0 : i64, scratch_operands = 0 : i64, tpu.core_type = #tpu.core_type<tc>, window_params = [{pipeline_mode = #tpu.pipeline_mode<synchronous>, transform_indices = @transform_0, window_bounds = array<i64: 2, 256>}, {pipeline_mode = #tpu.pipeline_mode<synchronous>, transform_indices = @transform_1, window_bounds = array<i64: 2, 256>}, {pipeline_mode = #tpu.pipeline_mode<synchronous>, transform_indices = @transform_2, window_bounds = array<i64: 9, 1, 256>}, {pipeline_mode = #tpu.pipeline_mode<synchronous>, transform_indices = @transform_3, window_bounds = array<i64: 9, 8, 2>}, {pipeline_mode = #tpu.pipeline_mode<synchronous>, transform_indices = @transform_4, window_bounds = array<i64: 8, 1>}, {pipeline_mode = #tpu.pipeline_mode<synchronous>, transform_indices = @transform_5, window_bounds = array<i64: 9, 8, 8>}, {pipeline_mode = #tpu.pipeline_mode<synchronous>, transform_indices = @transform_6, window_bounds = array<i64: 8, 1>}, {pipeline_mode = #tpu.pipeline_mode<synchronous>, transform_indices = @transform_7, window_bounds = array<i64: 9, 2, 8>}, {pipeline_mode = #tpu.pipeline_mode<synchronous>, transform_indices = @transform_8, window_bounds = array<i64: 2, 1>}, {pipeline_mode = #tpu.pipeline_mode<synchronous>, transform_indices = @transform_9, window_bounds = array<i64: 256, 256>}, {pipeline_mode = #tpu.pipeline_mode<synchronous>, transform_indices = @transform_10, window_bounds = array<i64: 2, 256>}]} {
    %c0 = arith.constant 0 : index
    %c0_0 = arith.constant 0 : index
    %0 = vector.load %arg1[%c0, %c0_0] : memref<2x256xf32, #tpu.memory_space<vmem>>, vector<2x256xf32>
    %cst = arith.constant 0.000000e+00 : f32
    %1 = vector.broadcast %cst : f32 to vector<8x256xf32>
    %c17_i32 = arith.constant 17 : i32
    %2 = tpu.dynamic_rotate %0 by %c17_i32 dim 1 : vector<2x256xf32>, i32 -> vector<2x256xf32>
    %c0_1 = arith.constant 0 : index
    %c0_2 = arith.constant 0 : index
    %c0_3 = arith.constant 0 : index
    %3 = vector.load %arg3[%c0_1, %c0_2, %c0_3] : memref<9x1x256xf32, #tpu.memory_space<vmem>>, vector<1x1x256xf32>
    %4 = vector.shape_cast %3 : vector<1x1x256xf32> to vector<1x256xf32>
    %5 = vector.broadcast %4 : vector<1x256xf32> to vector<2x256xf32>
    %6 = arith.mulf %2, %5 : vector<2x256xf32>
    %c0_4 = arith.constant 0 : index
    %c0_5 = arith.constant 0 : index
    %c0_6 = arith.constant 0 : index
    %7 = vector.load %arg4[%c0_4, %c0_5, %c0_6] : memref<9x8x2xf32, #tpu.memory_space<vmem>>, vector<1x8x2xf32>
    %8 = vector.shape_cast %7 : vector<1x8x2xf32> to vector<8x2xf32>
    %cst_7 = arith.constant dense<0.000000e+00> : vector<8x256xf32>
    %9 = tpu.matmul %8, %6, %cst_7 {dimension_numbers = #tpu.dot_dimension_numbers<[1], [0], [0], [1], [0, 0, 1, 1], [], []>} : vector<8x2xf32>, vector<2x256xf32>, vector<8x256xf32> -> vector<8x256xf32>
    %10 = arith.addf %1, %9 : vector<8x256xf32>
    %c16_i32 = arith.constant 16 : i32
    %11 = tpu.dynamic_rotate %0 by %c16_i32 dim 1 : vector<2x256xf32>, i32 -> vector<2x256xf32>
    %c1 = arith.constant 1 : index
    %c0_8 = arith.constant 0 : index
    %c0_9 = arith.constant 0 : index
    %12 = vector.load %arg3[%c1, %c0_8, %c0_9] : memref<9x1x256xf32, #tpu.memory_space<vmem>>, vector<1x1x256xf32>
    %13 = vector.shape_cast %12 : vector<1x1x256xf32> to vector<1x256xf32>
    %14 = vector.broadcast %13 : vector<1x256xf32> to vector<2x256xf32>
    %15 = arith.mulf %11, %14 : vector<2x256xf32>
    %c1_10 = arith.constant 1 : index
    %c0_11 = arith.constant 0 : index
    %c0_12 = arith.constant 0 : index
    %16 = vector.load %arg4[%c1_10, %c0_11, %c0_12] : memref<9x8x2xf32, #tpu.memory_space<vmem>>, vector<1x8x2xf32>
    %17 = vector.shape_cast %16 : vector<1x8x2xf32> to vector<8x2xf32>
    %cst_13 = arith.constant dense<0.000000e+00> : vector<8x256xf32>
    %18 = tpu.matmul %17, %15, %cst_13 {dimension_numbers = #tpu.dot_dimension_numbers<[1], [0], [0], [1], [0, 0, 1, 1], [], []>} : vector<8x2xf32>, vector<2x256xf32>, vector<8x256xf32> -> vector<8x256xf32>
    %19 = arith.addf %10, %18 : vector<8x256xf32>
    %c15_i32 = arith.constant 15 : i32
    %20 = tpu.dynamic_rotate %0 by %c15_i32 dim 1 : vector<2x256xf32>, i32 -> vector<2x256xf32>
    %c2 = arith.constant 2 : index
    %c0_14 = arith.constant 0 : index
    %c0_15 = arith.constant 0 : index
    %21 = vector.load %arg3[%c2, %c0_14, %c0_15] : memref<9x1x256xf32, #tpu.memory_space<vmem>>, vector<1x1x256xf32>
    %22 = vector.shape_cast %21 : vector<1x1x256xf32> to vector<1x256xf32>
    %23 = vector.broadcast %22 : vector<1x256xf32> to vector<2x256xf32>
    %24 = arith.mulf %20, %23 : vector<2x256xf32>
    %c2_16 = arith.constant 2 : index
    %c0_17 = arith.constant 0 : index
    %c0_18 = arith.constant 0 : index
    %25 = vector.load %arg4[%c2_16, %c0_17, %c0_18] : memref<9x8x2xf32, #tpu.memory_space<vmem>>, vector<1x8x2xf32>
    %26 = vector.shape_cast %25 : vector<1x8x2xf32> to vector<8x2xf32>
    %cst_19 = arith.constant dense<0.000000e+00> : vector<8x256xf32>
    %27 = tpu.matmul %26, %24, %cst_19 {dimension_numbers = #tpu.dot_dimension_numbers<[1], [0], [0], [1], [0, 0, 1, 1], [], []>} : vector<8x2xf32>, vector<2x256xf32>, vector<8x256xf32> -> vector<8x256xf32>
    %28 = arith.addf %19, %27 : vector<8x256xf32>
    %c1_i32 = arith.constant 1 : i32
    %29 = tpu.dynamic_rotate %0 by %c1_i32 dim 1 : vector<2x256xf32>, i32 -> vector<2x256xf32>
    %c3 = arith.constant 3 : index
    %c0_20 = arith.constant 0 : index
    %c0_21 = arith.constant 0 : index
    %30 = vector.load %arg3[%c3, %c0_20, %c0_21] : memref<9x1x256xf32, #tpu.memory_space<vmem>>, vector<1x1x256xf32>
    %31 = vector.shape_cast %30 : vector<1x1x256xf32> to vector<1x256xf32>
    %32 = vector.broadcast %31 : vector<1x256xf32> to vector<2x256xf32>
    %33 = arith.mulf %29, %32 : vector<2x256xf32>
    %c3_22 = arith.constant 3 : index
    %c0_23 = arith.constant 0 : index
    %c0_24 = arith.constant 0 : index
    %34 = vector.load %arg4[%c3_22, %c0_23, %c0_24] : memref<9x8x2xf32, #tpu.memory_space<vmem>>, vector<1x8x2xf32>
    %35 = vector.shape_cast %34 : vector<1x8x2xf32> to vector<8x2xf32>
    %cst_25 = arith.constant dense<0.000000e+00> : vector<8x256xf32>
    %36 = tpu.matmul %35, %33, %cst_25 {dimension_numbers = #tpu.dot_dimension_numbers<[1], [0], [0], [1], [0, 0, 1, 1], [], []>} : vector<8x2xf32>, vector<2x256xf32>, vector<8x256xf32> -> vector<8x256xf32>
    %37 = arith.addf %28, %36 : vector<8x256xf32>
    %c4 = arith.constant 4 : index
    %c0_26 = arith.constant 0 : index
    %c0_27 = arith.constant 0 : index
    %38 = vector.load %arg4[%c4, %c0_26, %c0_27] : memref<9x8x2xf32, #tpu.memory_space<vmem>>, vector<1x8x2xf32>
    %39 = vector.shape_cast %38 : vector<1x8x2xf32> to vector<8x2xf32>
    %cst_28 = arith.constant dense<0.000000e+00> : vector<8x256xf32>
    %40 = tpu.matmul %39, %0, %cst_28 {dimension_numbers = #tpu.dot_dimension_numbers<[1], [0], [0], [1], [0, 0, 1, 1], [], []>} : vector<8x2xf32>, vector<2x256xf32>, vector<8x256xf32> -> vector<8x256xf32>
    %41 = arith.addf %37, %40 : vector<8x256xf32>
    %c255_i32 = arith.constant 255 : i32
    %42 = tpu.dynamic_rotate %0 by %c255_i32 dim 1 : vector<2x256xf32>, i32 -> vector<2x256xf32>
    %c5 = arith.constant 5 : index
    %c0_29 = arith.constant 0 : index
    %c0_30 = arith.constant 0 : index
    %43 = vector.load %arg3[%c5, %c0_29, %c0_30] : memref<9x1x256xf32, #tpu.memory_space<vmem>>, vector<1x1x256xf32>
    %44 = vector.shape_cast %43 : vector<1x1x256xf32> to vector<1x256xf32>
    %45 = vector.broadcast %44 : vector<1x256xf32> to vector<2x256xf32>
    %46 = arith.mulf %42, %45 : vector<2x256xf32>
    %c5_31 = arith.constant 5 : index
    %c0_32 = arith.constant 0 : index
    %c0_33 = arith.constant 0 : index
    %47 = vector.load %arg4[%c5_31, %c0_32, %c0_33] : memref<9x8x2xf32, #tpu.memory_space<vmem>>, vector<1x8x2xf32>
    %48 = vector.shape_cast %47 : vector<1x8x2xf32> to vector<8x2xf32>
    %cst_34 = arith.constant dense<0.000000e+00> : vector<8x256xf32>
    %49 = tpu.matmul %48, %46, %cst_34 {dimension_numbers = #tpu.dot_dimension_numbers<[1], [0], [0], [1], [0, 0, 1, 1], [], []>} : vector<8x2xf32>, vector<2x256xf32>, vector<8x256xf32> -> vector<8x256xf32>
    %50 = arith.addf %41, %49 : vector<8x256xf32>
    %c241_i32 = arith.constant 241 : i32
    %51 = tpu.dynamic_rotate %0 by %c241_i32 dim 1 : vector<2x256xf32>, i32 -> vector<2x256xf32>
    %c6 = arith.constant 6 : index
    %c0_35 = arith.constant 0 : index
    %c0_36 = arith.constant 0 : index
    %52 = vector.load %arg3[%c6, %c0_35, %c0_36] : memref<9x1x256xf32, #tpu.memory_space<vmem>>, vector<1x1x256xf32>
    %53 = vector.shape_cast %52 : vector<1x1x256xf32> to vector<1x256xf32>
    %54 = vector.broadcast %53 : vector<1x256xf32> to vector<2x256xf32>
    %55 = arith.mulf %51, %54 : vector<2x256xf32>
    %c6_37 = arith.constant 6 : index
    %c0_38 = arith.constant 0 : index
    %c0_39 = arith.constant 0 : index
    %56 = vector.load %arg4[%c6_37, %c0_38, %c0_39] : memref<9x8x2xf32, #tpu.memory_space<vmem>>, vector<1x8x2xf32>
    %57 = vector.shape_cast %56 : vector<1x8x2xf32> to vector<8x2xf32>
    %cst_40 = arith.constant dense<0.000000e+00> : vector<8x256xf32>
    %58 = tpu.matmul %57, %55, %cst_40 {dimension_numbers = #tpu.dot_dimension_numbers<[1], [0], [0], [1], [0, 0, 1, 1], [], []>} : vector<8x2xf32>, vector<2x256xf32>, vector<8x256xf32> -> vector<8x256xf32>
    %59 = arith.addf %50, %58 : vector<8x256xf32>
    %c240_i32 = arith.constant 240 : i32
    %60 = tpu.dynamic_rotate %0 by %c240_i32 dim 1 : vector<2x256xf32>, i32 -> vector<2x256xf32>
    %c7 = arith.constant 7 : index
    %c0_41 = arith.constant 0 : index
    %c0_42 = arith.constant 0 : index
    %61 = vector.load %arg3[%c7, %c0_41, %c0_42] : memref<9x1x256xf32, #tpu.memory_space<vmem>>, vector<1x1x256xf32>
    %62 = vector.shape_cast %61 : vector<1x1x256xf32> to vector<1x256xf32>
    %63 = vector.broadcast %62 : vector<1x256xf32> to vector<2x256xf32>
    %64 = arith.mulf %60, %63 : vector<2x256xf32>
    %c7_43 = arith.constant 7 : index
    %c0_44 = arith.constant 0 : index
    %c0_45 = arith.constant 0 : index
    %65 = vector.load %arg4[%c7_43, %c0_44, %c0_45] : memref<9x8x2xf32, #tpu.memory_space<vmem>>, vector<1x8x2xf32>
    %66 = vector.shape_cast %65 : vector<1x8x2xf32> to vector<8x2xf32>
    %cst_46 = arith.constant dense<0.000000e+00> : vector<8x256xf32>
    %67 = tpu.matmul %66, %64, %cst_46 {dimension_numbers = #tpu.dot_dimension_numbers<[1], [0], [0], [1], [0, 0, 1, 1], [], []>} : vector<8x2xf32>, vector<2x256xf32>, vector<8x256xf32> -> vector<8x256xf32>
    %68 = arith.addf %59, %67 : vector<8x256xf32>
    %c239_i32 = arith.constant 239 : i32
    %69 = tpu.dynamic_rotate %0 by %c239_i32 dim 1 : vector<2x256xf32>, i32 -> vector<2x256xf32>
    %c8 = arith.constant 8 : index
    %c0_47 = arith.constant 0 : index
    %c0_48 = arith.constant 0 : index
    %70 = vector.load %arg3[%c8, %c0_47, %c0_48] : memref<9x1x256xf32, #tpu.memory_space<vmem>>, vector<1x1x256xf32>
    %71 = vector.shape_cast %70 : vector<1x1x256xf32> to vector<1x256xf32>
    %72 = vector.broadcast %71 : vector<1x256xf32> to vector<2x256xf32>
    %73 = arith.mulf %69, %72 : vector<2x256xf32>
    %c8_49 = arith.constant 8 : index
    %c0_50 = arith.constant 0 : index
    %c0_51 = arith.constant 0 : index
    %74 = vector.load %arg4[%c8_49, %c0_50, %c0_51] : memref<9x8x2xf32, #tpu.memory_space<vmem>>, vector<1x8x2xf32>
    %75 = vector.shape_cast %74 : vector<1x8x2xf32> to vector<8x2xf32>
    %cst_52 = arith.constant dense<0.000000e+00> : vector<8x256xf32>
    %76 = tpu.matmul %75, %73, %cst_52 {dimension_numbers = #tpu.dot_dimension_numbers<[1], [0], [0], [1], [0, 0, 1, 1], [], []>} : vector<8x2xf32>, vector<2x256xf32>, vector<8x256xf32> -> vector<8x256xf32>
    %77 = arith.addf %68, %76 : vector<8x256xf32>
    %c0_53 = arith.constant 0 : index
    %c0_54 = arith.constant 0 : index
    %78 = vector.load %arg5[%c0_53, %c0_54] : memref<8x1xf32, #tpu.memory_space<vmem>>, vector<8x1xf32>
    %79 = vector.broadcast %78 : vector<8x1xf32> to vector<8x256xf32>
    %80 = arith.addf %77, %79 : vector<8x256xf32>
    %cst_55 = arith.constant 0.000000e+00 : f32
    %81 = vector.broadcast %cst_55 : f32 to vector<8x256xf32>
    %82 = arith.maximumf %80, %81 : vector<8x256xf32>
    %cst_56 = arith.constant 0.000000e+00 : f32
    %83 = vector.broadcast %cst_56 : f32 to vector<8x256xf32>
    %c17_i32_57 = arith.constant 17 : i32
    %84 = tpu.dynamic_rotate %82 by %c17_i32_57 dim 1 : vector<8x256xf32>, i32 -> vector<8x256xf32>
    %c0_58 = arith.constant 0 : index
    %c0_59 = arith.constant 0 : index
    %c0_60 = arith.constant 0 : index
    %85 = vector.load %arg3[%c0_58, %c0_59, %c0_60] : memref<9x1x256xf32, #tpu.memory_space<vmem>>, vector<1x1x256xf32>
    %86 = vector.shape_cast %85 : vector<1x1x256xf32> to vector<1x256xf32>
    %87 = vector.broadcast %86 : vector<1x256xf32> to vector<8x256xf32>
    %88 = arith.mulf %84, %87 : vector<8x256xf32>
    %c0_61 = arith.constant 0 : index
    %c0_62 = arith.constant 0 : index
    %c0_63 = arith.constant 0 : index
    %89 = vector.load %arg6[%c0_61, %c0_62, %c0_63] : memref<9x8x8xf32, #tpu.memory_space<vmem>>, vector<1x8x8xf32>
    %90 = vector.shape_cast %89 : vector<1x8x8xf32> to vector<8x8xf32>
    %cst_64 = arith.constant dense<0.000000e+00> : vector<8x256xf32>
    %91 = tpu.matmul %90, %88, %cst_64 {dimension_numbers = #tpu.dot_dimension_numbers<[1], [0], [0], [1], [0, 0, 1, 1], [], []>} : vector<8x8xf32>, vector<8x256xf32>, vector<8x256xf32> -> vector<8x256xf32>
    %92 = arith.addf %83, %91 : vector<8x256xf32>
    %c16_i32_65 = arith.constant 16 : i32
    %93 = tpu.dynamic_rotate %82 by %c16_i32_65 dim 1 : vector<8x256xf32>, i32 -> vector<8x256xf32>
    %c1_66 = arith.constant 1 : index
    %c0_67 = arith.constant 0 : index
    %c0_68 = arith.constant 0 : index
    %94 = vector.load %arg3[%c1_66, %c0_67, %c0_68] : memref<9x1x256xf32, #tpu.memory_space<vmem>>, vector<1x1x256xf32>
    %95 = vector.shape_cast %94 : vector<1x1x256xf32> to vector<1x256xf32>
    %96 = vector.broadcast %95 : vector<1x256xf32> to vector<8x256xf32>
    %97 = arith.mulf %93, %96 : vector<8x256xf32>
    %c1_69 = arith.constant 1 : index
    %c0_70 = arith.constant 0 : index
    %c0_71 = arith.constant 0 : index
    %98 = vector.load %arg6[%c1_69, %c0_70, %c0_71] : memref<9x8x8xf32, #tpu.memory_space<vmem>>, vector<1x8x8xf32>
    %99 = vector.shape_cast %98 : vector<1x8x8xf32> to vector<8x8xf32>
    %cst_72 = arith.constant dense<0.000000e+00> : vector<8x256xf32>
    %100 = tpu.matmul %99, %97, %cst_72 {dimension_numbers = #tpu.dot_dimension_numbers<[1], [0], [0], [1], [0, 0, 1, 1], [], []>} : vector<8x8xf32>, vector<8x256xf32>, vector<8x256xf32> -> vector<8x256xf32>
    %101 = arith.addf %92, %100 : vector<8x256xf32>
    %c15_i32_73 = arith.constant 15 : i32
    %102 = tpu.dynamic_rotate %82 by %c15_i32_73 dim 1 : vector<8x256xf32>, i32 -> vector<8x256xf32>
    %c2_74 = arith.constant 2 : index
    %c0_75 = arith.constant 0 : index
    %c0_76 = arith.constant 0 : index
    %103 = vector.load %arg3[%c2_74, %c0_75, %c0_76] : memref<9x1x256xf32, #tpu.memory_space<vmem>>, vector<1x1x256xf32>
    %104 = vector.shape_cast %103 : vector<1x1x256xf32> to vector<1x256xf32>
    %105 = vector.broadcast %104 : vector<1x256xf32> to vector<8x256xf32>
    %106 = arith.mulf %102, %105 : vector<8x256xf32>
    %c2_77 = arith.constant 2 : index
    %c0_78 = arith.constant 0 : index
    %c0_79 = arith.constant 0 : index
    %107 = vector.load %arg6[%c2_77, %c0_78, %c0_79] : memref<9x8x8xf32, #tpu.memory_space<vmem>>, vector<1x8x8xf32>
    %108 = vector.shape_cast %107 : vector<1x8x8xf32> to vector<8x8xf32>
    %cst_80 = arith.constant dense<0.000000e+00> : vector<8x256xf32>
    %109 = tpu.matmul %108, %106, %cst_80 {dimension_numbers = #tpu.dot_dimension_numbers<[1], [0], [0], [1], [0, 0, 1, 1], [], []>} : vector<8x8xf32>, vector<8x256xf32>, vector<8x256xf32> -> vector<8x256xf32>
    %110 = arith.addf %101, %109 : vector<8x256xf32>
    %c1_i32_81 = arith.constant 1 : i32
    %111 = tpu.dynamic_rotate %82 by %c1_i32_81 dim 1 : vector<8x256xf32>, i32 -> vector<8x256xf32>
    %c3_82 = arith.constant 3 : index
    %c0_83 = arith.constant 0 : index
    %c0_84 = arith.constant 0 : index
    %112 = vector.load %arg3[%c3_82, %c0_83, %c0_84] : memref<9x1x256xf32, #tpu.memory_space<vmem>>, vector<1x1x256xf32>
    %113 = vector.shape_cast %112 : vector<1x1x256xf32> to vector<1x256xf32>
    %114 = vector.broadcast %113 : vector<1x256xf32> to vector<8x256xf32>
    %115 = arith.mulf %111, %114 : vector<8x256xf32>
    %c3_85 = arith.constant 3 : index
    %c0_86 = arith.constant 0 : index
    %c0_87 = arith.constant 0 : index
    %116 = vector.load %arg6[%c3_85, %c0_86, %c0_87] : memref<9x8x8xf32, #tpu.memory_space<vmem>>, vector<1x8x8xf32>
    %117 = vector.shape_cast %116 : vector<1x8x8xf32> to vector<8x8xf32>
    %cst_88 = arith.constant dense<0.000000e+00> : vector<8x256xf32>
    %118 = tpu.matmul %117, %115, %cst_88 {dimension_numbers = #tpu.dot_dimension_numbers<[1], [0], [0], [1], [0, 0, 1, 1], [], []>} : vector<8x8xf32>, vector<8x256xf32>, vector<8x256xf32> -> vector<8x256xf32>
    %119 = arith.addf %110, %118 : vector<8x256xf32>
    %c4_89 = arith.constant 4 : index
    %c0_90 = arith.constant 0 : index
    %c0_91 = arith.constant 0 : index
    %120 = vector.load %arg6[%c4_89, %c0_90, %c0_91] : memref<9x8x8xf32, #tpu.memory_space<vmem>>, vector<1x8x8xf32>
    %121 = vector.shape_cast %120 : vector<1x8x8xf32> to vector<8x8xf32>
    %cst_92 = arith.constant dense<0.000000e+00> : vector<8x256xf32>
    %122 = tpu.matmul %121, %82, %cst_92 {dimension_numbers = #tpu.dot_dimension_numbers<[1], [0], [0], [1], [0, 0, 1, 1], [], []>} : vector<8x8xf32>, vector<8x256xf32>, vector<8x256xf32> -> vector<8x256xf32>
    %123 = arith.addf %119, %122 : vector<8x256xf32>
    %c255_i32_93 = arith.constant 255 : i32
    %124 = tpu.dynamic_rotate %82 by %c255_i32_93 dim 1 : vector<8x256xf32>, i32 -> vector<8x256xf32>
    %c5_94 = arith.constant 5 : index
    %c0_95 = arith.constant 0 : index
    %c0_96 = arith.constant 0 : index
    %125 = vector.load %arg3[%c5_94, %c0_95, %c0_96] : memref<9x1x256xf32, #tpu.memory_space<vmem>>, vector<1x1x256xf32>
    %126 = vector.shape_cast %125 : vector<1x1x256xf32> to vector<1x256xf32>
    %127 = vector.broadcast %126 : vector<1x256xf32> to vector<8x256xf32>
    %128 = arith.mulf %124, %127 : vector<8x256xf32>
    %c5_97 = arith.constant 5 : index
    %c0_98 = arith.constant 0 : index
    %c0_99 = arith.constant 0 : index
    %129 = vector.load %arg6[%c5_97, %c0_98, %c0_99] : memref<9x8x8xf32, #tpu.memory_space<vmem>>, vector<1x8x8xf32>
    %130 = vector.shape_cast %129 : vector<1x8x8xf32> to vector<8x8xf32>
    %cst_100 = arith.constant dense<0.000000e+00> : vector<8x256xf32>
    %131 = tpu.matmul %130, %128, %cst_100 {dimension_numbers = #tpu.dot_dimension_numbers<[1], [0], [0], [1], [0, 0, 1, 1], [], []>} : vector<8x8xf32>, vector<8x256xf32>, vector<8x256xf32> -> vector<8x256xf32>
    %132 = arith.addf %123, %131 : vector<8x256xf32>
    %c241_i32_101 = arith.constant 241 : i32
    %133 = tpu.dynamic_rotate %82 by %c241_i32_101 dim 1 : vector<8x256xf32>, i32 -> vector<8x256xf32>
    %c6_102 = arith.constant 6 : index
    %c0_103 = arith.constant 0 : index
    %c0_104 = arith.constant 0 : index
    %134 = vector.load %arg3[%c6_102, %c0_103, %c0_104] : memref<9x1x256xf32, #tpu.memory_space<vmem>>, vector<1x1x256xf32>
    %135 = vector.shape_cast %134 : vector<1x1x256xf32> to vector<1x256xf32>
    %136 = vector.broadcast %135 : vector<1x256xf32> to vector<8x256xf32>
    %137 = arith.mulf %133, %136 : vector<8x256xf32>
    %c6_105 = arith.constant 6 : index
    %c0_106 = arith.constant 0 : index
    %c0_107 = arith.constant 0 : index
    %138 = vector.load %arg6[%c6_105, %c0_106, %c0_107] : memref<9x8x8xf32, #tpu.memory_space<vmem>>, vector<1x8x8xf32>
    %139 = vector.shape_cast %138 : vector<1x8x8xf32> to vector<8x8xf32>
    %cst_108 = arith.constant dense<0.000000e+00> : vector<8x256xf32>
    %140 = tpu.matmul %139, %137, %cst_108 {dimension_numbers = #tpu.dot_dimension_numbers<[1], [0], [0], [1], [0, 0, 1, 1], [], []>} : vector<8x8xf32>, vector<8x256xf32>, vector<8x256xf32> -> vector<8x256xf32>
    %141 = arith.addf %132, %140 : vector<8x256xf32>
    %c240_i32_109 = arith.constant 240 : i32
    %142 = tpu.dynamic_rotate %82 by %c240_i32_109 dim 1 : vector<8x256xf32>, i32 -> vector<8x256xf32>
    %c7_110 = arith.constant 7 : index
    %c0_111 = arith.constant 0 : index
    %c0_112 = arith.constant 0 : index
    %143 = vector.load %arg3[%c7_110, %c0_111, %c0_112] : memref<9x1x256xf32, #tpu.memory_space<vmem>>, vector<1x1x256xf32>
    %144 = vector.shape_cast %143 : vector<1x1x256xf32> to vector<1x256xf32>
    %145 = vector.broadcast %144 : vector<1x256xf32> to vector<8x256xf32>
    %146 = arith.mulf %142, %145 : vector<8x256xf32>
    %c7_113 = arith.constant 7 : index
    %c0_114 = arith.constant 0 : index
    %c0_115 = arith.constant 0 : index
    %147 = vector.load %arg6[%c7_113, %c0_114, %c0_115] : memref<9x8x8xf32, #tpu.memory_space<vmem>>, vector<1x8x8xf32>
    %148 = vector.shape_cast %147 : vector<1x8x8xf32> to vector<8x8xf32>
    %cst_116 = arith.constant dense<0.000000e+00> : vector<8x256xf32>
    %149 = tpu.matmul %148, %146, %cst_116 {dimension_numbers = #tpu.dot_dimension_numbers<[1], [0], [0], [1], [0, 0, 1, 1], [], []>} : vector<8x8xf32>, vector<8x256xf32>, vector<8x256xf32> -> vector<8x256xf32>
    %150 = arith.addf %141, %149 : vector<8x256xf32>
    %c239_i32_117 = arith.constant 239 : i32
    %151 = tpu.dynamic_rotate %82 by %c239_i32_117 dim 1 : vector<8x256xf32>, i32 -> vector<8x256xf32>
    %c8_118 = arith.constant 8 : index
    %c0_119 = arith.constant 0 : index
    %c0_120 = arith.constant 0 : index
    %152 = vector.load %arg3[%c8_118, %c0_119, %c0_120] : memref<9x1x256xf32, #tpu.memory_space<vmem>>, vector<1x1x256xf32>
    %153 = vector.shape_cast %152 : vector<1x1x256xf32> to vector<1x256xf32>
    %154 = vector.broadcast %153 : vector<1x256xf32> to vector<8x256xf32>
    %155 = arith.mulf %151, %154 : vector<8x256xf32>
    %c8_121 = arith.constant 8 : index
    %c0_122 = arith.constant 0 : index
    %c0_123 = arith.constant 0 : index
    %156 = vector.load %arg6[%c8_121, %c0_122, %c0_123] : memref<9x8x8xf32, #tpu.memory_space<vmem>>, vector<1x8x8xf32>
    %157 = vector.shape_cast %156 : vector<1x8x8xf32> to vector<8x8xf32>
    %cst_124 = arith.constant dense<0.000000e+00> : vector<8x256xf32>
    %158 = tpu.matmul %157, %155, %cst_124 {dimension_numbers = #tpu.dot_dimension_numbers<[1], [0], [0], [1], [0, 0, 1, 1], [], []>} : vector<8x8xf32>, vector<8x256xf32>, vector<8x256xf32> -> vector<8x256xf32>
    %159 = arith.addf %150, %158 : vector<8x256xf32>
    %c0_125 = arith.constant 0 : index
    %c0_126 = arith.constant 0 : index
    %160 = vector.load %arg7[%c0_125, %c0_126] : memref<8x1xf32, #tpu.memory_space<vmem>>, vector<8x1xf32>
    %161 = vector.broadcast %160 : vector<8x1xf32> to vector<8x256xf32>
    %162 = arith.addf %159, %161 : vector<8x256xf32>
    %cst_127 = arith.constant 0.000000e+00 : f32
    %163 = vector.broadcast %cst_127 : f32 to vector<8x256xf32>
    %164 = arith.maximumf %162, %163 : vector<8x256xf32>
    %cst_128 = arith.constant 0.000000e+00 : f32
    %165 = vector.broadcast %cst_128 : f32 to vector<2x256xf32>
    %c17_i32_129 = arith.constant 17 : i32
    %166 = tpu.dynamic_rotate %164 by %c17_i32_129 dim 1 : vector<8x256xf32>, i32 -> vector<8x256xf32>
    %c0_130 = arith.constant 0 : index
    %c0_131 = arith.constant 0 : index
    %c0_132 = arith.constant 0 : index
    %167 = vector.load %arg3[%c0_130, %c0_131, %c0_132] : memref<9x1x256xf32, #tpu.memory_space<vmem>>, vector<1x1x256xf32>
    %168 = vector.shape_cast %167 : vector<1x1x256xf32> to vector<1x256xf32>
    %169 = vector.broadcast %168 : vector<1x256xf32> to vector<8x256xf32>
    %170 = arith.mulf %166, %169 : vector<8x256xf32>
    %c0_133 = arith.constant 0 : index
    %c0_134 = arith.constant 0 : index
    %c0_135 = arith.constant 0 : index
    %171 = vector.load %arg8[%c0_133, %c0_134, %c0_135] : memref<9x2x8xf32, #tpu.memory_space<vmem>>, vector<1x2x8xf32>
    %172 = vector.shape_cast %171 : vector<1x2x8xf32> to vector<2x8xf32>
    %cst_136 = arith.constant dense<0.000000e+00> : vector<2x256xf32>
    %173 = tpu.matmul %172, %170, %cst_136 {dimension_numbers = #tpu.dot_dimension_numbers<[1], [0], [0], [1], [0, 0, 1, 1], [], []>} : vector<2x8xf32>, vector<8x256xf32>, vector<2x256xf32> -> vector<2x256xf32>
    %174 = arith.addf %165, %173 : vector<2x256xf32>
    %c16_i32_137 = arith.constant 16 : i32
    %175 = tpu.dynamic_rotate %164 by %c16_i32_137 dim 1 : vector<8x256xf32>, i32 -> vector<8x256xf32>
    %c1_138 = arith.constant 1 : index
    %c0_139 = arith.constant 0 : index
    %c0_140 = arith.constant 0 : index
    %176 = vector.load %arg3[%c1_138, %c0_139, %c0_140] : memref<9x1x256xf32, #tpu.memory_space<vmem>>, vector<1x1x256xf32>
    %177 = vector.shape_cast %176 : vector<1x1x256xf32> to vector<1x256xf32>
    %178 = vector.broadcast %177 : vector<1x256xf32> to vector<8x256xf32>
    %179 = arith.mulf %175, %178 : vector<8x256xf32>
    %c1_141 = arith.constant 1 : index
    %c0_142 = arith.constant 0 : index
    %c0_143 = arith.constant 0 : index
    %180 = vector.load %arg8[%c1_141, %c0_142, %c0_143] : memref<9x2x8xf32, #tpu.memory_space<vmem>>, vector<1x2x8xf32>
    %181 = vector.shape_cast %180 : vector<1x2x8xf32> to vector<2x8xf32>
    %cst_144 = arith.constant dense<0.000000e+00> : vector<2x256xf32>
    %182 = tpu.matmul %181, %179, %cst_144 {dimension_numbers = #tpu.dot_dimension_numbers<[1], [0], [0], [1], [0, 0, 1, 1], [], []>} : vector<2x8xf32>, vector<8x256xf32>, vector<2x256xf32> -> vector<2x256xf32>
    %183 = arith.addf %174, %182 : vector<2x256xf32>
    %c15_i32_145 = arith.constant 15 : i32
    %184 = tpu.dynamic_rotate %164 by %c15_i32_145 dim 1 : vector<8x256xf32>, i32 -> vector<8x256xf32>
    %c2_146 = arith.constant 2 : index
    %c0_147 = arith.constant 0 : index
    %c0_148 = arith.constant 0 : index
    %185 = vector.load %arg3[%c2_146, %c0_147, %c0_148] : memref<9x1x256xf32, #tpu.memory_space<vmem>>, vector<1x1x256xf32>
    %186 = vector.shape_cast %185 : vector<1x1x256xf32> to vector<1x256xf32>
    %187 = vector.broadcast %186 : vector<1x256xf32> to vector<8x256xf32>
    %188 = arith.mulf %184, %187 : vector<8x256xf32>
    %c2_149 = arith.constant 2 : index
    %c0_150 = arith.constant 0 : index
    %c0_151 = arith.constant 0 : index
    %189 = vector.load %arg8[%c2_149, %c0_150, %c0_151] : memref<9x2x8xf32, #tpu.memory_space<vmem>>, vector<1x2x8xf32>
    %190 = vector.shape_cast %189 : vector<1x2x8xf32> to vector<2x8xf32>
    %cst_152 = arith.constant dense<0.000000e+00> : vector<2x256xf32>
    %191 = tpu.matmul %190, %188, %cst_152 {dimension_numbers = #tpu.dot_dimension_numbers<[1], [0], [0], [1], [0, 0, 1, 1], [], []>} : vector<2x8xf32>, vector<8x256xf32>, vector<2x256xf32> -> vector<2x256xf32>
    %192 = arith.addf %183, %191 : vector<2x256xf32>
    %c1_i32_153 = arith.constant 1 : i32
    %193 = tpu.dynamic_rotate %164 by %c1_i32_153 dim 1 : vector<8x256xf32>, i32 -> vector<8x256xf32>
    %c3_154 = arith.constant 3 : index
    %c0_155 = arith.constant 0 : index
    %c0_156 = arith.constant 0 : index
    %194 = vector.load %arg3[%c3_154, %c0_155, %c0_156] : memref<9x1x256xf32, #tpu.memory_space<vmem>>, vector<1x1x256xf32>
    %195 = vector.shape_cast %194 : vector<1x1x256xf32> to vector<1x256xf32>
    %196 = vector.broadcast %195 : vector<1x256xf32> to vector<8x256xf32>
    %197 = arith.mulf %193, %196 : vector<8x256xf32>
    %c3_157 = arith.constant 3 : index
    %c0_158 = arith.constant 0 : index
    %c0_159 = arith.constant 0 : index
    %198 = vector.load %arg8[%c3_157, %c0_158, %c0_159] : memref<9x2x8xf32, #tpu.memory_space<vmem>>, vector<1x2x8xf32>
    %199 = vector.shape_cast %198 : vector<1x2x8xf32> to vector<2x8xf32>
    %cst_160 = arith.constant dense<0.000000e+00> : vector<2x256xf32>
    %200 = tpu.matmul %199, %197, %cst_160 {dimension_numbers = #tpu.dot_dimension_numbers<[1], [0], [0], [1], [0, 0, 1, 1], [], []>} : vector<2x8xf32>, vector<8x256xf32>, vector<2x256xf32> -> vector<2x256xf32>
    %201 = arith.addf %192, %200 : vector<2x256xf32>
    %c4_161 = arith.constant 4 : index
    %c0_162 = arith.constant 0 : index
    %c0_163 = arith.constant 0 : index
    %202 = vector.load %arg8[%c4_161, %c0_162, %c0_163] : memref<9x2x8xf32, #tpu.memory_space<vmem>>, vector<1x2x8xf32>
    %203 = vector.shape_cast %202 : vector<1x2x8xf32> to vector<2x8xf32>
    %cst_164 = arith.constant dense<0.000000e+00> : vector<2x256xf32>
    %204 = tpu.matmul %203, %164, %cst_164 {dimension_numbers = #tpu.dot_dimension_numbers<[1], [0], [0], [1], [0, 0, 1, 1], [], []>} : vector<2x8xf32>, vector<8x256xf32>, vector<2x256xf32> -> vector<2x256xf32>
    %205 = arith.addf %201, %204 : vector<2x256xf32>
    %c255_i32_165 = arith.constant 255 : i32
    %206 = tpu.dynamic_rotate %164 by %c255_i32_165 dim 1 : vector<8x256xf32>, i32 -> vector<8x256xf32>
    %c5_166 = arith.constant 5 : index
    %c0_167 = arith.constant 0 : index
    %c0_168 = arith.constant 0 : index
    %207 = vector.load %arg3[%c5_166, %c0_167, %c0_168] : memref<9x1x256xf32, #tpu.memory_space<vmem>>, vector<1x1x256xf32>
    %208 = vector.shape_cast %207 : vector<1x1x256xf32> to vector<1x256xf32>
    %209 = vector.broadcast %208 : vector<1x256xf32> to vector<8x256xf32>
    %210 = arith.mulf %206, %209 : vector<8x256xf32>
    %c5_169 = arith.constant 5 : index
    %c0_170 = arith.constant 0 : index
    %c0_171 = arith.constant 0 : index
    %211 = vector.load %arg8[%c5_169, %c0_170, %c0_171] : memref<9x2x8xf32, #tpu.memory_space<vmem>>, vector<1x2x8xf32>
    %212 = vector.shape_cast %211 : vector<1x2x8xf32> to vector<2x8xf32>
    %cst_172 = arith.constant dense<0.000000e+00> : vector<2x256xf32>
    %213 = tpu.matmul %212, %210, %cst_172 {dimension_numbers = #tpu.dot_dimension_numbers<[1], [0], [0], [1], [0, 0, 1, 1], [], []>} : vector<2x8xf32>, vector<8x256xf32>, vector<2x256xf32> -> vector<2x256xf32>
    %214 = arith.addf %205, %213 : vector<2x256xf32>
    %c241_i32_173 = arith.constant 241 : i32
    %215 = tpu.dynamic_rotate %164 by %c241_i32_173 dim 1 : vector<8x256xf32>, i32 -> vector<8x256xf32>
    %c6_174 = arith.constant 6 : index
    %c0_175 = arith.constant 0 : index
    %c0_176 = arith.constant 0 : index
    %216 = vector.load %arg3[%c6_174, %c0_175, %c0_176] : memref<9x1x256xf32, #tpu.memory_space<vmem>>, vector<1x1x256xf32>
    %217 = vector.shape_cast %216 : vector<1x1x256xf32> to vector<1x256xf32>
    %218 = vector.broadcast %217 : vector<1x256xf32> to vector<8x256xf32>
    %219 = arith.mulf %215, %218 : vector<8x256xf32>
    %c6_177 = arith.constant 6 : index
    %c0_178 = arith.constant 0 : index
    %c0_179 = arith.constant 0 : index
    %220 = vector.load %arg8[%c6_177, %c0_178, %c0_179] : memref<9x2x8xf32, #tpu.memory_space<vmem>>, vector<1x2x8xf32>
    %221 = vector.shape_cast %220 : vector<1x2x8xf32> to vector<2x8xf32>
    %cst_180 = arith.constant dense<0.000000e+00> : vector<2x256xf32>
    %222 = tpu.matmul %221, %219, %cst_180 {dimension_numbers = #tpu.dot_dimension_numbers<[1], [0], [0], [1], [0, 0, 1, 1], [], []>} : vector<2x8xf32>, vector<8x256xf32>, vector<2x256xf32> -> vector<2x256xf32>
    %223 = arith.addf %214, %222 : vector<2x256xf32>
    %c240_i32_181 = arith.constant 240 : i32
    %224 = tpu.dynamic_rotate %164 by %c240_i32_181 dim 1 : vector<8x256xf32>, i32 -> vector<8x256xf32>
    %c7_182 = arith.constant 7 : index
    %c0_183 = arith.constant 0 : index
    %c0_184 = arith.constant 0 : index
    %225 = vector.load %arg3[%c7_182, %c0_183, %c0_184] : memref<9x1x256xf32, #tpu.memory_space<vmem>>, vector<1x1x256xf32>
    %226 = vector.shape_cast %225 : vector<1x1x256xf32> to vector<1x256xf32>
    %227 = vector.broadcast %226 : vector<1x256xf32> to vector<8x256xf32>
    %228 = arith.mulf %224, %227 : vector<8x256xf32>
    %c7_185 = arith.constant 7 : index
    %c0_186 = arith.constant 0 : index
    %c0_187 = arith.constant 0 : index
    %229 = vector.load %arg8[%c7_185, %c0_186, %c0_187] : memref<9x2x8xf32, #tpu.memory_space<vmem>>, vector<1x2x8xf32>
    %230 = vector.shape_cast %229 : vector<1x2x8xf32> to vector<2x8xf32>
    %cst_188 = arith.constant dense<0.000000e+00> : vector<2x256xf32>
    %231 = tpu.matmul %230, %228, %cst_188 {dimension_numbers = #tpu.dot_dimension_numbers<[1], [0], [0], [1], [0, 0, 1, 1], [], []>} : vector<2x8xf32>, vector<8x256xf32>, vector<2x256xf32> -> vector<2x256xf32>
    %232 = arith.addf %223, %231 : vector<2x256xf32>
    %c239_i32_189 = arith.constant 239 : i32
    %233 = tpu.dynamic_rotate %164 by %c239_i32_189 dim 1 : vector<8x256xf32>, i32 -> vector<8x256xf32>
    %c8_190 = arith.constant 8 : index
    %c0_191 = arith.constant 0 : index
    %c0_192 = arith.constant 0 : index
    %234 = vector.load %arg3[%c8_190, %c0_191, %c0_192] : memref<9x1x256xf32, #tpu.memory_space<vmem>>, vector<1x1x256xf32>
    %235 = vector.shape_cast %234 : vector<1x1x256xf32> to vector<1x256xf32>
    %236 = vector.broadcast %235 : vector<1x256xf32> to vector<8x256xf32>
    %237 = arith.mulf %233, %236 : vector<8x256xf32>
    %c8_193 = arith.constant 8 : index
    %c0_194 = arith.constant 0 : index
    %c0_195 = arith.constant 0 : index
    %238 = vector.load %arg8[%c8_193, %c0_194, %c0_195] : memref<9x2x8xf32, #tpu.memory_space<vmem>>, vector<1x2x8xf32>
    %239 = vector.shape_cast %238 : vector<1x2x8xf32> to vector<2x8xf32>
    %cst_196 = arith.constant dense<0.000000e+00> : vector<2x256xf32>
    %240 = tpu.matmul %239, %237, %cst_196 {dimension_numbers = #tpu.dot_dimension_numbers<[1], [0], [0], [1], [0, 0, 1, 1], [], []>} : vector<2x8xf32>, vector<8x256xf32>, vector<2x256xf32> -> vector<2x256xf32>
    %241 = arith.addf %232, %240 : vector<2x256xf32>
    %c0_197 = arith.constant 0 : index
    %c0_198 = arith.constant 0 : index
    %242 = vector.load %arg9[%c0_197, %c0_198] : memref<2x1xf32, #tpu.memory_space<vmem>>, vector<2x1xf32>
    %243 = vector.broadcast %242 : vector<2x1xf32> to vector<2x256xf32>
    %244 = arith.addf %241, %243 : vector<2x256xf32>
    %245 = arith.truncf %244 : vector<2x256xf32> to vector<2x256xbf16>
    %c0_199 = arith.constant 0 : index
    %c0_200 = arith.constant 0 : index
    %246 = vector.load %arg10[%c0_199, %c0_200] : memref<256x256xbf16, #tpu.memory_space<vmem>>, vector<256x256xbf16>
    %cst_201 = arith.constant dense<0.000000e+00> : vector<2x256xf32>
    %247 = tpu.matmul %245, %246, %cst_201 {dimension_numbers = #tpu.dot_dimension_numbers<[1], [0], [0], [1], [0, 0, 1, 1], [], []>} : vector<2x256xbf16>, vector<256x256xbf16>, vector<2x256xf32> -> vector<2x256xf32>
    %c0_202 = arith.constant 0 : index
    %c0_203 = arith.constant 0 : index
    %248 = vector.load %arg2[%c0_202, %c0_203] : memref<2x256xf32, #tpu.memory_space<vmem>>, vector<2x256xf32>
    %249 = arith.addf %247, %248 : vector<2x256xf32>
    %c0_204 = arith.constant 0 : index
    %c0_205 = arith.constant 0 : index
    %250 = vector.load %arg11[%c0_204, %c0_205] : memref<2x256xf32, #tpu.memory_space<vmem>>, vector<2x256xf32>
    tpu.vector_store %arg11[%c0_204, %c0_205], %249 {strides = array<i32>} : memref<2x256xf32, #tpu.memory_space<vmem>>, vector<2x256xf32>,
    return
  }
  func.func @transform_0(%arg0: i32) -> (i32, i32) {
    %c0_i32 = arith.constant 0 : i32
    %c0_i32_0 = arith.constant 0 : i32
    %c0_i32_1 = arith.constant 0 : i32
    return %c0_i32, %c0_i32_0 : i32, i32
  }
  func.func @transform_1(%arg0: i32) -> (i32, i32) {
    %c0_i32 = arith.constant 0 : i32
    %c0_i32_0 = arith.constant 0 : i32
    %c0_i32_1 = arith.constant 0 : i32
    return %c0_i32, %c0_i32_0 : i32, i32
  }
  func.func @transform_2(%arg0: i32) -> (i32, i32, i32) {
    %c0_i32 = arith.constant 0 : i32
    %c0_i32_0 = arith.constant 0 : i32
    %c0_i32_1 = arith.constant 0 : i32
    %c0_i32_2 = arith.constant 0 : i32
    return %c0_i32, %c0_i32_0, %c0_i32_1 : i32, i32, i32
  }
  func.func @transform_3(%arg0: i32) -> (i32, i32, i32) {
    %c0_i32 = arith.constant 0 : i32
    %c0_i32_0 = arith.constant 0 : i32
    %c0_i32_1 = arith.constant 0 : i32
    %c0_i32_2 = arith.constant 0 : i32
    return %c0_i32, %c0_i32_0, %c0_i32_1 : i32, i32, i32
  }
  func.func @transform_4(%arg0: i32) -> (i32, i32) {
    %c0_i32 = arith.constant 0 : i32
    %c0_i32_0 = arith.constant 0 : i32
    %c0_i32_1 = arith.constant 0 : i32
    return %c0_i32, %c0_i32_0 : i32, i32
  }
  func.func @transform_5(%arg0: i32) -> (i32, i32, i32) {
    %c0_i32 = arith.constant 0 : i32
    %c0_i32_0 = arith.constant 0 : i32
    %c0_i32_1 = arith.constant 0 : i32
    %c0_i32_2 = arith.constant 0 : i32
    return %c0_i32, %c0_i32_0, %c0_i32_1 : i32, i32, i32
  }
  func.func @transform_6(%arg0: i32) -> (i32, i32) {
    %c0_i32 = arith.constant 0 : i32
    %c0_i32_0 = arith.constant 0 : i32
    %c0_i32_1 = arith.constant 0 : i32
    return %c0_i32, %c0_i32_0 : i32, i32
  }
  func.func @transform_7(%arg0: i32) -> (i32, i32, i32) {
    %c0_i32 = arith.constant 0 : i32
    %c0_i32_0 = arith.constant 0 : i32
    %c0_i32_1 = arith.constant 0 : i32
    %c0_i32_2 = arith.constant 0 : i32
    return %c0_i32, %c0_i32_0, %c0_i32_1 : i32, i32, i32
  }
  func.func @transform_8(%arg0: i32) -> (i32, i32) {
    %c0_i32 = arith.constant 0 : i32
    %c0_i32_0 = arith.constant 0 : i32
    %c0_i32_1 = arith.constant 0 : i32
    return %c0_i32, %c0_i32_0 : i32, i32
  }
  func.func @transform_9(%arg0: i32) -> (i32, i32) {
    %c0_i32 = arith.constant 0 : i32
    %c0_i32_0 = arith.constant 0 : i32
    %c0_i32_1 = arith.constant 0 : i32
    return %c0_i32, %c0_i32_0 : i32, i32
  }
  func.func @transform_10(%arg0: i32) -> (i32, i32) {
    %c0_i32 = arith.constant 0 : i32
    %c0_i32_0 = arith.constant 0 : i32
    %c0_i32_1 = arith.constant 0 : i32
    return %c0_i32, %c0_i32_0 : i32, i32
  }
}

</mosaic_0001>

<llo_original>
// kernel: forward.4
$region0: #{forward.4}
  #allocation0 [shape = 'u32[]', space=smem, size = 0x4, offset = 0x4, fixed_abs, tag = 'smem constant byte address 0x4 - core index']
  #allocation1 [shape = 'u32[144,128]{1,0:T(1,128)}', space=vmem, size = 0x12000, scoped, tag = 'internal scratch']
  %s0 = inlined_call_operand.vmem [shape: f32[2,256], index: 0, kind: input, shape index: {}]
  %s1 = inlined_call_operand.hbm [shape: bf16[256,256], index: 1, kind: input, shape index: {}]
  %s2 = inlined_call_operand.vmem [shape: f32[2,256], index: 2, kind: output, shape index: {}]
  %s3 = sld [smem:[#allocation0]]
  $region22: #{forward.4} parent=0
    _
  %s5 = ssub.s32 1, %s3
  %s6 = scalar_select 0, %s5, %s3
  $region1: #{forward.4} parent=0
    #allocation2 [shape = 'u8[131072]{0}', space=vmem, size = 0x20000, scoped, tag = 'input window, operand 1, single buffered']
    #allocation3 [shape = 's32[1]{0}', space=sflag, size = 0x4, scoped, tag = 'scoped memory for forward.4']
    %7 = vsyncpa [#allocation3], 0
    // Predicated region
    $region2: #{forward.4} parent=1 // pred_check
      _
    $region3: #{forward.4} parent=1 // pred_check_branch
      %9 = sbr.rel (0) target = $region5
    $region4: #{forward.4} parent=1 // pred_region
      _
    $region5: #{forward.4} parent=1 // pred_fallthru
      _
    // Predicated region
    $region6: #{forward.4} parent=1 // pred_check
      _
    $region7: #{forward.4} parent=1 // pred_check_branch
      %11 = sbr.rel (0) target = $region9
    $region8: #{forward.4} parent=1 // pred_region
      %s13 = ssub.s32 4096, 4096
      %14 = vsyncadd [#allocation3], %s13
      %s15 = sshll.u32 [#allocation2], 4
      %s16 = int_to_ptr.vmem [resolvable:$true] %s15
      %21 = dma.hbm_to_vmem [thread:$0]  %s1, 4096, %s16, [#allocation3], 128, 128, 8
    $region9: #{forward.4} parent=1 // pred_fallthru
      _
    // Predicated region
    $region10: #{forward.4} parent=1 // pred_check
      _
    $region11: #{forward.4} parent=1 // pred_check_branch
      %23 = sbr.rel (0) target = $region13
    $region12: #{forward.4} parent=1 // pred_region
      %24 = dma.done [#allocation3], 4096
    $region13: #{forward.4} parent=1 // pred_fallthru
      _
    %v25 = vld [vmem:[%s0] sm:$0xf]
    %v28 = vunpack.c.l.s4 1983009808
    %v29 = vunpack.c.0.s8 %v28
    %v30 = vlaneseq
    %v31 = vshrl.u32 %v30, 7
    %v32 = vsub.s32 %v29, %v31
    %v33 = vrot.slane %v25, %v32
    %v34 = vcombine.high %v33, %v33
    %v37 = vpack.c.bf16 %v33, %v33
    %v38 = vpack.c.bf16 %v34, %v34
    %v39 = vld [vmem:[#allocation2] sm:$0xff]
    %v40 = vld [vmem:[#allocation2 + $0x8] sm:$0xff]
    %v41 = vld [vmem:[#allocation2 + $0x10] sm:$0xff]
    %v42 = vld [vmem:[#allocation2 + $0x18] sm:$0xff]
    %v43 = vld [vmem:[#allocation2 + $0x20] sm:$0xff]
    %v44 = vld [vmem:[#allocation2 + $0x28] sm:$0xff]
    %v45 = vld [vmem:[#allocation2 + $0x30] sm:$0xff]
    %v46 = vld [vmem:[#allocation2 + $0x38] sm:$0xff]
    %v47 = vld [vmem:[#allocation2 + $0x40] sm:$0xff]
    %v48 = vld [vmem:[#allocation2 + $0x48] sm:$0xff]
    %v49 = vld [vmem:[#allocation2 + $0x50] sm:$0xff]
    %v50 = vld [vmem:[#allocation2 + $0x58] sm:$0xff]
    %v51 = vld [vmem:[#allocation2 + $0x60] sm:$0xff]
    %v52 = vld [vmem:[#allocation2 + $0x68] sm:$0xff]
    %v53 = vld [vmem:[#allocation2 + $0x70] sm:$0xff]
    %v54 = vld [vmem:[#allocation2 + $0x78] sm:$0xff]
    %v55 = vld [vmem:[#allocation2 + $0x80] sm:$0xff]
    %v56 = vld [vmem:[#allocation2 + $0x88] sm:$0xff]
    %v57 = vld [vmem:[#allocation2 + $0x90] sm:$0xff]
    %v58 = vld [vmem:[#allocation2 + $0x98] sm:$0xff]
    %v59 = vld [vmem:[#allocation2 + $0xa0] sm:$0xff]
    %v60 = vld [vmem:[#allocation2 + $0xa8] sm:$0xff]
    %v61 = vld [vmem:[#allocation2 + $0xb0] sm:$0xff]
    %v62 = vld [vmem:[#allocation2 + $0xb8] sm:$0xff]
    %v63 = vld [vmem:[#allocation2 + $0xc0] sm:$0xff]
    %v64 = vld [vmem:[#allocation2 + $0xc8] sm:$0xff]
    %v65 = vld [vmem:[#allocation2 + $0xd0] sm:$0xff]
    %v66 = vld [vmem:[#allocation2 + $0xd8] sm:$0xff]
    %v67 = vld [vmem:[#allocation2 + $0xe0] sm:$0xff]
    %v68 = vld [vmem:[#allocation2 + $0xe8] sm:$0xff]
    %v69 = vld [vmem:[#allocation2 + $0xf0] sm:$0xff]
    %v70 = vld [vmem:[#allocation2 + $0xf8] sm:$0xff]
    %v103 = vunpack.c.l.b16 %v39
    %v104 = vunpack.c.h.b16 %v39
    %v105 = vunpack.c.l.b16 %v40
    %v106 = vunpack.c.h.b16 %v40
    %v107 = vunpack.c.l.b16 %v41
    %v108 = vunpack.c.h.b16 %v41
    %v109 = vunpack.c.l.b16 %v42
    %v110 = vunpack.c.h.b16 %v42
    %v111 = vunpack.c.l.b16 %v43
    %v112 = vunpack.c.h.b16 %v43
    %v113 = vunpack.c.l.b16 %v44
    %v114 = vunpack.c.h.b16 %v44
    %v115 = vunpack.c.l.b16 %v45
    %v116 = vunpack.c.h.b16 %v45
    %v117 = vunpack.c.l.b16 %v46
    %v118 = vunpack.c.h.b16 %v46
    %v119 = vunpack.c.l.b16 %v47
    %v120 = vunpack.c.h.b16 %v47
    %v121 = vunpack.c.l.b16 %v48
    %v122 = vunpack.c.h.b16 %v48
    %v123 = vunpack.c.l.b16 %v49
    %v124 = vunpack.c.h.b16 %v49
    %v125 = vunpack.c.l.b16 %v50
    %v126 = vunpack.c.h.b16 %v50
    %v127 = vunpack.c.l.b16 %v51
    %v128 = vunpack.c.h.b16 %v51
    %v129 = vunpack.c.l.b16 %v52
    %v130 = vunpack.c.h.b16 %v52
    %v131 = vunpack.c.l.b16 %v53
    %v132 = vunpack.c.h.b16 %v53
    %v133 = vunpack.c.l.b16 %v54
    %v134 = vunpack.c.h.b16 %v54
    %v135 = vunpack.c.l.b16 %v55
    %v136 = vunpack.c.h.b16 %v55
    %v137 = vunpack.c.l.b16 %v56
    %v138 = vunpack.c.h.b16 %v56
    %v139 = vunpack.c.l.b16 %v57
    %v140 = vunpack.c.h.b16 %v57
    %v141 = vunpack.c.l.b16 %v58
    %v142 = vunpack.c.h.b16 %v58
    %v143 = vunpack.c.l.b16 %v59
    %v144 = vunpack.c.h.b16 %v59
    %v145 = vunpack.c.l.b16 %v60
    %v146 = vunpack.c.h.b16 %v60
    %v147 = vunpack.c.l.b16 %v61
    %v148 = vunpack.c.h.b16 %v61
    %v149 = vunpack.c.l.b16 %v62
    %v150 = vunpack.c.h.b16 %v62
    %v151 = vunpack.c.l.b16 %v63
    %v152 = vunpack.c.h.b16 %v63
    %v153 = vunpack.c.l.b16 %v64
    %v154 = vunpack.c.h.b16 %v64
    %v155 = vunpack.c.l.b16 %v65
    %v156 = vunpack.c.h.b16 %v65
    %v157 = vunpack.c.l.b16 %v66
    %v158 = vunpack.c.h.b16 %v66
    %v159 = vunpack.c.l.b16 %v67
    %v160 = vunpack.c.h.b16 %v67
    %v161 = vunpack.c.l.b16 %v68
    %v162 = vunpack.c.h.b16 %v68
    %v163 = vunpack.c.l.b16 %v69
    %v164 = vunpack.c.h.b16 %v69
    %v165 = vunpack.c.l.b16 %v70
    %v166 = vunpack.c.h.b16 %v70
    %v167 = vpack.c.b16 %v105, %v103
    %v168 = vpack.c.b16 %v106, %v104
    %v169 = vpack.c.b16 %v109, %v107
    %v170 = vpack.c.b16 %v110, %v108
    %v171 = vpack.c.b16 %v113, %v111
    %v172 = vpack.c.b16 %v114, %v112
    %v173 = vpack.c.b16 %v117, %v115
    %v174 = vpack.c.b16 %v118, %v116
    %v175 = vpack.c.b16 %v121, %v119
    %v176 = vpack.c.b16 %v122, %v120
    %v177 = vpack.c.b16 %v125, %v123
    %v178 = vpack.c.b16 %v126, %v124
    %v179 = vpack.c.b16 %v129, %v127
    %v180 = vpack.c.b16 %v130, %v128
    %v181 = vpack.c.b16 %v133, %v131
    %v182 = vpack.c.b16 %v134, %v132
    %v183 = vpack.c.b16 %v137, %v135
    %v184 = vpack.c.b16 %v138, %v136
    %v185 = vpack.c.b16 %v141, %v139
    %v186 = vpack.c.b16 %v142, %v140
    %v187 = vpack.c.b16 %v145, %v143
    %v188 = vpack.c.b16 %v146, %v144
    %v189 = vpack.c.b16 %v149, %v147
    %v190 = vpack.c.b16 %v150, %v148
    %v191 = vpack.c.b16 %v153, %v151
    %v192 = vpack.c.b16 %v154, %v152
    %v193 = vpack.c.b16 %v157, %v155
    %v194 = vpack.c.b16 %v158, %v156
    %v195 = vpack.c.b16 %v161, %v159
    %v196 = vpack.c.b16 %v162, %v160
    %v197 = vpack.c.b16 %v165, %v163
    %v198 = vpack.c.b16 %v166, %v164
    %231 = vmatprep.subr.bf16.mxu0 %v182
    %232 = vmatpush1.bf16.msra.mxu0 %v181
    %233 = vmatprep.subr.bf16.mxu0 %v180
    %234 = vmatpush1.bf16.msra.mxu0 %v179
    %235 = vmatprep.subr.bf16.mxu0 %v178
    %236 = vmatpush1.bf16.msra.mxu0 %v177
    %237 = vmatprep.subr.bf16.mxu0 %v176
    %238 = vmatpush1.bf16.msra.mxu0 %v175
    %239 = vmatprep.subr.bf16.mxu0 %v174
    %240 = vmatpush1.bf16.msra.mxu0 %v173
    %241 = vmatprep.subr.bf16.mxu0 %v172
    %242 = vmatpush1.bf16.msra.mxu0 %v171
    %243 = vmatprep.subr.bf16.mxu0 %v170
    %244 = vmatpush1.bf16.msra.mxu0 %v169
    %245 = vmatprep.subr.bf16.mxu0 %v168
    %246 = vmatpush1.bf16.msra.mxu0 %v167
    %247 = vmatprep.subr.bf16.mxu0 %v198
    %248 = vmatpush2.bf16.msra.mxu0 %v197
    %249 = vmatprep.subr.bf16.mxu0 %v196
    %250 = vmatpush2.bf16.msra.mxu0 %v195
    %251 = vmatprep.subr.bf16.mxu0 %v194
    %252 = vmatpush2.bf16.msra.mxu0 %v193
    %253 = vmatprep.subr.bf16.mxu0 %v192
    %254 = vmatpush2.bf16.msra.mxu0 %v191
    %255 = vmatprep.subr.bf16.mxu0 %v190
    %256 = vmatpush2.bf16.msra.mxu0 %v189
    %257 = vmatprep.subr.bf16.mxu0 %v188
    %258 = vmatpush2.bf16.msra.mxu0 %v187
    %259 = vmatprep.subr.bf16.mxu0 %v186
    %260 = vmatpush2.bf16.msra.mxu0 %v185
    %261 = vmatprep.subr.bf16.mxu0 %v184
    %262 = vmatpush2.bf16.msra.mxu0 %v183
    %263 = vmatprep.mubr.bf16.mxu0 %v38
    %264 = vmatmul.mubr.bf16.gmra.mxu0 %v37
    %v265 = vpop.f32.mrf.mxu0
    %v266 = vadd.f32 0.0, %v265
    %v267 = vpop.f32.mrf.mxu0
    %v268 = vadd.f32 0.0, %v267
    %v269 = vpop.f32.mrf.mxu0
    %v270 = vpop.f32.mrf.mxu0
    %271 = vdwg.mxu0
    %v274 = vcombine.low %v266, %v268
    %v276 = vunpack.c.l.s4 1983009808
    %v277 = vunpack.c.0.s8 %v276
    %v278 = vlaneseq
    %v279 = vshrl.u32 %v278, 7
    %v280 = vsub.s32 %v277, %v279
    %v281 = vrot.slane %v274, %v280
    %283 = vst [vmem:[%s2] sm:$0xf] %v281
    // Predicated region
    $region14: #{forward.4} parent=1 // pred_check
      _
    $region15: #{forward.4} parent=1 // pred_check_branch
      %285 = sbr.rel (0) target = $region17
    $region16: #{forward.4} parent=1 // pred_region
      _
    $region17: #{forward.4} parent=1 // pred_fallthru
      _
    // Predicated region
    $region18: #{forward.4} parent=1 // pred_check
      _
    $region19: #{forward.4} parent=1 // pred_check_branch
      %287 = sbr.rel (0) target = $region21
    $region20: #{forward.4} parent=1 // pred_region
      _
    $region21: #{forward.4} parent=1 // pred_fallthru
      _
    %288 = vsyncpa [#allocation3], 1

// kernel: forward.5
$region0: #{forward.5}
  #allocation0 [shape = 'u32[]', space=smem, size = 0x4, offset = 0x4, fixed_abs, tag = 'smem constant byte address 0x4 - core index']
  #allocation1 [shape = 'u32[144,128]{1,0:T(1,128)}', space=vmem, size = 0x12000, scoped, tag = 'internal scratch']
  %s0 = inlined_call_operand.vmem [shape: f32[2,256], index: 0, kind: input, shape index: {}, may-alias: {0,1}]
  %s1 = inlined_call_operand.vmem [shape: f32[2,256], index: 1, kind: input, shape index: {}, may-alias: {0,1}]
  %s2 = inlined_call_operand.vmem [shape: f32[9,1,256], index: 2, kind: input, shape index: {}]
  %s3 = inlined_call_operand.hbm [shape: f32[9,8,2], index: 3, kind: input, shape index: {}]
  %s4 = inlined_call_operand.vmem [shape: f32[8,1], index: 4, kind: input, shape index: {}, may-alias: {4,6}]
  %s5 = inlined_call_operand.hbm [shape: f32[9,8,8], index: 5, kind: input, shape index: {}]
  %s6 = inlined_call_operand.vmem [shape: f32[8,1], index: 6, kind: input, shape index: {}, may-alias: {4,6}]
  %s7 = inlined_call_operand.vmem [shape: f32[9,2,8], index: 7, kind: input, shape index: {}]
  %s8 = inlined_call_operand.vmem [shape: f32[2,1], index: 8, kind: input, shape index: {}]
  %s9 = inlined_call_operand.vmem [shape: bf16[256,256], index: 9, kind: input, shape index: {}]
  %s10 = inlined_call_operand.vmem [shape: f32[2,256], index: 10, kind: output, shape index: {}]
  %s11 = sld [smem:[#allocation0]]
  $region58: #{forward.5} parent=0
    _
  %s13 = ssub.s32 1, %s11
  %s14 = scalar_select 0, %s13, %s11
  $region1: #{forward.5} parent=0
    #allocation2 [shape = 'u8[36864]{0}', space=vmem, size = 0x9000, scoped, tag = 'input window, operand 3, single buffered']
    #allocation3 [shape = 's32[1]{0}', space=sflag, size = 0x4, scoped, tag = 'scoped memory for forward.5']
    #allocation4 [shape = 'u8[36864]{0}', space=vmem, size = 0x9000, scoped, tag = 'input window, operand 5, single buffered']
    #allocation5 [shape = 's32[1]{0}', space=sflag, size = 0x4, scoped, tag = 'scoped memory for forward.5']
    %15 = vsyncpa [#allocation3], 0
    %16 = vsyncpa [#allocation5], 0
    // Predicated region
    $region2: #{forward.5} parent=1 // pred_check
      _
    $region3: #{forward.5} parent=1 // pred_check_branch
      %18 = sbr.rel (0) target = $region5
    $region4: #{forward.5} parent=1 // pred_region
      _
    $region5: #{forward.5} parent=1 // pred_fallthru
      _
    // Predicated region
    $region6: #{forward.5} parent=1 // pred_check
      _
    $region7: #{forward.5} parent=1 // pred_check_branch
      %20 = sbr.rel (0) target = $region9
    $region8: #{forward.5} parent=1 // pred_region
      _
    $region9: #{forward.5} parent=1 // pred_fallthru
      _
    // Predicated region
    $region10: #{forward.5} parent=1 // pred_check
      _
    $region11: #{forward.5} parent=1 // pred_check_branch
      %22 = sbr.rel (0) target = $region13
    $region12: #{forward.5} parent=1 // pred_region
      _
    $region13: #{forward.5} parent=1 // pred_fallthru
      _
    // Predicated region
    $region14: #{forward.5} parent=1 // pred_check
      _
    $region15: #{forward.5} parent=1 // pred_check_branch
      %24 = sbr.rel (0) target = $region17
    $region16: #{forward.5} parent=1 // pred_region
      %s26 = ssub.s32 1152, 1152
      %27 = vsyncadd [#allocation3], %s26
      %s28 = sshll.u32 [#allocation2], 4
      %s29 = int_to_ptr.vmem [resolvable:$true] %s28
      %34 = dma.hbm_to_vmem [thread:$0]  %s3, 1152, %s29, [#allocation3], 128, 128, 8
    $region17: #{forward.5} parent=1 // pred_fallthru
      _
    // Predicated region
    $region18: #{forward.5} parent=1 // pred_check
      _
    $region19: #{forward.5} parent=1 // pred_check_branch
      %36 = sbr.rel (0) target = $region21
    $region20: #{forward.5} parent=1 // pred_region
      _
    $region21: #{forward.5} parent=1 // pred_fallthru
      _
    // Predicated region
    $region22: #{forward.5} parent=1 // pred_check
      _
    $region23: #{forward.5} parent=1 // pred_check_branch
      %38 = sbr.rel (0) target = $region25
    $region24: #{forward.5} parent=1 // pred_region
      %s40 = ssub.s32 1152, 1152
      %41 = vsyncadd [#allocation5], %s40
      %s42 = sshll.u32 [#allocation4], 4
      %s43 = int_to_ptr.vmem [resolvable:$true] %s42
      %48 = dma.hbm_to_vmem [thread:$0]  %s5, 1152, %s43, [#allocation5], 128, 128, 8
    $region25: #{forward.5} parent=1 // pred_fallthru
      _
    // Predicated region
    $region26: #{forward.5} parent=1 // pred_check
      _
    $region27: #{forward.5} parent=1 // pred_check_branch
      %50 = sbr.rel (0) target = $region29
    $region28: #{forward.5} parent=1 // pred_region
      _
    $region29: #{forward.5} parent=1 // pred_fallthru
      _
    // Predicated region
    $region30: #{forward.5} parent=1 // pred_check
      _
    $region31: #{forward.5} parent=1 // pred_check_branch
      %52 = sbr.rel (0) target = $region33
    $region32: #{forward.5} parent=1 // pred_region
      _
    $region33: #{forward.5} parent=1 // pred_fallthru
      _
    // Predicated region
    $region34: #{forward.5} parent=1 // pred_check
      _
    $region35: #{forward.5} parent=1 // pred_check_branch
      %54 = sbr.rel (0) target = $region37
    $region36: #{forward.5} parent=1 // pred_region
      _
    $region37: #{forward.5} parent=1 // pred_fallthru
      _
    // Predicated region
    $region38: #{forward.5} parent=1 // pred_check
      _
    $region39: #{forward.5} parent=1 // pred_check_branch
      %56 = sbr.rel (0) target = $region41
    $region40: #{forward.5} parent=1 // pred_region
      _
    $region41: #{forward.5} parent=1 // pred_fallthru
      _
    // Predicated region
    $region42: #{forward.5} parent=1 // pred_check
      _
    $region43: #{forward.5} parent=1 // pred_check_branch
      %58 = sbr.rel (0) target = $region45
    $region44: #{forward.5} parent=1 // pred_region
      %59 = dma.done [#allocation3], 1152
    $region45: #{forward.5} parent=1 // pred_fallthru
      _
    // Predicated region
    $region46: #{forward.5} parent=1 // pred_check
      _
    $region47: #{forward.5} parent=1 // pred_check_branch
      %61 = sbr.rel (0) target = $region49
    $region48: #{forward.5} parent=1 // pred_region
      %62 = dma.done [#allocation5], 1152
    $region49: #{forward.5} parent=1 // pred_fallthru
      _
    %v63 = vld [vmem:[%s0] sm:$0xf]
    %v66 = vunpack.c.l.s4 1983009808
    %v67 = vunpack.c.0.s8 %v66
    %v68 = vlaneseq
    %v69 = vshrl.u32 %v68, 7
    %v70 = vsub.s32 %v67, %v69
    %v71 = vrot.slane %v63, %v70
    %v72 = vcombine.high %v71, %v71
    %75 = vrot.lane.b32.xlu0 %v71, 17
    %v76 = vpop.permute.xlu0 %75
    %77 = vrot.lane.b32.xlu0 %v72, 17
    %v78 = vpop.permute.xlu0 %77
    %v79 = vlaneseq
    %v80 = vand.u32 %v79, 127
    %vm81 = vcmp.lt.s32.totalorder %v80, 17
    %v82 = vsel %vm81, %v76, %v78
    %v83 = vsel %vm81, %v78, %v76
    %v84 = vld [vmem:[%s2] sm:$0x3]
    %v86 = vlaneseq
    %v87 = vshrl.u32 %v86, 7
    %v88 = vsub.s32 0, %v87
    %v89 = vrot.slane %v84, %v88
    %v90 = vlaneseq
    %v91 = vshrl.u32 %v90, 7
    %v92 = vsub.s32 1, %v91
    %v93 = vrot.slane %v84, %v92
    %v96 = vmul.f32 %v83, %v89
    %v97 = vmul.f32 %v82, %v93
    %v98 = vld [vmem:[#allocation2] sm:$0xff]
    %99 = vrot.lane.b32.xlu0 %v71, 16
    %v100 = vpop.permute.xlu0 %99
    %101 = vrot.lane.b32.xlu0 %v72, 16
    %v102 = vpop.permute.xlu0 %101
    %vm103 = vcmp.lt.s32.totalorder %v80, 16
    %v104 = vsel %vm103, %v100, %v102
    %v105 = vsel %vm103, %v102, %v100
    %s106 = scalar_lea.vmem %s2, 2
    %v107 = vld [vmem:[%s106] sm:$0x3]
    %v109 = vlaneseq
    %v110 = vshrl.u32 %v109, 7
    %v111 = vsub.s32 0, %v110
    %v112 = vrot.slane %v107, %v111
    %v113 = vlaneseq
    %v114 = vshrl.u32 %v113, 7
    %v115 = vsub.s32 1, %v114
    %v116 = vrot.slane %v107, %v115
    %v119 = vmul.f32 %v105, %v112
    %v120 = vmul.f32 %v104, %v116
    %s121 = scalar_lea.vmem [#allocation2], 8
    %v122 = vld [vmem:[%s121] sm:$0xff]
    %vm123 = vcmask 15360
    %v125 = vsel %vm123, %v122, 0
    %vm127 = vcmask 1041408
    %v129 = vsel %vm127, %v119, 0
    %v132 = vsel %vm127, %v120, 0
    %134 = vmatprep.subr.mxu0 0.0
    %135 = vmatpush1.msra.mxu0 0.0
    %136 = vmatprep.subr.mxu0 0.0
    %137 = vmatpush1.msra.mxu0 0.0
    %138 = vmatprep.subr.mxu0 0.0
    %139 = vmatpush1.msra.mxu0 0.0
    %140 = vmatprep.subr.mxu0 0.0
    %141 = vmatpush1.msra.mxu0 0.0
    %142 = vmatprep.subr.mxu0 0.0
    %143 = vmatpush1.msra.mxu0 0.0
    %144 = vmatprep.subr.mxu0 0.0
    %145 = vmatpush1.msra.mxu0 0.0
    %146 = vmatprep.subr.mxu0 0.0
    %147 = vmatpush1.msra.mxu0 0.0
    %148 = vmatprep.subr.mxu0 0.0
    %149 = vmatpush1.msra.mxu0 0.0
    %150 = vmatprep.subr.mxu0 0.0
    %151 = vmatpush1.msra.mxu0 0.0
    %152 = vmatprep.subr.mxu0 0.0
    %153 = vmatpush1.msra.mxu0 0.0
    %154 = vmatprep.subr.mxu0 0.0
    %155 = vmatpush1.msra.mxu0 0.0
    %156 = vmatprep.subr.mxu0 0.0
    %157 = vmatpush1.msra.mxu0 0.0
    %158 = vmatprep.subr.mxu0 0.0
    %159 = vmatpush1.msra.mxu0 0.0
    %160 = vmatprep.subr.mxu0 0.0
    %161 = vmatpush1.msra.mxu0 0.0
    %162 = vmatprep.subr.mxu0 0.0
    %163 = vmatpush1.msra.mxu0 0.0
    %164 = vmatprep.subr.mxu0 %v132
    %165 = vmatpush1.msra.mxu0 %v129
    %166 = vmatprep.subr.mxu0 0.0
    %167 = vmatpush2.msra.mxu0 0.0
    %168 = vmatprep.subr.mxu0 0.0
    %169 = vmatpush2.msra.mxu0 0.0
    %170 = vmatprep.subr.mxu0 0.0
    %171 = vmatpush2.msra.mxu0 0.0
    %172 = vmatprep.subr.mxu0 0.0
    %173 = vmatpush2.msra.mxu0 0.0
    %174 = vmatprep.subr.mxu0 0.0
    %175 = vmatpush2.msra.mxu0 0.0
    %176 = vmatprep.subr.mxu0 0.0
    %177 = vmatpush2.msra.mxu0 0.0
    %178 = vmatprep.subr.mxu0 0.0
    %179 = vmatpush2.msra.mxu0 0.0
    %180 = vmatprep.subr.mxu0 0.0
    %181 = vmatpush2.msra.mxu0 0.0
    %182 = vmatprep.subr.mxu0 0.0
    %183 = vmatpush2.msra.mxu0 0.0
    %184 = vmatprep.subr.mxu0 0.0
    %185 = vmatpush2.msra.mxu0 0.0
    %186 = vmatprep.subr.mxu0 0.0
    %187 = vmatpush2.msra.mxu0 0.0
    %188 = vmatprep.subr.mxu0 0.0
    %189 = vmatpush2.msra.mxu0 0.0
    %190 = vmatprep.subr.mxu0 0.0
    %191 = vmatpush2.msra.mxu0 0.0
    %192 = vmatprep.subr.mxu0 0.0
    %193 = vmatpush2.msra.mxu0 0.0
    %194 = vmatprep.subr.mxu0 0.0
    %195 = vmatpush2.msra.mxu0 0.0
    %196 = vmatprep.subr.mxu0 0.0
    %197 = vmatpush2.msra.mxu0 0.0
    %198 = vmatprep.mubr.f32.mxu0 0.0
    %199 = vmatmul.mubr.f32.gmra.mxu0 %v125
    %v200 = vpop.f32.mrf.mxu0
    %v201 = vadd.f32 0.0, %v200
    %v202 = vpop.f32.mrf.mxu0
    %v203 = vadd.f32 0.0, %v202
    %204 = vdwg.mxu0
    %v206 = vsel %vm123, %v98, 0
    %v209 = vsel %vm127, %v96, 0
    %v212 = vsel %vm127, %v97, 0
    %214 = vmatprep.subr.mxu0 0.0
    %215 = vmatpush1.msra.mxu0 0.0
    %216 = vmatprep.subr.mxu0 0.0
    %217 = vmatpush1.msra.mxu0 0.0
    %218 = vmatprep.subr.mxu0 0.0
    %219 = vmatpush1.msra.mxu0 0.0
    %220 = vmatprep.subr.mxu0 0.0
    %221 = vmatpush1.msra.mxu0 0.0
    %222 = vmatprep.subr.mxu0 0.0
    %223 = vmatpush1.msra.mxu0 0.0
    %224 = vmatprep.subr.mxu0 0.0
    %225 = vmatpush1.msra.mxu0 0.0
    %226 = vmatprep.subr.mxu0 0.0
    %227 = vmatpush1.msra.mxu0 0.0
    %228 = vmatprep.subr.mxu0 0.0
    %229 = vmatpush1.msra.mxu0 0.0
    %230 = vmatprep.subr.mxu0 0.0
    %231 = vmatpush1.msra.mxu0 0.0
    %232 = vmatprep.subr.mxu0 0.0
    %233 = vmatpush1.msra.mxu0 0.0
    %234 = vmatprep.subr.mxu0 0.0
    %235 = vmatpush1.msra.mxu0 0.0
    %236 = vmatprep.subr.mxu0 0.0
    %237 = vmatpush1.msra.mxu0 0.0
    %238 = vmatprep.subr.mxu0 0.0
    %239 = vmatpush1.msra.mxu0 0.0
    %240 = vmatprep.subr.mxu0 0.0
    %241 = vmatpush1.msra.mxu0 0.0
    %242 = vmatprep.subr.mxu0 0.0
    %243 = vmatpush1.msra.mxu0 0.0
    %244 = vmatprep.subr.mxu0 %v212
    %245 = vmatpush1.msra.mxu0 %v209
    %246 = vmatprep.subr.mxu0 0.0
    %247 = vmatpush2.msra.mxu0 0.0
    %248 = vmatprep.subr.mxu0 0.0
    %249 = vmatpush2.msra.mxu0 0.0
    %250 = vmatprep.subr.mxu0 0.0
    %251 = vmatpush2.msra.mxu0 0.0
    %252 = vmatprep.subr.mxu0 0.0
    %253 = vmatpush2.msra.mxu0 0.0
    %254 = vmatprep.subr.mxu0 0.0
    %255 = vmatpush2.msra.mxu0 0.0
    %256 = vmatprep.subr.mxu0 0.0
    %257 = vmatpush2.msra.mxu0 0.0
    %258 = vmatprep.subr.mxu0 0.0
    %259 = vmatpush2.msra.mxu0 0.0
    %260 = vmatprep.subr.mxu0 0.0
    %261 = vmatpush2.msra.mxu0 0.0
    %262 = vmatprep.subr.mxu0 0.0
    %263 = vmatpush2.msra.mxu0 0.0
    %264 = vmatprep.subr.mxu0 0.0
    %265 = vmatpush2.msra.mxu0 0.0
    %266 = vmatprep.subr.mxu0 0.0
    %267 = vmatpush2.msra.mxu0 0.0
    %268 = vmatprep.subr.mxu0 0.0
    %269 = vmatpush2.msra.mxu0 0.0
    %270 = vmatprep.subr.mxu0 0.0
    %271 = vmatpush2.msra.mxu0 0.0
    %272 = vmatprep.subr.mxu0 0.0
    %273 = vmatpush2.msra.mxu0 0.0
    %274 = vmatprep.subr.mxu0 0.0
    %275 = vmatpush2.msra.mxu0 0.0
    %276 = vmatprep.subr.mxu0 0.0
    %277 = vmatpush2.msra.mxu0 0.0
    %278 = vmatprep.mubr.f32.mxu0 0.0
    %279 = vmatmul.mubr.f32.gmra.mxu0 %v206
    %v280 = vpop.f32.mrf.mxu0
    %v281 = vadd.f32 %v201, %v280
    %v282 = vpop.f32.mrf.mxu0
    %v283 = vadd.f32 %v203, %v282
    %284 = vdwg.mxu0
    %285 = vrot.lane.b32.xlu0 %v71, 15
    %v286 = vpop.permute.xlu0 %285
    %287 = vrot.lane.b32.xlu0 %v72, 15
    %v288 = vpop.permute.xlu0 %287
    %vm289 = vcmp.lt.s32.totalorder %v80, 15
    %v290 = vsel %vm289, %v286, %v288
    %v291 = vsel %vm289, %v288, %v286
    %s292 = scalar_lea.vmem %s2, 4
    %v293 = vld [vmem:[%s292] sm:$0x3]
    %v295 = vlaneseq
    %v296 = vshrl.u32 %v295, 7
    %v297 = vsub.s32 0, %v296
    %v298 = vrot.slane %v293, %v297
    %v299 = vlaneseq
    %v300 = vshrl.u32 %v299, 7
    %v301 = vsub.s32 1, %v300
    %v302 = vrot.slane %v293, %v301
    %v305 = vmul.f32 %v291, %v298
    %v306 = vmul.f32 %v290, %v302
    %s307 = scalar_lea.vmem [#allocation2], 16
    %v308 = vld [vmem:[%s307] sm:$0xff]
    %v310 = vsel %vm123, %v308, 0
    %v313 = vsel %vm127, %v305, 0
    %v316 = vsel %vm127, %v306, 0
    %318 = vmatprep.subr.mxu0 0.0
    %319 = vmatpush1.msra.mxu0 0.0
    %320 = vmatprep.subr.mxu0 0.0
    %321 = vmatpush1.msra.mxu0 0.0
    %322 = vmatprep.subr.mxu0 0.0
    %323 = vmatpush1.msra.mxu0 0.0
    %324 = vmatprep.subr.mxu0 0.0
    %325 = vmatpush1.msra.mxu0 0.0
    %326 = vmatprep.subr.mxu0 0.0
    %327 = vmatpush1.msra.mxu0 0.0
    %328 = vmatprep.subr.mxu0 0.0
    %329 = vmatpush1.msra.mxu0 0.0
    %330 = vmatprep.subr.mxu0 0.0
    %331 = vmatpush1.msra.mxu0 0.0
    %332 = vmatprep.subr.mxu0 0.0
    %333 = vmatpush1.msra.mxu0 0.0
    %334 = vmatprep.subr.mxu0 0.0
    %335 = vmatpush1.msra.mxu0 0.0
    %336 = vmatprep.subr.mxu0 0.0
    %337 = vmatpush1.msra.mxu0 0.0
    %338 = vmatprep.subr.mxu0 0.0
    %339 = vmatpush1.msra.mxu0 0.0
    %340 = vmatprep.subr.mxu0 0.0
    %341 = vmatpush1.msra.mxu0 0.0
    %342 = vmatprep.subr.mxu0 0.0
    %343 = vmatpush1.msra.mxu0 0.0
    %344 = vmatprep.subr.mxu0 0.0
    %345 = vmatpush1.msra.mxu0 0.0
    %346 = vmatprep.subr.mxu0 0.0
    %347 = vmatpush1.msra.mxu0 0.0
    %348 = vmatprep.subr.mxu0 %v316
    %349 = vmatpush1.msra.mxu0 %v313
    %350 = vmatprep.subr.mxu0 0.0
    %351 = vmatpush2.msra.mxu0 0.0
    %352 = vmatprep.subr.mxu0 0.0
    %353 = vmatpush2.msra.mxu0 0.0
    %354 = vmatprep.subr.mxu0 0.0
    %355 = vmatpush2.msra.mxu0 0.0
    %356 = vmatprep.subr.mxu0 0.0
    %357 = vmatpush2.msra.mxu0 0.0
    %358 = vmatprep.subr.mxu0 0.0
    %359 = vmatpush2.msra.mxu0 0.0
    %360 = vmatprep.subr.mxu0 0.0
    %361 = vmatpush2.msra.mxu0 0.0
    %362 = vmatprep.subr.mxu0 0.0
    %363 = vmatpush2.msra.mxu0 0.0
    %364 = vmatprep.subr.mxu0 0.0
    %365 = vmatpush2.msra.mxu0 0.0
    %366 = vmatprep.subr.mxu0 0.0
    %367 = vmatpush2.msra.mxu0 0.0
    %368 = vmatprep.subr.mxu0 0.0
    %369 = vmatpush2.msra.mxu0 0.0
    %370 = vmatprep.subr.mxu0 0.0
    %371 = vmatpush2.msra.mxu0 0.0
    %372 = vmatprep.subr.mxu0 0.0
    %373 = vmatpush2.msra.mxu0 0.0
    %374 = vmatprep.subr.mxu0 0.0
    %375 = vmatpush2.msra.mxu0 0.0
    %376 = vmatprep.subr.mxu0 0.0
    %377 = vmatpush2.msra.mxu0 0.0
    %378 = vmatprep.subr.mxu0 0.0
    %379 = vmatpush2.msra.mxu0 0.0
    %380 = vmatprep.subr.mxu0 0.0
    %381 = vmatpush2.msra.mxu0 0.0
    %382 = vmatprep.mubr.f32.mxu0 0.0
    %383 = vmatmul.mubr.f32.gmra.mxu0 %v310
    %v384 = vpop.f32.mrf.mxu0
    %v385 = vadd.f32 0.0, %v384
    %v386 = vpop.f32.mrf.mxu0
    %v387 = vadd.f32 0.0, %v386
    %388 = vdwg.mxu0
    %v389 = vadd.f32 %v281, %v385
    %v390 = vadd.f32 %v283, %v387
    %391 = vrot.lane.b32.xlu0 %v71, 1
    %v392 = vpop.permute.xlu0 %391
    %393 = vrot.lane.b32.xlu0 %v72, 1
    %v394 = vpop.permute.xlu0 %393
    %vm395 = vcmp.lt.s32.totalorder %v80, 1
    %v396 = vsel %vm395, %v392, %v394
    %v397 = vsel %vm395, %v394, %v392
    %s398 = scalar_lea.vmem %s2, 6
    %v399 = vld [vmem:[%s398] sm:$0x3]
    %v401 = vlaneseq
    %v402 = vshrl.u32 %v401, 7
    %v403 = vsub.s32 0, %v402
    %v404 = vrot.slane %v399, %v403
    %v405 = vlaneseq
    %v406 = vshrl.u32 %v405, 7
    %v407 = vsub.s32 1, %v406
    %v408 = vrot.slane %v399, %v407
    %v411 = vmul.f32 %v397, %v404
    %v412 = vmul.f32 %v396, %v408
    %s413 = scalar_lea.vmem [#allocation2], 24
    %v414 = vld [vmem:[%s413] sm:$0xff]
    %v416 = vsel %vm123, %v414, 0
    %v419 = vsel %vm127, %v411, 0
    %v422 = vsel %vm127, %v412, 0
    %424 = vmatprep.subr.mxu0 0.0
    %425 = vmatpush1.msra.mxu0 0.0
    %426 = vmatprep.subr.mxu0 0.0
    %427 = vmatpush1.msra.mxu0 0.0
    %428 = vmatprep.subr.mxu0 0.0
    %429 = vmatpush1.msra.mxu0 0.0
    %430 = vmatprep.subr.mxu0 0.0
    %431 = vmatpush1.msra.mxu0 0.0
    %432 = vmatprep.subr.mxu0 0.0
    %433 = vmatpush1.msra.mxu0 0.0
    %434 = vmatprep.subr.mxu0 0.0
    %435 = vmatpush1.msra.mxu0 0.0
    %436 = vmatprep.subr.mxu0 0.0
    %437 = vmatpush1.msra.mxu0 0.0
    %438 = vmatprep.subr.mxu0 0.0
    %439 = vmatpush1.msra.mxu0 0.0
    %440 = vmatprep.subr.mxu0 0.0
    %441 = vmatpush1.msra.mxu0 0.0
    %442 = vmatprep.subr.mxu0 0.0
    %443 = vmatpush1.msra.mxu0 0.0
    %444 = vmatprep.subr.mxu0 0.0
    %445 = vmatpush1.msra.mxu0 0.0
    %446 = vmatprep.subr.mxu0 0.0
    %447 = vmatpush1.msra.mxu0 0.0
    %448 = vmatprep.subr.mxu0 0.0
    %449 = vmatpush1.msra.mxu0 0.0
    %450 = vmatprep.subr.mxu0 0.0
    %451 = vmatpush1.msra.mxu0 0.0
    %452 = vmatprep.subr.mxu0 0.0
    %453 = vmatpush1.msra.mxu0 0.0
    %454 = vmatprep.subr.mxu0 %v422
    %455 = vmatpush1.msra.mxu0 %v419
    %456 = vmatprep.subr.mxu0 0.0
    %457 = vmatpush2.msra.mxu0 0.0
    %458 = vmatprep.subr.mxu0 0.0
    %459 = vmatpush2.msra.mxu0 0.0
    %460 = vmatprep.subr.mxu0 0.0
    %461 = vmatpush2.msra.mxu0 0.0
    %462 = vmatprep.subr.mxu0 0.0
    %463 = vmatpush2.msra.mxu0 0.0
    %464 = vmatprep.subr.mxu0 0.0
    %465 = vmatpush2.msra.mxu0 0.0
    %466 = vmatprep.subr.mxu0 0.0
    %467 = vmatpush2.msra.mxu0 0.0
    %468 = vmatprep.subr.mxu0 0.0
    %469 = vmatpush2.msra.mxu0 0.0
    %470 = vmatprep.subr.mxu0 0.0
    %471 = vmatpush2.msra.mxu0 0.0
    %472 = vmatprep.subr.mxu0 0.0
    %473 = vmatpush2.msra.mxu0 0.0
    %474 = vmatprep.subr.mxu0 0.0
    %475 = vmatpush2.msra.mxu0 0.0
    %476 = vmatprep.subr.mxu0 0.0
    %477 = vmatpush2.msra.mxu0 0.0
    %478 = vmatprep.subr.mxu0 0.0
    %479 = vmatpush2.msra.mxu0 0.0
    %480 = vmatprep.subr.mxu0 0.0
    %481 = vmatpush2.msra.mxu0 0.0
    %482 = vmatprep.subr.mxu0 0.0
    %483 = vmatpush2.msra.mxu0 0.0
    %484 = vmatprep.subr.mxu0 0.0
    %485 = vmatpush2.msra.mxu0 0.0
    %486 = vmatprep.subr.mxu0 0.0
    %487 = vmatpush2.msra.mxu0 0.0
    %488 = vmatprep.mubr.f32.mxu0 0.0
    %489 = vmatmul.mubr.f32.gmra.mxu0 %v416
    %v490 = vpop.f32.mrf.mxu0
    %v491 = vadd.f32 0.0, %v490
    %v492 = vpop.f32.mrf.mxu0
    %v493 = vadd.f32 0.0, %v492
    %494 = vdwg.mxu0
    %v495 = vadd.f32 %v389, %v491
    %v496 = vadd.f32 %v390, %v493
    %s497 = scalar_lea.vmem [#allocation2], 32
    %v498 = vld [vmem:[%s497] sm:$0xff]
    %v500 = vsel %vm123, %v498, 0
    %v502 = vsel %vm127, %v71, 0
    %v504 = vsel %vm127, %v72, 0
    %506 = vmatprep.subr.mxu0 0.0
    %507 = vmatpush1.msra.mxu0 0.0
    %508 = vmatprep.subr.mxu0 0.0
    %509 = vmatpush1.msra.mxu0 0.0
    %510 = vmatprep.subr.mxu0 0.0
    %511 = vmatpush1.msra.mxu0 0.0
    %512 = vmatprep.subr.mxu0 0.0
    %513 = vmatpush1.msra.mxu0 0.0
    %514 = vmatprep.subr.mxu0 0.0
    %515 = vmatpush1.msra.mxu0 0.0
    %516 = vmatprep.subr.mxu0 0.0
    %517 = vmatpush1.msra.mxu0 0.0
    %518 = vmatprep.subr.mxu0 0.0
    %519 = vmatpush1.msra.mxu0 0.0
    %520 = vmatprep.subr.mxu0 0.0
    %521 = vmatpush1.msra.mxu0 0.0
    %522 = vmatprep.subr.mxu0 0.0
    %523 = vmatpush1.msra.mxu0 0.0
    %524 = vmatprep.subr.mxu0 0.0
    %525 = vmatpush1.msra.mxu0 0.0
    %526 = vmatprep.subr.mxu0 0.0
    %527 = vmatpush1.msra.mxu0 0.0
    %528 = vmatprep.subr.mxu0 0.0
    %529 = vmatpush1.msra.mxu0 0.0
    %530 = vmatprep.subr.mxu0 0.0
    %531 = vmatpush1.msra.mxu0 0.0
    %532 = vmatprep.subr.mxu0 0.0
    %533 = vmatpush1.msra.mxu0 0.0
    %534 = vmatprep.subr.mxu0 0.0
    %535 = vmatpush1.msra.mxu0 0.0
    %536 = vmatprep.subr.mxu0 %v504
    %537 = vmatpush1.msra.mxu0 %v502
    %538 = vmatprep.subr.mxu0 0.0
    %539 = vmatpush2.msra.mxu0 0.0
    %540 = vmatprep.subr.mxu0 0.0
    %541 = vmatpush2.msra.mxu0 0.0
    %542 = vmatprep.subr.mxu0 0.0
    %543 = vmatpush2.msra.mxu0 0.0
    %544 = vmatprep.subr.mxu0 0.0
    %545 = vmatpush2.msra.mxu0 0.0
    %546 = vmatprep.subr.mxu0 0.0
    %547 = vmatpush2.msra.mxu0 0.0
    %548 = vmatprep.subr.mxu0 0.0
    %549 = vmatpush2.msra.mxu0 0.0
    %550 = vmatprep.subr.mxu0 0.0
    %551 = vmatpush2.msra.mxu0 0.0
    %552 = vmatprep.subr.mxu0 0.0
    %553 = vmatpush2.msra.mxu0 0.0
    %554 = vmatprep.subr.mxu0 0.0
    %555 = vmatpush2.msra.mxu0 0.0
    %556 = vmatprep.subr.mxu0 0.0
    %557 = vmatpush2.msra.mxu0 0.0
    %558 = vmatprep.subr.mxu0 0.0
    %559 = vmatpush2.msra.mxu0 0.0
    %560 = vmatprep.subr.mxu0 0.0
    %561 = vmatpush2.msra.mxu0 0.0
    %562 = vmatprep.subr.mxu0 0.0
    %563 = vmatpush2.msra.mxu0 0.0
    %564 = vmatprep.subr.mxu0 0.0
    %565 = vmatpush2.msra.mxu0 0.0
    %566 = vmatprep.subr.mxu0 0.0
    %567 = vmatpush2.msra.mxu0 0.0
    %568 = vmatprep.subr.mxu0 0.0
    %569 = vmatpush2.msra.mxu0 0.0
    %570 = vmatprep.mubr.f32.mxu0 0.0
    %571 = vmatmul.mubr.f32.gmra.mxu0 %v500
    %v572 = vpop.f32.mrf.mxu0
    %v573 = vadd.f32 0.0, %v572
    %v574 = vpop.f32.mrf.mxu0
    %v575 = vadd.f32 0.0, %v574
    %576 = vdwg.mxu0
    %v577 = vadd.f32 %v495, %v573
    %v578 = vadd.f32 %v496, %v575
    %579 = vrot.lane.b32.xlu0 %v71, 127
    %v580 = vpop.permute.xlu0 %579
    %581 = vrot.lane.b32.xlu0 %v72, 127
    %v582 = vpop.permute.xlu0 %581
    %vm583 = vcmp.lt.s32.totalorder %v80, 127
    %v584 = vsel %vm583, %v580, %v582
    %v585 = vsel %vm583, %v582, %v580
    %s586 = scalar_lea.vmem %s2, 10
    %v587 = vld [vmem:[%s586] sm:$0x3]
    %v589 = vlaneseq
    %v590 = vshrl.u32 %v589, 7
    %v591 = vsub.s32 0, %v590
    %v592 = vrot.slane %v587, %v591
    %v593 = vlaneseq
    %v594 = vshrl.u32 %v593, 7
    %v595 = vsub.s32 1, %v594
    %v596 = vrot.slane %v587, %v595
    %v599 = vmul.f32 %v584, %v592
    %v600 = vmul.f32 %v585, %v596
    %s601 = scalar_lea.vmem [#allocation2], 40
    %v602 = vld [vmem:[%s601] sm:$0xff]
    %v604 = vsel %vm123, %v602, 0
    %v607 = vsel %vm127, %v599, 0
    %v610 = vsel %vm127, %v600, 0
    %612 = vmatprep.subr.mxu0 0.0
    %613 = vmatpush1.msra.mxu0 0.0
    %614 = vmatprep.subr.mxu0 0.0
    %615 = vmatpush1.msra.mxu0 0.0
    %616 = vmatprep.subr.mxu0 0.0
    %617 = vmatpush1.msra.mxu0 0.0
    %618 = vmatprep.subr.mxu0 0.0
    %619 = vmatpush1.msra.mxu0 0.0
    %620 = vmatprep.subr.mxu0 0.0
    %621 = vmatpush1.msra.mxu0 0.0
    %622 = vmatprep.subr.mxu0 0.0
    %623 = vmatpush1.msra.mxu0 0.0
    %624 = vmatprep.subr.mxu0 0.0
    %625 = vmatpush1.msra.mxu0 0.0
    %626 = vmatprep.subr.mxu0 0.0
    %627 = vmatpush1.msra.mxu0 0.0
    %628 = vmatprep.subr.mxu0 0.0
    %629 = vmatpush1.msra.mxu0 0.0
    %630 = vmatprep.subr.mxu0 0.0
    %631 = vmatpush1.msra.mxu0 0.0
    %632 = vmatprep.subr.mxu0 0.0
    %633 = vmatpush1.msra.mxu0 0.0
    %634 = vmatprep.subr.mxu0 0.0
    %635 = vmatpush1.msra.mxu0 0.0
    %636 = vmatprep.subr.mxu0 0.0
    %637 = vmatpush1.msra.mxu0 0.0
    %638 = vmatprep.subr.mxu0 0.0
    %639 = vmatpush1.msra.mxu0 0.0
    %640 = vmatprep.subr.mxu0 0.0
    %641 = vmatpush1.msra.mxu0 0.0
    %642 = vmatprep.subr.mxu0 %v610
    %643 = vmatpush1.msra.mxu0 %v607
    %644 = vmatprep.subr.mxu0 0.0
    %645 = vmatpush2.msra.mxu0 0.0
    %646 = vmatprep.subr.mxu0 0.0
    %647 = vmatpush2.msra.mxu0 0.0
    %648 = vmatprep.subr.mxu0 0.0
    %649 = vmatpush2.msra.mxu0 0.0
    %650 = vmatprep.subr.mxu0 0.0
    %651 = vmatpush2.msra.mxu0 0.0
    %652 = vmatprep.subr.mxu0 0.0
    %653 = vmatpush2.msra.mxu0 0.0
    %654 = vmatprep.subr.mxu0 0.0
    %655 = vmatpush2.msra.mxu0 0.0
    %656 = vmatprep.subr.mxu0 0.0
    %657 = vmatpush2.msra.mxu0 0.0
    %658 = vmatprep.subr.mxu0 0.0
    %659 = vmatpush2.msra.mxu0 0.0
    %660 = vmatprep.subr.mxu0 0.0
    %661 = vmatpush2.msra.mxu0 0.0
    %662 = vmatprep.subr.mxu0 0.0
    %663 = vmatpush2.msra.mxu0 0.0
    %664 = vmatprep.subr.mxu0 0.0
    %665 = vmatpush2.msra.mxu0 0.0
    %666 = vmatprep.subr.mxu0 0.0
    %667 = vmatpush2.msra.mxu0 0.0
    %668 = vmatprep.subr.mxu0 0.0
    %669 = vmatpush2.msra.mxu0 0.0
    %670 = vmatprep.subr.mxu0 0.0
    %671 = vmatpush2.msra.mxu0 0.0
    %672 = vmatprep.subr.mxu0 0.0
    %673 = vmatpush2.msra.mxu0 0.0
    %674 = vmatprep.subr.mxu0 0.0
    %675 = vmatpush2.msra.mxu0 0.0
    %676 = vmatprep.mubr.f32.mxu0 0.0
    %677 = vmatmul.mubr.f32.gmra.mxu0 %v604
    %v678 = vpop.f32.mrf.mxu0
    %v679 = vadd.f32 0.0, %v678
    %v680 = vpop.f32.mrf.mxu0
    %v681 = vadd.f32 0.0, %v680
    %682 = vdwg.mxu0
    %v683 = vadd.f32 %v577, %v679
    %v684 = vadd.f32 %v578, %v681
    %685 = vrot.lane.b32.xlu0 %v71, 113
    %v686 = vpop.permute.xlu0 %685
    %687 = vrot.lane.b32.xlu0 %v72, 113
    %v688 = vpop.permute.xlu0 %687
    %vm689 = vcmp.lt.s32.totalorder %v80, 113
    %v690 = vsel %vm689, %v686, %v688
    %v691 = vsel %vm689, %v688, %v686
    %s692 = scalar_lea.vmem %s2, 12
    %v693 = vld [vmem:[%s692] sm:$0x3]
    %v695 = vlaneseq
    %v696 = vshrl.u32 %v695, 7
    %v697 = vsub.s32 0, %v696
    %v698 = vrot.slane %v693, %v697
    %v699 = vlaneseq
    %v700 = vshrl.u32 %v699, 7
    %v701 = vsub.s32 1, %v700
    %v702 = vrot.slane %v693, %v701
    %v705 = vmul.f32 %v690, %v698
    %v706 = vmul.f32 %v691, %v702
    %s707 = scalar_lea.vmem [#allocation2], 48
    %v708 = vld [vmem:[%s707] sm:$0xff]
    %v710 = vsel %vm123, %v708, 0
    %v713 = vsel %vm127, %v705, 0
    %v716 = vsel %vm127, %v706, 0
    %718 = vmatprep.subr.mxu0 0.0
    %719 = vmatpush1.msra.mxu0 0.0
    %720 = vmatprep.subr.mxu0 0.0
    %721 = vmatpush1.msra.mxu0 0.0
    %722 = vmatprep.subr.mxu0 0.0
    %723 = vmatpush1.msra.mxu0 0.0
    %724 = vmatprep.subr.mxu0 0.0
    %725 = vmatpush1.msra.mxu0 0.0
    %726 = vmatprep.subr.mxu0 0.0
    %727 = vmatpush1.msra.mxu0 0.0
    %728 = vmatprep.subr.mxu0 0.0
    %729 = vmatpush1.msra.mxu0 0.0
    %730 = vmatprep.subr.mxu0 0.0
    %731 = vmatpush1.msra.mxu0 0.0
    %732 = vmatprep.subr.mxu0 0.0
    %733 = vmatpush1.msra.mxu0 0.0
    %734 = vmatprep.subr.mxu0 0.0
    %735 = vmatpush1.msra.mxu0 0.0
    %736 = vmatprep.subr.mxu0 0.0
    %737 = vmatpush1.msra.mxu0 0.0
    %738 = vmatprep.subr.mxu0 0.0
    %739 = vmatpush1.msra.mxu0 0.0
    %740 = vmatprep.subr.mxu0 0.0
    %741 = vmatpush1.msra.mxu0 0.0
    %742 = vmatprep.subr.mxu0 0.0
    %743 = vmatpush1.msra.mxu0 0.0
    %744 = vmatprep.subr.mxu0 0.0
    %745 = vmatpush1.msra.mxu0 0.0
    %746 = vmatprep.subr.mxu0 0.0
    %747 = vmatpush1.msra.mxu0 0.0
    %748 = vmatprep.subr.mxu0 %v716
    %749 = vmatpush1.msra.mxu0 %v713
    %750 = vmatprep.subr.mxu0 0.0
    %751 = vmatpush2.msra.mxu0 0.0
    %752 = vmatprep.subr.mxu0 0.0
    %753 = vmatpush2.msra.mxu0 0.0
    %754 = vmatprep.subr.mxu0 0.0
    %755 = vmatpush2.msra.mxu0 0.0
    %756 = vmatprep.subr.mxu0 0.0
    %757 = vmatpush2.msra.mxu0 0.0
    %758 = vmatprep.subr.mxu0 0.0
    %759 = vmatpush2.msra.mxu0 0.0
    %760 = vmatprep.subr.mxu0 0.0
    %761 = vmatpush2.msra.mxu0 0.0
    %762 = vmatprep.subr.mxu0 0.0
    %763 = vmatpush2.msra.mxu0 0.0
    %764 = vmatprep.subr.mxu0 0.0
    %765 = vmatpush2.msra.mxu0 0.0
    %766 = vmatprep.subr.mxu0 0.0
    %767 = vmatpush2.msra.mxu0 0.0
    %768 = vmatprep.subr.mxu0 0.0
    %769 = vmatpush2.msra.mxu0 0.0
    %770 = vmatprep.subr.mxu0 0.0
    %771 = vmatpush2.msra.mxu0 0.0
    %772 = vmatprep.subr.mxu0 0.0
    %773 = vmatpush2.msra.mxu0 0.0
    %774 = vmatprep.subr.mxu0 0.0
    %775 = vmatpush2.msra.mxu0 0.0
    %776 = vmatprep.subr.mxu0 0.0
    %777 = vmatpush2.msra.mxu0 0.0
    %778 = vmatprep.subr.mxu0 0.0
    %779 = vmatpush2.msra.mxu0 0.0
    %780 = vmatprep.subr.mxu0 0.0
    %781 = vmatpush2.msra.mxu0 0.0
    %782 = vmatprep.mubr.f32.mxu0 0.0
    %783 = vmatmul.mubr.f32.gmra.mxu0 %v710
    %v784 = vpop.f32.mrf.mxu0
    %v785 = vadd.f32 0.0, %v784
    %v786 = vpop.f32.mrf.mxu0
    %v787 = vadd.f32 0.0, %v786
    %788 = vdwg.mxu0
    %v789 = vadd.f32 %v683, %v785
    %v790 = vadd.f32 %v684, %v787
    %791 = vrot.lane.b32.xlu0 %v71, 112
    %v792 = vpop.permute.xlu0 %791
    %793 = vrot.lane.b32.xlu0 %v72, 112
    %v794 = vpop.permute.xlu0 %793
    %vm795 = vcmp.lt.s32.totalorder %v80, 112
    %v796 = vsel %vm795, %v792, %v794
    %v797 = vsel %vm795, %v794, %v792
    %s798 = scalar_lea.vmem %s2, 14
    %v799 = vld [vmem:[%s798] sm:$0x3]
    %v801 = vlaneseq
    %v802 = vshrl.u32 %v801, 7
    %v803 = vsub.s32 0, %v802
    %v804 = vrot.slane %v799, %v803
    %v805 = vlaneseq
    %v806 = vshrl.u32 %v805, 7
    %v807 = vsub.s32 1, %v806
    %v808 = vrot.slane %v799, %v807
    %v811 = vmul.f32 %v796, %v804
    %v812 = vmul.f32 %v797, %v808
    %s813 = scalar_lea.vmem [#allocation2], 56
    %v814 = vld [vmem:[%s813] sm:$0xff]
    %v816 = vsel %vm123, %v814, 0
    %v819 = vsel %vm127, %v811, 0
    %v822 = vsel %vm127, %v812, 0
    %824 = vmatprep.subr.mxu0 0.0
    %825 = vmatpush1.msra.mxu0 0.0
    %826 = vmatprep.subr.mxu0 0.0
    %827 = vmatpush1.msra.mxu0 0.0
    %828 = vmatprep.subr.mxu0 0.0
    %829 = vmatpush1.msra.mxu0 0.0
    %830 = vmatprep.subr.mxu0 0.0
    %831 = vmatpush1.msra.mxu0 0.0
    %832 = vmatprep.subr.mxu0 0.0
    %833 = vmatpush1.msra.mxu0 0.0
    %834 = vmatprep.subr.mxu0 0.0
    %835 = vmatpush1.msra.mxu0 0.0
    %836 = vmatprep.subr.mxu0 0.0
    %837 = vmatpush1.msra.mxu0 0.0
    %838 = vmatprep.subr.mxu0 0.0
    %839 = vmatpush1.msra.mxu0 0.0
    %840 = vmatprep.subr.mxu0 0.0
    %841 = vmatpush1.msra.mxu0 0.0
    %842 = vmatprep.subr.mxu0 0.0
    %843 = vmatpush1.msra.mxu0 0.0
    %844 = vmatprep.subr.mxu0 0.0
    %845 = vmatpush1.msra.mxu0 0.0
    %846 = vmatprep.subr.mxu0 0.0
    %847 = vmatpush1.msra.mxu0 0.0
    %848 = vmatprep.subr.mxu0 0.0
    %849 = vmatpush1.msra.mxu0 0.0
    %850 = vmatprep.subr.mxu0 0.0
    %851 = vmatpush1.msra.mxu0 0.0
    %852 = vmatprep.subr.mxu0 0.0
    %853 = vmatpush1.msra.mxu0 0.0
    %854 = vmatprep.subr.mxu0 %v822
    %855 = vmatpush1.msra.mxu0 %v819
    %856 = vmatprep.subr.mxu0 0.0
    %857 = vmatpush2.msra.mxu0 0.0
    %858 = vmatprep.subr.mxu0 0.0
    %859 = vmatpush2.msra.mxu0 0.0
    %860 = vmatprep.subr.mxu0 0.0
    %861 = vmatpush2.msra.mxu0 0.0
    %862 = vmatprep.subr.mxu0 0.0
    %863 = vmatpush2.msra.mxu0 0.0
    %864 = vmatprep.subr.mxu0 0.0
    %865 = vmatpush2.msra.mxu0 0.0
    %866 = vmatprep.subr.mxu0 0.0
    %867 = vmatpush2.msra.mxu0 0.0
    %868 = vmatprep.subr.mxu0 0.0
    %869 = vmatpush2.msra.mxu0 0.0
    %870 = vmatprep.subr.mxu0 0.0
    %871 = vmatpush2.msra.mxu0 0.0
    %872 = vmatprep.subr.mxu0 0.0
    %873 = vmatpush2.msra.mxu0 0.0
    %874 = vmatprep.subr.mxu0 0.0
    %875 = vmatpush2.msra.mxu0 0.0
    %876 = vmatprep.subr.mxu0 0.0
    %877 = vmatpush2.msra.mxu0 0.0
    %878 = vmatprep.subr.mxu0 0.0
    %879 = vmatpush2.msra.mxu0 0.0
    %880 = vmatprep.subr.mxu0 0.0
    %881 = vmatpush2.msra.mxu0 0.0
    %882 = vmatprep.subr.mxu0 0.0
    %883 = vmatpush2.msra.mxu0 0.0
    %884 = vmatprep.subr.mxu0 0.0
    %885 = vmatpush2.msra.mxu0 0.0
    %886 = vmatprep.subr.mxu0 0.0
    %887 = vmatpush2.msra.mxu0 0.0
    %888 = vmatprep.mubr.f32.mxu0 0.0
    %889 = vmatmul.mubr.f32.gmra.mxu0 %v816
    %v890 = vpop.f32.mrf.mxu0
    %v891 = vadd.f32 0.0, %v890
    %v892 = vpop.f32.mrf.mxu0
    %v893 = vadd.f32 0.0, %v892
    %894 = vdwg.mxu0
    %v895 = vadd.f32 %v789, %v891
    %v896 = vadd.f32 %v790, %v893
    %897 = vrot.lane.b32.xlu0 %v71, 111
    %v898 = vpop.permute.xlu0 %897
    %899 = vrot.lane.b32.xlu0 %v72, 111
    %v900 = vpop.permute.xlu0 %899
    %vm901 = vcmp.lt.s32.totalorder %v80, 111
    %v902 = vsel %vm901, %v898, %v900
    %v903 = vsel %vm901, %v900, %v898
    %s904 = scalar_lea.vmem %s2, 16
    %v905 = vld [vmem:[%s904] sm:$0x3]
    %v907 = vlaneseq
    %v908 = vshrl.u32 %v907, 7
    %v909 = vsub.s32 0, %v908
    %v910 = vrot.slane %v905, %v909
    %v911 = vlaneseq
    %v912 = vshrl.u32 %v911, 7
    %v913 = vsub.s32 1, %v912
    %v914 = vrot.slane %v905, %v913
    %v917 = vmul.f32 %v902, %v910
    %v918 = vmul.f32 %v903, %v914
    %s919 = scalar_lea.vmem [#allocation2], 64
    %v920 = vld [vmem:[%s919] sm:$0xff]
    %v922 = vsel %vm123, %v920, 0
    %v925 = vsel %vm127, %v917, 0
    %v928 = vsel %vm127, %v918, 0
    %930 = vmatprep.subr.mxu0 0.0
    %931 = vmatpush1.msra.mxu0 0.0
    %932 = vmatprep.subr.mxu0 0.0
    %933 = vmatpush1.msra.mxu0 0.0
    %934 = vmatprep.subr.mxu0 0.0
    %935 = vmatpush1.msra.mxu0 0.0
    %936 = vmatprep.subr.mxu0 0.0
    %937 = vmatpush1.msra.mxu0 0.0
    %938 = vmatprep.subr.mxu0 0.0
    %939 = vmatpush1.msra.mxu0 0.0
    %940 = vmatprep.subr.mxu0 0.0
    %941 = vmatpush1.msra.mxu0 0.0
    %942 = vmatprep.subr.mxu0 0.0
    %943 = vmatpush1.msra.mxu0 0.0
    %944 = vmatprep.subr.mxu0 0.0
    %945 = vmatpush1.msra.mxu0 0.0
    %946 = vmatprep.subr.mxu0 0.0
    %947 = vmatpush1.msra.mxu0 0.0
    %948 = vmatprep.subr.mxu0 0.0
    %949 = vmatpush1.msra.mxu0 0.0
    %950 = vmatprep.subr.mxu0 0.0
    %951 = vmatpush1.msra.mxu0 0.0
    %952 = vmatprep.subr.mxu0 0.0
    %953 = vmatpush1.msra.mxu0 0.0
    %954 = vmatprep.subr.mxu0 0.0
    %955 = vmatpush1.msra.mxu0 0.0
    %956 = vmatprep.subr.mxu0 0.0
    %957 = vmatpush1.msra.mxu0 0.0
    %958 = vmatprep.subr.mxu0 0.0
    %959 = vmatpush1.msra.mxu0 0.0
    %960 = vmatprep.subr.mxu0 %v928
    %961 = vmatpush1.msra.mxu0 %v925
    %962 = vmatprep.subr.mxu0 0.0
    %963 = vmatpush2.msra.mxu0 0.0
    %964 = vmatprep.subr.mxu0 0.0
    %965 = vmatpush2.msra.mxu0 0.0
    %966 = vmatprep.subr.mxu0 0.0
    %967 = vmatpush2.msra.mxu0 0.0
    %968 = vmatprep.subr.mxu0 0.0
    %969 = vmatpush2.msra.mxu0 0.0
    %970 = vmatprep.subr.mxu0 0.0
    %971 = vmatpush2.msra.mxu0 0.0
    %972 = vmatprep.subr.mxu0 0.0
    %973 = vmatpush2.msra.mxu0 0.0
    %974 = vmatprep.subr.mxu0 0.0
    %975 = vmatpush2.msra.mxu0 0.0
    %976 = vmatprep.subr.mxu0 0.0
    %977 = vmatpush2.msra.mxu0 0.0
    %978 = vmatprep.subr.mxu0 0.0
    %979 = vmatpush2.msra.mxu0 0.0
    %980 = vmatprep.subr.mxu0 0.0
    %981 = vmatpush2.msra.mxu0 0.0
    %982 = vmatprep.subr.mxu0 0.0
    %983 = vmatpush2.msra.mxu0 0.0
    %984 = vmatprep.subr.mxu0 0.0
    %985 = vmatpush2.msra.mxu0 0.0
    %986 = vmatprep.subr.mxu0 0.0
    %987 = vmatpush2.msra.mxu0 0.0
    %988 = vmatprep.subr.mxu0 0.0
    %989 = vmatpush2.msra.mxu0 0.0
    %990 = vmatprep.subr.mxu0 0.0
    %991 = vmatpush2.msra.mxu0 0.0
    %992 = vmatprep.subr.mxu0 0.0
    %993 = vmatpush2.msra.mxu0 0.0
    %994 = vmatprep.mubr.f32.mxu0 0.0
    %995 = vmatmul.mubr.f32.gmra.mxu0 %v922
    %v996 = vpop.f32.mrf.mxu0
    %v997 = vadd.f32 0.0, %v996
    %v998 = vpop.f32.mrf.mxu0
    %v999 = vadd.f32 0.0, %v998
    %1000 = vdwg.mxu0
    %v1001 = vadd.f32 %v895, %v997
    %v1002 = vadd.f32 %v896, %v999
    %v1003 = vld [vmem:[%s4] sm:$0xff]
    %1005 = vset.pattern.permute.xlu0 0
    %1006 = vperm.xlu0 %1005, %v1003
    %v1007 = vpop.permute.xlu0 %1006
    %v1009 = vadd.f32 %v1001, %v1007
    %v1010 = vadd.f32 %v1002, %v1007
    %v1011 = vmax.f32 %v1009, 0.0
    %v1012 = vmax.f32 %v1010, 0.0
    %1013 = vrot.lane.b32.xlu0 %v1011, 17
    %v1014 = vpop.permute.xlu0 %1013
    %1015 = vrot.lane.b32.xlu0 %v1012, 17
    %v1016 = vpop.permute.xlu0 %1015
    %v1017 = vsel %vm81, %v1014, %v1016
    %v1018 = vsel %vm81, %v1016, %v1014
    %v1019 = vmul.f32 %v1018, %v89
    %v1020 = vmul.f32 %v1017, %v93
    %v1021 = vld [vmem:[#allocation4] sm:$0xff]
    %1022 = vrot.lane.b32.xlu0 %v1011, 16
    %v1023 = vpop.permute.xlu0 %1022
    %1024 = vrot.lane.b32.xlu0 %v1012, 16
    %v1025 = vpop.permute.xlu0 %1024
    %v1026 = vsel %vm103, %v1023, %v1025
    %v1027 = vsel %vm103, %v1025, %v1023
    %v1028 = vmul.f32 %v1027, %v112
    %v1029 = vmul.f32 %v1026, %v116
    %s1030 = scalar_lea.vmem [#allocation4], 8
    %v1031 = vld [vmem:[%s1030] sm:$0xff]
    %vm1032 = vcmask 64512
    %v1034 = vsel %vm1032, %v1031, 0
    %1036 = vmatprep.subr.mxu0 0.0
    %1037 = vmatpush1.msra.mxu0 0.0
    %1038 = vmatprep.subr.mxu0 0.0
    %1039 = vmatpush1.msra.mxu0 0.0
    %1040 = vmatprep.subr.mxu0 0.0
    %1041 = vmatpush1.msra.mxu0 0.0
    %1042 = vmatprep.subr.mxu0 0.0
    %1043 = vmatpush1.msra.mxu0 0.0
    %1044 = vmatprep.subr.mxu0 0.0
    %1045 = vmatpush1.msra.mxu0 0.0
    %1046 = vmatprep.subr.mxu0 0.0
    %1047 = vmatpush1.msra.mxu0 0.0
    %1048 = vmatprep.subr.mxu0 0.0
    %1049 = vmatpush1.msra.mxu0 0.0
    %1050 = vmatprep.subr.mxu0 0.0
    %1051 = vmatpush1.msra.mxu0 0.0
    %1052 = vmatprep.subr.mxu0 0.0
    %1053 = vmatpush1.msra.mxu0 0.0
    %1054 = vmatprep.subr.mxu0 0.0
    %1055 = vmatpush1.msra.mxu0 0.0
    %1056 = vmatprep.subr.mxu0 0.0
    %1057 = vmatpush1.msra.mxu0 0.0
    %1058 = vmatprep.subr.mxu0 0.0
    %1059 = vmatpush1.msra.mxu0 0.0
    %1060 = vmatprep.subr.mxu0 0.0
    %1061 = vmatpush1.msra.mxu0 0.0
    %1062 = vmatprep.subr.mxu0 0.0
    %1063 = vmatpush1.msra.mxu0 0.0
    %1064 = vmatprep.subr.mxu0 0.0
    %1065 = vmatpush1.msra.mxu0 0.0
    %1066 = vmatprep.subr.mxu0 %v1029
    %1067 = vmatpush1.msra.mxu0 %v1028
    %1068 = vmatprep.subr.mxu0 0.0
    %1069 = vmatpush2.msra.mxu0 0.0
    %1070 = vmatprep.subr.mxu0 0.0
    %1071 = vmatpush2.msra.mxu0 0.0
    %1072 = vmatprep.subr.mxu0 0.0
    %1073 = vmatpush2.msra.mxu0 0.0
    %1074 = vmatprep.subr.mxu0 0.0
    %1075 = vmatpush2.msra.mxu0 0.0
    %1076 = vmatprep.subr.mxu0 0.0
    %1077 = vmatpush2.msra.mxu0 0.0
    %1078 = vmatprep.subr.mxu0 0.0
    %1079 = vmatpush2.msra.mxu0 0.0
    %1080 = vmatprep.subr.mxu0 0.0
    %1081 = vmatpush2.msra.mxu0 0.0
    %1082 = vmatprep.subr.mxu0 0.0
    %1083 = vmatpush2.msra.mxu0 0.0
    %1084 = vmatprep.subr.mxu0 0.0
    %1085 = vmatpush2.msra.mxu0 0.0
    %1086 = vmatprep.subr.mxu0 0.0
    %1087 = vmatpush2.msra.mxu0 0.0
    %1088 = vmatprep.subr.mxu0 0.0
    %1089 = vmatpush2.msra.mxu0 0.0
    %1090 = vmatprep.subr.mxu0 0.0
    %1091 = vmatpush2.msra.mxu0 0.0
    %1092 = vmatprep.subr.mxu0 0.0
    %1093 = vmatpush2.msra.mxu0 0.0
    %1094 = vmatprep.subr.mxu0 0.0
    %1095 = vmatpush2.msra.mxu0 0.0
    %1096 = vmatprep.subr.mxu0 0.0
    %1097 = vmatpush2.msra.mxu0 0.0
    %1098 = vmatprep.subr.mxu0 0.0
    %1099 = vmatpush2.msra.mxu0 0.0
    %1100 = vmatprep.mubr.f32.mxu0 0.0
    %1101 = vmatmul.mubr.f32.gmra.mxu0 %v1034
    %v1102 = vpop.f32.mrf.mxu0
    %v1103 = vadd.f32 0.0, %v1102
    %v1104 = vpop.f32.mrf.mxu0
    %v1105 = vadd.f32 0.0, %v1104
    %1106 = vdwg.mxu0
    %v1108 = vsel %vm1032, %v1021, 0
    %1110 = vmatprep.subr.mxu0 0.0
    %1111 = vmatpush1.msra.mxu0 0.0
    %1112 = vmatprep.subr.mxu0 0.0
    %1113 = vmatpush1.msra.mxu0 0.0
    %1114 = vmatprep.subr.mxu0 0.0
    %1115 = vmatpush1.msra.mxu0 0.0
    %1116 = vmatprep.subr.mxu0 0.0
    %1117 = vmatpush1.msra.mxu0 0.0
    %1118 = vmatprep.subr.mxu0 0.0
    %1119 = vmatpush1.msra.mxu0 0.0
    %1120 = vmatprep.subr.mxu0 0.0
    %1121 = vmatpush1.msra.mxu0 0.0
    %1122 = vmatprep.subr.mxu0 0.0
    %1123 = vmatpush1.msra.mxu0 0.0
    %1124 = vmatprep.subr.mxu0 0.0
    %1125 = vmatpush1.msra.mxu0 0.0
    %1126 = vmatprep.subr.mxu0 0.0
    %1127 = vmatpush1.msra.mxu0 0.0
    %1128 = vmatprep.subr.mxu0 0.0
    %1129 = vmatpush1.msra.mxu0 0.0
    %1130 = vmatprep.subr.mxu0 0.0
    %1131 = vmatpush1.msra.mxu0 0.0
    %1132 = vmatprep.subr.mxu0 0.0
    %1133 = vmatpush1.msra.mxu0 0.0
    %1134 = vmatprep.subr.mxu0 0.0
    %1135 = vmatpush1.msra.mxu0 0.0
    %1136 = vmatprep.subr.mxu0 0.0
    %1137 = vmatpush1.msra.mxu0 0.0
    %1138 = vmatprep.subr.mxu0 0.0
    %1139 = vmatpush1.msra.mxu0 0.0
    %1140 = vmatprep.subr.mxu0 %v1020
    %1141 = vmatpush1.msra.mxu0 %v1019
    %1142 = vmatprep.subr.mxu0 0.0
    %1143 = vmatpush2.msra.mxu0 0.0
    %1144 = vmatprep.subr.mxu0 0.0
    %1145 = vmatpush2.msra.mxu0 0.0
    %1146 = vmatprep.subr.mxu0 0.0
    %1147 = vmatpush2.msra.mxu0 0.0
    %1148 = vmatprep.subr.mxu0 0.0
    %1149 = vmatpush2.msra.mxu0 0.0
    %1150 = vmatprep.subr.mxu0 0.0
    %1151 = vmatpush2.msra.mxu0 0.0
    %1152 = vmatprep.subr.mxu0 0.0
    %1153 = vmatpush2.msra.mxu0 0.0
    %1154 = vmatprep.subr.mxu0 0.0
    %1155 = vmatpush2.msra.mxu0 0.0
    %1156 = vmatprep.subr.mxu0 0.0
    %1157 = vmatpush2.msra.mxu0 0.0
    %1158 = vmatprep.subr.mxu0 0.0
    %1159 = vmatpush2.msra.mxu0 0.0
    %1160 = vmatprep.subr.mxu0 0.0
    %1161 = vmatpush2.msra.mxu0 0.0
    %1162 = vmatprep.subr.mxu0 0.0
    %1163 = vmatpush2.msra.mxu0 0.0
    %1164 = vmatprep.subr.mxu0 0.0
    %1165 = vmatpush2.msra.mxu0 0.0
    %1166 = vmatprep.subr.mxu0 0.0
    %1167 = vmatpush2.msra.mxu0 0.0
    %1168 = vmatprep.subr.mxu0 0.0
    %1169 = vmatpush2.msra.mxu0 0.0
    %1170 = vmatprep.subr.mxu0 0.0
    %1171 = vmatpush2.msra.mxu0 0.0
    %1172 = vmatprep.subr.mxu0 0.0
    %1173 = vmatpush2.msra.mxu0 0.0
    %1174 = vmatprep.mubr.f32.mxu0 0.0
    %1175 = vmatmul.mubr.f32.gmra.mxu0 %v1108
    %v1176 = vpop.f32.mrf.mxu0
    %v1177 = vadd.f32 %v1103, %v1176
    %v1178 = vpop.f32.mrf.mxu0
    %v1179 = vadd.f32 %v1105, %v1178
    %1180 = vdwg.mxu0
    %1181 = vrot.lane.b32.xlu0 %v1011, 15
    %v1182 = vpop.permute.xlu0 %1181
    %1183 = vrot.lane.b32.xlu0 %v1012, 15
    %v1184 = vpop.permute.xlu0 %1183
    %v1185 = vsel %vm289, %v1182, %v1184
    %v1186 = vsel %vm289, %v1184, %v1182
    %v1187 = vmul.f32 %v1186, %v298
    %v1188 = vmul.f32 %v1185, %v302
    %s1189 = scalar_lea.vmem [#allocation4], 16
    %v1190 = vld [vmem:[%s1189] sm:$0xff]
    %v1192 = vsel %vm1032, %v1190, 0
    %1194 = vmatprep.subr.mxu0 0.0
    %1195 = vmatpush1.msra.mxu0 0.0
    %1196 = vmatprep.subr.mxu0 0.0
    %1197 = vmatpush1.msra.mxu0 0.0
    %1198 = vmatprep.subr.mxu0 0.0
    %1199 = vmatpush1.msra.mxu0 0.0
    %1200 = vmatprep.subr.mxu0 0.0
    %1201 = vmatpush1.msra.mxu0 0.0
    %1202 = vmatprep.subr.mxu0 0.0
    %1203 = vmatpush1.msra.mxu0 0.0
    %1204 = vmatprep.subr.mxu0 0.0
    %1205 = vmatpush1.msra.mxu0 0.0
    %1206 = vmatprep.subr.mxu0 0.0
    %1207 = vmatpush1.msra.mxu0 0.0
    %1208 = vmatprep.subr.mxu0 0.0
    %1209 = vmatpush1.msra.mxu0 0.0
    %1210 = vmatprep.subr.mxu0 0.0
    %1211 = vmatpush1.msra.mxu0 0.0
    %1212 = vmatprep.subr.mxu0 0.0
    %1213 = vmatpush1.msra.mxu0 0.0
    %1214 = vmatprep.subr.mxu0 0.0
    %1215 = vmatpush1.msra.mxu0 0.0
    %1216 = vmatprep.subr.mxu0 0.0
    %1217 = vmatpush1.msra.mxu0 0.0
    %1218 = vmatprep.subr.mxu0 0.0
    %1219 = vmatpush1.msra.mxu0 0.0
    %1220 = vmatprep.subr.mxu0 0.0
    %1221 = vmatpush1.msra.mxu0 0.0
    %1222 = vmatprep.subr.mxu0 0.0
    %1223 = vmatpush1.msra.mxu0 0.0
    %1224 = vmatprep.subr.mxu0 %v1188
    %1225 = vmatpush1.msra.mxu0 %v1187
    %1226 = vmatprep.subr.mxu0 0.0
    %1227 = vmatpush2.msra.mxu0 0.0
    %1228 = vmatprep.subr.mxu0 0.0
    %1229 = vmatpush2.msra.mxu0 0.0
    %1230 = vmatprep.subr.mxu0 0.0
    %1231 = vmatpush2.msra.mxu0 0.0
    %1232 = vmatprep.subr.mxu0 0.0
    %1233 = vmatpush2.msra.mxu0 0.0
    %1234 = vmatprep.subr.mxu0 0.0
    %1235 = vmatpush2.msra.mxu0 0.0
    %1236 = vmatprep.subr.mxu0 0.0
    %1237 = vmatpush2.msra.mxu0 0.0
    %1238 = vmatprep.subr.mxu0 0.0
    %1239 = vmatpush2.msra.mxu0 0.0
    %1240 = vmatprep.subr.mxu0 0.0
    %1241 = vmatpush2.msra.mxu0 0.0
    %1242 = vmatprep.subr.mxu0 0.0
    %1243 = vmatpush2.msra.mxu0 0.0
    %1244 = vmatprep.subr.mxu0 0.0
    %1245 = vmatpush2.msra.mxu0 0.0
    %1246 = vmatprep.subr.mxu0 0.0
    %1247 = vmatpush2.msra.mxu0 0.0
    %1248 = vmatprep.subr.mxu0 0.0
    %1249 = vmatpush2.msra.mxu0 0.0
    %1250 = vmatprep.subr.mxu0 0.0
    %1251 = vmatpush2.msra.mxu0 0.0
    %1252 = vmatprep.subr.mxu0 0.0
    %1253 = vmatpush2.msra.mxu0 0.0
    %1254 = vmatprep.subr.mxu0 0.0
    %1255 = vmatpush2.msra.mxu0 0.0
    %1256 = vmatprep.subr.mxu0 0.0
    %1257 = vmatpush2.msra.mxu0 0.0
    %1258 = vmatprep.mubr.f32.mxu0 0.0
    %1259 = vmatmul.mubr.f32.gmra.mxu0 %v1192
    %v1260 = vpop.f32.mrf.mxu0
    %v1261 = vadd.f32 0.0, %v1260
    %v1262 = vpop.f32.mrf.mxu0
    %v1263 = vadd.f32 0.0, %v1262
    %1264 = vdwg.mxu0
    %v1265 = vadd.f32 %v1177, %v1261
    %v1266 = vadd.f32 %v1179, %v1263
    %1267 = vrot.lane.b32.xlu0 %v1011, 1
    %v1268 = vpop.permute.xlu0 %1267
    %1269 = vrot.lane.b32.xlu0 %v1012, 1
    %v1270 = vpop.permute.xlu0 %1269
    %v1271 = vsel %vm395, %v1268, %v1270
    %v1272 = vsel %vm395, %v1270, %v1268
    %v1273 = vmul.f32 %v1272, %v404
    %v1274 = vmul.f32 %v1271, %v408
    %s1275 = scalar_lea.vmem [#allocation4], 24
    %v1276 = vld [vmem:[%s1275] sm:$0xff]
    %v1278 = vsel %vm1032, %v1276, 0
    %1280 = vmatprep.subr.mxu0 0.0
    %1281 = vmatpush1.msra.mxu0 0.0
    %1282 = vmatprep.subr.mxu0 0.0
    %1283 = vmatpush1.msra.mxu0 0.0
    %1284 = vmatprep.subr.mxu0 0.0
    %1285 = vmatpush1.msra.mxu0 0.0
    %1286 = vmatprep.subr.mxu0 0.0
    %1287 = vmatpush1.msra.mxu0 0.0
    %1288 = vmatprep.subr.mxu0 0.0
    %1289 = vmatpush1.msra.mxu0 0.0
    %1290 = vmatprep.subr.mxu0 0.0
    %1291 = vmatpush1.msra.mxu0 0.0
    %1292 = vmatprep.subr.mxu0 0.0
    %1293 = vmatpush1.msra.mxu0 0.0
    %1294 = vmatprep.subr.mxu0 0.0
    %1295 = vmatpush1.msra.mxu0 0.0
    %1296 = vmatprep.subr.mxu0 0.0
    %1297 = vmatpush1.msra.mxu0 0.0
    %1298 = vmatprep.subr.mxu0 0.0
    %1299 = vmatpush1.msra.mxu0 0.0
    %1300 = vmatprep.subr.mxu0 0.0
    %1301 = vmatpush1.msra.mxu0 0.0
    %1302 = vmatprep.subr.mxu0 0.0
    %1303 = vmatpush1.msra.mxu0 0.0
    %1304 = vmatprep.subr.mxu0 0.0
    %1305 = vmatpush1.msra.mxu0 0.0
    %1306 = vmatprep.subr.mxu0 0.0
    %1307 = vmatpush1.msra.mxu0 0.0
    %1308 = vmatprep.subr.mxu0 0.0
    %1309 = vmatpush1.msra.mxu0 0.0
    %1310 = vmatprep.subr.mxu0 %v1274
    %1311 = vmatpush1.msra.mxu0 %v1273
    %1312 = vmatprep.subr.mxu0 0.0
    %1313 = vmatpush2.msra.mxu0 0.0
    %1314 = vmatprep.subr.mxu0 0.0
    %1315 = vmatpush2.msra.mxu0 0.0
    %1316 = vmatprep.subr.mxu0 0.0
    %1317 = vmatpush2.msra.mxu0 0.0
    %1318 = vmatprep.subr.mxu0 0.0
    %1319 = vmatpush2.msra.mxu0 0.0
    %1320 = vmatprep.subr.mxu0 0.0
    %1321 = vmatpush2.msra.mxu0 0.0
    %1322 = vmatprep.subr.mxu0 0.0
    %1323 = vmatpush2.msra.mxu0 0.0
    %1324 = vmatprep.subr.mxu0 0.0
    %1325 = vmatpush2.msra.mxu0 0.0
    %1326 = vmatprep.subr.mxu0 0.0
    %1327 = vmatpush2.msra.mxu0 0.0
    %1328 = vmatprep.subr.mxu0 0.0
    %1329 = vmatpush2.msra.mxu0 0.0
    %1330 = vmatprep.subr.mxu0 0.0
    %1331 = vmatpush2.msra.mxu0 0.0
    %1332 = vmatprep.subr.mxu0 0.0
    %1333 = vmatpush2.msra.mxu0 0.0
    %1334 = vmatprep.subr.mxu0 0.0
    %1335 = vmatpush2.msra.mxu0 0.0
    %1336 = vmatprep.subr.mxu0 0.0
    %1337 = vmatpush2.msra.mxu0 0.0
    %1338 = vmatprep.subr.mxu0 0.0
    %1339 = vmatpush2.msra.mxu0 0.0
    %1340 = vmatprep.subr.mxu0 0.0
    %1341 = vmatpush2.msra.mxu0 0.0
    %1342 = vmatprep.subr.mxu0 0.0
    %1343 = vmatpush2.msra.mxu0 0.0
    %1344 = vmatprep.mubr.f32.mxu0 0.0
    %1345 = vmatmul.mubr.f32.gmra.mxu0 %v1278
    %v1346 = vpop.f32.mrf.mxu0
    %v1347 = vadd.f32 0.0, %v1346
    %v1348 = vpop.f32.mrf.mxu0
    %v1349 = vadd.f32 0.0, %v1348
    %1350 = vdwg.mxu0
    %v1351 = vadd.f32 %v1265, %v1347
    %v1352 = vadd.f32 %v1266, %v1349
    %s1353 = scalar_lea.vmem [#allocation4], 32
    %v1354 = vld [vmem:[%s1353] sm:$0xff]
    %v1356 = vsel %vm1032, %v1354, 0
    %1358 = vmatprep.subr.mxu0 0.0
    %1359 = vmatpush1.msra.mxu0 0.0
    %1360 = vmatprep.subr.mxu0 0.0
    %1361 = vmatpush1.msra.mxu0 0.0
    %1362 = vmatprep.subr.mxu0 0.0
    %1363 = vmatpush1.msra.mxu0 0.0
    %1364 = vmatprep.subr.mxu0 0.0
    %1365 = vmatpush1.msra.mxu0 0.0
    %1366 = vmatprep.subr.mxu0 0.0
    %1367 = vmatpush1.msra.mxu0 0.0
    %1368 = vmatprep.subr.mxu0 0.0
    %1369 = vmatpush1.msra.mxu0 0.0
    %1370 = vmatprep.subr.mxu0 0.0
    %1371 = vmatpush1.msra.mxu0 0.0
    %1372 = vmatprep.subr.mxu0 0.0
    %1373 = vmatpush1.msra.mxu0 0.0
    %1374 = vmatprep.subr.mxu0 0.0
    %1375 = vmatpush1.msra.mxu0 0.0
    %1376 = vmatprep.subr.mxu0 0.0
    %1377 = vmatpush1.msra.mxu0 0.0
    %1378 = vmatprep.subr.mxu0 0.0
    %1379 = vmatpush1.msra.mxu0 0.0
    %1380 = vmatprep.subr.mxu0 0.0
    %1381 = vmatpush1.msra.mxu0 0.0
    %1382 = vmatprep.subr.mxu0 0.0
    %1383 = vmatpush1.msra.mxu0 0.0
    %1384 = vmatprep.subr.mxu0 0.0
    %1385 = vmatpush1.msra.mxu0 0.0
    %1386 = vmatprep.subr.mxu0 0.0
    %1387 = vmatpush1.msra.mxu0 0.0
    %1388 = vmatprep.subr.mxu0 %v1012
    %1389 = vmatpush1.msra.mxu0 %v1011
    %1390 = vmatprep.subr.mxu0 0.0
    %1391 = vmatpush2.msra.mxu0 0.0
    %1392 = vmatprep.subr.mxu0 0.0
    %1393 = vmatpush2.msra.mxu0 0.0
    %1394 = vmatprep.subr.mxu0 0.0
    %1395 = vmatpush2.msra.mxu0 0.0
    %1396 = vmatprep.subr.mxu0 0.0
    %1397 = vmatpush2.msra.mxu0 0.0
    %1398 = vmatprep.subr.mxu0 0.0
    %1399 = vmatpush2.msra.mxu0 0.0
    %1400 = vmatprep.subr.mxu0 0.0
    %1401 = vmatpush2.msra.mxu0 0.0
    %1402 = vmatprep.subr.mxu0 0.0
    %1403 = vmatpush2.msra.mxu0 0.0
    %1404 = vmatprep.subr.mxu0 0.0
    %1405 = vmatpush2.msra.mxu0 0.0
    %1406 = vmatprep.subr.mxu0 0.0
    %1407 = vmatpush2.msra.mxu0 0.0
    %1408 = vmatprep.subr.mxu0 0.0
    %1409 = vmatpush2.msra.mxu0 0.0
    %1410 = vmatprep.subr.mxu0 0.0
    %1411 = vmatpush2.msra.mxu0 0.0
    %1412 = vmatprep.subr.mxu0 0.0
    %1413 = vmatpush2.msra.mxu0 0.0
    %1414 = vmatprep.subr.mxu0 0.0
    %1415 = vmatpush2.msra.mxu0 0.0
    %1416 = vmatprep.subr.mxu0 0.0
    %1417 = vmatpush2.msra.mxu0 0.0
    %1418 = vmatprep.subr.mxu0 0.0
    %1419 = vmatpush2.msra.mxu0 0.0
    %1420 = vmatprep.subr.mxu0 0.0
    %1421 = vmatpush2.msra.mxu0 0.0
    %1422 = vmatprep.mubr.f32.mxu0 0.0
    %1423 = vmatmul.mubr.f32.gmra.mxu0 %v1356
    %v1424 = vpop.f32.mrf.mxu0
    %v1425 = vadd.f32 0.0, %v1424
    %v1426 = vpop.f32.mrf.mxu0
    %v1427 = vadd.f32 0.0, %v1426
    %1428 = vdwg.mxu0
    %v1429 = vadd.f32 %v1351, %v1425
    %v1430 = vadd.f32 %v1352, %v1427
    %1431 = vrot.lane.b32.xlu0 %v1011, 127
    %v1432 = vpop.permute.xlu0 %1431
    %1433 = vrot.lane.b32.xlu0 %v1012, 127
    %v1434 = vpop.permute.xlu0 %1433
    %v1435 = vsel %vm583, %v1432, %v1434
    %v1436 = vsel %vm583, %v1434, %v1432
    %v1437 = vmul.f32 %v1435, %v592
    %v1438 = vmul.f32 %v1436, %v596
    %s1439 = scalar_lea.vmem [#allocation4], 40
    %v1440 = vld [vmem:[%s1439] sm:$0xff]
    %v1442 = vsel %vm1032, %v1440, 0
    %1444 = vmatprep.subr.mxu0 0.0
    %1445 = vmatpush1.msra.mxu0 0.0
    %1446 = vmatprep.subr.mxu0 0.0
    %1447 = vmatpush1.msra.mxu0 0.0
    %1448 = vmatprep.subr.mxu0 0.0
    %1449 = vmatpush1.msra.mxu0 0.0
    %1450 = vmatprep.subr.mxu0 0.0
    %1451 = vmatpush1.msra.mxu0 0.0
    %1452 = vmatprep.subr.mxu0 0.0
    %1453 = vmatpush1.msra.mxu0 0.0
    %1454 = vmatprep.subr.mxu0 0.0
    %1455 = vmatpush1.msra.mxu0 0.0
    %1456 = vmatprep.subr.mxu0 0.0
    %1457 = vmatpush1.msra.mxu0 0.0
    %1458 = vmatprep.subr.mxu0 0.0
    %1459 = vmatpush1.msra.mxu0 0.0
    %1460 = vmatprep.subr.mxu0 0.0
    %1461 = vmatpush1.msra.mxu0 0.0
    %1462 = vmatprep.subr.mxu0 0.0
    %1463 = vmatpush1.msra.mxu0 0.0
    %1464 = vmatprep.subr.mxu0 0.0
    %1465 = vmatpush1.msra.mxu0 0.0
    %1466 = vmatprep.subr.mxu0 0.0
    %1467 = vmatpush1.msra.mxu0 0.0
    %1468 = vmatprep.subr.mxu0 0.0
    %1469 = vmatpush1.msra.mxu0 0.0
    %1470 = vmatprep.subr.mxu0 0.0
    %1471 = vmatpush1.msra.mxu0 0.0
    %1472 = vmatprep.subr.mxu0 0.0
    %1473 = vmatpush1.msra.mxu0 0.0
    %1474 = vmatprep.subr.mxu0 %v1438
    %1475 = vmatpush1.msra.mxu0 %v1437
    %1476 = vmatprep.subr.mxu0 0.0
    %1477 = vmatpush2.msra.mxu0 0.0
    %1478 = vmatprep.subr.mxu0 0.0
    %1479 = vmatpush2.msra.mxu0 0.0
    %1480 = vmatprep.subr.mxu0 0.0
    %1481 = vmatpush2.msra.mxu0 0.0
    %1482 = vmatprep.subr.mxu0 0.0
    %1483 = vmatpush2.msra.mxu0 0.0
    %1484 = vmatprep.subr.mxu0 0.0
    %1485 = vmatpush2.msra.mxu0 0.0
    %1486 = vmatprep.subr.mxu0 0.0
    %1487 = vmatpush2.msra.mxu0 0.0
    %1488 = vmatprep.subr.mxu0 0.0
    %1489 = vmatpush2.msra.mxu0 0.0
    %1490 = vmatprep.subr.mxu0 0.0
    %1491 = vmatpush2.msra.mxu0 0.0
    %1492 = vmatprep.subr.mxu0 0.0
    %1493 = vmatpush2.msra.mxu0 0.0
    %1494 = vmatprep.subr.mxu0 0.0
    %1495 = vmatpush2.msra.mxu0 0.0
    %1496 = vmatprep.subr.mxu0 0.0
    %1497 = vmatpush2.msra.mxu0 0.0
    %1498 = vmatprep.subr.mxu0 0.0
    %1499 = vmatpush2.msra.mxu0 0.0
    %1500 = vmatprep.subr.mxu0 0.0
    %1501 = vmatpush2.msra.mxu0 0.0
    %1502 = vmatprep.subr.mxu0 0.0
    %1503 = vmatpush2.msra.mxu0 0.0
    %1504 = vmatprep.subr.mxu0 0.0
    %1505 = vmatpush2.msra.mxu0 0.0
    %1506 = vmatprep.subr.mxu0 0.0
    %1507 = vmatpush2.msra.mxu0 0.0
    %1508 = vmatprep.mubr.f32.mxu0 0.0
    %1509 = vmatmul.mubr.f32.gmra.mxu0 %v1442
    %v1510 = vpop.f32.mrf.mxu0
    %v1511 = vadd.f32 0.0, %v1510
    %v1512 = vpop.f32.mrf.mxu0
    %v1513 = vadd.f32 0.0, %v1512
    %1514 = vdwg.mxu0
    %v1515 = vadd.f32 %v1429, %v1511
    %v1516 = vadd.f32 %v1430, %v1513
    %1517 = vrot.lane.b32.xlu0 %v1011, 113
    %v1518 = vpop.permute.xlu0 %1517
    %1519 = vrot.lane.b32.xlu0 %v1012, 113
    %v1520 = vpop.permute.xlu0 %1519
    %v1521 = vsel %vm689, %v1518, %v1520
    %v1522 = vsel %vm689, %v1520, %v1518
    %v1523 = vmul.f32 %v1521, %v698
    %v1524 = vmul.f32 %v1522, %v702
    %s1525 = scalar_lea.vmem [#allocation4], 48
    %v1526 = vld [vmem:[%s1525] sm:$0xff]
    %v1528 = vsel %vm1032, %v1526, 0
    %1530 = vmatprep.subr.mxu0 0.0
    %1531 = vmatpush1.msra.mxu0 0.0
    %1532 = vmatprep.subr.mxu0 0.0
    %1533 = vmatpush1.msra.mxu0 0.0
    %1534 = vmatprep.subr.mxu0 0.0
    %1535 = vmatpush1.msra.mxu0 0.0
    %1536 = vmatprep.subr.mxu0 0.0
    %1537 = vmatpush1.msra.mxu0 0.0
    %1538 = vmatprep.subr.mxu0 0.0
    %1539 = vmatpush1.msra.mxu0 0.0
    %1540 = vmatprep.subr.mxu0 0.0
    %1541 = vmatpush1.msra.mxu0 0.0
    %1542 = vmatprep.subr.mxu0 0.0
    %1543 = vmatpush1.msra.mxu0 0.0
    %1544 = vmatprep.subr.mxu0 0.0
    %1545 = vmatpush1.msra.mxu0 0.0
    %1546 = vmatprep.subr.mxu0 0.0
    %1547 = vmatpush1.msra.mxu0 0.0
    %1548 = vmatprep.subr.mxu0 0.0
    %1549 = vmatpush1.msra.mxu0 0.0
    %1550 = vmatprep.subr.mxu0 0.0
    %1551 = vmatpush1.msra.mxu0 0.0
    %1552 = vmatprep.subr.mxu0 0.0
    %1553 = vmatpush1.msra.mxu0 0.0
    %1554 = vmatprep.subr.mxu0 0.0
    %1555 = vmatpush1.msra.mxu0 0.0
    %1556 = vmatprep.subr.mxu0 0.0
    %1557 = vmatpush1.msra.mxu0 0.0
    %1558 = vmatprep.subr.mxu0 0.0
    %1559 = vmatpush1.msra.mxu0 0.0
    %1560 = vmatprep.subr.mxu0 %v1524
    %1561 = vmatpush1.msra.mxu0 %v1523
    %1562 = vmatprep.subr.mxu0 0.0
    %1563 = vmatpush2.msra.mxu0 0.0
    %1564 = vmatprep.subr.mxu0 0.0
    %1565 = vmatpush2.msra.mxu0 0.0
    %1566 = vmatprep.subr.mxu0 0.0
    %1567 = vmatpush2.msra.mxu0 0.0
    %1568 = vmatprep.subr.mxu0 0.0
    %1569 = vmatpush2.msra.mxu0 0.0
    %1570 = vmatprep.subr.mxu0 0.0
    %1571 = vmatpush2.msra.mxu0 0.0
    %1572 = vmatprep.subr.mxu0 0.0
    %1573 = vmatpush2.msra.mxu0 0.0
    %1574 = vmatprep.subr.mxu0 0.0
    %1575 = vmatpush2.msra.mxu0 0.0
    %1576 = vmatprep.subr.mxu0 0.0
    %1577 = vmatpush2.msra.mxu0 0.0
    %1578 = vmatprep.subr.mxu0 0.0
    %1579 = vmatpush2.msra.mxu0 0.0
    %1580 = vmatprep.subr.mxu0 0.0
    %1581 = vmatpush2.msra.mxu0 0.0
    %1582 = vmatprep.subr.mxu0 0.0
    %1583 = vmatpush2.msra.mxu0 0.0
    %1584 = vmatprep.subr.mxu0 0.0
    %1585 = vmatpush2.msra.mxu0 0.0
    %1586 = vmatprep.subr.mxu0 0.0
    %1587 = vmatpush2.msra.mxu0 0.0
    %1588 = vmatprep.subr.mxu0 0.0
    %1589 = vmatpush2.msra.mxu0 0.0
    %1590 = vmatprep.subr.mxu0 0.0
    %1591 = vmatpush2.msra.mxu0 0.0
    %1592 = vmatprep.subr.mxu0 0.0
    %1593 = vmatpush2.msra.mxu0 0.0
    %1594 = vmatprep.mubr.f32.mxu0 0.0
    %1595 = vmatmul.mubr.f32.gmra.mxu0 %v1528
    %v1596 = vpop.f32.mrf.mxu0
    %v1597 = vadd.f32 0.0, %v1596
    %v1598 = vpop.f32.mrf.mxu0
    %v1599 = vadd.f32 0.0, %v1598
    %1600 = vdwg.mxu0
    %v1601 = vadd.f32 %v1515, %v1597
    %v1602 = vadd.f32 %v1516, %v1599
    %1603 = vrot.lane.b32.xlu0 %v1011, 112
    %v1604 = vpop.permute.xlu0 %1603
    %1605 = vrot.lane.b32.xlu0 %v1012, 112
    %v1606 = vpop.permute.xlu0 %1605
    %v1607 = vsel %vm795, %v1604, %v1606
    %v1608 = vsel %vm795, %v1606, %v1604
    %v1609 = vmul.f32 %v1607, %v804
    %v1610 = vmul.f32 %v1608, %v808
    %s1611 = scalar_lea.vmem [#allocation4], 56
    %v1612 = vld [vmem:[%s1611] sm:$0xff]
    %v1614 = vsel %vm1032, %v1612, 0
    %1616 = vmatprep.subr.mxu0 0.0
    %1617 = vmatpush1.msra.mxu0 0.0
    %1618 = vmatprep.subr.mxu0 0.0
    %1619 = vmatpush1.msra.mxu0 0.0
    %1620 = vmatprep.subr.mxu0 0.0
    %1621 = vmatpush1.msra.mxu0 0.0
    %1622 = vmatprep.subr.mxu0 0.0
    %1623 = vmatpush1.msra.mxu0 0.0
    %1624 = vmatprep.subr.mxu0 0.0
    %1625 = vmatpush1.msra.mxu0 0.0
    %1626 = vmatprep.subr.mxu0 0.0
    %1627 = vmatpush1.msra.mxu0 0.0
    %1628 = vmatprep.subr.mxu0 0.0
    %1629 = vmatpush1.msra.mxu0 0.0
    %1630 = vmatprep.subr.mxu0 0.0
    %1631 = vmatpush1.msra.mxu0 0.0
    %1632 = vmatprep.subr.mxu0 0.0
    %1633 = vmatpush1.msra.mxu0 0.0
    %1634 = vmatprep.subr.mxu0 0.0
    %1635 = vmatpush1.msra.mxu0 0.0
    %1636 = vmatprep.subr.mxu0 0.0
    %1637 = vmatpush1.msra.mxu0 0.0
    %1638 = vmatprep.subr.mxu0 0.0
    %1639 = vmatpush1.msra.mxu0 0.0
    %1640 = vmatprep.subr.mxu0 0.0
    %1641 = vmatpush1.msra.mxu0 0.0
    %1642 = vmatprep.subr.mxu0 0.0
    %1643 = vmatpush1.msra.mxu0 0.0
    %1644 = vmatprep.subr.mxu0 0.0
    %1645 = vmatpush1.msra.mxu0 0.0
    %1646 = vmatprep.subr.mxu0 %v1610
    %1647 = vmatpush1.msra.mxu0 %v1609
    %1648 = vmatprep.subr.mxu0 0.0
    %1649 = vmatpush2.msra.mxu0 0.0
    %1650 = vmatprep.subr.mxu0 0.0
    %1651 = vmatpush2.msra.mxu0 0.0
    %1652 = vmatprep.subr.mxu0 0.0
    %1653 = vmatpush2.msra.mxu0 0.0
    %1654 = vmatprep.subr.mxu0 0.0
    %1655 = vmatpush2.msra.mxu0 0.0
    %1656 = vmatprep.subr.mxu0 0.0
    %1657 = vmatpush2.msra.mxu0 0.0
    %1658 = vmatprep.subr.mxu0 0.0
    %1659 = vmatpush2.msra.mxu0 0.0
    %1660 = vmatprep.subr.mxu0 0.0
    %1661 = vmatpush2.msra.mxu0 0.0
    %1662 = vmatprep.subr.mxu0 0.0
    %1663 = vmatpush2.msra.mxu0 0.0
    %1664 = vmatprep.subr.mxu0 0.0
    %1665 = vmatpush2.msra.mxu0 0.0
    %1666 = vmatprep.subr.mxu0 0.0
    %1667 = vmatpush2.msra.mxu0 0.0
    %1668 = vmatprep.subr.mxu0 0.0
    %1669 = vmatpush2.msra.mxu0 0.0
    %1670 = vmatprep.subr.mxu0 0.0
    %1671 = vmatpush2.msra.mxu0 0.0
    %1672 = vmatprep.subr.mxu0 0.0
    %1673 = vmatpush2.msra.mxu0 0.0
    %1674 = vmatprep.subr.mxu0 0.0
    %1675 = vmatpush2.msra.mxu0 0.0
    %1676 = vmatprep.subr.mxu0 0.0
    %1677 = vmatpush2.msra.mxu0 0.0
    %1678 = vmatprep.subr.mxu0 0.0
    %1679 = vmatpush2.msra.mxu0 0.0
    %1680 = vmatprep.mubr.f32.mxu0 0.0
    %1681 = vmatmul.mubr.f32.gmra.mxu0 %v1614
    %v1682 = vpop.f32.mrf.mxu0
    %v1683 = vadd.f32 0.0, %v1682
    %v1684 = vpop.f32.mrf.mxu0
    %v1685 = vadd.f32 0.0, %v1684
    %1686 = vdwg.mxu0
    %v1687 = vadd.f32 %v1601, %v1683
    %v1688 = vadd.f32 %v1602, %v1685
    %1689 = vrot.lane.b32.xlu0 %v1011, 111
    %v1690 = vpop.permute.xlu0 %1689
    %1691 = vrot.lane.b32.xlu0 %v1012, 111
    %v1692 = vpop.permute.xlu0 %1691
    %v1693 = vsel %vm901, %v1690, %v1692
    %v1694 = vsel %vm901, %v1692, %v1690
    %v1695 = vmul.f32 %v1693, %v910
    %v1696 = vmul.f32 %v1694, %v914
    %s1697 = scalar_lea.vmem [#allocation4], 64
    %v1698 = vld [vmem:[%s1697] sm:$0xff]
    %v1700 = vsel %vm1032, %v1698, 0
    %1702 = vmatprep.subr.mxu0 0.0
    %1703 = vmatpush1.msra.mxu0 0.0
    %1704 = vmatprep.subr.mxu0 0.0
    %1705 = vmatpush1.msra.mxu0 0.0
    %1706 = vmatprep.subr.mxu0 0.0
    %1707 = vmatpush1.msra.mxu0 0.0
    %1708 = vmatprep.subr.mxu0 0.0
    %1709 = vmatpush1.msra.mxu0 0.0
    %1710 = vmatprep.subr.mxu0 0.0
    %1711 = vmatpush1.msra.mxu0 0.0
    %1712 = vmatprep.subr.mxu0 0.0
    %1713 = vmatpush1.msra.mxu0 0.0
    %1714 = vmatprep.subr.mxu0 0.0
    %1715 = vmatpush1.msra.mxu0 0.0
    %1716 = vmatprep.subr.mxu0 0.0
    %1717 = vmatpush1.msra.mxu0 0.0
    %1718 = vmatprep.subr.mxu0 0.0
    %1719 = vmatpush1.msra.mxu0 0.0
    %1720 = vmatprep.subr.mxu0 0.0
    %1721 = vmatpush1.msra.mxu0 0.0
    %1722 = vmatprep.subr.mxu0 0.0
    %1723 = vmatpush1.msra.mxu0 0.0
    %1724 = vmatprep.subr.mxu0 0.0
    %1725 = vmatpush1.msra.mxu0 0.0
    %1726 = vmatprep.subr.mxu0 0.0
    %1727 = vmatpush1.msra.mxu0 0.0
    %1728 = vmatprep.subr.mxu0 0.0
    %1729 = vmatpush1.msra.mxu0 0.0
    %1730 = vmatprep.subr.mxu0 0.0
    %1731 = vmatpush1.msra.mxu0 0.0
    %1732 = vmatprep.subr.mxu0 %v1696
    %1733 = vmatpush1.msra.mxu0 %v1695
    %1734 = vmatprep.subr.mxu0 0.0
    %1735 = vmatpush2.msra.mxu0 0.0
    %1736 = vmatprep.subr.mxu0 0.0
    %1737 = vmatpush2.msra.mxu0 0.0
    %1738 = vmatprep.subr.mxu0 0.0
    %1739 = vmatpush2.msra.mxu0 0.0
    %1740 = vmatprep.subr.mxu0 0.0
    %1741 = vmatpush2.msra.mxu0 0.0
    %1742 = vmatprep.subr.mxu0 0.0
    %1743 = vmatpush2.msra.mxu0 0.0
    %1744 = vmatprep.subr.mxu0 0.0
    %1745 = vmatpush2.msra.mxu0 0.0
    %1746 = vmatprep.subr.mxu0 0.0
    %1747 = vmatpush2.msra.mxu0 0.0
    %1748 = vmatprep.subr.mxu0 0.0
    %1749 = vmatpush2.msra.mxu0 0.0
    %1750 = vmatprep.subr.mxu0 0.0
    %1751 = vmatpush2.msra.mxu0 0.0
    %1752 = vmatprep.subr.mxu0 0.0
    %1753 = vmatpush2.msra.mxu0 0.0
    %1754 = vmatprep.subr.mxu0 0.0
    %1755 = vmatpush2.msra.mxu0 0.0
    %1756 = vmatprep.subr.mxu0 0.0
    %1757 = vmatpush2.msra.mxu0 0.0
    %1758 = vmatprep.subr.mxu0 0.0
    %1759 = vmatpush2.msra.mxu0 0.0
    %1760 = vmatprep.subr.mxu0 0.0
    %1761 = vmatpush2.msra.mxu0 0.0
    %1762 = vmatprep.subr.mxu0 0.0
    %1763 = vmatpush2.msra.mxu0 0.0
    %1764 = vmatprep.subr.mxu0 0.0
    %1765 = vmatpush2.msra.mxu0 0.0
    %1766 = vmatprep.mubr.f32.mxu0 0.0
    %1767 = vmatmul.mubr.f32.gmra.mxu0 %v1700
    %v1768 = vpop.f32.mrf.mxu0
    %v1769 = vadd.f32 0.0, %v1768
    %v1770 = vpop.f32.mrf.mxu0
    %v1771 = vadd.f32 0.0, %v1770
    %1772 = vdwg.mxu0
    %v1773 = vadd.f32 %v1687, %v1769
    %v1774 = vadd.f32 %v1688, %v1771
    %v1775 = vld [vmem:[%s6] sm:$0xff]
    %1777 = vset.pattern.permute.xlu0 0
    %1778 = vperm.xlu0 %1777, %v1775
    %v1779 = vpop.permute.xlu0 %1778
    %v1781 = vadd.f32 %v1773, %v1779
    %v1782 = vadd.f32 %v1774, %v1779
    %v1783 = vmax.f32 %v1781, 0.0
    %v1784 = vmax.f32 %v1782, 0.0
    %1785 = vrot.lane.b32.xlu0 %v1783, 17
    %v1786 = vpop.permute.xlu0 %1785
    %1787 = vrot.lane.b32.xlu0 %v1784, 17
    %v1788 = vpop.permute.xlu0 %1787
    %v1789 = vsel %vm81, %v1786, %v1788
    %v1790 = vsel %vm81, %v1788, %v1786
    %v1791 = vmul.f32 %v1790, %v89
    %v1792 = vmul.f32 %v1789, %v93
    %v1793 = vld [vmem:[%s7] sm:$0x3]
    %1794 = vrot.lane.b32.xlu0 %v1783, 16
    %v1795 = vpop.permute.xlu0 %1794
    %1796 = vrot.lane.b32.xlu0 %v1784, 16
    %v1797 = vpop.permute.xlu0 %1796
    %v1798 = vsel %vm103, %v1795, %v1797
    %v1799 = vsel %vm103, %v1797, %v1795
    %v1800 = vmul.f32 %v1799, %v112
    %v1801 = vmul.f32 %v1798, %v116
    %s1802 = scalar_lea.vmem %s7, 2
    %v1803 = vld [vmem:[%s1802] sm:$0x3]
    %v1805 = vsel %vm1032, %v1803, 0
    %1807 = vmatprep.subr.mxu0 0.0
    %1808 = vmatpush1.msra.mxu0 0.0
    %1809 = vmatprep.subr.mxu0 0.0
    %1810 = vmatpush1.msra.mxu0 0.0
    %1811 = vmatprep.subr.mxu0 0.0
    %1812 = vmatpush1.msra.mxu0 0.0
    %1813 = vmatprep.subr.mxu0 0.0
    %1814 = vmatpush1.msra.mxu0 0.0
    %1815 = vmatprep.subr.mxu0 0.0
    %1816 = vmatpush1.msra.mxu0 0.0
    %1817 = vmatprep.subr.mxu0 0.0
    %1818 = vmatpush1.msra.mxu0 0.0
    %1819 = vmatprep.subr.mxu0 0.0
    %1820 = vmatpush1.msra.mxu0 0.0
    %1821 = vmatprep.subr.mxu0 0.0
    %1822 = vmatpush1.msra.mxu0 0.0
    %1823 = vmatprep.subr.mxu0 0.0
    %1824 = vmatpush1.msra.mxu0 0.0
    %1825 = vmatprep.subr.mxu0 0.0
    %1826 = vmatpush1.msra.mxu0 0.0
    %1827 = vmatprep.subr.mxu0 0.0
    %1828 = vmatpush1.msra.mxu0 0.0
    %1829 = vmatprep.subr.mxu0 0.0
    %1830 = vmatpush1.msra.mxu0 0.0
    %1831 = vmatprep.subr.mxu0 0.0
    %1832 = vmatpush1.msra.mxu0 0.0
    %1833 = vmatprep.subr.mxu0 0.0
    %1834 = vmatpush1.msra.mxu0 0.0
    %1835 = vmatprep.subr.mxu0 0.0
    %1836 = vmatpush1.msra.mxu0 0.0
    %1837 = vmatprep.subr.mxu0 %v1801
    %1838 = vmatpush1.msra.mxu0 %v1800
    %1839 = vmatprep.subr.mxu0 0.0
    %1840 = vmatpush2.msra.mxu0 0.0
    %1841 = vmatprep.subr.mxu0 0.0
    %1842 = vmatpush2.msra.mxu0 0.0
    %1843 = vmatprep.subr.mxu0 0.0
    %1844 = vmatpush2.msra.mxu0 0.0
    %1845 = vmatprep.subr.mxu0 0.0
    %1846 = vmatpush2.msra.mxu0 0.0
    %1847 = vmatprep.subr.mxu0 0.0
    %1848 = vmatpush2.msra.mxu0 0.0
    %1849 = vmatprep.subr.mxu0 0.0
    %1850 = vmatpush2.msra.mxu0 0.0
    %1851 = vmatprep.subr.mxu0 0.0
    %1852 = vmatpush2.msra.mxu0 0.0
    %1853 = vmatprep.subr.mxu0 0.0
    %1854 = vmatpush2.msra.mxu0 0.0
    %1855 = vmatprep.subr.mxu0 0.0
    %1856 = vmatpush2.msra.mxu0 0.0
    %1857 = vmatprep.subr.mxu0 0.0
    %1858 = vmatpush2.msra.mxu0 0.0
    %1859 = vmatprep.subr.mxu0 0.0
    %1860 = vmatpush2.msra.mxu0 0.0
    %1861 = vmatprep.subr.mxu0 0.0
    %1862 = vmatpush2.msra.mxu0 0.0
    %1863 = vmatprep.subr.mxu0 0.0
    %1864 = vmatpush2.msra.mxu0 0.0
    %1865 = vmatprep.subr.mxu0 0.0
    %1866 = vmatpush2.msra.mxu0 0.0
    %1867 = vmatprep.subr.mxu0 0.0
    %1868 = vmatpush2.msra.mxu0 0.0
    %1869 = vmatprep.subr.mxu0 0.0
    %1870 = vmatpush2.msra.mxu0 0.0
    %1871 = vmatprep.mubr.f32.mxu0 0.0
    %1872 = vmatmul.mubr.f32.gmra.mxu0 %v1805
    %v1873 = vpop.f32.mrf.mxu0
    %v1874 = vadd.f32 0.0, %v1873
    %v1875 = vpop.f32.mrf.mxu0
    %v1876 = vadd.f32 0.0, %v1875
    %1877 = vdwg.mxu0
    %v1879 = vsel %vm1032, %v1793, 0
    %1881 = vmatprep.subr.mxu0 0.0
    %1882 = vmatpush1.msra.mxu0 0.0
    %1883 = vmatprep.subr.mxu0 0.0
    %1884 = vmatpush1.msra.mxu0 0.0
    %1885 = vmatprep.subr.mxu0 0.0
    %1886 = vmatpush1.msra.mxu0 0.0
    %1887 = vmatprep.subr.mxu0 0.0
    %1888 = vmatpush1.msra.mxu0 0.0
    %1889 = vmatprep.subr.mxu0 0.0
    %1890 = vmatpush1.msra.mxu0 0.0
    %1891 = vmatprep.subr.mxu0 0.0
    %1892 = vmatpush1.msra.mxu0 0.0
    %1893 = vmatprep.subr.mxu0 0.0
    %1894 = vmatpush1.msra.mxu0 0.0
    %1895 = vmatprep.subr.mxu0 0.0
    %1896 = vmatpush1.msra.mxu0 0.0
    %1897 = vmatprep.subr.mxu0 0.0
    %1898 = vmatpush1.msra.mxu0 0.0
    %1899 = vmatprep.subr.mxu0 0.0
    %1900 = vmatpush1.msra.mxu0 0.0
    %1901 = vmatprep.subr.mxu0 0.0
    %1902 = vmatpush1.msra.mxu0 0.0
    %1903 = vmatprep.subr.mxu0 0.0
    %1904 = vmatpush1.msra.mxu0 0.0
    %1905 = vmatprep.subr.mxu0 0.0
    %1906 = vmatpush1.msra.mxu0 0.0
    %1907 = vmatprep.subr.mxu0 0.0
    %1908 = vmatpush1.msra.mxu0 0.0
    %1909 = vmatprep.subr.mxu0 0.0
    %1910 = vmatpush1.msra.mxu0 0.0
    %1911 = vmatprep.subr.mxu0 %v1792
    %1912 = vmatpush1.msra.mxu0 %v1791
    %1913 = vmatprep.subr.mxu0 0.0
    %1914 = vmatpush2.msra.mxu0 0.0
    %1915 = vmatprep.subr.mxu0 0.0
    %1916 = vmatpush2.msra.mxu0 0.0
    %1917 = vmatprep.subr.mxu0 0.0
    %1918 = vmatpush2.msra.mxu0 0.0
    %1919 = vmatprep.subr.mxu0 0.0
    %1920 = vmatpush2.msra.mxu0 0.0
    %1921 = vmatprep.subr.mxu0 0.0
    %1922 = vmatpush2.msra.mxu0 0.0
    %1923 = vmatprep.subr.mxu0 0.0
    %1924 = vmatpush2.msra.mxu0 0.0
    %1925 = vmatprep.subr.mxu0 0.0
    %1926 = vmatpush2.msra.mxu0 0.0
    %1927 = vmatprep.subr.mxu0 0.0
    %1928 = vmatpush2.msra.mxu0 0.0
    %1929 = vmatprep.subr.mxu0 0.0
    %1930 = vmatpush2.msra.mxu0 0.0
    %1931 = vmatprep.subr.mxu0 0.0
    %1932 = vmatpush2.msra.mxu0 0.0
    %1933 = vmatprep.subr.mxu0 0.0
    %1934 = vmatpush2.msra.mxu0 0.0
    %1935 = vmatprep.subr.mxu0 0.0
    %1936 = vmatpush2.msra.mxu0 0.0
    %1937 = vmatprep.subr.mxu0 0.0
    %1938 = vmatpush2.msra.mxu0 0.0
    %1939 = vmatprep.subr.mxu0 0.0
    %1940 = vmatpush2.msra.mxu0 0.0
    %1941 = vmatprep.subr.mxu0 0.0
    %1942 = vmatpush2.msra.mxu0 0.0
    %1943 = vmatprep.subr.mxu0 0.0
    %1944 = vmatpush2.msra.mxu0 0.0
    %1945 = vmatprep.mubr.f32.mxu0 0.0
    %1946 = vmatmul.mubr.f32.gmra.mxu0 %v1879
    %v1947 = vpop.f32.mrf.mxu0
    %v1948 = vadd.f32 %v1874, %v1947
    %v1949 = vpop.f32.mrf.mxu0
    %v1950 = vadd.f32 %v1876, %v1949
    %1951 = vdwg.mxu0
    %1952 = vrot.lane.b32.xlu0 %v1783, 15
    %v1953 = vpop.permute.xlu0 %1952
    %1954 = vrot.lane.b32.xlu0 %v1784, 15
    %v1955 = vpop.permute.xlu0 %1954
    %v1956 = vsel %vm289, %v1953, %v1955
    %v1957 = vsel %vm289, %v1955, %v1953
    %v1958 = vmul.f32 %v1957, %v298
    %v1959 = vmul.f32 %v1956, %v302
    %s1960 = scalar_lea.vmem %s7, 4
    %v1961 = vld [vmem:[%s1960] sm:$0x3]
    %v1963 = vsel %vm1032, %v1961, 0
    %1965 = vmatprep.subr.mxu0 0.0
    %1966 = vmatpush1.msra.mxu0 0.0
    %1967 = vmatprep.subr.mxu0 0.0
    %1968 = vmatpush1.msra.mxu0 0.0
    %1969 = vmatprep.subr.mxu0 0.0
    %1970 = vmatpush1.msra.mxu0 0.0
    %1971 = vmatprep.subr.mxu0 0.0
    %1972 = vmatpush1.msra.mxu0 0.0
    %1973 = vmatprep.subr.mxu0 0.0
    %1974 = vmatpush1.msra.mxu0 0.0
    %1975 = vmatprep.subr.mxu0 0.0
    %1976 = vmatpush1.msra.mxu0 0.0
    %1977 = vmatprep.subr.mxu0 0.0
    %1978 = vmatpush1.msra.mxu0 0.0
    %1979 = vmatprep.subr.mxu0 0.0
    %1980 = vmatpush1.msra.mxu0 0.0
    %1981 = vmatprep.subr.mxu0 0.0
    %1982 = vmatpush1.msra.mxu0 0.0
    %1983 = vmatprep.subr.mxu0 0.0
    %1984 = vmatpush1.msra.mxu0 0.0
    %1985 = vmatprep.subr.mxu0 0.0
    %1986 = vmatpush1.msra.mxu0 0.0
    %1987 = vmatprep.subr.mxu0 0.0
    %1988 = vmatpush1.msra.mxu0 0.0
    %1989 = vmatprep.subr.mxu0 0.0
    %1990 = vmatpush1.msra.mxu0 0.0
    %1991 = vmatprep.subr.mxu0 0.0
    %1992 = vmatpush1.msra.mxu0 0.0
    %1993 = vmatprep.subr.mxu0 0.0
    %1994 = vmatpush1.msra.mxu0 0.0
    %1995 = vmatprep.subr.mxu0 %v1959
    %1996 = vmatpush1.msra.mxu0 %v1958
    %1997 = vmatprep.subr.mxu0 0.0
    %1998 = vmatpush2.msra.mxu0 0.0
    %1999 = vmatprep.subr.mxu0 0.0
    %2000 = vmatpush2.msra.mxu0 0.0
    %2001 = vmatprep.subr.mxu0 0.0
    %2002 = vmatpush2.msra.mxu0 0.0
    %2003 = vmatprep.subr.mxu0 0.0
    %2004 = vmatpush2.msra.mxu0 0.0
    %2005 = vmatprep.subr.mxu0 0.0
    %2006 = vmatpush2.msra.mxu0 0.0
    %2007 = vmatprep.subr.mxu0 0.0
    %2008 = vmatpush2.msra.mxu0 0.0
    %2009 = vmatprep.subr.mxu0 0.0
    %2010 = vmatpush2.msra.mxu0 0.0
    %2011 = vmatprep.subr.mxu0 0.0
    %2012 = vmatpush2.msra.mxu0 0.0
    %2013 = vmatprep.subr.mxu0 0.0
    %2014 = vmatpush2.msra.mxu0 0.0
    %2015 = vmatprep.subr.mxu0 0.0
    %2016 = vmatpush2.msra.mxu0 0.0
    %2017 = vmatprep.subr.mxu0 0.0
    %2018 = vmatpush2.msra.mxu0 0.0
    %2019 = vmatprep.subr.mxu0 0.0
    %2020 = vmatpush2.msra.mxu0 0.0
    %2021 = vmatprep.subr.mxu0 0.0
    %2022 = vmatpush2.msra.mxu0 0.0
    %2023 = vmatprep.subr.mxu0 0.0
    %2024 = vmatpush2.msra.mxu0 0.0
    %2025 = vmatprep.subr.mxu0 0.0
    %2026 = vmatpush2.msra.mxu0 0.0
    %2027 = vmatprep.subr.mxu0 0.0
    %2028 = vmatpush2.msra.mxu0 0.0
    %2029 = vmatprep.mubr.f32.mxu0 0.0
    %2030 = vmatmul.mubr.f32.gmra.mxu0 %v1963
    %v2031 = vpop.f32.mrf.mxu0
    %v2032 = vadd.f32 0.0, %v2031
    %v2033 = vpop.f32.mrf.mxu0
    %v2034 = vadd.f32 0.0, %v2033
    %2035 = vdwg.mxu0
    %v2036 = vadd.f32 %v1948, %v2032
    %v2037 = vadd.f32 %v1950, %v2034
    %2038 = vrot.lane.b32.xlu0 %v1783, 1
    %v2039 = vpop.permute.xlu0 %2038
    %2040 = vrot.lane.b32.xlu0 %v1784, 1
    %v2041 = vpop.permute.xlu0 %2040
    %v2042 = vsel %vm395, %v2039, %v2041
    %v2043 = vsel %vm395, %v2041, %v2039
    %v2044 = vmul.f32 %v2043, %v404
    %v2045 = vmul.f32 %v2042, %v408
    %s2046 = scalar_lea.vmem %s7, 6
    %v2047 = vld [vmem:[%s2046] sm:$0x3]
    %v2049 = vsel %vm1032, %v2047, 0
    %2051 = vmatprep.subr.mxu0 0.0
    %2052 = vmatpush1.msra.mxu0 0.0
    %2053 = vmatprep.subr.mxu0 0.0
    %2054 = vmatpush1.msra.mxu0 0.0
    %2055 = vmatprep.subr.mxu0 0.0
    %2056 = vmatpush1.msra.mxu0 0.0
    %2057 = vmatprep.subr.mxu0 0.0
    %2058 = vmatpush1.msra.mxu0 0.0
    %2059 = vmatprep.subr.mxu0 0.0
    %2060 = vmatpush1.msra.mxu0 0.0
    %2061 = vmatprep.subr.mxu0 0.0
    %2062 = vmatpush1.msra.mxu0 0.0
    %2063 = vmatprep.subr.mxu0 0.0
    %2064 = vmatpush1.msra.mxu0 0.0
    %2065 = vmatprep.subr.mxu0 0.0
    %2066 = vmatpush1.msra.mxu0 0.0
    %2067 = vmatprep.subr.mxu0 0.0
    %2068 = vmatpush1.msra.mxu0 0.0
    %2069 = vmatprep.subr.mxu0 0.0
    %2070 = vmatpush1.msra.mxu0 0.0
    %2071 = vmatprep.subr.mxu0 0.0
    %2072 = vmatpush1.msra.mxu0 0.0
    %2073 = vmatprep.subr.mxu0 0.0
    %2074 = vmatpush1.msra.mxu0 0.0
    %2075 = vmatprep.subr.mxu0 0.0
    %2076 = vmatpush1.msra.mxu0 0.0
    %2077 = vmatprep.subr.mxu0 0.0
    %2078 = vmatpush1.msra.mxu0 0.0
    %2079 = vmatprep.subr.mxu0 0.0
    %2080 = vmatpush1.msra.mxu0 0.0
    %2081 = vmatprep.subr.mxu0 %v2045
    %2082 = vmatpush1.msra.mxu0 %v2044
    %2083 = vmatprep.subr.mxu0 0.0
    %2084 = vmatpush2.msra.mxu0 0.0
    %2085 = vmatprep.subr.mxu0 0.0
    %2086 = vmatpush2.msra.mxu0 0.0
    %2087 = vmatprep.subr.mxu0 0.0
    %2088 = vmatpush2.msra.mxu0 0.0
    %2089 = vmatprep.subr.mxu0 0.0
    %2090 = vmatpush2.msra.mxu0 0.0
    %2091 = vmatprep.subr.mxu0 0.0
    %2092 = vmatpush2.msra.mxu0 0.0
    %2093 = vmatprep.subr.mxu0 0.0
    %2094 = vmatpush2.msra.mxu0 0.0
    %2095 = vmatprep.subr.mxu0 0.0
    %2096 = vmatpush2.msra.mxu0 0.0
    %2097 = vmatprep.subr.mxu0 0.0
    %2098 = vmatpush2.msra.mxu0 0.0
    %2099 = vmatprep.subr.mxu0 0.0
    %2100 = vmatpush2.msra.mxu0 0.0
    %2101 = vmatprep.subr.mxu0 0.0
    %2102 = vmatpush2.msra.mxu0 0.0
    %2103 = vmatprep.subr.mxu0 0.0
    %2104 = vmatpush2.msra.mxu0 0.0
    %2105 = vmatprep.subr.mxu0 0.0
    %2106 = vmatpush2.msra.mxu0 0.0
    %2107 = vmatprep.subr.mxu0 0.0
    %2108 = vmatpush2.msra.mxu0 0.0
    %2109 = vmatprep.subr.mxu0 0.0
    %2110 = vmatpush2.msra.mxu0 0.0
    %2111 = vmatprep.subr.mxu0 0.0
    %2112 = vmatpush2.msra.mxu0 0.0
    %2113 = vmatprep.subr.mxu0 0.0
    %2114 = vmatpush2.msra.mxu0 0.0
    %2115 = vmatprep.mubr.f32.mxu0 0.0
    %2116 = vmatmul.mubr.f32.gmra.mxu0 %v2049
    %v2117 = vpop.f32.mrf.mxu0
    %v2118 = vadd.f32 0.0, %v2117
    %v2119 = vpop.f32.mrf.mxu0
    %v2120 = vadd.f32 0.0, %v2119
    %2121 = vdwg.mxu0
    %v2122 = vadd.f32 %v2036, %v2118
    %v2123 = vadd.f32 %v2037, %v2120
    %s2124 = scalar_lea.vmem %s7, 8
    %v2125 = vld [vmem:[%s2124] sm:$0x3]
    %v2127 = vsel %vm1032, %v2125, 0
    %2129 = vmatprep.subr.mxu0 0.0
    %2130 = vmatpush1.msra.mxu0 0.0
    %2131 = vmatprep.subr.mxu0 0.0
    %2132 = vmatpush1.msra.mxu0 0.0
    %2133 = vmatprep.subr.mxu0 0.0
    %2134 = vmatpush1.msra.mxu0 0.0
    %2135 = vmatprep.subr.mxu0 0.0
    %2136 = vmatpush1.msra.mxu0 0.0
    %2137 = vmatprep.subr.mxu0 0.0
    %2138 = vmatpush1.msra.mxu0 0.0
    %2139 = vmatprep.subr.mxu0 0.0
    %2140 = vmatpush1.msra.mxu0 0.0
    %2141 = vmatprep.subr.mxu0 0.0
    %2142 = vmatpush1.msra.mxu0 0.0
    %2143 = vmatprep.subr.mxu0 0.0
    %2144 = vmatpush1.msra.mxu0 0.0
    %2145 = vmatprep.subr.mxu0 0.0
    %2146 = vmatpush1.msra.mxu0 0.0
    %2147 = vmatprep.subr.mxu0 0.0
    %2148 = vmatpush1.msra.mxu0 0.0
    %2149 = vmatprep.subr.mxu0 0.0
    %2150 = vmatpush1.msra.mxu0 0.0
    %2151 = vmatprep.subr.mxu0 0.0
    %2152 = vmatpush1.msra.mxu0 0.0
    %2153 = vmatprep.subr.mxu0 0.0
    %2154 = vmatpush1.msra.mxu0 0.0
    %2155 = vmatprep.subr.mxu0 0.0
    %2156 = vmatpush1.msra.mxu0 0.0
    %2157 = vmatprep.subr.mxu0 0.0
    %2158 = vmatpush1.msra.mxu0 0.0
    %2159 = vmatprep.subr.mxu0 %v1784
    %2160 = vmatpush1.msra.mxu0 %v1783
    %2161 = vmatprep.subr.mxu0 0.0
    %2162 = vmatpush2.msra.mxu0 0.0
    %2163 = vmatprep.subr.mxu0 0.0
    %2164 = vmatpush2.msra.mxu0 0.0
    %2165 = vmatprep.subr.mxu0 0.0
    %2166 = vmatpush2.msra.mxu0 0.0
    %2167 = vmatprep.subr.mxu0 0.0
    %2168 = vmatpush2.msra.mxu0 0.0
    %2169 = vmatprep.subr.mxu0 0.0
    %2170 = vmatpush2.msra.mxu0 0.0
    %2171 = vmatprep.subr.mxu0 0.0
    %2172 = vmatpush2.msra.mxu0 0.0
    %2173 = vmatprep.subr.mxu0 0.0
    %2174 = vmatpush2.msra.mxu0 0.0
    %2175 = vmatprep.subr.mxu0 0.0
    %2176 = vmatpush2.msra.mxu0 0.0
    %2177 = vmatprep.subr.mxu0 0.0
    %2178 = vmatpush2.msra.mxu0 0.0
    %2179 = vmatprep.subr.mxu0 0.0
    %2180 = vmatpush2.msra.mxu0 0.0
    %2181 = vmatprep.subr.mxu0 0.0
    %2182 = vmatpush2.msra.mxu0 0.0
    %2183 = vmatprep.subr.mxu0 0.0
    %2184 = vmatpush2.msra.mxu0 0.0
    %2185 = vmatprep.subr.mxu0 0.0
    %2186 = vmatpush2.msra.mxu0 0.0
    %2187 = vmatprep.subr.mxu0 0.0
    %2188 = vmatpush2.msra.mxu0 0.0
    %2189 = vmatprep.subr.mxu0 0.0
    %2190 = vmatpush2.msra.mxu0 0.0
    %2191 = vmatprep.subr.mxu0 0.0
    %2192 = vmatpush2.msra.mxu0 0.0
    %2193 = vmatprep.mubr.f32.mxu0 0.0
    %2194 = vmatmul.mubr.f32.gmra.mxu0 %v2127
    %v2195 = vpop.f32.mrf.mxu0
    %v2196 = vadd.f32 0.0, %v2195
    %v2197 = vpop.f32.mrf.mxu0
    %v2198 = vadd.f32 0.0, %v2197
    %2199 = vdwg.mxu0
    %v2200 = vadd.f32 %v2122, %v2196
    %v2201 = vadd.f32 %v2123, %v2198
    %2202 = vrot.lane.b32.xlu0 %v1783, 127
    %v2203 = vpop.permute.xlu0 %2202
    %2204 = vrot.lane.b32.xlu0 %v1784, 127
    %v2205 = vpop.permute.xlu0 %2204
    %v2206 = vsel %vm583, %v2203, %v2205
    %v2207 = vsel %vm583, %v2205, %v2203
    %v2208 = vmul.f32 %v2206, %v592
    %v2209 = vmul.f32 %v2207, %v596
    %s2210 = scalar_lea.vmem %s7, 10
    %v2211 = vld [vmem:[%s2210] sm:$0x3]
    %v2213 = vsel %vm1032, %v2211, 0
    %2215 = vmatprep.subr.mxu0 0.0
    %2216 = vmatpush1.msra.mxu0 0.0
    %2217 = vmatprep.subr.mxu0 0.0
    %2218 = vmatpush1.msra.mxu0 0.0
    %2219 = vmatprep.subr.mxu0 0.0
    %2220 = vmatpush1.msra.mxu0 0.0
    %2221 = vmatprep.subr.mxu0 0.0
    %2222 = vmatpush1.msra.mxu0 0.0
    %2223 = vmatprep.subr.mxu0 0.0
    %2224 = vmatpush1.msra.mxu0 0.0
    %2225 = vmatprep.subr.mxu0 0.0
    %2226 = vmatpush1.msra.mxu0 0.0
    %2227 = vmatprep.subr.mxu0 0.0
    %2228 = vmatpush1.msra.mxu0 0.0
    %2229 = vmatprep.subr.mxu0 0.0
    %2230 = vmatpush1.msra.mxu0 0.0
    %2231 = vmatprep.subr.mxu0 0.0
    %2232 = vmatpush1.msra.mxu0 0.0
    %2233 = vmatprep.subr.mxu0 0.0
    %2234 = vmatpush1.msra.mxu0 0.0
    %2235 = vmatprep.subr.mxu0 0.0
    %2236 = vmatpush1.msra.mxu0 0.0
    %2237 = vmatprep.subr.mxu0 0.0
    %2238 = vmatpush1.msra.mxu0 0.0
    %2239 = vmatprep.subr.mxu0 0.0
    %2240 = vmatpush1.msra.mxu0 0.0
    %2241 = vmatprep.subr.mxu0 0.0
    %2242 = vmatpush1.msra.mxu0 0.0
    %2243 = vmatprep.subr.mxu0 0.0
    %2244 = vmatpush1.msra.mxu0 0.0
    %2245 = vmatprep.subr.mxu0 %v2209
    %2246 = vmatpush1.msra.mxu0 %v2208
    %2247 = vmatprep.subr.mxu0 0.0
    %2248 = vmatpush2.msra.mxu0 0.0
    %2249 = vmatprep.subr.mxu0 0.0
    %2250 = vmatpush2.msra.mxu0 0.0
    %2251 = vmatprep.subr.mxu0 0.0
    %2252 = vmatpush2.msra.mxu0 0.0
    %2253 = vmatprep.subr.mxu0 0.0
    %2254 = vmatpush2.msra.mxu0 0.0
    %2255 = vmatprep.subr.mxu0 0.0
    %2256 = vmatpush2.msra.mxu0 0.0
    %2257 = vmatprep.subr.mxu0 0.0
    %2258 = vmatpush2.msra.mxu0 0.0
    %2259 = vmatprep.subr.mxu0 0.0
    %2260 = vmatpush2.msra.mxu0 0.0
    %2261 = vmatprep.subr.mxu0 0.0
    %2262 = vmatpush2.msra.mxu0 0.0
    %2263 = vmatprep.subr.mxu0 0.0
    %2264 = vmatpush2.msra.mxu0 0.0
    %2265 = vmatprep.subr.mxu0 0.0
    %2266 = vmatpush2.msra.mxu0 0.0
    %2267 = vmatprep.subr.mxu0 0.0
    %2268 = vmatpush2.msra.mxu0 0.0
    %2269 = vmatprep.subr.mxu0 0.0
    %2270 = vmatpush2.msra.mxu0 0.0
    %2271 = vmatprep.subr.mxu0 0.0
    %2272 = vmatpush2.msra.mxu0 0.0
    %2273 = vmatprep.subr.mxu0 0.0
    %2274 = vmatpush2.msra.mxu0 0.0
    %2275 = vmatprep.subr.mxu0 0.0
    %2276 = vmatpush2.msra.mxu0 0.0
    %2277 = vmatprep.subr.mxu0 0.0
    %2278 = vmatpush2.msra.mxu0 0.0
    %2279 = vmatprep.mubr.f32.mxu0 0.0
    %2280 = vmatmul.mubr.f32.gmra.mxu0 %v2213
    %v2281 = vpop.f32.mrf.mxu0
    %v2282 = vadd.f32 0.0, %v2281
    %v2283 = vpop.f32.mrf.mxu0
    %v2284 = vadd.f32 0.0, %v2283
    %2285 = vdwg.mxu0
    %v2286 = vadd.f32 %v2200, %v2282
    %v2287 = vadd.f32 %v2201, %v2284
    %2288 = vrot.lane.b32.xlu0 %v1783, 113
    %v2289 = vpop.permute.xlu0 %2288
    %2290 = vrot.lane.b32.xlu0 %v1784, 113
    %v2291 = vpop.permute.xlu0 %2290
    %v2292 = vsel %vm689, %v2289, %v2291
    %v2293 = vsel %vm689, %v2291, %v2289
    %v2294 = vmul.f32 %v2292, %v698
    %v2295 = vmul.f32 %v2293, %v702
    %s2296 = scalar_lea.vmem %s7, 12
    %v2297 = vld [vmem:[%s2296] sm:$0x3]
    %v2299 = vsel %vm1032, %v2297, 0
    %2301 = vmatprep.subr.mxu0 0.0
    %2302 = vmatpush1.msra.mxu0 0.0
    %2303 = vmatprep.subr.mxu0 0.0
    %2304 = vmatpush1.msra.mxu0 0.0
    %2305 = vmatprep.subr.mxu0 0.0
    %2306 = vmatpush1.msra.mxu0 0.0
    %2307 = vmatprep.subr.mxu0 0.0
    %2308 = vmatpush1.msra.mxu0 0.0
    %2309 = vmatprep.subr.mxu0 0.0
    %2310 = vmatpush1.msra.mxu0 0.0
    %2311 = vmatprep.subr.mxu0 0.0
    %2312 = vmatpush1.msra.mxu0 0.0
    %2313 = vmatprep.subr.mxu0 0.0
    %2314 = vmatpush1.msra.mxu0 0.0
    %2315 = vmatprep.subr.mxu0 0.0
    %2316 = vmatpush1.msra.mxu0 0.0
    %2317 = vmatprep.subr.mxu0 0.0
    %2318 = vmatpush1.msra.mxu0 0.0
    %2319 = vmatprep.subr.mxu0 0.0
    %2320 = vmatpush1.msra.mxu0 0.0
    %2321 = vmatprep.subr.mxu0 0.0
    %2322 = vmatpush1.msra.mxu0 0.0
    %2323 = vmatprep.subr.mxu0 0.0
    %2324 = vmatpush1.msra.mxu0 0.0
    %2325 = vmatprep.subr.mxu0 0.0
    %2326 = vmatpush1.msra.mxu0 0.0
    %2327 = vmatprep.subr.mxu0 0.0
    %2328 = vmatpush1.msra.mxu0 0.0
    %2329 = vmatprep.subr.mxu0 0.0
    %2330 = vmatpush1.msra.mxu0 0.0
    %2331 = vmatprep.subr.mxu0 %v2295
    %2332 = vmatpush1.msra.mxu0 %v2294
    %2333 = vmatprep.subr.mxu0 0.0
    %2334 = vmatpush2.msra.mxu0 0.0
    %2335 = vmatprep.subr.mxu0 0.0
    %2336 = vmatpush2.msra.mxu0 0.0
    %2337 = vmatprep.subr.mxu0 0.0
    %2338 = vmatpush2.msra.mxu0 0.0
    %2339 = vmatprep.subr.mxu0 0.0
    %2340 = vmatpush2.msra.mxu0 0.0
    %2341 = vmatprep.subr.mxu0 0.0
    %2342 = vmatpush2.msra.mxu0 0.0
    %2343 = vmatprep.subr.mxu0 0.0
    %2344 = vmatpush2.msra.mxu0 0.0
    %2345 = vmatprep.subr.mxu0 0.0
    %2346 = vmatpush2.msra.mxu0 0.0
    %2347 = vmatprep.subr.mxu0 0.0
    %2348 = vmatpush2.msra.mxu0 0.0
    %2349 = vmatprep.subr.mxu0 0.0
    %2350 = vmatpush2.msra.mxu0 0.0
    %2351 = vmatprep.subr.mxu0 0.0
    %2352 = vmatpush2.msra.mxu0 0.0
    %2353 = vmatprep.subr.mxu0 0.0
    %2354 = vmatpush2.msra.mxu0 0.0
    %2355 = vmatprep.subr.mxu0 0.0
    %2356 = vmatpush2.msra.mxu0 0.0
    %2357 = vmatprep.subr.mxu0 0.0
    %2358 = vmatpush2.msra.mxu0 0.0
    %2359 = vmatprep.subr.mxu0 0.0
    %2360 = vmatpush2.msra.mxu0 0.0
    %2361 = vmatprep.subr.mxu0 0.0
    %2362 = vmatpush2.msra.mxu0 0.0
    %2363 = vmatprep.subr.mxu0 0.0
    %2364 = vmatpush2.msra.mxu0 0.0
    %2365 = vmatprep.mubr.f32.mxu0 0.0
    %2366 = vmatmul.mubr.f32.gmra.mxu0 %v2299
    %v2367 = vpop.f32.mrf.mxu0
    %v2368 = vadd.f32 0.0, %v2367
    %v2369 = vpop.f32.mrf.mxu0
    %v2370 = vadd.f32 0.0, %v2369
    %2371 = vdwg.mxu0
    %v2372 = vadd.f32 %v2286, %v2368
    %v2373 = vadd.f32 %v2287, %v2370
    %2374 = vrot.lane.b32.xlu0 %v1783, 112
    %v2375 = vpop.permute.xlu0 %2374
    %2376 = vrot.lane.b32.xlu0 %v1784, 112
    %v2377 = vpop.permute.xlu0 %2376
    %v2378 = vsel %vm795, %v2375, %v2377
    %v2379 = vsel %vm795, %v2377, %v2375
    %v2380 = vmul.f32 %v2378, %v804
    %v2381 = vmul.f32 %v2379, %v808
    %s2382 = scalar_lea.vmem %s7, 14
    %v2383 = vld [vmem:[%s2382] sm:$0x3]
    %v2385 = vsel %vm1032, %v2383, 0
    %2387 = vmatprep.subr.mxu0 0.0
    %2388 = vmatpush1.msra.mxu0 0.0
    %2389 = vmatprep.subr.mxu0 0.0
    %2390 = vmatpush1.msra.mxu0 0.0
    %2391 = vmatprep.subr.mxu0 0.0
    %2392 = vmatpush1.msra.mxu0 0.0
    %2393 = vmatprep.subr.mxu0 0.0
    %2394 = vmatpush1.msra.mxu0 0.0
    %2395 = vmatprep.subr.mxu0 0.0
    %2396 = vmatpush1.msra.mxu0 0.0
    %2397 = vmatprep.subr.mxu0 0.0
    %2398 = vmatpush1.msra.mxu0 0.0
    %2399 = vmatprep.subr.mxu0 0.0
    %2400 = vmatpush1.msra.mxu0 0.0
    %2401 = vmatprep.subr.mxu0 0.0
    %2402 = vmatpush1.msra.mxu0 0.0
    %2403 = vmatprep.subr.mxu0 0.0
    %2404 = vmatpush1.msra.mxu0 0.0
    %2405 = vmatprep.subr.mxu0 0.0
    %2406 = vmatpush1.msra.mxu0 0.0
    %2407 = vmatprep.subr.mxu0 0.0
    %2408 = vmatpush1.msra.mxu0 0.0
    %2409 = vmatprep.subr.mxu0 0.0
    %2410 = vmatpush1.msra.mxu0 0.0
    %2411 = vmatprep.subr.mxu0 0.0
    %2412 = vmatpush1.msra.mxu0 0.0
    %2413 = vmatprep.subr.mxu0 0.0
    %2414 = vmatpush1.msra.mxu0 0.0
    %2415 = vmatprep.subr.mxu0 0.0
    %2416 = vmatpush1.msra.mxu0 0.0
    %2417 = vmatprep.subr.mxu0 %v2381
    %2418 = vmatpush1.msra.mxu0 %v2380
    %2419 = vmatprep.subr.mxu0 0.0
    %2420 = vmatpush2.msra.mxu0 0.0
    %2421 = vmatprep.subr.mxu0 0.0
    %2422 = vmatpush2.msra.mxu0 0.0
    %2423 = vmatprep.subr.mxu0 0.0
    %2424 = vmatpush2.msra.mxu0 0.0
    %2425 = vmatprep.subr.mxu0 0.0
    %2426 = vmatpush2.msra.mxu0 0.0
    %2427 = vmatprep.subr.mxu0 0.0
    %2428 = vmatpush2.msra.mxu0 0.0
    %2429 = vmatprep.subr.mxu0 0.0
    %2430 = vmatpush2.msra.mxu0 0.0
    %2431 = vmatprep.subr.mxu0 0.0
    %2432 = vmatpush2.msra.mxu0 0.0
    %2433 = vmatprep.subr.mxu0 0.0
    %2434 = vmatpush2.msra.mxu0 0.0
    %2435 = vmatprep.subr.mxu0 0.0
    %2436 = vmatpush2.msra.mxu0 0.0
    %2437 = vmatprep.subr.mxu0 0.0
    %2438 = vmatpush2.msra.mxu0 0.0
    %2439 = vmatprep.subr.mxu0 0.0
    %2440 = vmatpush2.msra.mxu0 0.0
    %2441 = vmatprep.subr.mxu0 0.0
    %2442 = vmatpush2.msra.mxu0 0.0
    %2443 = vmatprep.subr.mxu0 0.0
    %2444 = vmatpush2.msra.mxu0 0.0
    %2445 = vmatprep.subr.mxu0 0.0
    %2446 = vmatpush2.msra.mxu0 0.0
    %2447 = vmatprep.subr.mxu0 0.0
    %2448 = vmatpush2.msra.mxu0 0.0
    %2449 = vmatprep.subr.mxu0 0.0
    %2450 = vmatpush2.msra.mxu0 0.0
    %2451 = vmatprep.mubr.f32.mxu0 0.0
    %2452 = vmatmul.mubr.f32.gmra.mxu0 %v2385
    %v2453 = vpop.f32.mrf.mxu0
    %v2454 = vadd.f32 0.0, %v2453
    %v2455 = vpop.f32.mrf.mxu0
    %v2456 = vadd.f32 0.0, %v2455
    %2457 = vdwg.mxu0
    %v2458 = vadd.f32 %v2372, %v2454
    %v2459 = vadd.f32 %v2373, %v2456
    %2460 = vrot.lane.b32.xlu0 %v1783, 111
    %v2461 = vpop.permute.xlu0 %2460
    %2462 = vrot.lane.b32.xlu0 %v1784, 111
    %v2463 = vpop.permute.xlu0 %2462
    %v2464 = vsel %vm901, %v2461, %v2463
    %v2465 = vsel %vm901, %v2463, %v2461
    %v2466 = vmul.f32 %v2464, %v910
    %v2467 = vmul.f32 %v2465, %v914
    %s2468 = scalar_lea.vmem %s7, 16
    %v2469 = vld [vmem:[%s2468] sm:$0x3]
    %v2471 = vsel %vm1032, %v2469, 0
    %2473 = vmatprep.subr.mxu0 0.0
    %2474 = vmatpush1.msra.mxu0 0.0
    %2475 = vmatprep.subr.mxu0 0.0
    %2476 = vmatpush1.msra.mxu0 0.0
    %2477 = vmatprep.subr.mxu0 0.0
    %2478 = vmatpush1.msra.mxu0 0.0
    %2479 = vmatprep.subr.mxu0 0.0
    %2480 = vmatpush1.msra.mxu0 0.0
    %2481 = vmatprep.subr.mxu0 0.0
    %2482 = vmatpush1.msra.mxu0 0.0
    %2483 = vmatprep.subr.mxu0 0.0
    %2484 = vmatpush1.msra.mxu0 0.0
    %2485 = vmatprep.subr.mxu0 0.0
    %2486 = vmatpush1.msra.mxu0 0.0
    %2487 = vmatprep.subr.mxu0 0.0
    %2488 = vmatpush1.msra.mxu0 0.0
    %2489 = vmatprep.subr.mxu0 0.0
    %2490 = vmatpush1.msra.mxu0 0.0
    %2491 = vmatprep.subr.mxu0 0.0
    %2492 = vmatpush1.msra.mxu0 0.0
    %2493 = vmatprep.subr.mxu0 0.0
    %2494 = vmatpush1.msra.mxu0 0.0
    %2495 = vmatprep.subr.mxu0 0.0
    %2496 = vmatpush1.msra.mxu0 0.0
    %2497 = vmatprep.subr.mxu0 0.0
    %2498 = vmatpush1.msra.mxu0 0.0
    %2499 = vmatprep.subr.mxu0 0.0
    %2500 = vmatpush1.msra.mxu0 0.0
    %2501 = vmatprep.subr.mxu0 0.0
    %2502 = vmatpush1.msra.mxu0 0.0
    %2503 = vmatprep.subr.mxu0 %v2467
    %2504 = vmatpush1.msra.mxu0 %v2466
    %2505 = vmatprep.subr.mxu0 0.0
    %2506 = vmatpush2.msra.mxu0 0.0
    %2507 = vmatprep.subr.mxu0 0.0
    %2508 = vmatpush2.msra.mxu0 0.0
    %2509 = vmatprep.subr.mxu0 0.0
    %2510 = vmatpush2.msra.mxu0 0.0
    %2511 = vmatprep.subr.mxu0 0.0
    %2512 = vmatpush2.msra.mxu0 0.0
    %2513 = vmatprep.subr.mxu0 0.0
    %2514 = vmatpush2.msra.mxu0 0.0
    %2515 = vmatprep.subr.mxu0 0.0
    %2516 = vmatpush2.msra.mxu0 0.0
    %2517 = vmatprep.subr.mxu0 0.0
    %2518 = vmatpush2.msra.mxu0 0.0
    %2519 = vmatprep.subr.mxu0 0.0
    %2520 = vmatpush2.msra.mxu0 0.0
    %2521 = vmatprep.subr.mxu0 0.0
    %2522 = vmatpush2.msra.mxu0 0.0
    %2523 = vmatprep.subr.mxu0 0.0
    %2524 = vmatpush2.msra.mxu0 0.0
    %2525 = vmatprep.subr.mxu0 0.0
    %2526 = vmatpush2.msra.mxu0 0.0
    %2527 = vmatprep.subr.mxu0 0.0
    %2528 = vmatpush2.msra.mxu0 0.0
    %2529 = vmatprep.subr.mxu0 0.0
    %2530 = vmatpush2.msra.mxu0 0.0
    %2531 = vmatprep.subr.mxu0 0.0
    %2532 = vmatpush2.msra.mxu0 0.0
    %2533 = vmatprep.subr.mxu0 0.0
    %2534 = vmatpush2.msra.mxu0 0.0
    %2535 = vmatprep.subr.mxu0 0.0
    %2536 = vmatpush2.msra.mxu0 0.0
    %2537 = vmatprep.mubr.f32.mxu0 0.0
    %2538 = vmatmul.mubr.f32.gmra.mxu0 %v2471
    %v2539 = vpop.f32.mrf.mxu0
    %v2540 = vadd.f32 0.0, %v2539
    %v2541 = vpop.f32.mrf.mxu0
    %v2542 = vadd.f32 0.0, %v2541
    %2543 = vdwg.mxu0
    %v2544 = vadd.f32 %v2458, %v2540
    %v2545 = vadd.f32 %v2459, %v2542
    %v2546 = vld [vmem:[%s8] sm:$0x3]
    %2548 = vset.pattern.permute.xlu0 0
    %2549 = vperm.xlu0 %2548, %v2546
    %v2550 = vpop.permute.xlu0 %2549
    %v2552 = vadd.f32 %v2544, %v2550
    %v2553 = vadd.f32 %v2545, %v2550
    %v2554 = vpack.c.bf16 %v2552, %v2552
    %v2555 = vpack.c.bf16 %v2553, %v2553
    %v2556 = vld [vmem:[%s9] sm:$0xff]
    %v2557 = vld [vmem:[%s9 + $0x8] sm:$0xff]
    %v2558 = vld [vmem:[%s9 + $0x10] sm:$0xff]
    %v2559 = vld [vmem:[%s9 + $0x18] sm:$0xff]
    %v2560 = vld [vmem:[%s9 + $0x20] sm:$0xff]
    %v2561 = vld [vmem:[%s9 + $0x28] sm:$0xff]
    %v2562 = vld [vmem:[%s9 + $0x30] sm:$0xff]
    %v2563 = vld [vmem:[%s9 + $0x38] sm:$0xff]
    %v2564 = vld [vmem:[%s9 + $0x40] sm:$0xff]
    %v2565 = vld [vmem:[%s9 + $0x48] sm:$0xff]
    %v2566 = vld [vmem:[%s9 + $0x50] sm:$0xff]
    %v2567 = vld [vmem:[%s9 + $0x58] sm:$0xff]
    %v2568 = vld [vmem:[%s9 + $0x60] sm:$0xff]
    %v2569 = vld [vmem:[%s9 + $0x68] sm:$0xff]
    %v2570 = vld [vmem:[%s9 + $0x70] sm:$0xff]
    %v2571 = vld [vmem:[%s9 + $0x78] sm:$0xff]
    %v2572 = vld [vmem:[%s9 + $0x80] sm:$0xff]
    %v2573 = vld [vmem:[%s9 + $0x88] sm:$0xff]
    %v2574 = vld [vmem:[%s9 + $0x90] sm:$0xff]
    %v2575 = vld [vmem:[%s9 + $0x98] sm:$0xff]
    %v2576 = vld [vmem:[%s9 + $0xa0] sm:$0xff]
    %v2577 = vld [vmem:[%s9 + $0xa8] sm:$0xff]
    %v2578 = vld [vmem:[%s9 + $0xb0] sm:$0xff]
    %v2579 = vld [vmem:[%s9 + $0xb8] sm:$0xff]
    %v2580 = vld [vmem:[%s9 + $0xc0] sm:$0xff]
    %v2581 = vld [vmem:[%s9 + $0xc8] sm:$0xff]
    %v2582 = vld [vmem:[%s9 + $0xd0] sm:$0xff]
    %v2583 = vld [vmem:[%s9 + $0xd8] sm:$0xff]
    %v2584 = vld [vmem:[%s9 + $0xe0] sm:$0xff]
    %v2585 = vld [vmem:[%s9 + $0xe8] sm:$0xff]
    %v2586 = vld [vmem:[%s9 + $0xf0] sm:$0xff]
    %v2587 = vld [vmem:[%s9 + $0xf8] sm:$0xff]
    %v2588 = vld [vmem:[%s1] sm:$0xf]
    %v2621 = vunpack.c.l.b16 %v2556
    %v2622 = vunpack.c.h.b16 %v2556
    %v2623 = vunpack.c.l.b16 %v2557
    %v2624 = vunpack.c.h.b16 %v2557
    %v2625 = vunpack.c.l.b16 %v2558
    %v2626 = vunpack.c.h.b16 %v2558
    %v2627 = vunpack.c.l.b16 %v2559
    %v2628 = vunpack.c.h.b16 %v2559
    %v2629 = vunpack.c.l.b16 %v2560
    %v2630 = vunpack.c.h.b16 %v2560
    %v2631 = vunpack.c.l.b16 %v2561
    %v2632 = vunpack.c.h.b16 %v2561
    %v2633 = vunpack.c.l.b16 %v2562
    %v2634 = vunpack.c.h.b16 %v2562
    %v2635 = vunpack.c.l.b16 %v2563
    %v2636 = vunpack.c.h.b16 %v2563
    %v2637 = vunpack.c.l.b16 %v2564
    %v2638 = vunpack.c.h.b16 %v2564
    %v2639 = vunpack.c.l.b16 %v2565
    %v2640 = vunpack.c.h.b16 %v2565
    %v2641 = vunpack.c.l.b16 %v2566
    %v2642 = vunpack.c.h.b16 %v2566
    %v2643 = vunpack.c.l.b16 %v2567
    %v2644 = vunpack.c.h.b16 %v2567
    %v2645 = vunpack.c.l.b16 %v2568
    %v2646 = vunpack.c.h.b16 %v2568
    %v2647 = vunpack.c.l.b16 %v2569
    %v2648 = vunpack.c.h.b16 %v2569
    %v2649 = vunpack.c.l.b16 %v2570
    %v2650 = vunpack.c.h.b16 %v2570
    %v2651 = vunpack.c.l.b16 %v2571
    %v2652 = vunpack.c.h.b16 %v2571
    %v2653 = vunpack.c.l.b16 %v2572
    %v2654 = vunpack.c.h.b16 %v2572
    %v2655 = vunpack.c.l.b16 %v2573
    %v2656 = vunpack.c.h.b16 %v2573
    %v2657 = vunpack.c.l.b16 %v2574
    %v2658 = vunpack.c.h.b16 %v2574
    %v2659 = vunpack.c.l.b16 %v2575
    %v2660 = vunpack.c.h.b16 %v2575
    %v2661 = vunpack.c.l.b16 %v2576
    %v2662 = vunpack.c.h.b16 %v2576
    %v2663 = vunpack.c.l.b16 %v2577
    %v2664 = vunpack.c.h.b16 %v2577
    %v2665 = vunpack.c.l.b16 %v2578
    %v2666 = vunpack.c.h.b16 %v2578
    %v2667 = vunpack.c.l.b16 %v2579
    %v2668 = vunpack.c.h.b16 %v2579
    %v2669 = vunpack.c.l.b16 %v2580
    %v2670 = vunpack.c.h.b16 %v2580
    %v2671 = vunpack.c.l.b16 %v2581
    %v2672 = vunpack.c.h.b16 %v2581
    %v2673 = vunpack.c.l.b16 %v2582
    %v2674 = vunpack.c.h.b16 %v2582
    %v2675 = vunpack.c.l.b16 %v2583
    %v2676 = vunpack.c.h.b16 %v2583
    %v2677 = vunpack.c.l.b16 %v2584
    %v2678 = vunpack.c.h.b16 %v2584
    %v2679 = vunpack.c.l.b16 %v2585
    %v2680 = vunpack.c.h.b16 %v2585
    %v2681 = vunpack.c.l.b16 %v2586
    %v2682 = vunpack.c.h.b16 %v2586
    %v2683 = vunpack.c.l.b16 %v2587
    %v2684 = vunpack.c.h.b16 %v2587
    %v2685 = vpack.c.b16 %v2623, %v2621
    %v2686 = vpack.c.b16 %v2624, %v2622
    %v2687 = vpack.c.b16 %v2627, %v2625
    %v2688 = vpack.c.b16 %v2628, %v2626
    %v2689 = vpack.c.b16 %v2631, %v2629
    %v2690 = vpack.c.b16 %v2632, %v2630
    %v2691 = vpack.c.b16 %v2635, %v2633
    %v2692 = vpack.c.b16 %v2636, %v2634
    %v2693 = vpack.c.b16 %v2639, %v2637
    %v2694 = vpack.c.b16 %v2640, %v2638
    %v2695 = vpack.c.b16 %v2643, %v2641
    %v2696 = vpack.c.b16 %v2644, %v2642
    %v2697 = vpack.c.b16 %v2647, %v2645
    %v2698 = vpack.c.b16 %v2648, %v2646
    %v2699 = vpack.c.b16 %v2651, %v2649
    %v2700 = vpack.c.b16 %v2652, %v2650
    %v2701 = vpack.c.b16 %v2655, %v2653
    %v2702 = vpack.c.b16 %v2656, %v2654
    %v2703 = vpack.c.b16 %v2659, %v2657
    %v2704 = vpack.c.b16 %v2660, %v2658
    %v2705 = vpack.c.b16 %v2663, %v2661
    %v2706 = vpack.c.b16 %v2664, %v2662
    %v2707 = vpack.c.b16 %v2667, %v2665
    %v2708 = vpack.c.b16 %v2668, %v2666
    %v2709 = vpack.c.b16 %v2671, %v2669
    %v2710 = vpack.c.b16 %v2672, %v2670
    %v2711 = vpack.c.b16 %v2675, %v2673
    %v2712 = vpack.c.b16 %v2676, %v2674
    %v2713 = vpack.c.b16 %v2679, %v2677
    %v2714 = vpack.c.b16 %v2680, %v2678
    %v2715 = vpack.c.b16 %v2683, %v2681
    %v2716 = vpack.c.b16 %v2684, %v2682
    %v2751 = vunpack.c.l.s4 1983009808
    %v2752 = vunpack.c.0.s8 %v2751
    %v2753 = vlaneseq
    %v2754 = vshrl.u32 %v2753, 7
    %v2755 = vsub.s32 %v2752, %v2754
    %v2756 = vrot.slane %v2588, %v2755
    %v2757 = vcombine.high %v2756, %v2756
    %2760 = vmatprep.subr.bf16.mxu0 %v2700
    %2761 = vmatpush1.bf16.msra.mxu0 %v2699
    %2762 = vmatprep.subr.bf16.mxu0 %v2698
    %2763 = vmatpush1.bf16.msra.mxu0 %v2697
    %2764 = vmatprep.subr.bf16.mxu0 %v2696
    %2765 = vmatpush1.bf16.msra.mxu0 %v2695
    %2766 = vmatprep.subr.bf16.mxu0 %v2694
    %2767 = vmatpush1.bf16.msra.mxu0 %v2693
    %2768 = vmatprep.subr.bf16.mxu0 %v2692
    %2769 = vmatpush1.bf16.msra.mxu0 %v2691
    %2770 = vmatprep.subr.bf16.mxu0 %v2690
    %2771 = vmatpush1.bf16.msra.mxu0 %v2689
    %2772 = vmatprep.subr.bf16.mxu0 %v2688
    %2773 = vmatpush1.bf16.msra.mxu0 %v2687
    %2774 = vmatprep.subr.bf16.mxu0 %v2686
    %2775 = vmatpush1.bf16.msra.mxu0 %v2685
    %2776 = vmatprep.subr.bf16.mxu0 %v2716
    %2777 = vmatpush2.bf16.msra.mxu0 %v2715
    %2778 = vmatprep.subr.bf16.mxu0 %v2714
    %2779 = vmatpush2.bf16.msra.mxu0 %v2713
    %2780 = vmatprep.subr.bf16.mxu0 %v2712
    %2781 = vmatpush2.bf16.msra.mxu0 %v2711
    %2782 = vmatprep.subr.bf16.mxu0 %v2710
    %2783 = vmatpush2.bf16.msra.mxu0 %v2709
    %2784 = vmatprep.subr.bf16.mxu0 %v2708
    %2785 = vmatpush2.bf16.msra.mxu0 %v2707
    %2786 = vmatprep.subr.bf16.mxu0 %v2706
    %2787 = vmatpush2.bf16.msra.mxu0 %v2705
    %2788 = vmatprep.subr.bf16.mxu0 %v2704
    %2789 = vmatpush2.bf16.msra.mxu0 %v2703
    %2790 = vmatprep.subr.bf16.mxu0 %v2702
    %2791 = vmatpush2.bf16.msra.mxu0 %v2701
    %2792 = vmatprep.mubr.bf16.mxu0 %v2555
    %2793 = vmatmul.mubr.bf16.gmra.mxu0 %v2554
    %v2794 = vpop.f32.mrf.mxu0
    %v2795 = vadd.f32 %v2756, %v2794
    %v2796 = vpop.f32.mrf.mxu0
    %v2797 = vadd.f32 %v2757, %v2796
    %v2798 = vpop.f32.mrf.mxu0
    %v2799 = vpop.f32.mrf.mxu0
    %2800 = vdwg.mxu0
    %v2803 = vcombine.low %v2795, %v2797
    %v2805 = vunpack.c.l.s4 1983009808
    %v2806 = vunpack.c.0.s8 %v2805
    %v2807 = vlaneseq
    %v2808 = vshrl.u32 %v2807, 7
    %v2809 = vsub.s32 %v2806, %v2808
    %v2810 = vrot.slane %v2803, %v2809
    %2812 = vst [vmem:[%s10] sm:$0xf] %v2810
    // Predicated region
    $region50: #{forward.5} parent=1 // pred_check
      _
    $region51: #{forward.5} parent=1 // pred_check_branch
      %2814 = sbr.rel (0) target = $region53
    $region52: #{forward.5} parent=1 // pred_region
      _
    $region53: #{forward.5} parent=1 // pred_fallthru
      _
    // Predicated region
    $region54: #{forward.5} parent=1 // pred_check
      _
    $region55: #{forward.5} parent=1 // pred_check_branch
      %2816 = sbr.rel (0) target = $region57
    $region56: #{forward.5} parent=1 // pred_region
      _
    $region57: #{forward.5} parent=1 // pred_fallthru
      _
    %2817 = vsyncpa [#allocation3], 1
    %2818 = vsyncpa [#allocation5], 1

// kernel: forward.7
$region0: #{forward.7}
  #allocation0 [shape = 'u32[]', space=smem, size = 0x4, offset = 0x4, fixed_abs, tag = 'smem constant byte address 0x4 - core index']
  #allocation1 [shape = 'u32[144,128]{1,0:T(1,128)}', space=vmem, size = 0x12000, scoped, tag = 'internal scratch']
  %s0 = inlined_call_operand.vmem [shape: f32[2,256], index: 0, kind: input, shape index: {}]
  %s1 = inlined_call_operand.vmem [shape: f32[9,1,256], index: 1, kind: input, shape index: {}]
  %s2 = inlined_call_operand.vmem [shape: f32[9,8,2], index: 2, kind: input, shape index: {}]
  %s3 = inlined_call_operand.vmem [shape: f32[8,1], index: 3, kind: input, shape index: {}, may-alias: {3,5}]
  %s4 = inlined_call_operand.vmem [shape: f32[9,8,8], index: 4, kind: input, shape index: {}]
  %s5 = inlined_call_operand.vmem [shape: f32[8,1], index: 5, kind: input, shape index: {}, may-alias: {3,5}]
  %s6 = inlined_call_operand.vmem [shape: f32[9,2,8], index: 6, kind: input, shape index: {}]
  %s7 = inlined_call_operand.vmem [shape: f32[2,1], index: 7, kind: input, shape index: {}]
  %s8 = inlined_call_operand.vmem [shape: f32[2,256], index: 8, kind: output, shape index: {}]
  %s9 = sld [smem:[#allocation0]]
  $region42: #{forward.7} parent=0
    _
  %s11 = ssub.s32 1, %s9
  %s12 = scalar_select 0, %s11, %s9
  // Predicated region
  $region2: #{forward.7} parent=0 // pred_check
    _
  $region3: #{forward.7} parent=0 // pred_check_branch
    %14 = sbr.rel (0) target = $region5
  $region4: #{forward.7} parent=0 // pred_region
    _
  $region5: #{forward.7} parent=0 // pred_fallthru
    _
  // Predicated region
  $region6: #{forward.7} parent=0 // pred_check
    _
  $region7: #{forward.7} parent=0 // pred_check_branch
    %16 = sbr.rel (0) target = $region9
  $region8: #{forward.7} parent=0 // pred_region
    _
  $region9: #{forward.7} parent=0 // pred_fallthru
    _
  // Predicated region
  $region10: #{forward.7} parent=0 // pred_check
    _
  $region11: #{forward.7} parent=0 // pred_check_branch
    %18 = sbr.rel (0) target = $region13
  $region12: #{forward.7} parent=0 // pred_region
    _
  $region13: #{forward.7} parent=0 // pred_fallthru
    _
  // Predicated region
  $region14: #{forward.7} parent=0 // pred_check
    _
  $region15: #{forward.7} parent=0 // pred_check_branch
    %20 = sbr.rel (0) target = $region17
  $region16: #{forward.7} parent=0 // pred_region
    _
  $region17: #{forward.7} parent=0 // pred_fallthru
    _
  // Predicated region
  $region18: #{forward.7} parent=0 // pred_check
    _
  $region19: #{forward.7} parent=0 // pred_check_branch
    %22 = sbr.rel (0) target = $region21
  $region20: #{forward.7} parent=0 // pred_region
    _
  $region21: #{forward.7} parent=0 // pred_fallthru
    _
  // Predicated region
  $region22: #{forward.7} parent=0 // pred_check
    _
  $region23: #{forward.7} parent=0 // pred_check_branch
    %24 = sbr.rel (0) target = $region25
  $region24: #{forward.7} parent=0 // pred_region
    _
  $region25: #{forward.7} parent=0 // pred_fallthru
    _
  // Predicated region
  $region26: #{forward.7} parent=0 // pred_check
    _
  $region27: #{forward.7} parent=0 // pred_check_branch
    %26 = sbr.rel (0) target = $region29
  $region28: #{forward.7} parent=0 // pred_region
    _
  $region29: #{forward.7} parent=0 // pred_fallthru
    _
  // Predicated region
  $region30: #{forward.7} parent=0 // pred_check
    _
  $region31: #{forward.7} parent=0 // pred_check_branch
    %28 = sbr.rel (0) target = $region33
  $region32: #{forward.7} parent=0 // pred_region
    _
  $region33: #{forward.7} parent=0 // pred_fallthru
    _
  %v29 = vld [vmem:[%s0] sm:$0xf]
  %v32 = vunpack.c.l.s4 1983009808
  %v33 = vunpack.c.0.s8 %v32
  %v34 = vlaneseq
  %v35 = vshrl.u32 %v34, 7
  %v36 = vsub.s32 %v33, %v35
  %v37 = vrot.slane %v29, %v36
  %v38 = vcombine.high %v37, %v37
  %41 = vrot.lane.b32.xlu0 %v37, 17
  %v42 = vpop.permute.xlu0 %41
  %43 = vrot.lane.b32.xlu0 %v38, 17
  %v44 = vpop.permute.xlu0 %43
  %v45 = vlaneseq
  %v46 = vand.u32 %v45, 127
  %vm47 = vcmp.lt.s32.totalorder %v46, 17
  %v48 = vsel %vm47, %v42, %v44
  %v49 = vsel %vm47, %v44, %v42
  %v50 = vld [vmem:[%s1] sm:$0x3]
  %v52 = vlaneseq
  %v53 = vshrl.u32 %v52, 7
  %v54 = vsub.s32 0, %v53
  %v55 = vrot.slane %v50, %v54
  %v56 = vlaneseq
  %v57 = vshrl.u32 %v56, 7
  %v58 = vsub.s32 1, %v57
  %v59 = vrot.slane %v50, %v58
  %v62 = vmul.f32 %v49, %v55
  %v63 = vmul.f32 %v48, %v59
  %v64 = vld [vmem:[%s2] sm:$0xff]
  %65 = vrot.lane.b32.xlu0 %v37, 16
  %v66 = vpop.permute.xlu0 %65
  %67 = vrot.lane.b32.xlu0 %v38, 16
  %v68 = vpop.permute.xlu0 %67
  %vm69 = vcmp.lt.s32.totalorder %v46, 16
  %v70 = vsel %vm69, %v66, %v68
  %v71 = vsel %vm69, %v68, %v66
  %s72 = scalar_lea.vmem %s1, 2
  %v73 = vld [vmem:[%s72] sm:$0x3]
  %v75 = vlaneseq
  %v76 = vshrl.u32 %v75, 7
  %v77 = vsub.s32 0, %v76
  %v78 = vrot.slane %v73, %v77
  %v79 = vlaneseq
  %v80 = vshrl.u32 %v79, 7
  %v81 = vsub.s32 1, %v80
  %v82 = vrot.slane %v73, %v81
  %v85 = vmul.f32 %v71, %v78
  %v86 = vmul.f32 %v70, %v82
  %s87 = scalar_lea.vmem %s2, 8
  %v88 = vld [vmem:[%s87] sm:$0xff]
  %vm89 = vcmask 15360
  %v91 = vsel %vm89, %v88, 0
  %vm93 = vcmask 1041408
  %v95 = vsel %vm93, %v85, 0
  %v98 = vsel %vm93, %v86, 0
  %100 = vmatprep.subr.mxu0 0.0
  %101 = vmatpush1.msra.mxu0 0.0
  %102 = vmatprep.subr.mxu0 0.0
  %103 = vmatpush1.msra.mxu0 0.0
  %104 = vmatprep.subr.mxu0 0.0
  %105 = vmatpush1.msra.mxu0 0.0
  %106 = vmatprep.subr.mxu0 0.0
  %107 = vmatpush1.msra.mxu0 0.0
  %108 = vmatprep.subr.mxu0 0.0
  %109 = vmatpush1.msra.mxu0 0.0
  %110 = vmatprep.subr.mxu0 0.0
  %111 = vmatpush1.msra.mxu0 0.0
  %112 = vmatprep.subr.mxu0 0.0
  %113 = vmatpush1.msra.mxu0 0.0
  %114 = vmatprep.subr.mxu0 0.0
  %115 = vmatpush1.msra.mxu0 0.0
  %116 = vmatprep.subr.mxu0 0.0
  %117 = vmatpush1.msra.mxu0 0.0
  %118 = vmatprep.subr.mxu0 0.0
  %119 = vmatpush1.msra.mxu0 0.0
  %120 = vmatprep.subr.mxu0 0.0
  %121 = vmatpush1.msra.mxu0 0.0
  %122 = vmatprep.subr.mxu0 0.0
  %123 = vmatpush1.msra.mxu0 0.0
  %124 = vmatprep.subr.mxu0 0.0
  %125 = vmatpush1.msra.mxu0 0.0
  %126 = vmatprep.subr.mxu0 0.0
  %127 = vmatpush1.msra.mxu0 0.0
  %128 = vmatprep.subr.mxu0 0.0
  %129 = vmatpush1.msra.mxu0 0.0
  %130 = vmatprep.subr.mxu0 %v98
  %131 = vmatpush1.msra.mxu0 %v95
  %132 = vmatprep.subr.mxu0 0.0
  %133 = vmatpush2.msra.mxu0 0.0
  %134 = vmatprep.subr.mxu0 0.0
  %135 = vmatpush2.msra.mxu0 0.0
  %136 = vmatprep.subr.mxu0 0.0
  %137 = vmatpush2.msra.mxu0 0.0
  %138 = vmatprep.subr.mxu0 0.0
  %139 = vmatpush2.msra.mxu0 0.0
  %140 = vmatprep.subr.mxu0 0.0
  %141 = vmatpush2.msra.mxu0 0.0
  %142 = vmatprep.subr.mxu0 0.0
  %143 = vmatpush2.msra.mxu0 0.0
  %144 = vmatprep.subr.mxu0 0.0
  %145 = vmatpush2.msra.mxu0 0.0
  %146 = vmatprep.subr.mxu0 0.0
  %147 = vmatpush2.msra.mxu0 0.0
  %148 = vmatprep.subr.mxu0 0.0
  %149 = vmatpush2.msra.mxu0 0.0
  %150 = vmatprep.subr.mxu0 0.0
  %151 = vmatpush2.msra.mxu0 0.0
  %152 = vmatprep.subr.mxu0 0.0
  %153 = vmatpush2.msra.mxu0 0.0
  %154 = vmatprep.subr.mxu0 0.0
  %155 = vmatpush2.msra.mxu0 0.0
  %156 = vmatprep.subr.mxu0 0.0
  %157 = vmatpush2.msra.mxu0 0.0
  %158 = vmatprep.subr.mxu0 0.0
  %159 = vmatpush2.msra.mxu0 0.0
  %160 = vmatprep.subr.mxu0 0.0
  %161 = vmatpush2.msra.mxu0 0.0
  %162 = vmatprep.subr.mxu0 0.0
  %163 = vmatpush2.msra.mxu0 0.0
  %164 = vmatprep.mubr.f32.mxu0 0.0
  %165 = vmatmul.mubr.f32.gmra.mxu0 %v91
  %v166 = vpop.f32.mrf.mxu0
  %v167 = vadd.f32 0.0, %v166
  %v168 = vpop.f32.mrf.mxu0
  %v169 = vadd.f32 0.0, %v168
  %170 = vdwg.mxu0
  %v172 = vsel %vm89, %v64, 0
  %v175 = vsel %vm93, %v62, 0
  %v178 = vsel %vm93, %v63, 0
  %180 = vmatprep.subr.mxu0 0.0
  %181 = vmatpush1.msra.mxu0 0.0
  %182 = vmatprep.subr.mxu0 0.0
  %183 = vmatpush1.msra.mxu0 0.0
  %184 = vmatprep.subr.mxu0 0.0
  %185 = vmatpush1.msra.mxu0 0.0
  %186 = vmatprep.subr.mxu0 0.0
  %187 = vmatpush1.msra.mxu0 0.0
  %188 = vmatprep.subr.mxu0 0.0
  %189 = vmatpush1.msra.mxu0 0.0
  %190 = vmatprep.subr.mxu0 0.0
  %191 = vmatpush1.msra.mxu0 0.0
  %192 = vmatprep.subr.mxu0 0.0
  %193 = vmatpush1.msra.mxu0 0.0
  %194 = vmatprep.subr.mxu0 0.0
  %195 = vmatpush1.msra.mxu0 0.0
  %196 = vmatprep.subr.mxu0 0.0
  %197 = vmatpush1.msra.mxu0 0.0
  %198 = vmatprep.subr.mxu0 0.0
  %199 = vmatpush1.msra.mxu0 0.0
  %200 = vmatprep.subr.mxu0 0.0
  %201 = vmatpush1.msra.mxu0 0.0
  %202 = vmatprep.subr.mxu0 0.0
  %203 = vmatpush1.msra.mxu0 0.0
  %204 = vmatprep.subr.mxu0 0.0
  %205 = vmatpush1.msra.mxu0 0.0
  %206 = vmatprep.subr.mxu0 0.0
  %207 = vmatpush1.msra.mxu0 0.0
  %208 = vmatprep.subr.mxu0 0.0
  %209 = vmatpush1.msra.mxu0 0.0
  %210 = vmatprep.subr.mxu0 %v178
  %211 = vmatpush1.msra.mxu0 %v175
  %212 = vmatprep.subr.mxu0 0.0
  %213 = vmatpush2.msra.mxu0 0.0
  %214 = vmatprep.subr.mxu0 0.0
  %215 = vmatpush2.msra.mxu0 0.0
  %216 = vmatprep.subr.mxu0 0.0
  %217 = vmatpush2.msra.mxu0 0.0
  %218 = vmatprep.subr.mxu0 0.0
  %219 = vmatpush2.msra.mxu0 0.0
  %220 = vmatprep.subr.mxu0 0.0
  %221 = vmatpush2.msra.mxu0 0.0
  %222 = vmatprep.subr.mxu0 0.0
  %223 = vmatpush2.msra.mxu0 0.0
  %224 = vmatprep.subr.mxu0 0.0
  %225 = vmatpush2.msra.mxu0 0.0
  %226 = vmatprep.subr.mxu0 0.0
  %227 = vmatpush2.msra.mxu0 0.0
  %228 = vmatprep.subr.mxu0 0.0
  %229 = vmatpush2.msra.mxu0 0.0
  %230 = vmatprep.subr.mxu0 0.0
  %231 = vmatpush2.msra.mxu0 0.0
  %232 = vmatprep.subr.mxu0 0.0
  %233 = vmatpush2.msra.mxu0 0.0
  %234 = vmatprep.subr.mxu0 0.0
  %235 = vmatpush2.msra.mxu0 0.0
  %236 = vmatprep.subr.mxu0 0.0
  %237 = vmatpush2.msra.mxu0 0.0
  %238 = vmatprep.subr.mxu0 0.0
  %239 = vmatpush2.msra.mxu0 0.0
  %240 = vmatprep.subr.mxu0 0.0
  %241 = vmatpush2.msra.mxu0 0.0
  %242 = vmatprep.subr.mxu0 0.0
  %243 = vmatpush2.msra.mxu0 0.0
  %244 = vmatprep.mubr.f32.mxu0 0.0
  %245 = vmatmul.mubr.f32.gmra.mxu0 %v172
  %v246 = vpop.f32.mrf.mxu0
  %v247 = vadd.f32 %v167, %v246
  %v248 = vpop.f32.mrf.mxu0
  %v249 = vadd.f32 %v169, %v248
  %250 = vdwg.mxu0
  %251 = vrot.lane.b32.xlu0 %v37, 15
  %v252 = vpop.permute.xlu0 %251
  %253 = vrot.lane.b32.xlu0 %v38, 15
  %v254 = vpop.permute.xlu0 %253
  %vm255 = vcmp.lt.s32.totalorder %v46, 15
  %v256 = vsel %vm255, %v252, %v254
  %v257 = vsel %vm255, %v254, %v252
  %s258 = scalar_lea.vmem %s1, 4
  %v259 = vld [vmem:[%s258] sm:$0x3]
  %v261 = vlaneseq
  %v262 = vshrl.u32 %v261, 7
  %v263 = vsub.s32 0, %v262
  %v264 = vrot.slane %v259, %v263
  %v265 = vlaneseq
  %v266 = vshrl.u32 %v265, 7
  %v267 = vsub.s32 1, %v266
  %v268 = vrot.slane %v259, %v267
  %v271 = vmul.f32 %v257, %v264
  %v272 = vmul.f32 %v256, %v268
  %s273 = scalar_lea.vmem %s2, 16
  %v274 = vld [vmem:[%s273] sm:$0xff]
  %v276 = vsel %vm89, %v274, 0
  %v279 = vsel %vm93, %v271, 0
  %v282 = vsel %vm93, %v272, 0
  %284 = vmatprep.subr.mxu0 0.0
  %285 = vmatpush1.msra.mxu0 0.0
  %286 = vmatprep.subr.mxu0 0.0
  %287 = vmatpush1.msra.mxu0 0.0
  %288 = vmatprep.subr.mxu0 0.0
  %289 = vmatpush1.msra.mxu0 0.0
  %290 = vmatprep.subr.mxu0 0.0
  %291 = vmatpush1.msra.mxu0 0.0
  %292 = vmatprep.subr.mxu0 0.0
  %293 = vmatpush1.msra.mxu0 0.0
  %294 = vmatprep.subr.mxu0 0.0
  %295 = vmatpush1.msra.mxu0 0.0
  %296 = vmatprep.subr.mxu0 0.0
  %297 = vmatpush1.msra.mxu0 0.0
  %298 = vmatprep.subr.mxu0 0.0
  %299 = vmatpush1.msra.mxu0 0.0
  %300 = vmatprep.subr.mxu0 0.0
  %301 = vmatpush1.msra.mxu0 0.0
  %302 = vmatprep.subr.mxu0 0.0
  %303 = vmatpush1.msra.mxu0 0.0
  %304 = vmatprep.subr.mxu0 0.0
  %305 = vmatpush1.msra.mxu0 0.0
  %306 = vmatprep.subr.mxu0 0.0
  %307 = vmatpush1.msra.mxu0 0.0
  %308 = vmatprep.subr.mxu0 0.0
  %309 = vmatpush1.msra.mxu0 0.0
  %310 = vmatprep.subr.mxu0 0.0
  %311 = vmatpush1.msra.mxu0 0.0
  %312 = vmatprep.subr.mxu0 0.0
  %313 = vmatpush1.msra.mxu0 0.0
  %314 = vmatprep.subr.mxu0 %v282
  %315 = vmatpush1.msra.mxu0 %v279
  %316 = vmatprep.subr.mxu0 0.0
  %317 = vmatpush2.msra.mxu0 0.0
  %318 = vmatprep.subr.mxu0 0.0
  %319 = vmatpush2.msra.mxu0 0.0
  %320 = vmatprep.subr.mxu0 0.0
  %321 = vmatpush2.msra.mxu0 0.0
  %322 = vmatprep.subr.mxu0 0.0
  %323 = vmatpush2.msra.mxu0 0.0
  %324 = vmatprep.subr.mxu0 0.0
  %325 = vmatpush2.msra.mxu0 0.0
  %326 = vmatprep.subr.mxu0 0.0
  %327 = vmatpush2.msra.mxu0 0.0
  %328 = vmatprep.subr.mxu0 0.0
  %329 = vmatpush2.msra.mxu0 0.0
  %330 = vmatprep.subr.mxu0 0.0
  %331 = vmatpush2.msra.mxu0 0.0
  %332 = vmatprep.subr.mxu0 0.0
  %333 = vmatpush2.msra.mxu0 0.0
  %334 = vmatprep.subr.mxu0 0.0
  %335 = vmatpush2.msra.mxu0 0.0
  %336 = vmatprep.subr.mxu0 0.0
  %337 = vmatpush2.msra.mxu0 0.0
  %338 = vmatprep.subr.mxu0 0.0
  %339 = vmatpush2.msra.mxu0 0.0
  %340 = vmatprep.subr.mxu0 0.0
  %341 = vmatpush2.msra.mxu0 0.0
  %342 = vmatprep.subr.mxu0 0.0
  %343 = vmatpush2.msra.mxu0 0.0
  %344 = vmatprep.subr.mxu0 0.0
  %345 = vmatpush2.msra.mxu0 0.0
  %346 = vmatprep.subr.mxu0 0.0
  %347 = vmatpush2.msra.mxu0 0.0
  %348 = vmatprep.mubr.f32.mxu0 0.0
  %349 = vmatmul.mubr.f32.gmra.mxu0 %v276
  %v350 = vpop.f32.mrf.mxu0
  %v351 = vadd.f32 0.0, %v350
  %v352 = vpop.f32.mrf.mxu0
  %v353 = vadd.f32 0.0, %v352
  %354 = vdwg.mxu0
  %v355 = vadd.f32 %v247, %v351
  %v356 = vadd.f32 %v249, %v353
  %357 = vrot.lane.b32.xlu0 %v37, 1
  %v358 = vpop.permute.xlu0 %357
  %359 = vrot.lane.b32.xlu0 %v38, 1
  %v360 = vpop.permute.xlu0 %359
  %vm361 = vcmp.lt.s32.totalorder %v46, 1
  %v362 = vsel %vm361, %v358, %v360
  %v363 = vsel %vm361, %v360, %v358
  %s364 = scalar_lea.vmem %s1, 6
  %v365 = vld [vmem:[%s364] sm:$0x3]
  %v367 = vlaneseq
  %v368 = vshrl.u32 %v367, 7
  %v369 = vsub.s32 0, %v368
  %v370 = vrot.slane %v365, %v369
  %v371 = vlaneseq
  %v372 = vshrl.u32 %v371, 7
  %v373 = vsub.s32 1, %v372
  %v374 = vrot.slane %v365, %v373
  %v377 = vmul.f32 %v363, %v370
  %v378 = vmul.f32 %v362, %v374
  %s379 = scalar_lea.vmem %s2, 24
  %v380 = vld [vmem:[%s379] sm:$0xff]
  %v382 = vsel %vm89, %v380, 0
  %v385 = vsel %vm93, %v377, 0
  %v388 = vsel %vm93, %v378, 0
  %390 = vmatprep.subr.mxu0 0.0
  %391 = vmatpush1.msra.mxu0 0.0
  %392 = vmatprep.subr.mxu0 0.0
  %393 = vmatpush1.msra.mxu0 0.0
  %394 = vmatprep.subr.mxu0 0.0
  %395 = vmatpush1.msra.mxu0 0.0
  %396 = vmatprep.subr.mxu0 0.0
  %397 = vmatpush1.msra.mxu0 0.0
  %398 = vmatprep.subr.mxu0 0.0
  %399 = vmatpush1.msra.mxu0 0.0
  %400 = vmatprep.subr.mxu0 0.0
  %401 = vmatpush1.msra.mxu0 0.0
  %402 = vmatprep.subr.mxu0 0.0
  %403 = vmatpush1.msra.mxu0 0.0
  %404 = vmatprep.subr.mxu0 0.0
  %405 = vmatpush1.msra.mxu0 0.0
  %406 = vmatprep.subr.mxu0 0.0
  %407 = vmatpush1.msra.mxu0 0.0
  %408 = vmatprep.subr.mxu0 0.0
  %409 = vmatpush1.msra.mxu0 0.0
  %410 = vmatprep.subr.mxu0 0.0
  %411 = vmatpush1.msra.mxu0 0.0
  %412 = vmatprep.subr.mxu0 0.0
  %413 = vmatpush1.msra.mxu0 0.0
  %414 = vmatprep.subr.mxu0 0.0
  %415 = vmatpush1.msra.mxu0 0.0
  %416 = vmatprep.subr.mxu0 0.0
  %417 = vmatpush1.msra.mxu0 0.0
  %418 = vmatprep.subr.mxu0 0.0
  %419 = vmatpush1.msra.mxu0 0.0
  %420 = vmatprep.subr.mxu0 %v388
  %421 = vmatpush1.msra.mxu0 %v385
  %422 = vmatprep.subr.mxu0 0.0
  %423 = vmatpush2.msra.mxu0 0.0
  %424 = vmatprep.subr.mxu0 0.0
  %425 = vmatpush2.msra.mxu0 0.0
  %426 = vmatprep.subr.mxu0 0.0
  %427 = vmatpush2.msra.mxu0 0.0
  %428 = vmatprep.subr.mxu0 0.0
  %429 = vmatpush2.msra.mxu0 0.0
  %430 = vmatprep.subr.mxu0 0.0
  %431 = vmatpush2.msra.mxu0 0.0
  %432 = vmatprep.subr.mxu0 0.0
  %433 = vmatpush2.msra.mxu0 0.0
  %434 = vmatprep.subr.mxu0 0.0
  %435 = vmatpush2.msra.mxu0 0.0
  %436 = vmatprep.subr.mxu0 0.0
  %437 = vmatpush2.msra.mxu0 0.0
  %438 = vmatprep.subr.mxu0 0.0
  %439 = vmatpush2.msra.mxu0 0.0
  %440 = vmatprep.subr.mxu0 0.0
  %441 = vmatpush2.msra.mxu0 0.0
  %442 = vmatprep.subr.mxu0 0.0
  %443 = vmatpush2.msra.mxu0 0.0
  %444 = vmatprep.subr.mxu0 0.0
  %445 = vmatpush2.msra.mxu0 0.0
  %446 = vmatprep.subr.mxu0 0.0
  %447 = vmatpush2.msra.mxu0 0.0
  %448 = vmatprep.subr.mxu0 0.0
  %449 = vmatpush2.msra.mxu0 0.0
  %450 = vmatprep.subr.mxu0 0.0
  %451 = vmatpush2.msra.mxu0 0.0
  %452 = vmatprep.subr.mxu0 0.0
  %453 = vmatpush2.msra.mxu0 0.0
  %454 = vmatprep.mubr.f32.mxu0 0.0
  %455 = vmatmul.mubr.f32.gmra.mxu0 %v382
  %v456 = vpop.f32.mrf.mxu0
  %v457 = vadd.f32 0.0, %v456
  %v458 = vpop.f32.mrf.mxu0
  %v459 = vadd.f32 0.0, %v458
  %460 = vdwg.mxu0
  %v461 = vadd.f32 %v355, %v457
  %v462 = vadd.f32 %v356, %v459
  %s463 = scalar_lea.vmem %s2, 32
  %v464 = vld [vmem:[%s463] sm:$0xff]
  %v466 = vsel %vm89, %v464, 0
  %v468 = vsel %vm93, %v37, 0
  %v470 = vsel %vm93, %v38, 0
  %472 = vmatprep.subr.mxu0 0.0
  %473 = vmatpush1.msra.mxu0 0.0
  %474 = vmatprep.subr.mxu0 0.0
  %475 = vmatpush1.msra.mxu0 0.0
  %476 = vmatprep.subr.mxu0 0.0
  %477 = vmatpush1.msra.mxu0 0.0
  %478 = vmatprep.subr.mxu0 0.0
  %479 = vmatpush1.msra.mxu0 0.0
  %480 = vmatprep.subr.mxu0 0.0
  %481 = vmatpush1.msra.mxu0 0.0
  %482 = vmatprep.subr.mxu0 0.0
  %483 = vmatpush1.msra.mxu0 0.0
  %484 = vmatprep.subr.mxu0 0.0
  %485 = vmatpush1.msra.mxu0 0.0
  %486 = vmatprep.subr.mxu0 0.0
  %487 = vmatpush1.msra.mxu0 0.0
  %488 = vmatprep.subr.mxu0 0.0
  %489 = vmatpush1.msra.mxu0 0.0
  %490 = vmatprep.subr.mxu0 0.0
  %491 = vmatpush1.msra.mxu0 0.0
  %492 = vmatprep.subr.mxu0 0.0
  %493 = vmatpush1.msra.mxu0 0.0
  %494 = vmatprep.subr.mxu0 0.0
  %495 = vmatpush1.msra.mxu0 0.0
  %496 = vmatprep.subr.mxu0 0.0
  %497 = vmatpush1.msra.mxu0 0.0
  %498 = vmatprep.subr.mxu0 0.0
  %499 = vmatpush1.msra.mxu0 0.0
  %500 = vmatprep.subr.mxu0 0.0
  %501 = vmatpush1.msra.mxu0 0.0
  %502 = vmatprep.subr.mxu0 %v470
  %503 = vmatpush1.msra.mxu0 %v468
  %504 = vmatprep.subr.mxu0 0.0
  %505 = vmatpush2.msra.mxu0 0.0
  %506 = vmatprep.subr.mxu0 0.0
  %507 = vmatpush2.msra.mxu0 0.0
  %508 = vmatprep.subr.mxu0 0.0
  %509 = vmatpush2.msra.mxu0 0.0
  %510 = vmatprep.subr.mxu0 0.0
  %511 = vmatpush2.msra.mxu0 0.0
  %512 = vmatprep.subr.mxu0 0.0
  %513 = vmatpush2.msra.mxu0 0.0
  %514 = vmatprep.subr.mxu0 0.0
  %515 = vmatpush2.msra.mxu0 0.0
  %516 = vmatprep.subr.mxu0 0.0
  %517 = vmatpush2.msra.mxu0 0.0
  %518 = vmatprep.subr.mxu0 0.0
  %519 = vmatpush2.msra.mxu0 0.0
  %520 = vmatprep.subr.mxu0 0.0
  %521 = vmatpush2.msra.mxu0 0.0
  %522 = vmatprep.subr.mxu0 0.0
  %523 = vmatpush2.msra.mxu0 0.0
  %524 = vmatprep.subr.mxu0 0.0
  %525 = vmatpush2.msra.mxu0 0.0
  %526 = vmatprep.subr.mxu0 0.0
  %527 = vmatpush2.msra.mxu0 0.0
  %528 = vmatprep.subr.mxu0 0.0
  %529 = vmatpush2.msra.mxu0 0.0
  %530 = vmatprep.subr.mxu0 0.0
  %531 = vmatpush2.msra.mxu0 0.0
  %532 = vmatprep.subr.mxu0 0.0
  %533 = vmatpush2.msra.mxu0 0.0
  %534 = vmatprep.subr.mxu0 0.0
  %535 = vmatpush2.msra.mxu0 0.0
  %536 = vmatprep.mubr.f32.mxu0 0.0
  %537 = vmatmul.mubr.f32.gmra.mxu0 %v466
  %v538 = vpop.f32.mrf.mxu0
  %v539 = vadd.f32 0.0, %v538
  %v540 = vpop.f32.mrf.mxu0
  %v541 = vadd.f32 0.0, %v540
  %542 = vdwg.mxu0
  %v543 = vadd.f32 %v461, %v539
  %v544 = vadd.f32 %v462, %v541
  %545 = vrot.lane.b32.xlu0 %v37, 127
  %v546 = vpop.permute.xlu0 %545
  %547 = vrot.lane.b32.xlu0 %v38, 127
  %v548 = vpop.permute.xlu0 %547
  %vm549 = vcmp.lt.s32.totalorder %v46, 127
  %v550 = vsel %vm549, %v546, %v548
  %v551 = vsel %vm549, %v548, %v546
  %s552 = scalar_lea.vmem %s1, 10
  %v553 = vld [vmem:[%s552] sm:$0x3]
  %v555 = vlaneseq
  %v556 = vshrl.u32 %v555, 7
  %v557 = vsub.s32 0, %v556
  %v558 = vrot.slane %v553, %v557
  %v559 = vlaneseq
  %v560 = vshrl.u32 %v559, 7
  %v561 = vsub.s32 1, %v560
  %v562 = vrot.slane %v553, %v561
  %v565 = vmul.f32 %v550, %v558
  %v566 = vmul.f32 %v551, %v562
  %s567 = scalar_lea.vmem %s2, 40
  %v568 = vld [vmem:[%s567] sm:$0xff]
  %v570 = vsel %vm89, %v568, 0
  %v573 = vsel %vm93, %v565, 0
  %v576 = vsel %vm93, %v566, 0
  %578 = vmatprep.subr.mxu0 0.0
  %579 = vmatpush1.msra.mxu0 0.0
  %580 = vmatprep.subr.mxu0 0.0
  %581 = vmatpush1.msra.mxu0 0.0
  %582 = vmatprep.subr.mxu0 0.0
  %583 = vmatpush1.msra.mxu0 0.0
  %584 = vmatprep.subr.mxu0 0.0
  %585 = vmatpush1.msra.mxu0 0.0
  %586 = vmatprep.subr.mxu0 0.0
  %587 = vmatpush1.msra.mxu0 0.0
  %588 = vmatprep.subr.mxu0 0.0
  %589 = vmatpush1.msra.mxu0 0.0
  %590 = vmatprep.subr.mxu0 0.0
  %591 = vmatpush1.msra.mxu0 0.0
  %592 = vmatprep.subr.mxu0 0.0
  %593 = vmatpush1.msra.mxu0 0.0
  %594 = vmatprep.subr.mxu0 0.0
  %595 = vmatpush1.msra.mxu0 0.0
  %596 = vmatprep.subr.mxu0 0.0
  %597 = vmatpush1.msra.mxu0 0.0
  %598 = vmatprep.subr.mxu0 0.0
  %599 = vmatpush1.msra.mxu0 0.0
  %600 = vmatprep.subr.mxu0 0.0
  %601 = vmatpush1.msra.mxu0 0.0
  %602 = vmatprep.subr.mxu0 0.0
  %603 = vmatpush1.msra.mxu0 0.0
  %604 = vmatprep.subr.mxu0 0.0
  %605 = vmatpush1.msra.mxu0 0.0
  %606 = vmatprep.subr.mxu0 0.0
  %607 = vmatpush1.msra.mxu0 0.0
  %608 = vmatprep.subr.mxu0 %v576
  %609 = vmatpush1.msra.mxu0 %v573
  %610 = vmatprep.subr.mxu0 0.0
  %611 = vmatpush2.msra.mxu0 0.0
  %612 = vmatprep.subr.mxu0 0.0
  %613 = vmatpush2.msra.mxu0 0.0
  %614 = vmatprep.subr.mxu0 0.0
  %615 = vmatpush2.msra.mxu0 0.0
  %616 = vmatprep.subr.mxu0 0.0
  %617 = vmatpush2.msra.mxu0 0.0
  %618 = vmatprep.subr.mxu0 0.0
  %619 = vmatpush2.msra.mxu0 0.0
  %620 = vmatprep.subr.mxu0 0.0
  %621 = vmatpush2.msra.mxu0 0.0
  %622 = vmatprep.subr.mxu0 0.0
  %623 = vmatpush2.msra.mxu0 0.0
  %624 = vmatprep.subr.mxu0 0.0
  %625 = vmatpush2.msra.mxu0 0.0
  %626 = vmatprep.subr.mxu0 0.0
  %627 = vmatpush2.msra.mxu0 0.0
  %628 = vmatprep.subr.mxu0 0.0
  %629 = vmatpush2.msra.mxu0 0.0
  %630 = vmatprep.subr.mxu0 0.0
  %631 = vmatpush2.msra.mxu0 0.0
  %632 = vmatprep.subr.mxu0 0.0
  %633 = vmatpush2.msra.mxu0 0.0
  %634 = vmatprep.subr.mxu0 0.0
  %635 = vmatpush2.msra.mxu0 0.0
  %636 = vmatprep.subr.mxu0 0.0
  %637 = vmatpush2.msra.mxu0 0.0
  %638 = vmatprep.subr.mxu0 0.0
  %639 = vmatpush2.msra.mxu0 0.0
  %640 = vmatprep.subr.mxu0 0.0
  %641 = vmatpush2.msra.mxu0 0.0
  %642 = vmatprep.mubr.f32.mxu0 0.0
  %643 = vmatmul.mubr.f32.gmra.mxu0 %v570
  %v644 = vpop.f32.mrf.mxu0
  %v645 = vadd.f32 0.0, %v644
  %v646 = vpop.f32.mrf.mxu0
  %v647 = vadd.f32 0.0, %v646
  %648 = vdwg.mxu0
  %v649 = vadd.f32 %v543, %v645
  %v650 = vadd.f32 %v544, %v647
  %651 = vrot.lane.b32.xlu0 %v37, 113
  %v652 = vpop.permute.xlu0 %651
  %653 = vrot.lane.b32.xlu0 %v38, 113
  %v654 = vpop.permute.xlu0 %653
  %vm655 = vcmp.lt.s32.totalorder %v46, 113
  %v656 = vsel %vm655, %v652, %v654
  %v657 = vsel %vm655, %v654, %v652
  %s658 = scalar_lea.vmem %s1, 12
  %v659 = vld [vmem:[%s658] sm:$0x3]
  %v661 = vlaneseq
  %v662 = vshrl.u32 %v661, 7
  %v663 = vsub.s32 0, %v662
  %v664 = vrot.slane %v659, %v663
  %v665 = vlaneseq
  %v666 = vshrl.u32 %v665, 7
  %v667 = vsub.s32 1, %v666
  %v668 = vrot.slane %v659, %v667
  %v671 = vmul.f32 %v656, %v664
  %v672 = vmul.f32 %v657, %v668
  %s673 = scalar_lea.vmem %s2, 48
  %v674 = vld [vmem:[%s673] sm:$0xff]
  %v676 = vsel %vm89, %v674, 0
  %v679 = vsel %vm93, %v671, 0
  %v682 = vsel %vm93, %v672, 0
  %684 = vmatprep.subr.mxu0 0.0
  %685 = vmatpush1.msra.mxu0 0.0
  %686 = vmatprep.subr.mxu0 0.0
  %687 = vmatpush1.msra.mxu0 0.0
  %688 = vmatprep.subr.mxu0 0.0
  %689 = vmatpush1.msra.mxu0 0.0
  %690 = vmatprep.subr.mxu0 0.0
  %691 = vmatpush1.msra.mxu0 0.0
  %692 = vmatprep.subr.mxu0 0.0
  %693 = vmatpush1.msra.mxu0 0.0
  %694 = vmatprep.subr.mxu0 0.0
  %695 = vmatpush1.msra.mxu0 0.0
  %696 = vmatprep.subr.mxu0 0.0
  %697 = vmatpush1.msra.mxu0 0.0
  %698 = vmatprep.subr.mxu0 0.0
  %699 = vmatpush1.msra.mxu0 0.0
  %700 = vmatprep.subr.mxu0 0.0
  %701 = vmatpush1.msra.mxu0 0.0
  %702 = vmatprep.subr.mxu0 0.0
  %703 = vmatpush1.msra.mxu0 0.0
  %704 = vmatprep.subr.mxu0 0.0
  %705 = vmatpush1.msra.mxu0 0.0
  %706 = vmatprep.subr.mxu0 0.0
  %707 = vmatpush1.msra.mxu0 0.0
  %708 = vmatprep.subr.mxu0 0.0
  %709 = vmatpush1.msra.mxu0 0.0
  %710 = vmatprep.subr.mxu0 0.0
  %711 = vmatpush1.msra.mxu0 0.0
  %712 = vmatprep.subr.mxu0 0.0
  %713 = vmatpush1.msra.mxu0 0.0
  %714 = vmatprep.subr.mxu0 %v682
  %715 = vmatpush1.msra.mxu0 %v679
  %716 = vmatprep.subr.mxu0 0.0
  %717 = vmatpush2.msra.mxu0 0.0
  %718 = vmatprep.subr.mxu0 0.0
  %719 = vmatpush2.msra.mxu0 0.0
  %720 = vmatprep.subr.mxu0 0.0
  %721 = vmatpush2.msra.mxu0 0.0
  %722 = vmatprep.subr.mxu0 0.0
  %723 = vmatpush2.msra.mxu0 0.0
  %724 = vmatprep.subr.mxu0 0.0
  %725 = vmatpush2.msra.mxu0 0.0
  %726 = vmatprep.subr.mxu0 0.0
  %727 = vmatpush2.msra.mxu0 0.0
  %728 = vmatprep.subr.mxu0 0.0
  %729 = vmatpush2.msra.mxu0 0.0
  %730 = vmatprep.subr.mxu0 0.0
  %731 = vmatpush2.msra.mxu0 0.0
  %732 = vmatprep.subr.mxu0 0.0
  %733 = vmatpush2.msra.mxu0 0.0
  %734 = vmatprep.subr.mxu0 0.0
  %735 = vmatpush2.msra.mxu0 0.0
  %736 = vmatprep.subr.mxu0 0.0
  %737 = vmatpush2.msra.mxu0 0.0
  %738 = vmatprep.subr.mxu0 0.0
  %739 = vmatpush2.msra.mxu0 0.0
  %740 = vmatprep.subr.mxu0 0.0
  %741 = vmatpush2.msra.mxu0 0.0
  %742 = vmatprep.subr.mxu0 0.0
  %743 = vmatpush2.msra.mxu0 0.0
  %744 = vmatprep.subr.mxu0 0.0
  %745 = vmatpush2.msra.mxu0 0.0
  %746 = vmatprep.subr.mxu0 0.0
  %747 = vmatpush2.msra.mxu0 0.0
  %748 = vmatprep.mubr.f32.mxu0 0.0
  %749 = vmatmul.mubr.f32.gmra.mxu0 %v676
  %v750 = vpop.f32.mrf.mxu0
  %v751 = vadd.f32 0.0, %v750
  %v752 = vpop.f32.mrf.mxu0
  %v753 = vadd.f32 0.0, %v752
  %754 = vdwg.mxu0
  %v755 = vadd.f32 %v649, %v751
  %v756 = vadd.f32 %v650, %v753
  %757 = vrot.lane.b32.xlu0 %v37, 112
  %v758 = vpop.permute.xlu0 %757
  %759 = vrot.lane.b32.xlu0 %v38, 112
  %v760 = vpop.permute.xlu0 %759
  %vm761 = vcmp.lt.s32.totalorder %v46, 112
  %v762 = vsel %vm761, %v758, %v760
  %v763 = vsel %vm761, %v760, %v758
  %s764 = scalar_lea.vmem %s1, 14
  %v765 = vld [vmem:[%s764] sm:$0x3]
  %v767 = vlaneseq
  %v768 = vshrl.u32 %v767, 7
  %v769 = vsub.s32 0, %v768
  %v770 = vrot.slane %v765, %v769
  %v771 = vlaneseq
  %v772 = vshrl.u32 %v771, 7
  %v773 = vsub.s32 1, %v772
  %v774 = vrot.slane %v765, %v773
  %v777 = vmul.f32 %v762, %v770
  %v778 = vmul.f32 %v763, %v774
  %s779 = scalar_lea.vmem %s2, 56
  %v780 = vld [vmem:[%s779] sm:$0xff]
  %v782 = vsel %vm89, %v780, 0
  %v785 = vsel %vm93, %v777, 0
  %v788 = vsel %vm93, %v778, 0
  %790 = vmatprep.subr.mxu0 0.0
  %791 = vmatpush1.msra.mxu0 0.0
  %792 = vmatprep.subr.mxu0 0.0
  %793 = vmatpush1.msra.mxu0 0.0
  %794 = vmatprep.subr.mxu0 0.0
  %795 = vmatpush1.msra.mxu0 0.0
  %796 = vmatprep.subr.mxu0 0.0
  %797 = vmatpush1.msra.mxu0 0.0
  %798 = vmatprep.subr.mxu0 0.0
  %799 = vmatpush1.msra.mxu0 0.0
  %800 = vmatprep.subr.mxu0 0.0
  %801 = vmatpush1.msra.mxu0 0.0
  %802 = vmatprep.subr.mxu0 0.0
  %803 = vmatpush1.msra.mxu0 0.0
  %804 = vmatprep.subr.mxu0 0.0
  %805 = vmatpush1.msra.mxu0 0.0
  %806 = vmatprep.subr.mxu0 0.0
  %807 = vmatpush1.msra.mxu0 0.0
  %808 = vmatprep.subr.mxu0 0.0
  %809 = vmatpush1.msra.mxu0 0.0
  %810 = vmatprep.subr.mxu0 0.0
  %811 = vmatpush1.msra.mxu0 0.0
  %812 = vmatprep.subr.mxu0 0.0
  %813 = vmatpush1.msra.mxu0 0.0
  %814 = vmatprep.subr.mxu0 0.0
  %815 = vmatpush1.msra.mxu0 0.0
  %816 = vmatprep.subr.mxu0 0.0
  %817 = vmatpush1.msra.mxu0 0.0
  %818 = vmatprep.subr.mxu0 0.0
  %819 = vmatpush1.msra.mxu0 0.0
  %820 = vmatprep.subr.mxu0 %v788
  %821 = vmatpush1.msra.mxu0 %v785
  %822 = vmatprep.subr.mxu0 0.0
  %823 = vmatpush2.msra.mxu0 0.0
  %824 = vmatprep.subr.mxu0 0.0
  %825 = vmatpush2.msra.mxu0 0.0
  %826 = vmatprep.subr.mxu0 0.0
  %827 = vmatpush2.msra.mxu0 0.0
  %828 = vmatprep.subr.mxu0 0.0
  %829 = vmatpush2.msra.mxu0 0.0
  %830 = vmatprep.subr.mxu0 0.0
  %831 = vmatpush2.msra.mxu0 0.0
  %832 = vmatprep.subr.mxu0 0.0
  %833 = vmatpush2.msra.mxu0 0.0
  %834 = vmatprep.subr.mxu0 0.0
  %835 = vmatpush2.msra.mxu0 0.0
  %836 = vmatprep.subr.mxu0 0.0
  %837 = vmatpush2.msra.mxu0 0.0
  %838 = vmatprep.subr.mxu0 0.0
  %839 = vmatpush2.msra.mxu0 0.0
  %840 = vmatprep.subr.mxu0 0.0
  %841 = vmatpush2.msra.mxu0 0.0
  %842 = vmatprep.subr.mxu0 0.0
  %843 = vmatpush2.msra.mxu0 0.0
  %844 = vmatprep.subr.mxu0 0.0
  %845 = vmatpush2.msra.mxu0 0.0
  %846 = vmatprep.subr.mxu0 0.0
  %847 = vmatpush2.msra.mxu0 0.0
  %848 = vmatprep.subr.mxu0 0.0
  %849 = vmatpush2.msra.mxu0 0.0
  %850 = vmatprep.subr.mxu0 0.0
  %851 = vmatpush2.msra.mxu0 0.0
  %852 = vmatprep.subr.mxu0 0.0
  %853 = vmatpush2.msra.mxu0 0.0
  %854 = vmatprep.mubr.f32.mxu0 0.0
  %855 = vmatmul.mubr.f32.gmra.mxu0 %v782
  %v856 = vpop.f32.mrf.mxu0
  %v857 = vadd.f32 0.0, %v856
  %v858 = vpop.f32.mrf.mxu0
  %v859 = vadd.f32 0.0, %v858
  %860 = vdwg.mxu0
  %v861 = vadd.f32 %v755, %v857
  %v862 = vadd.f32 %v756, %v859
  %863 = vrot.lane.b32.xlu0 %v37, 111
  %v864 = vpop.permute.xlu0 %863
  %865 = vrot.lane.b32.xlu0 %v38, 111
  %v866 = vpop.permute.xlu0 %865
  %vm867 = vcmp.lt.s32.totalorder %v46, 111
  %v868 = vsel %vm867, %v864, %v866
  %v869 = vsel %vm867, %v866, %v864
  %s870 = scalar_lea.vmem %s1, 16
  %v871 = vld [vmem:[%s870] sm:$0x3]
  %v873 = vlaneseq
  %v874 = vshrl.u32 %v873, 7
  %v875 = vsub.s32 0, %v874
  %v876 = vrot.slane %v871, %v875
  %v877 = vlaneseq
  %v878 = vshrl.u32 %v877, 7
  %v879 = vsub.s32 1, %v878
  %v880 = vrot.slane %v871, %v879
  %v883 = vmul.f32 %v868, %v876
  %v884 = vmul.f32 %v869, %v880
  %s885 = scalar_lea.vmem %s2, 64
  %v886 = vld [vmem:[%s885] sm:$0xff]
  %v888 = vsel %vm89, %v886, 0
  %v891 = vsel %vm93, %v883, 0
  %v894 = vsel %vm93, %v884, 0
  %896 = vmatprep.subr.mxu0 0.0
  %897 = vmatpush1.msra.mxu0 0.0
  %898 = vmatprep.subr.mxu0 0.0
  %899 = vmatpush1.msra.mxu0 0.0
  %900 = vmatprep.subr.mxu0 0.0
  %901 = vmatpush1.msra.mxu0 0.0
  %902 = vmatprep.subr.mxu0 0.0
  %903 = vmatpush1.msra.mxu0 0.0
  %904 = vmatprep.subr.mxu0 0.0
  %905 = vmatpush1.msra.mxu0 0.0
  %906 = vmatprep.subr.mxu0 0.0
  %907 = vmatpush1.msra.mxu0 0.0
  %908 = vmatprep.subr.mxu0 0.0
  %909 = vmatpush1.msra.mxu0 0.0
  %910 = vmatprep.subr.mxu0 0.0
  %911 = vmatpush1.msra.mxu0 0.0
  %912 = vmatprep.subr.mxu0 0.0
  %913 = vmatpush1.msra.mxu0 0.0
  %914 = vmatprep.subr.mxu0 0.0
  %915 = vmatpush1.msra.mxu0 0.0
  %916 = vmatprep.subr.mxu0 0.0
  %917 = vmatpush1.msra.mxu0 0.0
  %918 = vmatprep.subr.mxu0 0.0
  %919 = vmatpush1.msra.mxu0 0.0
  %920 = vmatprep.subr.mxu0 0.0
  %921 = vmatpush1.msra.mxu0 0.0
  %922 = vmatprep.subr.mxu0 0.0
  %923 = vmatpush1.msra.mxu0 0.0
  %924 = vmatprep.subr.mxu0 0.0
  %925 = vmatpush1.msra.mxu0 0.0
  %926 = vmatprep.subr.mxu0 %v894
  %927 = vmatpush1.msra.mxu0 %v891
  %928 = vmatprep.subr.mxu0 0.0
  %929 = vmatpush2.msra.mxu0 0.0
  %930 = vmatprep.subr.mxu0 0.0
  %931 = vmatpush2.msra.mxu0 0.0
  %932 = vmatprep.subr.mxu0 0.0
  %933 = vmatpush2.msra.mxu0 0.0
  %934 = vmatprep.subr.mxu0 0.0
  %935 = vmatpush2.msra.mxu0 0.0
  %936 = vmatprep.subr.mxu0 0.0
  %937 = vmatpush2.msra.mxu0 0.0
  %938 = vmatprep.subr.mxu0 0.0
  %939 = vmatpush2.msra.mxu0 0.0
  %940 = vmatprep.subr.mxu0 0.0
  %941 = vmatpush2.msra.mxu0 0.0
  %942 = vmatprep.subr.mxu0 0.0
  %943 = vmatpush2.msra.mxu0 0.0
  %944 = vmatprep.subr.mxu0 0.0
  %945 = vmatpush2.msra.mxu0 0.0
  %946 = vmatprep.subr.mxu0 0.0
  %947 = vmatpush2.msra.mxu0 0.0
  %948 = vmatprep.subr.mxu0 0.0
  %949 = vmatpush2.msra.mxu0 0.0
  %950 = vmatprep.subr.mxu0 0.0
  %951 = vmatpush2.msra.mxu0 0.0
  %952 = vmatprep.subr.mxu0 0.0
  %953 = vmatpush2.msra.mxu0 0.0
  %954 = vmatprep.subr.mxu0 0.0
  %955 = vmatpush2.msra.mxu0 0.0
  %956 = vmatprep.subr.mxu0 0.0
  %957 = vmatpush2.msra.mxu0 0.0
  %958 = vmatprep.subr.mxu0 0.0
  %959 = vmatpush2.msra.mxu0 0.0
  %960 = vmatprep.mubr.f32.mxu0 0.0
  %961 = vmatmul.mubr.f32.gmra.mxu0 %v888
  %v962 = vpop.f32.mrf.mxu0
  %v963 = vadd.f32 0.0, %v962
  %v964 = vpop.f32.mrf.mxu0
  %v965 = vadd.f32 0.0, %v964
  %966 = vdwg.mxu0
  %v967 = vadd.f32 %v861, %v963
  %v968 = vadd.f32 %v862, %v965
  %v969 = vld [vmem:[%s3] sm:$0xff]
  %971 = vset.pattern.permute.xlu0 0
  %972 = vperm.xlu0 %971, %v969
  %v973 = vpop.permute.xlu0 %972
  %v975 = vadd.f32 %v967, %v973
  %v976 = vadd.f32 %v968, %v973
  %v977 = vmax.f32 %v975, 0.0
  %v978 = vmax.f32 %v976, 0.0
  %979 = vrot.lane.b32.xlu0 %v977, 17
  %v980 = vpop.permute.xlu0 %979
  %981 = vrot.lane.b32.xlu0 %v978, 17
  %v982 = vpop.permute.xlu0 %981
  %v983 = vsel %vm47, %v980, %v982
  %v984 = vsel %vm47, %v982, %v980
  %v985 = vmul.f32 %v984, %v55
  %v986 = vmul.f32 %v983, %v59
  %v987 = vld [vmem:[%s4] sm:$0xff]
  %988 = vrot.lane.b32.xlu0 %v977, 16
  %v989 = vpop.permute.xlu0 %988
  %990 = vrot.lane.b32.xlu0 %v978, 16
  %v991 = vpop.permute.xlu0 %990
  %v992 = vsel %vm69, %v989, %v991
  %v993 = vsel %vm69, %v991, %v989
  %v994 = vmul.f32 %v993, %v78
  %v995 = vmul.f32 %v992, %v82
  %s996 = scalar_lea.vmem %s4, 8
  %v997 = vld [vmem:[%s996] sm:$0xff]
  %vm998 = vcmask 64512
  %v1000 = vsel %vm998, %v997, 0
  %1002 = vmatprep.subr.mxu0 0.0
  %1003 = vmatpush1.msra.mxu0 0.0
  %1004 = vmatprep.subr.mxu0 0.0
  %1005 = vmatpush1.msra.mxu0 0.0
  %1006 = vmatprep.subr.mxu0 0.0
  %1007 = vmatpush1.msra.mxu0 0.0
  %1008 = vmatprep.subr.mxu0 0.0
  %1009 = vmatpush1.msra.mxu0 0.0
  %1010 = vmatprep.subr.mxu0 0.0
  %1011 = vmatpush1.msra.mxu0 0.0
  %1012 = vmatprep.subr.mxu0 0.0
  %1013 = vmatpush1.msra.mxu0 0.0
  %1014 = vmatprep.subr.mxu0 0.0
  %1015 = vmatpush1.msra.mxu0 0.0
  %1016 = vmatprep.subr.mxu0 0.0
  %1017 = vmatpush1.msra.mxu0 0.0
  %1018 = vmatprep.subr.mxu0 0.0
  %1019 = vmatpush1.msra.mxu0 0.0
  %1020 = vmatprep.subr.mxu0 0.0
  %1021 = vmatpush1.msra.mxu0 0.0
  %1022 = vmatprep.subr.mxu0 0.0
  %1023 = vmatpush1.msra.mxu0 0.0
  %1024 = vmatprep.subr.mxu0 0.0
  %1025 = vmatpush1.msra.mxu0 0.0
  %1026 = vmatprep.subr.mxu0 0.0
  %1027 = vmatpush1.msra.mxu0 0.0
  %1028 = vmatprep.subr.mxu0 0.0
  %1029 = vmatpush1.msra.mxu0 0.0
  %1030 = vmatprep.subr.mxu0 0.0
  %1031 = vmatpush1.msra.mxu0 0.0
  %1032 = vmatprep.subr.mxu0 %v995
  %1033 = vmatpush1.msra.mxu0 %v994
  %1034 = vmatprep.subr.mxu0 0.0
  %1035 = vmatpush2.msra.mxu0 0.0
  %1036 = vmatprep.subr.mxu0 0.0
  %1037 = vmatpush2.msra.mxu0 0.0
  %1038 = vmatprep.subr.mxu0 0.0
  %1039 = vmatpush2.msra.mxu0 0.0
  %1040 = vmatprep.subr.mxu0 0.0
  %1041 = vmatpush2.msra.mxu0 0.0
  %1042 = vmatprep.subr.mxu0 0.0
  %1043 = vmatpush2.msra.mxu0 0.0
  %1044 = vmatprep.subr.mxu0 0.0
  %1045 = vmatpush2.msra.mxu0 0.0
  %1046 = vmatprep.subr.mxu0 0.0
  %1047 = vmatpush2.msra.mxu0 0.0
  %1048 = vmatprep.subr.mxu0 0.0
  %1049 = vmatpush2.msra.mxu0 0.0
  %1050 = vmatprep.subr.mxu0 0.0
  %1051 = vmatpush2.msra.mxu0 0.0
  %1052 = vmatprep.subr.mxu0 0.0
  %1053 = vmatpush2.msra.mxu0 0.0
  %1054 = vmatprep.subr.mxu0 0.0
  %1055 = vmatpush2.msra.mxu0 0.0
  %1056 = vmatprep.subr.mxu0 0.0
  %1057 = vmatpush2.msra.mxu0 0.0
  %1058 = vmatprep.subr.mxu0 0.0
  %1059 = vmatpush2.msra.mxu0 0.0
  %1060 = vmatprep.subr.mxu0 0.0
  %1061 = vmatpush2.msra.mxu0 0.0
  %1062 = vmatprep.subr.mxu0 0.0
  %1063 = vmatpush2.msra.mxu0 0.0
  %1064 = vmatprep.subr.mxu0 0.0
  %1065 = vmatpush2.msra.mxu0 0.0
  %1066 = vmatprep.mubr.f32.mxu0 0.0
  %1067 = vmatmul.mubr.f32.gmra.mxu0 %v1000
  %v1068 = vpop.f32.mrf.mxu0
  %v1069 = vadd.f32 0.0, %v1068
  %v1070 = vpop.f32.mrf.mxu0
  %v1071 = vadd.f32 0.0, %v1070
  %1072 = vdwg.mxu0
  %v1074 = vsel %vm998, %v987, 0
  %1076 = vmatprep.subr.mxu0 0.0
  %1077 = vmatpush1.msra.mxu0 0.0
  %1078 = vmatprep.subr.mxu0 0.0
  %1079 = vmatpush1.msra.mxu0 0.0
  %1080 = vmatprep.subr.mxu0 0.0
  %1081 = vmatpush1.msra.mxu0 0.0
  %1082 = vmatprep.subr.mxu0 0.0
  %1083 = vmatpush1.msra.mxu0 0.0
  %1084 = vmatprep.subr.mxu0 0.0
  %1085 = vmatpush1.msra.mxu0 0.0
  %1086 = vmatprep.subr.mxu0 0.0
  %1087 = vmatpush1.msra.mxu0 0.0
  %1088 = vmatprep.subr.mxu0 0.0
  %1089 = vmatpush1.msra.mxu0 0.0
  %1090 = vmatprep.subr.mxu0 0.0
  %1091 = vmatpush1.msra.mxu0 0.0
  %1092 = vmatprep.subr.mxu0 0.0
  %1093 = vmatpush1.msra.mxu0 0.0
  %1094 = vmatprep.subr.mxu0 0.0
  %1095 = vmatpush1.msra.mxu0 0.0
  %1096 = vmatprep.subr.mxu0 0.0
  %1097 = vmatpush1.msra.mxu0 0.0
  %1098 = vmatprep.subr.mxu0 0.0
  %1099 = vmatpush1.msra.mxu0 0.0
  %1100 = vmatprep.subr.mxu0 0.0
  %1101 = vmatpush1.msra.mxu0 0.0
  %1102 = vmatprep.subr.mxu0 0.0
  %1103 = vmatpush1.msra.mxu0 0.0
  %1104 = vmatprep.subr.mxu0 0.0
  %1105 = vmatpush1.msra.mxu0 0.0
  %1106 = vmatprep.subr.mxu0 %v986
  %1107 = vmatpush1.msra.mxu0 %v985
  %1108 = vmatprep.subr.mxu0 0.0
  %1109 = vmatpush2.msra.mxu0 0.0
  %1110 = vmatprep.subr.mxu0 0.0
  %1111 = vmatpush2.msra.mxu0 0.0
  %1112 = vmatprep.subr.mxu0 0.0
  %1113 = vmatpush2.msra.mxu0 0.0
  %1114 = vmatprep.subr.mxu0 0.0
  %1115 = vmatpush2.msra.mxu0 0.0
  %1116 = vmatprep.subr.mxu0 0.0
  %1117 = vmatpush2.msra.mxu0 0.0
  %1118 = vmatprep.subr.mxu0 0.0
  %1119 = vmatpush2.msra.mxu0 0.0
  %1120 = vmatprep.subr.mxu0 0.0
  %1121 = vmatpush2.msra.mxu0 0.0
  %1122 = vmatprep.subr.mxu0 0.0
  %1123 = vmatpush2.msra.mxu0 0.0
  %1124 = vmatprep.subr.mxu0 0.0
  %1125 = vmatpush2.msra.mxu0 0.0
  %1126 = vmatprep.subr.mxu0 0.0
  %1127 = vmatpush2.msra.mxu0 0.0
  %1128 = vmatprep.subr.mxu0 0.0
  %1129 = vmatpush2.msra.mxu0 0.0
  %1130 = vmatprep.subr.mxu0 0.0
  %1131 = vmatpush2.msra.mxu0 0.0
  %1132 = vmatprep.subr.mxu0 0.0
  %1133 = vmatpush2.msra.mxu0 0.0
  %1134 = vmatprep.subr.mxu0 0.0
  %1135 = vmatpush2.msra.mxu0 0.0
  %1136 = vmatprep.subr.mxu0 0.0
  %1137 = vmatpush2.msra.mxu0 0.0
  %1138 = vmatprep.subr.mxu0 0.0
  %1139 = vmatpush2.msra.mxu0 0.0
  %1140 = vmatprep.mubr.f32.mxu0 0.0
  %1141 = vmatmul.mubr.f32.gmra.mxu0 %v1074
  %v1142 = vpop.f32.mrf.mxu0
  %v1143 = vadd.f32 %v1069, %v1142
  %v1144 = vpop.f32.mrf.mxu0
  %v1145 = vadd.f32 %v1071, %v1144
  %1146 = vdwg.mxu0
  %1147 = vrot.lane.b32.xlu0 %v977, 15
  %v1148 = vpop.permute.xlu0 %1147
  %1149 = vrot.lane.b32.xlu0 %v978, 15
  %v1150 = vpop.permute.xlu0 %1149
  %v1151 = vsel %vm255, %v1148, %v1150
  %v1152 = vsel %vm255, %v1150, %v1148
  %v1153 = vmul.f32 %v1152, %v264
  %v1154 = vmul.f32 %v1151, %v268
  %s1155 = scalar_lea.vmem %s4, 16
  %v1156 = vld [vmem:[%s1155] sm:$0xff]
  %v1158 = vsel %vm998, %v1156, 0
  %1160 = vmatprep.subr.mxu0 0.0
  %1161 = vmatpush1.msra.mxu0 0.0
  %1162 = vmatprep.subr.mxu0 0.0
  %1163 = vmatpush1.msra.mxu0 0.0
  %1164 = vmatprep.subr.mxu0 0.0
  %1165 = vmatpush1.msra.mxu0 0.0
  %1166 = vmatprep.subr.mxu0 0.0
  %1167 = vmatpush1.msra.mxu0 0.0
  %1168 = vmatprep.subr.mxu0 0.0
  %1169 = vmatpush1.msra.mxu0 0.0
  %1170 = vmatprep.subr.mxu0 0.0
  %1171 = vmatpush1.msra.mxu0 0.0
  %1172 = vmatprep.subr.mxu0 0.0
  %1173 = vmatpush1.msra.mxu0 0.0
  %1174 = vmatprep.subr.mxu0 0.0
  %1175 = vmatpush1.msra.mxu0 0.0
  %1176 = vmatprep.subr.mxu0 0.0
  %1177 = vmatpush1.msra.mxu0 0.0
  %1178 = vmatprep.subr.mxu0 0.0
  %1179 = vmatpush1.msra.mxu0 0.0
  %1180 = vmatprep.subr.mxu0 0.0
  %1181 = vmatpush1.msra.mxu0 0.0
  %1182 = vmatprep.subr.mxu0 0.0
  %1183 = vmatpush1.msra.mxu0 0.0
  %1184 = vmatprep.subr.mxu0 0.0
  %1185 = vmatpush1.msra.mxu0 0.0
  %1186 = vmatprep.subr.mxu0 0.0
  %1187 = vmatpush1.msra.mxu0 0.0
  %1188 = vmatprep.subr.mxu0 0.0
  %1189 = vmatpush1.msra.mxu0 0.0
  %1190 = vmatprep.subr.mxu0 %v1154
  %1191 = vmatpush1.msra.mxu0 %v1153
  %1192 = vmatprep.subr.mxu0 0.0
  %1193 = vmatpush2.msra.mxu0 0.0
  %1194 = vmatprep.subr.mxu0 0.0
  %1195 = vmatpush2.msra.mxu0 0.0
  %1196 = vmatprep.subr.mxu0 0.0
  %1197 = vmatpush2.msra.mxu0 0.0
  %1198 = vmatprep.subr.mxu0 0.0
  %1199 = vmatpush2.msra.mxu0 0.0
  %1200 = vmatprep.subr.mxu0 0.0
  %1201 = vmatpush2.msra.mxu0 0.0
  %1202 = vmatprep.subr.mxu0 0.0
  %1203 = vmatpush2.msra.mxu0 0.0
  %1204 = vmatprep.subr.mxu0 0.0
  %1205 = vmatpush2.msra.mxu0 0.0
  %1206 = vmatprep.subr.mxu0 0.0
  %1207 = vmatpush2.msra.mxu0 0.0
  %1208 = vmatprep.subr.mxu0 0.0
  %1209 = vmatpush2.msra.mxu0 0.0
  %1210 = vmatprep.subr.mxu0 0.0
  %1211 = vmatpush2.msra.mxu0 0.0
  %1212 = vmatprep.subr.mxu0 0.0
  %1213 = vmatpush2.msra.mxu0 0.0
  %1214 = vmatprep.subr.mxu0 0.0
  %1215 = vmatpush2.msra.mxu0 0.0
  %1216 = vmatprep.subr.mxu0 0.0
  %1217 = vmatpush2.msra.mxu0 0.0
  %1218 = vmatprep.subr.mxu0 0.0
  %1219 = vmatpush2.msra.mxu0 0.0
  %1220 = vmatprep.subr.mxu0 0.0
  %1221 = vmatpush2.msra.mxu0 0.0
  %1222 = vmatprep.subr.mxu0 0.0
  %1223 = vmatpush2.msra.mxu0 0.0
  %1224 = vmatprep.mubr.f32.mxu0 0.0
  %1225 = vmatmul.mubr.f32.gmra.mxu0 %v1158
  %v1226 = vpop.f32.mrf.mxu0
  %v1227 = vadd.f32 0.0, %v1226
  %v1228 = vpop.f32.mrf.mxu0
  %v1229 = vadd.f32 0.0, %v1228
  %1230 = vdwg.mxu0
  %v1231 = vadd.f32 %v1143, %v1227
  %v1232 = vadd.f32 %v1145, %v1229
  %1233 = vrot.lane.b32.xlu0 %v977, 1
  %v1234 = vpop.permute.xlu0 %1233
  %1235 = vrot.lane.b32.xlu0 %v978, 1
  %v1236 = vpop.permute.xlu0 %1235
  %v1237 = vsel %vm361, %v1234, %v1236
  %v1238 = vsel %vm361, %v1236, %v1234
  %v1239 = vmul.f32 %v1238, %v370
  %v1240 = vmul.f32 %v1237, %v374
  %s1241 = scalar_lea.vmem %s4, 24
  %v1242 = vld [vmem:[%s1241] sm:$0xff]
  %v1244 = vsel %vm998, %v1242, 0
  %1246 = vmatprep.subr.mxu0 0.0
  %1247 = vmatpush1.msra.mxu0 0.0
  %1248 = vmatprep.subr.mxu0 0.0
  %1249 = vmatpush1.msra.mxu0 0.0
  %1250 = vmatprep.subr.mxu0 0.0
  %1251 = vmatpush1.msra.mxu0 0.0
  %1252 = vmatprep.subr.mxu0 0.0
  %1253 = vmatpush1.msra.mxu0 0.0
  %1254 = vmatprep.subr.mxu0 0.0
  %1255 = vmatpush1.msra.mxu0 0.0
  %1256 = vmatprep.subr.mxu0 0.0
  %1257 = vmatpush1.msra.mxu0 0.0
  %1258 = vmatprep.subr.mxu0 0.0
  %1259 = vmatpush1.msra.mxu0 0.0
  %1260 = vmatprep.subr.mxu0 0.0
  %1261 = vmatpush1.msra.mxu0 0.0
  %1262 = vmatprep.subr.mxu0 0.0
  %1263 = vmatpush1.msra.mxu0 0.0
  %1264 = vmatprep.subr.mxu0 0.0
  %1265 = vmatpush1.msra.mxu0 0.0
  %1266 = vmatprep.subr.mxu0 0.0
  %1267 = vmatpush1.msra.mxu0 0.0
  %1268 = vmatprep.subr.mxu0 0.0
  %1269 = vmatpush1.msra.mxu0 0.0
  %1270 = vmatprep.subr.mxu0 0.0
  %1271 = vmatpush1.msra.mxu0 0.0
  %1272 = vmatprep.subr.mxu0 0.0
  %1273 = vmatpush1.msra.mxu0 0.0
  %1274 = vmatprep.subr.mxu0 0.0
  %1275 = vmatpush1.msra.mxu0 0.0
  %1276 = vmatprep.subr.mxu0 %v1240
  %1277 = vmatpush1.msra.mxu0 %v1239
  %1278 = vmatprep.subr.mxu0 0.0
  %1279 = vmatpush2.msra.mxu0 0.0
  %1280 = vmatprep.subr.mxu0 0.0
  %1281 = vmatpush2.msra.mxu0 0.0
  %1282 = vmatprep.subr.mxu0 0.0
  %1283 = vmatpush2.msra.mxu0 0.0
  %1284 = vmatprep.subr.mxu0 0.0
  %1285 = vmatpush2.msra.mxu0 0.0
  %1286 = vmatprep.subr.mxu0 0.0
  %1287 = vmatpush2.msra.mxu0 0.0
  %1288 = vmatprep.subr.mxu0 0.0
  %1289 = vmatpush2.msra.mxu0 0.0
  %1290 = vmatprep.subr.mxu0 0.0
  %1291 = vmatpush2.msra.mxu0 0.0
  %1292 = vmatprep.subr.mxu0 0.0
  %1293 = vmatpush2.msra.mxu0 0.0
  %1294 = vmatprep.subr.mxu0 0.0
  %1295 = vmatpush2.msra.mxu0 0.0
  %1296 = vmatprep.subr.mxu0 0.0
  %1297 = vmatpush2.msra.mxu0 0.0
  %1298 = vmatprep.subr.mxu0 0.0
  %1299 = vmatpush2.msra.mxu0 0.0
  %1300 = vmatprep.subr.mxu0 0.0
  %1301 = vmatpush2.msra.mxu0 0.0
  %1302 = vmatprep.subr.mxu0 0.0
  %1303 = vmatpush2.msra.mxu0 0.0
  %1304 = vmatprep.subr.mxu0 0.0
  %1305 = vmatpush2.msra.mxu0 0.0
  %1306 = vmatprep.subr.mxu0 0.0
  %1307 = vmatpush2.msra.mxu0 0.0
  %1308 = vmatprep.subr.mxu0 0.0
  %1309 = vmatpush2.msra.mxu0 0.0
  %1310 = vmatprep.mubr.f32.mxu0 0.0
  %1311 = vmatmul.mubr.f32.gmra.mxu0 %v1244
  %v1312 = vpop.f32.mrf.mxu0
  %v1313 = vadd.f32 0.0, %v1312
  %v1314 = vpop.f32.mrf.mxu0
  %v1315 = vadd.f32 0.0, %v1314
  %1316 = vdwg.mxu0
  %v1317 = vadd.f32 %v1231, %v1313
  %v1318 = vadd.f32 %v1232, %v1315
  %s1319 = scalar_lea.vmem %s4, 32
  %v1320 = vld [vmem:[%s1319] sm:$0xff]
  %v1322 = vsel %vm998, %v1320, 0
  %1324 = vmatprep.subr.mxu0 0.0
  %1325 = vmatpush1.msra.mxu0 0.0
  %1326 = vmatprep.subr.mxu0 0.0
  %1327 = vmatpush1.msra.mxu0 0.0
  %1328 = vmatprep.subr.mxu0 0.0
  %1329 = vmatpush1.msra.mxu0 0.0
  %1330 = vmatprep.subr.mxu0 0.0
  %1331 = vmatpush1.msra.mxu0 0.0
  %1332 = vmatprep.subr.mxu0 0.0
  %1333 = vmatpush1.msra.mxu0 0.0
  %1334 = vmatprep.subr.mxu0 0.0
  %1335 = vmatpush1.msra.mxu0 0.0
  %1336 = vmatprep.subr.mxu0 0.0
  %1337 = vmatpush1.msra.mxu0 0.0
  %1338 = vmatprep.subr.mxu0 0.0
  %1339 = vmatpush1.msra.mxu0 0.0
  %1340 = vmatprep.subr.mxu0 0.0
  %1341 = vmatpush1.msra.mxu0 0.0
  %1342 = vmatprep.subr.mxu0 0.0
  %1343 = vmatpush1.msra.mxu0 0.0
  %1344 = vmatprep.subr.mxu0 0.0
  %1345 = vmatpush1.msra.mxu0 0.0
  %1346 = vmatprep.subr.mxu0 0.0
  %1347 = vmatpush1.msra.mxu0 0.0
  %1348 = vmatprep.subr.mxu0 0.0
  %1349 = vmatpush1.msra.mxu0 0.0
  %1350 = vmatprep.subr.mxu0 0.0
  %1351 = vmatpush1.msra.mxu0 0.0
  %1352 = vmatprep.subr.mxu0 0.0
  %1353 = vmatpush1.msra.mxu0 0.0
  %1354 = vmatprep.subr.mxu0 %v978
  %1355 = vmatpush1.msra.mxu0 %v977
  %1356 = vmatprep.subr.mxu0 0.0
  %1357 = vmatpush2.msra.mxu0 0.0
  %1358 = vmatprep.subr.mxu0 0.0
  %1359 = vmatpush2.msra.mxu0 0.0
  %1360 = vmatprep.subr.mxu0 0.0
  %1361 = vmatpush2.msra.mxu0 0.0
  %1362 = vmatprep.subr.mxu0 0.0
  %1363 = vmatpush2.msra.mxu0 0.0
  %1364 = vmatprep.subr.mxu0 0.0
  %1365 = vmatpush2.msra.mxu0 0.0
  %1366 = vmatprep.subr.mxu0 0.0
  %1367 = vmatpush2.msra.mxu0 0.0
  %1368 = vmatprep.subr.mxu0 0.0
  %1369 = vmatpush2.msra.mxu0 0.0
  %1370 = vmatprep.subr.mxu0 0.0
  %1371 = vmatpush2.msra.mxu0 0.0
  %1372 = vmatprep.subr.mxu0 0.0
  %1373 = vmatpush2.msra.mxu0 0.0
  %1374 = vmatprep.subr.mxu0 0.0
  %1375 = vmatpush2.msra.mxu0 0.0
  %1376 = vmatprep.subr.mxu0 0.0
  %1377 = vmatpush2.msra.mxu0 0.0
  %1378 = vmatprep.subr.mxu0 0.0
  %1379 = vmatpush2.msra.mxu0 0.0
  %1380 = vmatprep.subr.mxu0 0.0
  %1381 = vmatpush2.msra.mxu0 0.0
  %1382 = vmatprep.subr.mxu0 0.0
  %1383 = vmatpush2.msra.mxu0 0.0
  %1384 = vmatprep.subr.mxu0 0.0
  %1385 = vmatpush2.msra.mxu0 0.0
  %1386 = vmatprep.subr.mxu0 0.0
  %1387 = vmatpush2.msra.mxu0 0.0
  %1388 = vmatprep.mubr.f32.mxu0 0.0
  %1389 = vmatmul.mubr.f32.gmra.mxu0 %v1322
  %v1390 = vpop.f32.mrf.mxu0
  %v1391 = vadd.f32 0.0, %v1390
  %v1392 = vpop.f32.mrf.mxu0
  %v1393 = vadd.f32 0.0, %v1392
  %1394 = vdwg.mxu0
  %v1395 = vadd.f32 %v1317, %v1391
  %v1396 = vadd.f32 %v1318, %v1393
  %1397 = vrot.lane.b32.xlu0 %v977, 127
  %v1398 = vpop.permute.xlu0 %1397
  %1399 = vrot.lane.b32.xlu0 %v978, 127
  %v1400 = vpop.permute.xlu0 %1399
  %v1401 = vsel %vm549, %v1398, %v1400
  %v1402 = vsel %vm549, %v1400, %v1398
  %v1403 = vmul.f32 %v1401, %v558
  %v1404 = vmul.f32 %v1402, %v562
  %s1405 = scalar_lea.vmem %s4, 40
  %v1406 = vld [vmem:[%s1405] sm:$0xff]
  %v1408 = vsel %vm998, %v1406, 0
  %1410 = vmatprep.subr.mxu0 0.0
  %1411 = vmatpush1.msra.mxu0 0.0
  %1412 = vmatprep.subr.mxu0 0.0
  %1413 = vmatpush1.msra.mxu0 0.0
  %1414 = vmatprep.subr.mxu0 0.0
  %1415 = vmatpush1.msra.mxu0 0.0
  %1416 = vmatprep.subr.mxu0 0.0
  %1417 = vmatpush1.msra.mxu0 0.0
  %1418 = vmatprep.subr.mxu0 0.0
  %1419 = vmatpush1.msra.mxu0 0.0
  %1420 = vmatprep.subr.mxu0 0.0
  %1421 = vmatpush1.msra.mxu0 0.0
  %1422 = vmatprep.subr.mxu0 0.0
  %1423 = vmatpush1.msra.mxu0 0.0
  %1424 = vmatprep.subr.mxu0 0.0
  %1425 = vmatpush1.msra.mxu0 0.0
  %1426 = vmatprep.subr.mxu0 0.0
  %1427 = vmatpush1.msra.mxu0 0.0
  %1428 = vmatprep.subr.mxu0 0.0
  %1429 = vmatpush1.msra.mxu0 0.0
  %1430 = vmatprep.subr.mxu0 0.0
  %1431 = vmatpush1.msra.mxu0 0.0
  %1432 = vmatprep.subr.mxu0 0.0
  %1433 = vmatpush1.msra.mxu0 0.0
  %1434 = vmatprep.subr.mxu0 0.0
  %1435 = vmatpush1.msra.mxu0 0.0
  %1436 = vmatprep.subr.mxu0 0.0
  %1437 = vmatpush1.msra.mxu0 0.0
  %1438 = vmatprep.subr.mxu0 0.0
  %1439 = vmatpush1.msra.mxu0 0.0
  %1440 = vmatprep.subr.mxu0 %v1404
  %1441 = vmatpush1.msra.mxu0 %v1403
  %1442 = vmatprep.subr.mxu0 0.0
  %1443 = vmatpush2.msra.mxu0 0.0
  %1444 = vmatprep.subr.mxu0 0.0
  %1445 = vmatpush2.msra.mxu0 0.0
  %1446 = vmatprep.subr.mxu0 0.0
  %1447 = vmatpush2.msra.mxu0 0.0
  %1448 = vmatprep.subr.mxu0 0.0
  %1449 = vmatpush2.msra.mxu0 0.0
  %1450 = vmatprep.subr.mxu0 0.0
  %1451 = vmatpush2.msra.mxu0 0.0
  %1452 = vmatprep.subr.mxu0 0.0
  %1453 = vmatpush2.msra.mxu0 0.0
  %1454 = vmatprep.subr.mxu0 0.0
  %1455 = vmatpush2.msra.mxu0 0.0
  %1456 = vmatprep.subr.mxu0 0.0
  %1457 = vmatpush2.msra.mxu0 0.0
  %1458 = vmatprep.subr.mxu0 0.0
  %1459 = vmatpush2.msra.mxu0 0.0
  %1460 = vmatprep.subr.mxu0 0.0
  %1461 = vmatpush2.msra.mxu0 0.0
  %1462 = vmatprep.subr.mxu0 0.0
  %1463 = vmatpush2.msra.mxu0 0.0
  %1464 = vmatprep.subr.mxu0 0.0
  %1465 = vmatpush2.msra.mxu0 0.0
  %1466 = vmatprep.subr.mxu0 0.0
  %1467 = vmatpush2.msra.mxu0 0.0
  %1468 = vmatprep.subr.mxu0 0.0
  %1469 = vmatpush2.msra.mxu0 0.0
  %1470 = vmatprep.subr.mxu0 0.0
  %1471 = vmatpush2.msra.mxu0 0.0
  %1472 = vmatprep.subr.mxu0 0.0
  %1473 = vmatpush2.msra.mxu0 0.0
  %1474 = vmatprep.mubr.f32.mxu0 0.0
  %1475 = vmatmul.mubr.f32.gmra.mxu0 %v1408
  %v1476 = vpop.f32.mrf.mxu0
  %v1477 = vadd.f32 0.0, %v1476
  %v1478 = vpop.f32.mrf.mxu0
  %v1479 = vadd.f32 0.0, %v1478
  %1480 = vdwg.mxu0
  %v1481 = vadd.f32 %v1395, %v1477
  %v1482 = vadd.f32 %v1396, %v1479
  %1483 = vrot.lane.b32.xlu0 %v977, 113
  %v1484 = vpop.permute.xlu0 %1483
  %1485 = vrot.lane.b32.xlu0 %v978, 113
  %v1486 = vpop.permute.xlu0 %1485
  %v1487 = vsel %vm655, %v1484, %v1486
  %v1488 = vsel %vm655, %v1486, %v1484
  %v1489 = vmul.f32 %v1487, %v664
  %v1490 = vmul.f32 %v1488, %v668
  %s1491 = scalar_lea.vmem %s4, 48
  %v1492 = vld [vmem:[%s1491] sm:$0xff]
  %v1494 = vsel %vm998, %v1492, 0
  %1496 = vmatprep.subr.mxu0 0.0
  %1497 = vmatpush1.msra.mxu0 0.0
  %1498 = vmatprep.subr.mxu0 0.0
  %1499 = vmatpush1.msra.mxu0 0.0
  %1500 = vmatprep.subr.mxu0 0.0
  %1501 = vmatpush1.msra.mxu0 0.0
  %1502 = vmatprep.subr.mxu0 0.0
  %1503 = vmatpush1.msra.mxu0 0.0
  %1504 = vmatprep.subr.mxu0 0.0
  %1505 = vmatpush1.msra.mxu0 0.0
  %1506 = vmatprep.subr.mxu0 0.0
  %1507 = vmatpush1.msra.mxu0 0.0
  %1508 = vmatprep.subr.mxu0 0.0
  %1509 = vmatpush1.msra.mxu0 0.0
  %1510 = vmatprep.subr.mxu0 0.0
  %1511 = vmatpush1.msra.mxu0 0.0
  %1512 = vmatprep.subr.mxu0 0.0
  %1513 = vmatpush1.msra.mxu0 0.0
  %1514 = vmatprep.subr.mxu0 0.0
  %1515 = vmatpush1.msra.mxu0 0.0
  %1516 = vmatprep.subr.mxu0 0.0
  %1517 = vmatpush1.msra.mxu0 0.0
  %1518 = vmatprep.subr.mxu0 0.0
  %1519 = vmatpush1.msra.mxu0 0.0
  %1520 = vmatprep.subr.mxu0 0.0
  %1521 = vmatpush1.msra.mxu0 0.0
  %1522 = vmatprep.subr.mxu0 0.0
  %1523 = vmatpush1.msra.mxu0 0.0
  %1524 = vmatprep.subr.mxu0 0.0
  %1525 = vmatpush1.msra.mxu0 0.0
  %1526 = vmatprep.subr.mxu0 %v1490
  %1527 = vmatpush1.msra.mxu0 %v1489
  %1528 = vmatprep.subr.mxu0 0.0
  %1529 = vmatpush2.msra.mxu0 0.0
  %1530 = vmatprep.subr.mxu0 0.0
  %1531 = vmatpush2.msra.mxu0 0.0
  %1532 = vmatprep.subr.mxu0 0.0
  %1533 = vmatpush2.msra.mxu0 0.0
  %1534 = vmatprep.subr.mxu0 0.0
  %1535 = vmatpush2.msra.mxu0 0.0
  %1536 = vmatprep.subr.mxu0 0.0
  %1537 = vmatpush2.msra.mxu0 0.0
  %1538 = vmatprep.subr.mxu0 0.0
  %1539 = vmatpush2.msra.mxu0 0.0
  %1540 = vmatprep.subr.mxu0 0.0
  %1541 = vmatpush2.msra.mxu0 0.0
  %1542 = vmatprep.subr.mxu0 0.0
  %1543 = vmatpush2.msra.mxu0 0.0
  %1544 = vmatprep.subr.mxu0 0.0
  %1545 = vmatpush2.msra.mxu0 0.0
  %1546 = vmatprep.subr.mxu0 0.0
  %1547 = vmatpush2.msra.mxu0 0.0
  %1548 = vmatprep.subr.mxu0 0.0
  %1549 = vmatpush2.msra.mxu0 0.0
  %1550 = vmatprep.subr.mxu0 0.0
  %1551 = vmatpush2.msra.mxu0 0.0
  %1552 = vmatprep.subr.mxu0 0.0
  %1553 = vmatpush2.msra.mxu0 0.0
  %1554 = vmatprep.subr.mxu0 0.0
  %1555 = vmatpush2.msra.mxu0 0.0
  %1556 = vmatprep.subr.mxu0 0.0
  %1557 = vmatpush2.msra.mxu0 0.0
  %1558 = vmatprep.subr.mxu0 0.0
  %1559 = vmatpush2.msra.mxu0 0.0
  %1560 = vmatprep.mubr.f32.mxu0 0.0
  %1561 = vmatmul.mubr.f32.gmra.mxu0 %v1494
  %v1562 = vpop.f32.mrf.mxu0
  %v1563 = vadd.f32 0.0, %v1562
  %v1564 = vpop.f32.mrf.mxu0
  %v1565 = vadd.f32 0.0, %v1564
  %1566 = vdwg.mxu0
  %v1567 = vadd.f32 %v1481, %v1563
  %v1568 = vadd.f32 %v1482, %v1565
  %1569 = vrot.lane.b32.xlu0 %v977, 112
  %v1570 = vpop.permute.xlu0 %1569
  %1571 = vrot.lane.b32.xlu0 %v978, 112
  %v1572 = vpop.permute.xlu0 %1571
  %v1573 = vsel %vm761, %v1570, %v1572
  %v1574 = vsel %vm761, %v1572, %v1570
  %v1575 = vmul.f32 %v1573, %v770
  %v1576 = vmul.f32 %v1574, %v774
  %s1577 = scalar_lea.vmem %s4, 56
  %v1578 = vld [vmem:[%s1577] sm:$0xff]
  %v1580 = vsel %vm998, %v1578, 0
  %1582 = vmatprep.subr.mxu0 0.0
  %1583 = vmatpush1.msra.mxu0 0.0
  %1584 = vmatprep.subr.mxu0 0.0
  %1585 = vmatpush1.msra.mxu0 0.0
  %1586 = vmatprep.subr.mxu0 0.0
  %1587 = vmatpush1.msra.mxu0 0.0
  %1588 = vmatprep.subr.mxu0 0.0
  %1589 = vmatpush1.msra.mxu0 0.0
  %1590 = vmatprep.subr.mxu0 0.0
  %1591 = vmatpush1.msra.mxu0 0.0
  %1592 = vmatprep.subr.mxu0 0.0
  %1593 = vmatpush1.msra.mxu0 0.0
  %1594 = vmatprep.subr.mxu0 0.0
  %1595 = vmatpush1.msra.mxu0 0.0
  %1596 = vmatprep.subr.mxu0 0.0
  %1597 = vmatpush1.msra.mxu0 0.0
  %1598 = vmatprep.subr.mxu0 0.0
  %1599 = vmatpush1.msra.mxu0 0.0
  %1600 = vmatprep.subr.mxu0 0.0
  %1601 = vmatpush1.msra.mxu0 0.0
  %1602 = vmatprep.subr.mxu0 0.0
  %1603 = vmatpush1.msra.mxu0 0.0
  %1604 = vmatprep.subr.mxu0 0.0
  %1605 = vmatpush1.msra.mxu0 0.0
  %1606 = vmatprep.subr.mxu0 0.0
  %1607 = vmatpush1.msra.mxu0 0.0
  %1608 = vmatprep.subr.mxu0 0.0
  %1609 = vmatpush1.msra.mxu0 0.0
  %1610 = vmatprep.subr.mxu0 0.0
  %1611 = vmatpush1.msra.mxu0 0.0
  %1612 = vmatprep.subr.mxu0 %v1576
  %1613 = vmatpush1.msra.mxu0 %v1575
  %1614 = vmatprep.subr.mxu0 0.0
  %1615 = vmatpush2.msra.mxu0 0.0
  %1616 = vmatprep.subr.mxu0 0.0
  %1617 = vmatpush2.msra.mxu0 0.0
  %1618 = vmatprep.subr.mxu0 0.0
  %1619 = vmatpush2.msra.mxu0 0.0
  %1620 = vmatprep.subr.mxu0 0.0
  %1621 = vmatpush2.msra.mxu0 0.0
  %1622 = vmatprep.subr.mxu0 0.0
  %1623 = vmatpush2.msra.mxu0 0.0
  %1624 = vmatprep.subr.mxu0 0.0
  %1625 = vmatpush2.msra.mxu0 0.0
  %1626 = vmatprep.subr.mxu0 0.0
  %1627 = vmatpush2.msra.mxu0 0.0
  %1628 = vmatprep.subr.mxu0 0.0
  %1629 = vmatpush2.msra.mxu0 0.0
  %1630 = vmatprep.subr.mxu0 0.0
  %1631 = vmatpush2.msra.mxu0 0.0
  %1632 = vmatprep.subr.mxu0 0.0
  %1633 = vmatpush2.msra.mxu0 0.0
  %1634 = vmatprep.subr.mxu0 0.0
  %1635 = vmatpush2.msra.mxu0 0.0
  %1636 = vmatprep.subr.mxu0 0.0
  %1637 = vmatpush2.msra.mxu0 0.0
  %1638 = vmatprep.subr.mxu0 0.0
  %1639 = vmatpush2.msra.mxu0 0.0
  %1640 = vmatprep.subr.mxu0 0.0
  %1641 = vmatpush2.msra.mxu0 0.0
  %1642 = vmatprep.subr.mxu0 0.0
  %1643 = vmatpush2.msra.mxu0 0.0
  %1644 = vmatprep.subr.mxu0 0.0
  %1645 = vmatpush2.msra.mxu0 0.0
  %1646 = vmatprep.mubr.f32.mxu0 0.0
  %1647 = vmatmul.mubr.f32.gmra.mxu0 %v1580
  %v1648 = vpop.f32.mrf.mxu0
  %v1649 = vadd.f32 0.0, %v1648
  %v1650 = vpop.f32.mrf.mxu0
  %v1651 = vadd.f32 0.0, %v1650
  %1652 = vdwg.mxu0
  %v1653 = vadd.f32 %v1567, %v1649
  %v1654 = vadd.f32 %v1568, %v1651
  %1655 = vrot.lane.b32.xlu0 %v977, 111
  %v1656 = vpop.permute.xlu0 %1655
  %1657 = vrot.lane.b32.xlu0 %v978, 111
  %v1658 = vpop.permute.xlu0 %1657
  %v1659 = vsel %vm867, %v1656, %v1658
  %v1660 = vsel %vm867, %v1658, %v1656
  %v1661 = vmul.f32 %v1659, %v876
  %v1662 = vmul.f32 %v1660, %v880
  %s1663 = scalar_lea.vmem %s4, 64
  %v1664 = vld [vmem:[%s1663] sm:$0xff]
  %v1666 = vsel %vm998, %v1664, 0
  %1668 = vmatprep.subr.mxu0 0.0
  %1669 = vmatpush1.msra.mxu0 0.0
  %1670 = vmatprep.subr.mxu0 0.0
  %1671 = vmatpush1.msra.mxu0 0.0
  %1672 = vmatprep.subr.mxu0 0.0
  %1673 = vmatpush1.msra.mxu0 0.0
  %1674 = vmatprep.subr.mxu0 0.0
  %1675 = vmatpush1.msra.mxu0 0.0
  %1676 = vmatprep.subr.mxu0 0.0
  %1677 = vmatpush1.msra.mxu0 0.0
  %1678 = vmatprep.subr.mxu0 0.0
  %1679 = vmatpush1.msra.mxu0 0.0
  %1680 = vmatprep.subr.mxu0 0.0
  %1681 = vmatpush1.msra.mxu0 0.0
  %1682 = vmatprep.subr.mxu0 0.0
  %1683 = vmatpush1.msra.mxu0 0.0
  %1684 = vmatprep.subr.mxu0 0.0
  %1685 = vmatpush1.msra.mxu0 0.0
  %1686 = vmatprep.subr.mxu0 0.0
  %1687 = vmatpush1.msra.mxu0 0.0
  %1688 = vmatprep.subr.mxu0 0.0
  %1689 = vmatpush1.msra.mxu0 0.0
  %1690 = vmatprep.subr.mxu0 0.0
  %1691 = vmatpush1.msra.mxu0 0.0
  %1692 = vmatprep.subr.mxu0 0.0
  %1693 = vmatpush1.msra.mxu0 0.0
  %1694 = vmatprep.subr.mxu0 0.0
  %1695 = vmatpush1.msra.mxu0 0.0
  %1696 = vmatprep.subr.mxu0 0.0
  %1697 = vmatpush1.msra.mxu0 0.0
  %1698 = vmatprep.subr.mxu0 %v1662
  %1699 = vmatpush1.msra.mxu0 %v1661
  %1700 = vmatprep.subr.mxu0 0.0
  %1701 = vmatpush2.msra.mxu0 0.0
  %1702 = vmatprep.subr.mxu0 0.0
  %1703 = vmatpush2.msra.mxu0 0.0
  %1704 = vmatprep.subr.mxu0 0.0
  %1705 = vmatpush2.msra.mxu0 0.0
  %1706 = vmatprep.subr.mxu0 0.0
  %1707 = vmatpush2.msra.mxu0 0.0
  %1708 = vmatprep.subr.mxu0 0.0
  %1709 = vmatpush2.msra.mxu0 0.0
  %1710 = vmatprep.subr.mxu0 0.0
  %1711 = vmatpush2.msra.mxu0 0.0
  %1712 = vmatprep.subr.mxu0 0.0
  %1713 = vmatpush2.msra.mxu0 0.0
  %1714 = vmatprep.subr.mxu0 0.0
  %1715 = vmatpush2.msra.mxu0 0.0
  %1716 = vmatprep.subr.mxu0 0.0
  %1717 = vmatpush2.msra.mxu0 0.0
  %1718 = vmatprep.subr.mxu0 0.0
  %1719 = vmatpush2.msra.mxu0 0.0
  %1720 = vmatprep.subr.mxu0 0.0
  %1721 = vmatpush2.msra.mxu0 0.0
  %1722 = vmatprep.subr.mxu0 0.0
  %1723 = vmatpush2.msra.mxu0 0.0
  %1724 = vmatprep.subr.mxu0 0.0
  %1725 = vmatpush2.msra.mxu0 0.0
  %1726 = vmatprep.subr.mxu0 0.0
  %1727 = vmatpush2.msra.mxu0 0.0
  %1728 = vmatprep.subr.mxu0 0.0
  %1729 = vmatpush2.msra.mxu0 0.0
  %1730 = vmatprep.subr.mxu0 0.0
  %1731 = vmatpush2.msra.mxu0 0.0
  %1732 = vmatprep.mubr.f32.mxu0 0.0
  %1733 = vmatmul.mubr.f32.gmra.mxu0 %v1666
  %v1734 = vpop.f32.mrf.mxu0
  %v1735 = vadd.f32 0.0, %v1734
  %v1736 = vpop.f32.mrf.mxu0
  %v1737 = vadd.f32 0.0, %v1736
  %1738 = vdwg.mxu0
  %v1739 = vadd.f32 %v1653, %v1735
  %v1740 = vadd.f32 %v1654, %v1737
  %v1741 = vld [vmem:[%s5] sm:$0xff]
  %1743 = vset.pattern.permute.xlu0 0
  %1744 = vperm.xlu0 %1743, %v1741
  %v1745 = vpop.permute.xlu0 %1744
  %v1747 = vadd.f32 %v1739, %v1745
  %v1748 = vadd.f32 %v1740, %v1745
  %v1749 = vmax.f32 %v1747, 0.0
  %v1750 = vmax.f32 %v1748, 0.0
  %1751 = vrot.lane.b32.xlu0 %v1749, 17
  %v1752 = vpop.permute.xlu0 %1751
  %1753 = vrot.lane.b32.xlu0 %v1750, 17
  %v1754 = vpop.permute.xlu0 %1753
  %v1755 = vsel %vm47, %v1752, %v1754
  %v1756 = vsel %vm47, %v1754, %v1752
  %v1757 = vmul.f32 %v1756, %v55
  %v1758 = vmul.f32 %v1755, %v59
  %v1759 = vld [vmem:[%s6] sm:$0x3]
  %1760 = vrot.lane.b32.xlu0 %v1749, 16
  %v1761 = vpop.permute.xlu0 %1760
  %1762 = vrot.lane.b32.xlu0 %v1750, 16
  %v1763 = vpop.permute.xlu0 %1762
  %v1764 = vsel %vm69, %v1761, %v1763
  %v1765 = vsel %vm69, %v1763, %v1761
  %v1766 = vmul.f32 %v1765, %v78
  %v1767 = vmul.f32 %v1764, %v82
  %s1768 = scalar_lea.vmem %s6, 2
  %v1769 = vld [vmem:[%s1768] sm:$0x3]
  %v1771 = vsel %vm998, %v1769, 0
  %1773 = vmatprep.subr.mxu0 0.0
  %1774 = vmatpush1.msra.mxu0 0.0
  %1775 = vmatprep.subr.mxu0 0.0
  %1776 = vmatpush1.msra.mxu0 0.0
  %1777 = vmatprep.subr.mxu0 0.0
  %1778 = vmatpush1.msra.mxu0 0.0
  %1779 = vmatprep.subr.mxu0 0.0
  %1780 = vmatpush1.msra.mxu0 0.0
  %1781 = vmatprep.subr.mxu0 0.0
  %1782 = vmatpush1.msra.mxu0 0.0
  %1783 = vmatprep.subr.mxu0 0.0
  %1784 = vmatpush1.msra.mxu0 0.0
  %1785 = vmatprep.subr.mxu0 0.0
  %1786 = vmatpush1.msra.mxu0 0.0
  %1787 = vmatprep.subr.mxu0 0.0
  %1788 = vmatpush1.msra.mxu0 0.0
  %1789 = vmatprep.subr.mxu0 0.0
  %1790 = vmatpush1.msra.mxu0 0.0
  %1791 = vmatprep.subr.mxu0 0.0
  %1792 = vmatpush1.msra.mxu0 0.0
  %1793 = vmatprep.subr.mxu0 0.0
  %1794 = vmatpush1.msra.mxu0 0.0
  %1795 = vmatprep.subr.mxu0 0.0
  %1796 = vmatpush1.msra.mxu0 0.0
  %1797 = vmatprep.subr.mxu0 0.0
  %1798 = vmatpush1.msra.mxu0 0.0
  %1799 = vmatprep.subr.mxu0 0.0
  %1800 = vmatpush1.msra.mxu0 0.0
  %1801 = vmatprep.subr.mxu0 0.0
  %1802 = vmatpush1.msra.mxu0 0.0
  %1803 = vmatprep.subr.mxu0 %v1767
  %1804 = vmatpush1.msra.mxu0 %v1766
  %1805 = vmatprep.subr.mxu0 0.0
  %1806 = vmatpush2.msra.mxu0 0.0
  %1807 = vmatprep.subr.mxu0 0.0
  %1808 = vmatpush2.msra.mxu0 0.0
  %1809 = vmatprep.subr.mxu0 0.0
  %1810 = vmatpush2.msra.mxu0 0.0
  %1811 = vmatprep.subr.mxu0 0.0
  %1812 = vmatpush2.msra.mxu0 0.0
  %1813 = vmatprep.subr.mxu0 0.0
  %1814 = vmatpush2.msra.mxu0 0.0
  %1815 = vmatprep.subr.mxu0 0.0
  %1816 = vmatpush2.msra.mxu0 0.0
  %1817 = vmatprep.subr.mxu0 0.0
  %1818 = vmatpush2.msra.mxu0 0.0
  %1819 = vmatprep.subr.mxu0 0.0
  %1820 = vmatpush2.msra.mxu0 0.0
  %1821 = vmatprep.subr.mxu0 0.0
  %1822 = vmatpush2.msra.mxu0 0.0
  %1823 = vmatprep.subr.mxu0 0.0
  %1824 = vmatpush2.msra.mxu0 0.0
  %1825 = vmatprep.subr.mxu0 0.0
  %1826 = vmatpush2.msra.mxu0 0.0
  %1827 = vmatprep.subr.mxu0 0.0
  %1828 = vmatpush2.msra.mxu0 0.0
  %1829 = vmatprep.subr.mxu0 0.0
  %1830 = vmatpush2.msra.mxu0 0.0
  %1831 = vmatprep.subr.mxu0 0.0
  %1832 = vmatpush2.msra.mxu0 0.0
  %1833 = vmatprep.subr.mxu0 0.0
  %1834 = vmatpush2.msra.mxu0 0.0
  %1835 = vmatprep.subr.mxu0 0.0
  %1836 = vmatpush2.msra.mxu0 0.0
  %1837 = vmatprep.mubr.f32.mxu0 0.0
  %1838 = vmatmul.mubr.f32.gmra.mxu0 %v1771
  %v1839 = vpop.f32.mrf.mxu0
  %v1840 = vadd.f32 0.0, %v1839
  %v1841 = vpop.f32.mrf.mxu0
  %v1842 = vadd.f32 0.0, %v1841
  %1843 = vdwg.mxu0
  %v1845 = vsel %vm998, %v1759, 0
  %1847 = vmatprep.subr.mxu0 0.0
  %1848 = vmatpush1.msra.mxu0 0.0
  %1849 = vmatprep.subr.mxu0 0.0
  %1850 = vmatpush1.msra.mxu0 0.0
  %1851 = vmatprep.subr.mxu0 0.0
  %1852 = vmatpush1.msra.mxu0 0.0
  %1853 = vmatprep.subr.mxu0 0.0
  %1854 = vmatpush1.msra.mxu0 0.0
  %1855 = vmatprep.subr.mxu0 0.0
  %1856 = vmatpush1.msra.mxu0 0.0
  %1857 = vmatprep.subr.mxu0 0.0
  %1858 = vmatpush1.msra.mxu0 0.0
  %1859 = vmatprep.subr.mxu0 0.0
  %1860 = vmatpush1.msra.mxu0 0.0
  %1861 = vmatprep.subr.mxu0 0.0
  %1862 = vmatpush1.msra.mxu0 0.0
  %1863 = vmatprep.subr.mxu0 0.0
  %1864 = vmatpush1.msra.mxu0 0.0
  %1865 = vmatprep.subr.mxu0 0.0
  %1866 = vmatpush1.msra.mxu0 0.0
  %1867 = vmatprep.subr.mxu0 0.0
  %1868 = vmatpush1.msra.mxu0 0.0
  %1869 = vmatprep.subr.mxu0 0.0
  %1870 = vmatpush1.msra.mxu0 0.0
  %1871 = vmatprep.subr.mxu0 0.0
  %1872 = vmatpush1.msra.mxu0 0.0
  %1873 = vmatprep.subr.mxu0 0.0
  %1874 = vmatpush1.msra.mxu0 0.0
  %1875 = vmatprep.subr.mxu0 0.0
  %1876 = vmatpush1.msra.mxu0 0.0
  %1877 = vmatprep.subr.mxu0 %v1758
  %1878 = vmatpush1.msra.mxu0 %v1757
  %1879 = vmatprep.subr.mxu0 0.0
  %1880 = vmatpush2.msra.mxu0 0.0
  %1881 = vmatprep.subr.mxu0 0.0
  %1882 = vmatpush2.msra.mxu0 0.0
  %1883 = vmatprep.subr.mxu0 0.0
  %1884 = vmatpush2.msra.mxu0 0.0
  %1885 = vmatprep.subr.mxu0 0.0
  %1886 = vmatpush2.msra.mxu0 0.0
  %1887 = vmatprep.subr.mxu0 0.0
  %1888 = vmatpush2.msra.mxu0 0.0
  %1889 = vmatprep.subr.mxu0 0.0
  %1890 = vmatpush2.msra.mxu0 0.0
  %1891 = vmatprep.subr.mxu0 0.0
  %1892 = vmatpush2.msra.mxu0 0.0
  %1893 = vmatprep.subr.mxu0 0.0
  %1894 = vmatpush2.msra.mxu0 0.0
  %1895 = vmatprep.subr.mxu0 0.0
  %1896 = vmatpush2.msra.mxu0 0.0
  %1897 = vmatprep.subr.mxu0 0.0
  %1898 = vmatpush2.msra.mxu0 0.0
  %1899 = vmatprep.subr.mxu0 0.0
  %1900 = vmatpush2.msra.mxu0 0.0
  %1901 = vmatprep.subr.mxu0 0.0
  %1902 = vmatpush2.msra.mxu0 0.0
  %1903 = vmatprep.subr.mxu0 0.0
  %1904 = vmatpush2.msra.mxu0 0.0
  %1905 = vmatprep.subr.mxu0 0.0
  %1906 = vmatpush2.msra.mxu0 0.0
  %1907 = vmatprep.subr.mxu0 0.0
  %1908 = vmatpush2.msra.mxu0 0.0
  %1909 = vmatprep.subr.mxu0 0.0
  %1910 = vmatpush2.msra.mxu0 0.0
  %1911 = vmatprep.mubr.f32.mxu0 0.0
  %1912 = vmatmul.mubr.f32.gmra.mxu0 %v1845
  %v1913 = vpop.f32.mrf.mxu0
  %v1914 = vadd.f32 %v1840, %v1913
  %v1915 = vpop.f32.mrf.mxu0
  %v1916 = vadd.f32 %v1842, %v1915
  %1917 = vdwg.mxu0
  %1918 = vrot.lane.b32.xlu0 %v1749, 15
  %v1919 = vpop.permute.xlu0 %1918
  %1920 = vrot.lane.b32.xlu0 %v1750, 15
  %v1921 = vpop.permute.xlu0 %1920
  %v1922 = vsel %vm255, %v1919, %v1921
  %v1923 = vsel %vm255, %v1921, %v1919
  %v1924 = vmul.f32 %v1923, %v264
  %v1925 = vmul.f32 %v1922, %v268
  %s1926 = scalar_lea.vmem %s6, 4
  %v1927 = vld [vmem:[%s1926] sm:$0x3]
  %v1929 = vsel %vm998, %v1927, 0
  %1931 = vmatprep.subr.mxu0 0.0
  %1932 = vmatpush1.msra.mxu0 0.0
  %1933 = vmatprep.subr.mxu0 0.0
  %1934 = vmatpush1.msra.mxu0 0.0
  %1935 = vmatprep.subr.mxu0 0.0
  %1936 = vmatpush1.msra.mxu0 0.0
  %1937 = vmatprep.subr.mxu0 0.0
  %1938 = vmatpush1.msra.mxu0 0.0
  %1939 = vmatprep.subr.mxu0 0.0
  %1940 = vmatpush1.msra.mxu0 0.0
  %1941 = vmatprep.subr.mxu0 0.0
  %1942 = vmatpush1.msra.mxu0 0.0
  %1943 = vmatprep.subr.mxu0 0.0
  %1944 = vmatpush1.msra.mxu0 0.0
  %1945 = vmatprep.subr.mxu0 0.0
  %1946 = vmatpush1.msra.mxu0 0.0
  %1947 = vmatprep.subr.mxu0 0.0
  %1948 = vmatpush1.msra.mxu0 0.0
  %1949 = vmatprep.subr.mxu0 0.0
  %1950 = vmatpush1.msra.mxu0 0.0
  %1951 = vmatprep.subr.mxu0 0.0
  %1952 = vmatpush1.msra.mxu0 0.0
  %1953 = vmatprep.subr.mxu0 0.0
  %1954 = vmatpush1.msra.mxu0 0.0
  %1955 = vmatprep.subr.mxu0 0.0
  %1956 = vmatpush1.msra.mxu0 0.0
  %1957 = vmatprep.subr.mxu0 0.0
  %1958 = vmatpush1.msra.mxu0 0.0
  %1959 = vmatprep.subr.mxu0 0.0
  %1960 = vmatpush1.msra.mxu0 0.0
  %1961 = vmatprep.subr.mxu0 %v1925
  %1962 = vmatpush1.msra.mxu0 %v1924
  %1963 = vmatprep.subr.mxu0 0.0
  %1964 = vmatpush2.msra.mxu0 0.0
  %1965 = vmatprep.subr.mxu0 0.0
  %1966 = vmatpush2.msra.mxu0 0.0
  %1967 = vmatprep.subr.mxu0 0.0
  %1968 = vmatpush2.msra.mxu0 0.0
  %1969 = vmatprep.subr.mxu0 0.0
  %1970 = vmatpush2.msra.mxu0 0.0
  %1971 = vmatprep.subr.mxu0 0.0
  %1972 = vmatpush2.msra.mxu0 0.0
  %1973 = vmatprep.subr.mxu0 0.0
  %1974 = vmatpush2.msra.mxu0 0.0
  %1975 = vmatprep.subr.mxu0 0.0
  %1976 = vmatpush2.msra.mxu0 0.0
  %1977 = vmatprep.subr.mxu0 0.0
  %1978 = vmatpush2.msra.mxu0 0.0
  %1979 = vmatprep.subr.mxu0 0.0
  %1980 = vmatpush2.msra.mxu0 0.0
  %1981 = vmatprep.subr.mxu0 0.0
  %1982 = vmatpush2.msra.mxu0 0.0
  %1983 = vmatprep.subr.mxu0 0.0
  %1984 = vmatpush2.msra.mxu0 0.0
  %1985 = vmatprep.subr.mxu0 0.0
  %1986 = vmatpush2.msra.mxu0 0.0
  %1987 = vmatprep.subr.mxu0 0.0
  %1988 = vmatpush2.msra.mxu0 0.0
  %1989 = vmatprep.subr.mxu0 0.0
  %1990 = vmatpush2.msra.mxu0 0.0
  %1991 = vmatprep.subr.mxu0 0.0
  %1992 = vmatpush2.msra.mxu0 0.0
  %1993 = vmatprep.subr.mxu0 0.0
  %1994 = vmatpush2.msra.mxu0 0.0
  %1995 = vmatprep.mubr.f32.mxu0 0.0
  %1996 = vmatmul.mubr.f32.gmra.mxu0 %v1929
  %v1997 = vpop.f32.mrf.mxu0
  %v1998 = vadd.f32 0.0, %v1997
  %v1999 = vpop.f32.mrf.mxu0
  %v2000 = vadd.f32 0.0, %v1999
  %2001 = vdwg.mxu0
  %v2002 = vadd.f32 %v1914, %v1998
  %v2003 = vadd.f32 %v1916, %v2000
  %2004 = vrot.lane.b32.xlu0 %v1749, 1
  %v2005 = vpop.permute.xlu0 %2004
  %2006 = vrot.lane.b32.xlu0 %v1750, 1
  %v2007 = vpop.permute.xlu0 %2006
  %v2008 = vsel %vm361, %v2005, %v2007
  %v2009 = vsel %vm361, %v2007, %v2005
  %v2010 = vmul.f32 %v2009, %v370
  %v2011 = vmul.f32 %v2008, %v374
  %s2012 = scalar_lea.vmem %s6, 6
  %v2013 = vld [vmem:[%s2012] sm:$0x3]
  %v2015 = vsel %vm998, %v2013, 0
  %2017 = vmatprep.subr.mxu0 0.0
  %2018 = vmatpush1.msra.mxu0 0.0
  %2019 = vmatprep.subr.mxu0 0.0
  %2020 = vmatpush1.msra.mxu0 0.0
  %2021 = vmatprep.subr.mxu0 0.0
  %2022 = vmatpush1.msra.mxu0 0.0
  %2023 = vmatprep.subr.mxu0 0.0
  %2024 = vmatpush1.msra.mxu0 0.0
  %2025 = vmatprep.subr.mxu0 0.0
  %2026 = vmatpush1.msra.mxu0 0.0
  %2027 = vmatprep.subr.mxu0 0.0
  %2028 = vmatpush1.msra.mxu0 0.0
  %2029 = vmatprep.subr.mxu0 0.0
  %2030 = vmatpush1.msra.mxu0 0.0
  %2031 = vmatprep.subr.mxu0 0.0
  %2032 = vmatpush1.msra.mxu0 0.0
  %2033 = vmatprep.subr.mxu0 0.0
  %2034 = vmatpush1.msra.mxu0 0.0
  %2035 = vmatprep.subr.mxu0 0.0
  %2036 = vmatpush1.msra.mxu0 0.0
  %2037 = vmatprep.subr.mxu0 0.0
  %2038 = vmatpush1.msra.mxu0 0.0
  %2039 = vmatprep.subr.mxu0 0.0
  %2040 = vmatpush1.msra.mxu0 0.0
  %2041 = vmatprep.subr.mxu0 0.0
  %2042 = vmatpush1.msra.mxu0 0.0
  %2043 = vmatprep.subr.mxu0 0.0
  %2044 = vmatpush1.msra.mxu0 0.0
  %2045 = vmatprep.subr.mxu0 0.0
  %2046 = vmatpush1.msra.mxu0 0.0
  %2047 = vmatprep.subr.mxu0 %v2011
  %2048 = vmatpush1.msra.mxu0 %v2010
  %2049 = vmatprep.subr.mxu0 0.0
  %2050 = vmatpush2.msra.mxu0 0.0
  %2051 = vmatprep.subr.mxu0 0.0
  %2052 = vmatpush2.msra.mxu0 0.0
  %2053 = vmatprep.subr.mxu0 0.0
  %2054 = vmatpush2.msra.mxu0 0.0
  %2055 = vmatprep.subr.mxu0 0.0
  %2056 = vmatpush2.msra.mxu0 0.0
  %2057 = vmatprep.subr.mxu0 0.0
  %2058 = vmatpush2.msra.mxu0 0.0
  %2059 = vmatprep.subr.mxu0 0.0
  %2060 = vmatpush2.msra.mxu0 0.0
  %2061 = vmatprep.subr.mxu0 0.0
  %2062 = vmatpush2.msra.mxu0 0.0
  %2063 = vmatprep.subr.mxu0 0.0
  %2064 = vmatpush2.msra.mxu0 0.0
  %2065 = vmatprep.subr.mxu0 0.0
  %2066 = vmatpush2.msra.mxu0 0.0
  %2067 = vmatprep.subr.mxu0 0.0
  %2068 = vmatpush2.msra.mxu0 0.0
  %2069 = vmatprep.subr.mxu0 0.0
  %2070 = vmatpush2.msra.mxu0 0.0
  %2071 = vmatprep.subr.mxu0 0.0
  %2072 = vmatpush2.msra.mxu0 0.0
  %2073 = vmatprep.subr.mxu0 0.0
  %2074 = vmatpush2.msra.mxu0 0.0
  %2075 = vmatprep.subr.mxu0 0.0
  %2076 = vmatpush2.msra.mxu0 0.0
  %2077 = vmatprep.subr.mxu0 0.0
  %2078 = vmatpush2.msra.mxu0 0.0
  %2079 = vmatprep.subr.mxu0 0.0
  %2080 = vmatpush2.msra.mxu0 0.0
  %2081 = vmatprep.mubr.f32.mxu0 0.0
  %2082 = vmatmul.mubr.f32.gmra.mxu0 %v2015
  %v2083 = vpop.f32.mrf.mxu0
  %v2084 = vadd.f32 0.0, %v2083
  %v2085 = vpop.f32.mrf.mxu0
  %v2086 = vadd.f32 0.0, %v2085
  %2087 = vdwg.mxu0
  %v2088 = vadd.f32 %v2002, %v2084
  %v2089 = vadd.f32 %v2003, %v2086
  %s2090 = scalar_lea.vmem %s6, 8
  %v2091 = vld [vmem:[%s2090] sm:$0x3]
  %v2093 = vsel %vm998, %v2091, 0
  %2095 = vmatprep.subr.mxu0 0.0
  %2096 = vmatpush1.msra.mxu0 0.0
  %2097 = vmatprep.subr.mxu0 0.0
  %2098 = vmatpush1.msra.mxu0 0.0
  %2099 = vmatprep.subr.mxu0 0.0
  %2100 = vmatpush1.msra.mxu0 0.0
  %2101 = vmatprep.subr.mxu0 0.0
  %2102 = vmatpush1.msra.mxu0 0.0
  %2103 = vmatprep.subr.mxu0 0.0
  %2104 = vmatpush1.msra.mxu0 0.0
  %2105 = vmatprep.subr.mxu0 0.0
  %2106 = vmatpush1.msra.mxu0 0.0
  %2107 = vmatprep.subr.mxu0 0.0
  %2108 = vmatpush1.msra.mxu0 0.0
  %2109 = vmatprep.subr.mxu0 0.0
  %2110 = vmatpush1.msra.mxu0 0.0
  %2111 = vmatprep.subr.mxu0 0.0
  %2112 = vmatpush1.msra.mxu0 0.0
  %2113 = vmatprep.subr.mxu0 0.0
  %2114 = vmatpush1.msra.mxu0 0.0
  %2115 = vmatprep.subr.mxu0 0.0
  %2116 = vmatpush1.msra.mxu0 0.0
  %2117 = vmatprep.subr.mxu0 0.0
  %2118 = vmatpush1.msra.mxu0 0.0
  %2119 = vmatprep.subr.mxu0 0.0
  %2120 = vmatpush1.msra.mxu0 0.0
  %2121 = vmatprep.subr.mxu0 0.0
  %2122 = vmatpush1.msra.mxu0 0.0
  %2123 = vmatprep.subr.mxu0 0.0
  %2124 = vmatpush1.msra.mxu0 0.0
  %2125 = vmatprep.subr.mxu0 %v1750
  %2126 = vmatpush1.msra.mxu0 %v1749
  %2127 = vmatprep.subr.mxu0 0.0
  %2128 = vmatpush2.msra.mxu0 0.0
  %2129 = vmatprep.subr.mxu0 0.0
  %2130 = vmatpush2.msra.mxu0 0.0
  %2131 = vmatprep.subr.mxu0 0.0
  %2132 = vmatpush2.msra.mxu0 0.0
  %2133 = vmatprep.subr.mxu0 0.0
  %2134 = vmatpush2.msra.mxu0 0.0
  %2135 = vmatprep.subr.mxu0 0.0
  %2136 = vmatpush2.msra.mxu0 0.0
  %2137 = vmatprep.subr.mxu0 0.0
  %2138 = vmatpush2.msra.mxu0 0.0
  %2139 = vmatprep.subr.mxu0 0.0
  %2140 = vmatpush2.msra.mxu0 0.0
  %2141 = vmatprep.subr.mxu0 0.0
  %2142 = vmatpush2.msra.mxu0 0.0
  %2143 = vmatprep.subr.mxu0 0.0
  %2144 = vmatpush2.msra.mxu0 0.0
  %2145 = vmatprep.subr.mxu0 0.0
  %2146 = vmatpush2.msra.mxu0 0.0
  %2147 = vmatprep.subr.mxu0 0.0
  %2148 = vmatpush2.msra.mxu0 0.0
  %2149 = vmatprep.subr.mxu0 0.0
  %2150 = vmatpush2.msra.mxu0 0.0
  %2151 = vmatprep.subr.mxu0 0.0
  %2152 = vmatpush2.msra.mxu0 0.0
  %2153 = vmatprep.subr.mxu0 0.0
  %2154 = vmatpush2.msra.mxu0 0.0
  %2155 = vmatprep.subr.mxu0 0.0
  %2156 = vmatpush2.msra.mxu0 0.0
  %2157 = vmatprep.subr.mxu0 0.0
  %2158 = vmatpush2.msra.mxu0 0.0
  %2159 = vmatprep.mubr.f32.mxu0 0.0
  %2160 = vmatmul.mubr.f32.gmra.mxu0 %v2093
  %v2161 = vpop.f32.mrf.mxu0
  %v2162 = vadd.f32 0.0, %v2161
  %v2163 = vpop.f32.mrf.mxu0
  %v2164 = vadd.f32 0.0, %v2163
  %2165 = vdwg.mxu0
  %v2166 = vadd.f32 %v2088, %v2162
  %v2167 = vadd.f32 %v2089, %v2164
  %2168 = vrot.lane.b32.xlu0 %v1749, 127
  %v2169 = vpop.permute.xlu0 %2168
  %2170 = vrot.lane.b32.xlu0 %v1750, 127
  %v2171 = vpop.permute.xlu0 %2170
  %v2172 = vsel %vm549, %v2169, %v2171
  %v2173 = vsel %vm549, %v2171, %v2169
  %v2174 = vmul.f32 %v2172, %v558
  %v2175 = vmul.f32 %v2173, %v562
  %s2176 = scalar_lea.vmem %s6, 10
  %v2177 = vld [vmem:[%s2176] sm:$0x3]
  %v2179 = vsel %vm998, %v2177, 0
  %2181 = vmatprep.subr.mxu0 0.0
  %2182 = vmatpush1.msra.mxu0 0.0
  %2183 = vmatprep.subr.mxu0 0.0
  %2184 = vmatpush1.msra.mxu0 0.0
  %2185 = vmatprep.subr.mxu0 0.0
  %2186 = vmatpush1.msra.mxu0 0.0
  %2187 = vmatprep.subr.mxu0 0.0
  %2188 = vmatpush1.msra.mxu0 0.0
  %2189 = vmatprep.subr.mxu0 0.0
  %2190 = vmatpush1.msra.mxu0 0.0
  %2191 = vmatprep.subr.mxu0 0.0
  %2192 = vmatpush1.msra.mxu0 0.0
  %2193 = vmatprep.subr.mxu0 0.0
  %2194 = vmatpush1.msra.mxu0 0.0
  %2195 = vmatprep.subr.mxu0 0.0
  %2196 = vmatpush1.msra.mxu0 0.0
  %2197 = vmatprep.subr.mxu0 0.0
  %2198 = vmatpush1.msra.mxu0 0.0
  %2199 = vmatprep.subr.mxu0 0.0
  %2200 = vmatpush1.msra.mxu0 0.0
  %2201 = vmatprep.subr.mxu0 0.0
  %2202 = vmatpush1.msra.mxu0 0.0
  %2203 = vmatprep.subr.mxu0 0.0
  %2204 = vmatpush1.msra.mxu0 0.0
  %2205 = vmatprep.subr.mxu0 0.0
  %2206 = vmatpush1.msra.mxu0 0.0
  %2207 = vmatprep.subr.mxu0 0.0
  %2208 = vmatpush1.msra.mxu0 0.0
  %2209 = vmatprep.subr.mxu0 0.0
  %2210 = vmatpush1.msra.mxu0 0.0
  %2211 = vmatprep.subr.mxu0 %v2175
  %2212 = vmatpush1.msra.mxu0 %v2174
  %2213 = vmatprep.subr.mxu0 0.0
  %2214 = vmatpush2.msra.mxu0 0.0
  %2215 = vmatprep.subr.mxu0 0.0
  %2216 = vmatpush2.msra.mxu0 0.0
  %2217 = vmatprep.subr.mxu0 0.0
  %2218 = vmatpush2.msra.mxu0 0.0
  %2219 = vmatprep.subr.mxu0 0.0
  %2220 = vmatpush2.msra.mxu0 0.0
  %2221 = vmatprep.subr.mxu0 0.0
  %2222 = vmatpush2.msra.mxu0 0.0
  %2223 = vmatprep.subr.mxu0 0.0
  %2224 = vmatpush2.msra.mxu0 0.0
  %2225 = vmatprep.subr.mxu0 0.0
  %2226 = vmatpush2.msra.mxu0 0.0
  %2227 = vmatprep.subr.mxu0 0.0
  %2228 = vmatpush2.msra.mxu0 0.0
  %2229 = vmatprep.subr.mxu0 0.0
  %2230 = vmatpush2.msra.mxu0 0.0
  %2231 = vmatprep.subr.mxu0 0.0
  %2232 = vmatpush2.msra.mxu0 0.0
  %2233 = vmatprep.subr.mxu0 0.0
  %2234 = vmatpush2.msra.mxu0 0.0
  %2235 = vmatprep.subr.mxu0 0.0
  %2236 = vmatpush2.msra.mxu0 0.0
  %2237 = vmatprep.subr.mxu0 0.0
  %2238 = vmatpush2.msra.mxu0 0.0
  %2239 = vmatprep.subr.mxu0 0.0
  %2240 = vmatpush2.msra.mxu0 0.0
  %2241 = vmatprep.subr.mxu0 0.0
  %2242 = vmatpush2.msra.mxu0 0.0
  %2243 = vmatprep.subr.mxu0 0.0
  %2244 = vmatpush2.msra.mxu0 0.0
  %2245 = vmatprep.mubr.f32.mxu0 0.0
  %2246 = vmatmul.mubr.f32.gmra.mxu0 %v2179
  %v2247 = vpop.f32.mrf.mxu0
  %v2248 = vadd.f32 0.0, %v2247
  %v2249 = vpop.f32.mrf.mxu0
  %v2250 = vadd.f32 0.0, %v2249
  %2251 = vdwg.mxu0
  %v2252 = vadd.f32 %v2166, %v2248
  %v2253 = vadd.f32 %v2167, %v2250
  %2254 = vrot.lane.b32.xlu0 %v1749, 113
  %v2255 = vpop.permute.xlu0 %2254
  %2256 = vrot.lane.b32.xlu0 %v1750, 113
  %v2257 = vpop.permute.xlu0 %2256
  %v2258 = vsel %vm655, %v2255, %v2257
  %v2259 = vsel %vm655, %v2257, %v2255
  %v2260 = vmul.f32 %v2258, %v664
  %v2261 = vmul.f32 %v2259, %v668
  %s2262 = scalar_lea.vmem %s6, 12
  %v2263 = vld [vmem:[%s2262] sm:$0x3]
  %v2265 = vsel %vm998, %v2263, 0
  %2267 = vmatprep.subr.mxu0 0.0
  %2268 = vmatpush1.msra.mxu0 0.0
  %2269 = vmatprep.subr.mxu0 0.0
  %2270 = vmatpush1.msra.mxu0 0.0
  %2271 = vmatprep.subr.mxu0 0.0
  %2272 = vmatpush1.msra.mxu0 0.0
  %2273 = vmatprep.subr.mxu0 0.0
  %2274 = vmatpush1.msra.mxu0 0.0
  %2275 = vmatprep.subr.mxu0 0.0
  %2276 = vmatpush1.msra.mxu0 0.0
  %2277 = vmatprep.subr.mxu0 0.0
  %2278 = vmatpush1.msra.mxu0 0.0
  %2279 = vmatprep.subr.mxu0 0.0
  %2280 = vmatpush1.msra.mxu0 0.0
  %2281 = vmatprep.subr.mxu0 0.0
  %2282 = vmatpush1.msra.mxu0 0.0
  %2283 = vmatprep.subr.mxu0 0.0
  %2284 = vmatpush1.msra.mxu0 0.0
  %2285 = vmatprep.subr.mxu0 0.0
  %2286 = vmatpush1.msra.mxu0 0.0
  %2287 = vmatprep.subr.mxu0 0.0
  %2288 = vmatpush1.msra.mxu0 0.0
  %2289 = vmatprep.subr.mxu0 0.0
  %2290 = vmatpush1.msra.mxu0 0.0
  %2291 = vmatprep.subr.mxu0 0.0
  %2292 = vmatpush1.msra.mxu0 0.0
  %2293 = vmatprep.subr.mxu0 0.0
  %2294 = vmatpush1.msra.mxu0 0.0
  %2295 = vmatprep.subr.mxu0 0.0
  %2296 = vmatpush1.msra.mxu0 0.0
  %2297 = vmatprep.subr.mxu0 %v2261
  %2298 = vmatpush1.msra.mxu0 %v2260
  %2299 = vmatprep.subr.mxu0 0.0
  %2300 = vmatpush2.msra.mxu0 0.0
  %2301 = vmatprep.subr.mxu0 0.0
  %2302 = vmatpush2.msra.mxu0 0.0
  %2303 = vmatprep.subr.mxu0 0.0
  %2304 = vmatpush2.msra.mxu0 0.0
  %2305 = vmatprep.subr.mxu0 0.0
  %2306 = vmatpush2.msra.mxu0 0.0
  %2307 = vmatprep.subr.mxu0 0.0
  %2308 = vmatpush2.msra.mxu0 0.0
  %2309 = vmatprep.subr.mxu0 0.0
  %2310 = vmatpush2.msra.mxu0 0.0
  %2311 = vmatprep.subr.mxu0 0.0
  %2312 = vmatpush2.msra.mxu0 0.0
  %2313 = vmatprep.subr.mxu0 0.0
  %2314 = vmatpush2.msra.mxu0 0.0
  %2315 = vmatprep.subr.mxu0 0.0
  %2316 = vmatpush2.msra.mxu0 0.0
  %2317 = vmatprep.subr.mxu0 0.0
  %2318 = vmatpush2.msra.mxu0 0.0
  %2319 = vmatprep.subr.mxu0 0.0
  %2320 = vmatpush2.msra.mxu0 0.0
  %2321 = vmatprep.subr.mxu0 0.0
  %2322 = vmatpush2.msra.mxu0 0.0
  %2323 = vmatprep.subr.mxu0 0.0
  %2324 = vmatpush2.msra.mxu0 0.0
  %2325 = vmatprep.subr.mxu0 0.0
  %2326 = vmatpush2.msra.mxu0 0.0
  %2327 = vmatprep.subr.mxu0 0.0
  %2328 = vmatpush2.msra.mxu0 0.0
  %2329 = vmatprep.subr.mxu0 0.0
  %2330 = vmatpush2.msra.mxu0 0.0
  %2331 = vmatprep.mubr.f32.mxu0 0.0
  %2332 = vmatmul.mubr.f32.gmra.mxu0 %v2265
  %v2333 = vpop.f32.mrf.mxu0
  %v2334 = vadd.f32 0.0, %v2333
  %v2335 = vpop.f32.mrf.mxu0
  %v2336 = vadd.f32 0.0, %v2335
  %2337 = vdwg.mxu0
  %v2338 = vadd.f32 %v2252, %v2334
  %v2339 = vadd.f32 %v2253, %v2336
  %2340 = vrot.lane.b32.xlu0 %v1749, 112
  %v2341 = vpop.permute.xlu0 %2340
  %2342 = vrot.lane.b32.xlu0 %v1750, 112
  %v2343 = vpop.permute.xlu0 %2342
  %v2344 = vsel %vm761, %v2341, %v2343
  %v2345 = vsel %vm761, %v2343, %v2341
  %v2346 = vmul.f32 %v2344, %v770
  %v2347 = vmul.f32 %v2345, %v774
  %s2348 = scalar_lea.vmem %s6, 14
  %v2349 = vld [vmem:[%s2348] sm:$0x3]
  %v2351 = vsel %vm998, %v2349, 0
  %2353 = vmatprep.subr.mxu0 0.0
  %2354 = vmatpush1.msra.mxu0 0.0
  %2355 = vmatprep.subr.mxu0 0.0
  %2356 = vmatpush1.msra.mxu0 0.0
  %2357 = vmatprep.subr.mxu0 0.0
  %2358 = vmatpush1.msra.mxu0 0.0
  %2359 = vmatprep.subr.mxu0 0.0
  %2360 = vmatpush1.msra.mxu0 0.0
  %2361 = vmatprep.subr.mxu0 0.0
  %2362 = vmatpush1.msra.mxu0 0.0
  %2363 = vmatprep.subr.mxu0 0.0
  %2364 = vmatpush1.msra.mxu0 0.0
  %2365 = vmatprep.subr.mxu0 0.0
  %2366 = vmatpush1.msra.mxu0 0.0
  %2367 = vmatprep.subr.mxu0 0.0
  %2368 = vmatpush1.msra.mxu0 0.0
  %2369 = vmatprep.subr.mxu0 0.0
  %2370 = vmatpush1.msra.mxu0 0.0
  %2371 = vmatprep.subr.mxu0 0.0
  %2372 = vmatpush1.msra.mxu0 0.0
  %2373 = vmatprep.subr.mxu0 0.0
  %2374 = vmatpush1.msra.mxu0 0.0
  %2375 = vmatprep.subr.mxu0 0.0
  %2376 = vmatpush1.msra.mxu0 0.0
  %2377 = vmatprep.subr.mxu0 0.0
  %2378 = vmatpush1.msra.mxu0 0.0
  %2379 = vmatprep.subr.mxu0 0.0
  %2380 = vmatpush1.msra.mxu0 0.0
  %2381 = vmatprep.subr.mxu0 0.0
  %2382 = vmatpush1.msra.mxu0 0.0
  %2383 = vmatprep.subr.mxu0 %v2347
  %2384 = vmatpush1.msra.mxu0 %v2346
  %2385 = vmatprep.subr.mxu0 0.0
  %2386 = vmatpush2.msra.mxu0 0.0
  %2387 = vmatprep.subr.mxu0 0.0
  %2388 = vmatpush2.msra.mxu0 0.0
  %2389 = vmatprep.subr.mxu0 0.0
  %2390 = vmatpush2.msra.mxu0 0.0
  %2391 = vmatprep.subr.mxu0 0.0
  %2392 = vmatpush2.msra.mxu0 0.0
  %2393 = vmatprep.subr.mxu0 0.0
  %2394 = vmatpush2.msra.mxu0 0.0
  %2395 = vmatprep.subr.mxu0 0.0
  %2396 = vmatpush2.msra.mxu0 0.0
  %2397 = vmatprep.subr.mxu0 0.0
  %2398 = vmatpush2.msra.mxu0 0.0
  %2399 = vmatprep.subr.mxu0 0.0
  %2400 = vmatpush2.msra.mxu0 0.0
  %2401 = vmatprep.subr.mxu0 0.0
  %2402 = vmatpush2.msra.mxu0 0.0
  %2403 = vmatprep.subr.mxu0 0.0
  %2404 = vmatpush2.msra.mxu0 0.0
  %2405 = vmatprep.subr.mxu0 0.0
  %2406 = vmatpush2.msra.mxu0 0.0
  %2407 = vmatprep.subr.mxu0 0.0
  %2408 = vmatpush2.msra.mxu0 0.0
  %2409 = vmatprep.subr.mxu0 0.0
  %2410 = vmatpush2.msra.mxu0 0.0
  %2411 = vmatprep.subr.mxu0 0.0
  %2412 = vmatpush2.msra.mxu0 0.0
  %2413 = vmatprep.subr.mxu0 0.0
  %2414 = vmatpush2.msra.mxu0 0.0
  %2415 = vmatprep.subr.mxu0 0.0
  %2416 = vmatpush2.msra.mxu0 0.0
  %2417 = vmatprep.mubr.f32.mxu0 0.0
  %2418 = vmatmul.mubr.f32.gmra.mxu0 %v2351
  %v2419 = vpop.f32.mrf.mxu0
  %v2420 = vadd.f32 0.0, %v2419
  %v2421 = vpop.f32.mrf.mxu0
  %v2422 = vadd.f32 0.0, %v2421
  %2423 = vdwg.mxu0
  %v2424 = vadd.f32 %v2338, %v2420
  %v2425 = vadd.f32 %v2339, %v2422
  %2426 = vrot.lane.b32.xlu0 %v1749, 111
  %v2427 = vpop.permute.xlu0 %2426
  %2428 = vrot.lane.b32.xlu0 %v1750, 111
  %v2429 = vpop.permute.xlu0 %2428
  %v2430 = vsel %vm867, %v2427, %v2429
  %v2431 = vsel %vm867, %v2429, %v2427
  %v2432 = vmul.f32 %v2430, %v876
  %v2433 = vmul.f32 %v2431, %v880
  %s2434 = scalar_lea.vmem %s6, 16
  %v2435 = vld [vmem:[%s2434] sm:$0x3]
  %v2437 = vsel %vm998, %v2435, 0
  %2439 = vmatprep.subr.mxu0 0.0
  %2440 = vmatpush1.msra.mxu0 0.0
  %2441 = vmatprep.subr.mxu0 0.0
  %2442 = vmatpush1.msra.mxu0 0.0
  %2443 = vmatprep.subr.mxu0 0.0
  %2444 = vmatpush1.msra.mxu0 0.0
  %2445 = vmatprep.subr.mxu0 0.0
  %2446 = vmatpush1.msra.mxu0 0.0
  %2447 = vmatprep.subr.mxu0 0.0
  %2448 = vmatpush1.msra.mxu0 0.0
  %2449 = vmatprep.subr.mxu0 0.0
  %2450 = vmatpush1.msra.mxu0 0.0
  %2451 = vmatprep.subr.mxu0 0.0
  %2452 = vmatpush1.msra.mxu0 0.0
  %2453 = vmatprep.subr.mxu0 0.0
  %2454 = vmatpush1.msra.mxu0 0.0
  %2455 = vmatprep.subr.mxu0 0.0
  %2456 = vmatpush1.msra.mxu0 0.0
  %2457 = vmatprep.subr.mxu0 0.0
  %2458 = vmatpush1.msra.mxu0 0.0
  %2459 = vmatprep.subr.mxu0 0.0
  %2460 = vmatpush1.msra.mxu0 0.0
  %2461 = vmatprep.subr.mxu0 0.0
  %2462 = vmatpush1.msra.mxu0 0.0
  %2463 = vmatprep.subr.mxu0 0.0
  %2464 = vmatpush1.msra.mxu0 0.0
  %2465 = vmatprep.subr.mxu0 0.0
  %2466 = vmatpush1.msra.mxu0 0.0
  %2467 = vmatprep.subr.mxu0 0.0
  %2468 = vmatpush1.msra.mxu0 0.0
  %2469 = vmatprep.subr.mxu0 %v2433
  %2470 = vmatpush1.msra.mxu0 %v2432
  %2471 = vmatprep.subr.mxu0 0.0
  %2472 = vmatpush2.msra.mxu0 0.0
  %2473 = vmatprep.subr.mxu0 0.0
  %2474 = vmatpush2.msra.mxu0 0.0
  %2475 = vmatprep.subr.mxu0 0.0
  %2476 = vmatpush2.msra.mxu0 0.0
  %2477 = vmatprep.subr.mxu0 0.0
  %2478 = vmatpush2.msra.mxu0 0.0
  %2479 = vmatprep.subr.mxu0 0.0
  %2480 = vmatpush2.msra.mxu0 0.0
  %2481 = vmatprep.subr.mxu0 0.0
  %2482 = vmatpush2.msra.mxu0 0.0
  %2483 = vmatprep.subr.mxu0 0.0
  %2484 = vmatpush2.msra.mxu0 0.0
  %2485 = vmatprep.subr.mxu0 0.0
  %2486 = vmatpush2.msra.mxu0 0.0
  %2487 = vmatprep.subr.mxu0 0.0
  %2488 = vmatpush2.msra.mxu0 0.0
  %2489 = vmatprep.subr.mxu0 0.0
  %2490 = vmatpush2.msra.mxu0 0.0
  %2491 = vmatprep.subr.mxu0 0.0
  %2492 = vmatpush2.msra.mxu0 0.0
  %2493 = vmatprep.subr.mxu0 0.0
  %2494 = vmatpush2.msra.mxu0 0.0
  %2495 = vmatprep.subr.mxu0 0.0
  %2496 = vmatpush2.msra.mxu0 0.0
  %2497 = vmatprep.subr.mxu0 0.0
  %2498 = vmatpush2.msra.mxu0 0.0
  %2499 = vmatprep.subr.mxu0 0.0
  %2500 = vmatpush2.msra.mxu0 0.0
  %2501 = vmatprep.subr.mxu0 0.0
  %2502 = vmatpush2.msra.mxu0 0.0
  %2503 = vmatprep.mubr.f32.mxu0 0.0
  %2504 = vmatmul.mubr.f32.gmra.mxu0 %v2437
  %v2505 = vpop.f32.mrf.mxu0
  %v2506 = vadd.f32 0.0, %v2505
  %v2507 = vpop.f32.mrf.mxu0
  %v2508 = vadd.f32 0.0, %v2507
  %2509 = vdwg.mxu0
  %v2510 = vadd.f32 %v2424, %v2506
  %v2511 = vadd.f32 %v2425, %v2508
  %v2512 = vld [vmem:[%s7] sm:$0x3]
  %2514 = vset.pattern.permute.xlu0 0
  %2515 = vperm.xlu0 %2514, %v2512
  %v2516 = vpop.permute.xlu0 %2515
  %v2518 = vadd.f32 %v2510, %v2516
  %v2519 = vadd.f32 %v2511, %v2516
  %v2522 = vcombine.low %v2518, %v2519
  %v2524 = vunpack.c.l.s4 1983009808
  %v2525 = vunpack.c.0.s8 %v2524
  %v2526 = vlaneseq
  %v2527 = vshrl.u32 %v2526, 7
  %v2528 = vsub.s32 %v2525, %v2527
  %v2529 = vrot.slane %v2522, %v2528
  %2531 = vst [vmem:[%s8] sm:$0xf] %v2529
  // Predicated region
  $region34: #{forward.7} parent=0 // pred_check
    _
  $region35: #{forward.7} parent=0 // pred_check_branch
    %2533 = sbr.rel (0) target = $region37
  $region36: #{forward.7} parent=0 // pred_region
    _
  $region37: #{forward.7} parent=0 // pred_fallthru
    _
  // Predicated region
  $region38: #{forward.7} parent=0 // pred_check
    _
  $region39: #{forward.7} parent=0 // pred_check_branch
    %2535 = sbr.rel (0) target = $region41
  $region40: #{forward.7} parent=0 // pred_region
    _
  $region41: #{forward.7} parent=0 // pred_fallthru
    _

// kernel: forward.6
$region0: #{forward.6}
  #allocation0 [shape = 'u32[]', space=smem, size = 0x4, offset = 0x4, fixed_abs, tag = 'smem constant byte address 0x4 - core index']
  #allocation1 [shape = 'u32[144,128]{1,0:T(1,128)}', space=vmem, size = 0x12000, scoped, tag = 'internal scratch']
  %s0 = inlined_call_operand.vmem [shape: f32[2,256], index: 0, kind: input, shape index: {}]
  %s1 = inlined_call_operand.vmem [shape: f32[2,256], index: 1, kind: input, shape index: {}]
  %s2 = inlined_call_operand.vmem [shape: f32[9,1,256], index: 2, kind: input, shape index: {}]
  %s3 = inlined_call_operand.vmem [shape: f32[9,8,2], index: 3, kind: input, shape index: {}]
  %s4 = inlined_call_operand.vmem [shape: f32[8,1], index: 4, kind: input, shape index: {}, may-alias: {4,6}]
  %s5 = inlined_call_operand.vmem [shape: f32[9,8,8], index: 5, kind: input, shape index: {}]
  %s6 = inlined_call_operand.vmem [shape: f32[8,1], index: 6, kind: input, shape index: {}, may-alias: {4,6}]
  %s7 = inlined_call_operand.vmem [shape: f32[9,2,8], index: 7, kind: input, shape index: {}]
  %s8 = inlined_call_operand.vmem [shape: f32[2,1], index: 8, kind: input, shape index: {}]
  %s9 = inlined_call_operand.vmem [shape: bf16[256,256], index: 9, kind: input, shape index: {}]
  %s10 = inlined_call_operand.vmem [shape: f32[2,256], index: 10, kind: output, shape index: {}]
  %s11 = sld [smem:[#allocation0]]
  $region50: #{forward.6} parent=0
    _
  %s13 = ssub.s32 1, %s11
  %s14 = scalar_select 0, %s13, %s11
  // Predicated region
  $region2: #{forward.6} parent=0 // pred_check
    _
  $region3: #{forward.6} parent=0 // pred_check_branch
    %16 = sbr.rel (0) target = $region5
  $region4: #{forward.6} parent=0 // pred_region
    _
  $region5: #{forward.6} parent=0 // pred_fallthru
    _
  // Predicated region
  $region6: #{forward.6} parent=0 // pred_check
    _
  $region7: #{forward.6} parent=0 // pred_check_branch
    %18 = sbr.rel (0) target = $region9
  $region8: #{forward.6} parent=0 // pred_region
    _
  $region9: #{forward.6} parent=0 // pred_fallthru
    _
  // Predicated region
  $region10: #{forward.6} parent=0 // pred_check
    _
  $region11: #{forward.6} parent=0 // pred_check_branch
    %20 = sbr.rel (0) target = $region13
  $region12: #{forward.6} parent=0 // pred_region
    _
  $region13: #{forward.6} parent=0 // pred_fallthru
    _
  // Predicated region
  $region14: #{forward.6} parent=0 // pred_check
    _
  $region15: #{forward.6} parent=0 // pred_check_branch
    %22 = sbr.rel (0) target = $region17
  $region16: #{forward.6} parent=0 // pred_region
    _
  $region17: #{forward.6} parent=0 // pred_fallthru
    _
  // Predicated region
  $region18: #{forward.6} parent=0 // pred_check
    _
  $region19: #{forward.6} parent=0 // pred_check_branch
    %24 = sbr.rel (0) target = $region21
  $region20: #{forward.6} parent=0 // pred_region
    _
  $region21: #{forward.6} parent=0 // pred_fallthru
    _
  // Predicated region
  $region22: #{forward.6} parent=0 // pred_check
    _
  $region23: #{forward.6} parent=0 // pred_check_branch
    %26 = sbr.rel (0) target = $region25
  $region24: #{forward.6} parent=0 // pred_region
    _
  $region25: #{forward.6} parent=0 // pred_fallthru
    _
  // Predicated region
  $region26: #{forward.6} parent=0 // pred_check
    _
  $region27: #{forward.6} parent=0 // pred_check_branch
    %28 = sbr.rel (0) target = $region29
  $region28: #{forward.6} parent=0 // pred_region
    _
  $region29: #{forward.6} parent=0 // pred_fallthru
    _
  // Predicated region
  $region30: #{forward.6} parent=0 // pred_check
    _
  $region31: #{forward.6} parent=0 // pred_check_branch
    %30 = sbr.rel (0) target = $region33
  $region32: #{forward.6} parent=0 // pred_region
    _
  $region33: #{forward.6} parent=0 // pred_fallthru
    _
  // Predicated region
  $region34: #{forward.6} parent=0 // pred_check
    _
  $region35: #{forward.6} parent=0 // pred_check_branch
    %32 = sbr.rel (0) target = $region37
  $region36: #{forward.6} parent=0 // pred_region
    _
  $region37: #{forward.6} parent=0 // pred_fallthru
    _
  // Predicated region
  $region38: #{forward.6} parent=0 // pred_check
    _
  $region39: #{forward.6} parent=0 // pred_check_branch
    %34 = sbr.rel (0) target = $region41
  $region40: #{forward.6} parent=0 // pred_region
    _
  $region41: #{forward.6} parent=0 // pred_fallthru
    _
  %v35 = vld [vmem:[%s0] sm:$0xf]
  %v38 = vunpack.c.l.s4 1983009808
  %v39 = vunpack.c.0.s8 %v38
  %v40 = vlaneseq
  %v41 = vshrl.u32 %v40, 7
  %v42 = vsub.s32 %v39, %v41
  %v43 = vrot.slane %v35, %v42
  %v44 = vcombine.high %v43, %v43
  %47 = vrot.lane.b32.xlu0 %v43, 17
  %v48 = vpop.permute.xlu0 %47
  %49 = vrot.lane.b32.xlu0 %v44, 17
  %v50 = vpop.permute.xlu0 %49
  %v51 = vlaneseq
  %v52 = vand.u32 %v51, 127
  %vm53 = vcmp.lt.s32.totalorder %v52, 17
  %v54 = vsel %vm53, %v48, %v50
  %v55 = vsel %vm53, %v50, %v48
  %v56 = vld [vmem:[%s2] sm:$0x3]
  %v58 = vlaneseq
  %v59 = vshrl.u32 %v58, 7
  %v60 = vsub.s32 0, %v59
  %v61 = vrot.slane %v56, %v60
  %v62 = vlaneseq
  %v63 = vshrl.u32 %v62, 7
  %v64 = vsub.s32 1, %v63
  %v65 = vrot.slane %v56, %v64
  %v68 = vmul.f32 %v55, %v61
  %v69 = vmul.f32 %v54, %v65
  %v70 = vld [vmem:[%s3] sm:$0xff]
  %71 = vrot.lane.b32.xlu0 %v43, 16
  %v72 = vpop.permute.xlu0 %71
  %73 = vrot.lane.b32.xlu0 %v44, 16
  %v74 = vpop.permute.xlu0 %73
  %vm75 = vcmp.lt.s32.totalorder %v52, 16
  %v76 = vsel %vm75, %v72, %v74
  %v77 = vsel %vm75, %v74, %v72
  %s78 = scalar_lea.vmem %s2, 2
  %v79 = vld [vmem:[%s78] sm:$0x3]
  %v81 = vlaneseq
  %v82 = vshrl.u32 %v81, 7
  %v83 = vsub.s32 0, %v82
  %v84 = vrot.slane %v79, %v83
  %v85 = vlaneseq
  %v86 = vshrl.u32 %v85, 7
  %v87 = vsub.s32 1, %v86
  %v88 = vrot.slane %v79, %v87
  %v91 = vmul.f32 %v77, %v84
  %v92 = vmul.f32 %v76, %v88
  %s93 = scalar_lea.vmem %s3, 8
  %v94 = vld [vmem:[%s93] sm:$0xff]
  %vm95 = vcmask 15360
  %v97 = vsel %vm95, %v94, 0
  %vm99 = vcmask 1041408
  %v101 = vsel %vm99, %v91, 0
  %v104 = vsel %vm99, %v92, 0
  %106 = vmatprep.subr.mxu0 0.0
  %107 = vmatpush1.msra.mxu0 0.0
  %108 = vmatprep.subr.mxu0 0.0
  %109 = vmatpush1.msra.mxu0 0.0
  %110 = vmatprep.subr.mxu0 0.0
  %111 = vmatpush1.msra.mxu0 0.0
  %112 = vmatprep.subr.mxu0 0.0
  %113 = vmatpush1.msra.mxu0 0.0
  %114 = vmatprep.subr.mxu0 0.0
  %115 = vmatpush1.msra.mxu0 0.0
  %116 = vmatprep.subr.mxu0 0.0
  %117 = vmatpush1.msra.mxu0 0.0
  %118 = vmatprep.subr.mxu0 0.0
  %119 = vmatpush1.msra.mxu0 0.0
  %120 = vmatprep.subr.mxu0 0.0
  %121 = vmatpush1.msra.mxu0 0.0
  %122 = vmatprep.subr.mxu0 0.0
  %123 = vmatpush1.msra.mxu0 0.0
  %124 = vmatprep.subr.mxu0 0.0
  %125 = vmatpush1.msra.mxu0 0.0
  %126 = vmatprep.subr.mxu0 0.0
  %127 = vmatpush1.msra.mxu0 0.0
  %128 = vmatprep.subr.mxu0 0.0
  %129 = vmatpush1.msra.mxu0 0.0
  %130 = vmatprep.subr.mxu0 0.0
  %131 = vmatpush1.msra.mxu0 0.0
  %132 = vmatprep.subr.mxu0 0.0
  %133 = vmatpush1.msra.mxu0 0.0
  %134 = vmatprep.subr.mxu0 0.0
  %135 = vmatpush1.msra.mxu0 0.0
  %136 = vmatprep.subr.mxu0 %v104
  %137 = vmatpush1.msra.mxu0 %v101
  %138 = vmatprep.subr.mxu0 0.0
  %139 = vmatpush2.msra.mxu0 0.0
  %140 = vmatprep.subr.mxu0 0.0
  %141 = vmatpush2.msra.mxu0 0.0
  %142 = vmatprep.subr.mxu0 0.0
  %143 = vmatpush2.msra.mxu0 0.0
  %144 = vmatprep.subr.mxu0 0.0
  %145 = vmatpush2.msra.mxu0 0.0
  %146 = vmatprep.subr.mxu0 0.0
  %147 = vmatpush2.msra.mxu0 0.0
  %148 = vmatprep.subr.mxu0 0.0
  %149 = vmatpush2.msra.mxu0 0.0
  %150 = vmatprep.subr.mxu0 0.0
  %151 = vmatpush2.msra.mxu0 0.0
  %152 = vmatprep.subr.mxu0 0.0
  %153 = vmatpush2.msra.mxu0 0.0
  %154 = vmatprep.subr.mxu0 0.0
  %155 = vmatpush2.msra.mxu0 0.0
  %156 = vmatprep.subr.mxu0 0.0
  %157 = vmatpush2.msra.mxu0 0.0
  %158 = vmatprep.subr.mxu0 0.0
  %159 = vmatpush2.msra.mxu0 0.0
  %160 = vmatprep.subr.mxu0 0.0
  %161 = vmatpush2.msra.mxu0 0.0
  %162 = vmatprep.subr.mxu0 0.0
  %163 = vmatpush2.msra.mxu0 0.0
  %164 = vmatprep.subr.mxu0 0.0
  %165 = vmatpush2.msra.mxu0 0.0
  %166 = vmatprep.subr.mxu0 0.0
  %167 = vmatpush2.msra.mxu0 0.0
  %168 = vmatprep.subr.mxu0 0.0
  %169 = vmatpush2.msra.mxu0 0.0
  %170 = vmatprep.mubr.f32.mxu0 0.0
  %171 = vmatmul.mubr.f32.gmra.mxu0 %v97
  %v172 = vpop.f32.mrf.mxu0
  %v173 = vadd.f32 0.0, %v172
  %v174 = vpop.f32.mrf.mxu0
  %v175 = vadd.f32 0.0, %v174
  %176 = vdwg.mxu0
  %v178 = vsel %vm95, %v70, 0
  %v181 = vsel %vm99, %v68, 0
  %v184 = vsel %vm99, %v69, 0
  %186 = vmatprep.subr.mxu0 0.0
  %187 = vmatpush1.msra.mxu0 0.0
  %188 = vmatprep.subr.mxu0 0.0
  %189 = vmatpush1.msra.mxu0 0.0
  %190 = vmatprep.subr.mxu0 0.0
  %191 = vmatpush1.msra.mxu0 0.0
  %192 = vmatprep.subr.mxu0 0.0
  %193 = vmatpush1.msra.mxu0 0.0
  %194 = vmatprep.subr.mxu0 0.0
  %195 = vmatpush1.msra.mxu0 0.0
  %196 = vmatprep.subr.mxu0 0.0
  %197 = vmatpush1.msra.mxu0 0.0
  %198 = vmatprep.subr.mxu0 0.0
  %199 = vmatpush1.msra.mxu0 0.0
  %200 = vmatprep.subr.mxu0 0.0
  %201 = vmatpush1.msra.mxu0 0.0
  %202 = vmatprep.subr.mxu0 0.0
  %203 = vmatpush1.msra.mxu0 0.0
  %204 = vmatprep.subr.mxu0 0.0
  %205 = vmatpush1.msra.mxu0 0.0
  %206 = vmatprep.subr.mxu0 0.0
  %207 = vmatpush1.msra.mxu0 0.0
  %208 = vmatprep.subr.mxu0 0.0
  %209 = vmatpush1.msra.mxu0 0.0
  %210 = vmatprep.subr.mxu0 0.0
  %211 = vmatpush1.msra.mxu0 0.0
  %212 = vmatprep.subr.mxu0 0.0
  %213 = vmatpush1.msra.mxu0 0.0
  %214 = vmatprep.subr.mxu0 0.0
  %215 = vmatpush1.msra.mxu0 0.0
  %216 = vmatprep.subr.mxu0 %v184
  %217 = vmatpush1.msra.mxu0 %v181
  %218 = vmatprep.subr.mxu0 0.0
  %219 = vmatpush2.msra.mxu0 0.0
  %220 = vmatprep.subr.mxu0 0.0
  %221 = vmatpush2.msra.mxu0 0.0
  %222 = vmatprep.subr.mxu0 0.0
  %223 = vmatpush2.msra.mxu0 0.0
  %224 = vmatprep.subr.mxu0 0.0
  %225 = vmatpush2.msra.mxu0 0.0
  %226 = vmatprep.subr.mxu0 0.0
  %227 = vmatpush2.msra.mxu0 0.0
  %228 = vmatprep.subr.mxu0 0.0
  %229 = vmatpush2.msra.mxu0 0.0
  %230 = vmatprep.subr.mxu0 0.0
  %231 = vmatpush2.msra.mxu0 0.0
  %232 = vmatprep.subr.mxu0 0.0
  %233 = vmatpush2.msra.mxu0 0.0
  %234 = vmatprep.subr.mxu0 0.0
  %235 = vmatpush2.msra.mxu0 0.0
  %236 = vmatprep.subr.mxu0 0.0
  %237 = vmatpush2.msra.mxu0 0.0
  %238 = vmatprep.subr.mxu0 0.0
  %239 = vmatpush2.msra.mxu0 0.0
  %240 = vmatprep.subr.mxu0 0.0
  %241 = vmatpush2.msra.mxu0 0.0
  %242 = vmatprep.subr.mxu0 0.0
  %243 = vmatpush2.msra.mxu0 0.0
  %244 = vmatprep.subr.mxu0 0.0
  %245 = vmatpush2.msra.mxu0 0.0
  %246 = vmatprep.subr.mxu0 0.0
  %247 = vmatpush2.msra.mxu0 0.0
  %248 = vmatprep.subr.mxu0 0.0
  %249 = vmatpush2.msra.mxu0 0.0
  %250 = vmatprep.mubr.f32.mxu0 0.0
  %251 = vmatmul.mubr.f32.gmra.mxu0 %v178
  %v252 = vpop.f32.mrf.mxu0
  %v253 = vadd.f32 %v173, %v252
  %v254 = vpop.f32.mrf.mxu0
  %v255 = vadd.f32 %v175, %v254
  %256 = vdwg.mxu0
  %257 = vrot.lane.b32.xlu0 %v43, 15
  %v258 = vpop.permute.xlu0 %257
  %259 = vrot.lane.b32.xlu0 %v44, 15
  %v260 = vpop.permute.xlu0 %259
  %vm261 = vcmp.lt.s32.totalorder %v52, 15
  %v262 = vsel %vm261, %v258, %v260
  %v263 = vsel %vm261, %v260, %v258
  %s264 = scalar_lea.vmem %s2, 4
  %v265 = vld [vmem:[%s264] sm:$0x3]
  %v267 = vlaneseq
  %v268 = vshrl.u32 %v267, 7
  %v269 = vsub.s32 0, %v268
  %v270 = vrot.slane %v265, %v269
  %v271 = vlaneseq
  %v272 = vshrl.u32 %v271, 7
  %v273 = vsub.s32 1, %v272
  %v274 = vrot.slane %v265, %v273
  %v277 = vmul.f32 %v263, %v270
  %v278 = vmul.f32 %v262, %v274
  %s279 = scalar_lea.vmem %s3, 16
  %v280 = vld [vmem:[%s279] sm:$0xff]
  %v282 = vsel %vm95, %v280, 0
  %v285 = vsel %vm99, %v277, 0
  %v288 = vsel %vm99, %v278, 0
  %290 = vmatprep.subr.mxu0 0.0
  %291 = vmatpush1.msra.mxu0 0.0
  %292 = vmatprep.subr.mxu0 0.0
  %293 = vmatpush1.msra.mxu0 0.0
  %294 = vmatprep.subr.mxu0 0.0
  %295 = vmatpush1.msra.mxu0 0.0
  %296 = vmatprep.subr.mxu0 0.0
  %297 = vmatpush1.msra.mxu0 0.0
  %298 = vmatprep.subr.mxu0 0.0
  %299 = vmatpush1.msra.mxu0 0.0
  %300 = vmatprep.subr.mxu0 0.0
  %301 = vmatpush1.msra.mxu0 0.0
  %302 = vmatprep.subr.mxu0 0.0
  %303 = vmatpush1.msra.mxu0 0.0
  %304 = vmatprep.subr.mxu0 0.0
  %305 = vmatpush1.msra.mxu0 0.0
  %306 = vmatprep.subr.mxu0 0.0
  %307 = vmatpush1.msra.mxu0 0.0
  %308 = vmatprep.subr.mxu0 0.0
  %309 = vmatpush1.msra.mxu0 0.0
  %310 = vmatprep.subr.mxu0 0.0
  %311 = vmatpush1.msra.mxu0 0.0
  %312 = vmatprep.subr.mxu0 0.0
  %313 = vmatpush1.msra.mxu0 0.0
  %314 = vmatprep.subr.mxu0 0.0
  %315 = vmatpush1.msra.mxu0 0.0
  %316 = vmatprep.subr.mxu0 0.0
  %317 = vmatpush1.msra.mxu0 0.0
  %318 = vmatprep.subr.mxu0 0.0
  %319 = vmatpush1.msra.mxu0 0.0
  %320 = vmatprep.subr.mxu0 %v288
  %321 = vmatpush1.msra.mxu0 %v285
  %322 = vmatprep.subr.mxu0 0.0
  %323 = vmatpush2.msra.mxu0 0.0
  %324 = vmatprep.subr.mxu0 0.0
  %325 = vmatpush2.msra.mxu0 0.0
  %326 = vmatprep.subr.mxu0 0.0
  %327 = vmatpush2.msra.mxu0 0.0
  %328 = vmatprep.subr.mxu0 0.0
  %329 = vmatpush2.msra.mxu0 0.0
  %330 = vmatprep.subr.mxu0 0.0
  %331 = vmatpush2.msra.mxu0 0.0
  %332 = vmatprep.subr.mxu0 0.0
  %333 = vmatpush2.msra.mxu0 0.0
  %334 = vmatprep.subr.mxu0 0.0
  %335 = vmatpush2.msra.mxu0 0.0
  %336 = vmatprep.subr.mxu0 0.0
  %337 = vmatpush2.msra.mxu0 0.0
  %338 = vmatprep.subr.mxu0 0.0
  %339 = vmatpush2.msra.mxu0 0.0
  %340 = vmatprep.subr.mxu0 0.0
  %341 = vmatpush2.msra.mxu0 0.0
  %342 = vmatprep.subr.mxu0 0.0
  %343 = vmatpush2.msra.mxu0 0.0
  %344 = vmatprep.subr.mxu0 0.0
  %345 = vmatpush2.msra.mxu0 0.0
  %346 = vmatprep.subr.mxu0 0.0
  %347 = vmatpush2.msra.mxu0 0.0
  %348 = vmatprep.subr.mxu0 0.0
  %349 = vmatpush2.msra.mxu0 0.0
  %350 = vmatprep.subr.mxu0 0.0
  %351 = vmatpush2.msra.mxu0 0.0
  %352 = vmatprep.subr.mxu0 0.0
  %353 = vmatpush2.msra.mxu0 0.0
  %354 = vmatprep.mubr.f32.mxu0 0.0
  %355 = vmatmul.mubr.f32.gmra.mxu0 %v282
  %v356 = vpop.f32.mrf.mxu0
  %v357 = vadd.f32 0.0, %v356
  %v358 = vpop.f32.mrf.mxu0
  %v359 = vadd.f32 0.0, %v358
  %360 = vdwg.mxu0
  %v361 = vadd.f32 %v253, %v357
  %v362 = vadd.f32 %v255, %v359
  %363 = vrot.lane.b32.xlu0 %v43, 1
  %v364 = vpop.permute.xlu0 %363
  %365 = vrot.lane.b32.xlu0 %v44, 1
  %v366 = vpop.permute.xlu0 %365
  %vm367 = vcmp.lt.s32.totalorder %v52, 1
  %v368 = vsel %vm367, %v364, %v366
  %v369 = vsel %vm367, %v366, %v364
  %s370 = scalar_lea.vmem %s2, 6
  %v371 = vld [vmem:[%s370] sm:$0x3]
  %v373 = vlaneseq
  %v374 = vshrl.u32 %v373, 7
  %v375 = vsub.s32 0, %v374
  %v376 = vrot.slane %v371, %v375
  %v377 = vlaneseq
  %v378 = vshrl.u32 %v377, 7
  %v379 = vsub.s32 1, %v378
  %v380 = vrot.slane %v371, %v379
  %v383 = vmul.f32 %v369, %v376
  %v384 = vmul.f32 %v368, %v380
  %s385 = scalar_lea.vmem %s3, 24
  %v386 = vld [vmem:[%s385] sm:$0xff]
  %v388 = vsel %vm95, %v386, 0
  %v391 = vsel %vm99, %v383, 0
  %v394 = vsel %vm99, %v384, 0
  %396 = vmatprep.subr.mxu0 0.0
  %397 = vmatpush1.msra.mxu0 0.0
  %398 = vmatprep.subr.mxu0 0.0
  %399 = vmatpush1.msra.mxu0 0.0
  %400 = vmatprep.subr.mxu0 0.0
  %401 = vmatpush1.msra.mxu0 0.0
  %402 = vmatprep.subr.mxu0 0.0
  %403 = vmatpush1.msra.mxu0 0.0
  %404 = vmatprep.subr.mxu0 0.0
  %405 = vmatpush1.msra.mxu0 0.0
  %406 = vmatprep.subr.mxu0 0.0
  %407 = vmatpush1.msra.mxu0 0.0
  %408 = vmatprep.subr.mxu0 0.0
  %409 = vmatpush1.msra.mxu0 0.0
  %410 = vmatprep.subr.mxu0 0.0
  %411 = vmatpush1.msra.mxu0 0.0
  %412 = vmatprep.subr.mxu0 0.0
  %413 = vmatpush1.msra.mxu0 0.0
  %414 = vmatprep.subr.mxu0 0.0
  %415 = vmatpush1.msra.mxu0 0.0
  %416 = vmatprep.subr.mxu0 0.0
  %417 = vmatpush1.msra.mxu0 0.0
  %418 = vmatprep.subr.mxu0 0.0
  %419 = vmatpush1.msra.mxu0 0.0
  %420 = vmatprep.subr.mxu0 0.0
  %421 = vmatpush1.msra.mxu0 0.0
  %422 = vmatprep.subr.mxu0 0.0
  %423 = vmatpush1.msra.mxu0 0.0
  %424 = vmatprep.subr.mxu0 0.0
  %425 = vmatpush1.msra.mxu0 0.0
  %426 = vmatprep.subr.mxu0 %v394
  %427 = vmatpush1.msra.mxu0 %v391
  %428 = vmatprep.subr.mxu0 0.0
  %429 = vmatpush2.msra.mxu0 0.0
  %430 = vmatprep.subr.mxu0 0.0
  %431 = vmatpush2.msra.mxu0 0.0
  %432 = vmatprep.subr.mxu0 0.0
  %433 = vmatpush2.msra.mxu0 0.0
  %434 = vmatprep.subr.mxu0 0.0
  %435 = vmatpush2.msra.mxu0 0.0
  %436 = vmatprep.subr.mxu0 0.0
  %437 = vmatpush2.msra.mxu0 0.0
  %438 = vmatprep.subr.mxu0 0.0
  %439 = vmatpush2.msra.mxu0 0.0
  %440 = vmatprep.subr.mxu0 0.0
  %441 = vmatpush2.msra.mxu0 0.0
  %442 = vmatprep.subr.mxu0 0.0
  %443 = vmatpush2.msra.mxu0 0.0
  %444 = vmatprep.subr.mxu0 0.0
  %445 = vmatpush2.msra.mxu0 0.0
  %446 = vmatprep.subr.mxu0 0.0
  %447 = vmatpush2.msra.mxu0 0.0
  %448 = vmatprep.subr.mxu0 0.0
  %449 = vmatpush2.msra.mxu0 0.0
  %450 = vmatprep.subr.mxu0 0.0
  %451 = vmatpush2.msra.mxu0 0.0
  %452 = vmatprep.subr.mxu0 0.0
  %453 = vmatpush2.msra.mxu0 0.0
  %454 = vmatprep.subr.mxu0 0.0
  %455 = vmatpush2.msra.mxu0 0.0
  %456 = vmatprep.subr.mxu0 0.0
  %457 = vmatpush2.msra.mxu0 0.0
  %458 = vmatprep.subr.mxu0 0.0
  %459 = vmatpush2.msra.mxu0 0.0
  %460 = vmatprep.mubr.f32.mxu0 0.0
  %461 = vmatmul.mubr.f32.gmra.mxu0 %v388
  %v462 = vpop.f32.mrf.mxu0
  %v463 = vadd.f32 0.0, %v462
  %v464 = vpop.f32.mrf.mxu0
  %v465 = vadd.f32 0.0, %v464
  %466 = vdwg.mxu0
  %v467 = vadd.f32 %v361, %v463
  %v468 = vadd.f32 %v362, %v465
  %s469 = scalar_lea.vmem %s3, 32
  %v470 = vld [vmem:[%s469] sm:$0xff]
  %v472 = vsel %vm95, %v470, 0
  %v474 = vsel %vm99, %v43, 0
  %v476 = vsel %vm99, %v44, 0
  %478 = vmatprep.subr.mxu0 0.0
  %479 = vmatpush1.msra.mxu0 0.0
  %480 = vmatprep.subr.mxu0 0.0
  %481 = vmatpush1.msra.mxu0 0.0
  %482 = vmatprep.subr.mxu0 0.0
  %483 = vmatpush1.msra.mxu0 0.0
  %484 = vmatprep.subr.mxu0 0.0
  %485 = vmatpush1.msra.mxu0 0.0
  %486 = vmatprep.subr.mxu0 0.0
  %487 = vmatpush1.msra.mxu0 0.0
  %488 = vmatprep.subr.mxu0 0.0
  %489 = vmatpush1.msra.mxu0 0.0
  %490 = vmatprep.subr.mxu0 0.0
  %491 = vmatpush1.msra.mxu0 0.0
  %492 = vmatprep.subr.mxu0 0.0
  %493 = vmatpush1.msra.mxu0 0.0
  %494 = vmatprep.subr.mxu0 0.0
  %495 = vmatpush1.msra.mxu0 0.0
  %496 = vmatprep.subr.mxu0 0.0
  %497 = vmatpush1.msra.mxu0 0.0
  %498 = vmatprep.subr.mxu0 0.0
  %499 = vmatpush1.msra.mxu0 0.0
  %500 = vmatprep.subr.mxu0 0.0
  %501 = vmatpush1.msra.mxu0 0.0
  %502 = vmatprep.subr.mxu0 0.0
  %503 = vmatpush1.msra.mxu0 0.0
  %504 = vmatprep.subr.mxu0 0.0
  %505 = vmatpush1.msra.mxu0 0.0
  %506 = vmatprep.subr.mxu0 0.0
  %507 = vmatpush1.msra.mxu0 0.0
  %508 = vmatprep.subr.mxu0 %v476
  %509 = vmatpush1.msra.mxu0 %v474
  %510 = vmatprep.subr.mxu0 0.0
  %511 = vmatpush2.msra.mxu0 0.0
  %512 = vmatprep.subr.mxu0 0.0
  %513 = vmatpush2.msra.mxu0 0.0
  %514 = vmatprep.subr.mxu0 0.0
  %515 = vmatpush2.msra.mxu0 0.0
  %516 = vmatprep.subr.mxu0 0.0
  %517 = vmatpush2.msra.mxu0 0.0
  %518 = vmatprep.subr.mxu0 0.0
  %519 = vmatpush2.msra.mxu0 0.0
  %520 = vmatprep.subr.mxu0 0.0
  %521 = vmatpush2.msra.mxu0 0.0
  %522 = vmatprep.subr.mxu0 0.0
  %523 = vmatpush2.msra.mxu0 0.0
  %524 = vmatprep.subr.mxu0 0.0
  %525 = vmatpush2.msra.mxu0 0.0
  %526 = vmatprep.subr.mxu0 0.0
  %527 = vmatpush2.msra.mxu0 0.0
  %528 = vmatprep.subr.mxu0 0.0
  %529 = vmatpush2.msra.mxu0 0.0
  %530 = vmatprep.subr.mxu0 0.0
  %531 = vmatpush2.msra.mxu0 0.0
  %532 = vmatprep.subr.mxu0 0.0
  %533 = vmatpush2.msra.mxu0 0.0
  %534 = vmatprep.subr.mxu0 0.0
  %535 = vmatpush2.msra.mxu0 0.0
  %536 = vmatprep.subr.mxu0 0.0
  %537 = vmatpush2.msra.mxu0 0.0
  %538 = vmatprep.subr.mxu0 0.0
  %539 = vmatpush2.msra.mxu0 0.0
  %540 = vmatprep.subr.mxu0 0.0
  %541 = vmatpush2.msra.mxu0 0.0
  %542 = vmatprep.mubr.f32.mxu0 0.0
  %543 = vmatmul.mubr.f32.gmra.mxu0 %v472
  %v544 = vpop.f32.mrf.mxu0
  %v545 = vadd.f32 0.0, %v544
  %v546 = vpop.f32.mrf.mxu0
  %v547 = vadd.f32 0.0, %v546
  %548 = vdwg.mxu0
  %v549 = vadd.f32 %v467, %v545
  %v550 = vadd.f32 %v468, %v547
  %551 = vrot.lane.b32.xlu0 %v43, 127
  %v552 = vpop.permute.xlu0 %551
  %553 = vrot.lane.b32.xlu0 %v44, 127
  %v554 = vpop.permute.xlu0 %553
  %vm555 = vcmp.lt.s32.totalorder %v52, 127
  %v556 = vsel %vm555, %v552, %v554
  %v557 = vsel %vm555, %v554, %v552
  %s558 = scalar_lea.vmem %s2, 10
  %v559 = vld [vmem:[%s558] sm:$0x3]
  %v561 = vlaneseq
  %v562 = vshrl.u32 %v561, 7
  %v563 = vsub.s32 0, %v562
  %v564 = vrot.slane %v559, %v563
  %v565 = vlaneseq
  %v566 = vshrl.u32 %v565, 7
  %v567 = vsub.s32 1, %v566
  %v568 = vrot.slane %v559, %v567
  %v571 = vmul.f32 %v556, %v564
  %v572 = vmul.f32 %v557, %v568
  %s573 = scalar_lea.vmem %s3, 40
  %v574 = vld [vmem:[%s573] sm:$0xff]
  %v576 = vsel %vm95, %v574, 0
  %v579 = vsel %vm99, %v571, 0
  %v582 = vsel %vm99, %v572, 0
  %584 = vmatprep.subr.mxu0 0.0
  %585 = vmatpush1.msra.mxu0 0.0
  %586 = vmatprep.subr.mxu0 0.0
  %587 = vmatpush1.msra.mxu0 0.0
  %588 = vmatprep.subr.mxu0 0.0
  %589 = vmatpush1.msra.mxu0 0.0
  %590 = vmatprep.subr.mxu0 0.0
  %591 = vmatpush1.msra.mxu0 0.0
  %592 = vmatprep.subr.mxu0 0.0
  %593 = vmatpush1.msra.mxu0 0.0
  %594 = vmatprep.subr.mxu0 0.0
  %595 = vmatpush1.msra.mxu0 0.0
  %596 = vmatprep.subr.mxu0 0.0
  %597 = vmatpush1.msra.mxu0 0.0
  %598 = vmatprep.subr.mxu0 0.0
  %599 = vmatpush1.msra.mxu0 0.0
  %600 = vmatprep.subr.mxu0 0.0
  %601 = vmatpush1.msra.mxu0 0.0
  %602 = vmatprep.subr.mxu0 0.0
  %603 = vmatpush1.msra.mxu0 0.0
  %604 = vmatprep.subr.mxu0 0.0
  %605 = vmatpush1.msra.mxu0 0.0
  %606 = vmatprep.subr.mxu0 0.0
  %607 = vmatpush1.msra.mxu0 0.0
  %608 = vmatprep.subr.mxu0 0.0
  %609 = vmatpush1.msra.mxu0 0.0
  %610 = vmatprep.subr.mxu0 0.0
  %611 = vmatpush1.msra.mxu0 0.0
  %612 = vmatprep.subr.mxu0 0.0
  %613 = vmatpush1.msra.mxu0 0.0
  %614 = vmatprep.subr.mxu0 %v582
  %615 = vmatpush1.msra.mxu0 %v579
  %616 = vmatprep.subr.mxu0 0.0
  %617 = vmatpush2.msra.mxu0 0.0
  %618 = vmatprep.subr.mxu0 0.0
  %619 = vmatpush2.msra.mxu0 0.0
  %620 = vmatprep.subr.mxu0 0.0
  %621 = vmatpush2.msra.mxu0 0.0
  %622 = vmatprep.subr.mxu0 0.0
  %623 = vmatpush2.msra.mxu0 0.0
  %624 = vmatprep.subr.mxu0 0.0
  %625 = vmatpush2.msra.mxu0 0.0
  %626 = vmatprep.subr.mxu0 0.0
  %627 = vmatpush2.msra.mxu0 0.0
  %628 = vmatprep.subr.mxu0 0.0
  %629 = vmatpush2.msra.mxu0 0.0
  %630 = vmatprep.subr.mxu0 0.0
  %631 = vmatpush2.msra.mxu0 0.0
  %632 = vmatprep.subr.mxu0 0.0
  %633 = vmatpush2.msra.mxu0 0.0
  %634 = vmatprep.subr.mxu0 0.0
  %635 = vmatpush2.msra.mxu0 0.0
  %636 = vmatprep.subr.mxu0 0.0
  %637 = vmatpush2.msra.mxu0 0.0
  %638 = vmatprep.subr.mxu0 0.0
  %639 = vmatpush2.msra.mxu0 0.0
  %640 = vmatprep.subr.mxu0 0.0
  %641 = vmatpush2.msra.mxu0 0.0
  %642 = vmatprep.subr.mxu0 0.0
  %643 = vmatpush2.msra.mxu0 0.0
  %644 = vmatprep.subr.mxu0 0.0
  %645 = vmatpush2.msra.mxu0 0.0
  %646 = vmatprep.subr.mxu0 0.0
  %647 = vmatpush2.msra.mxu0 0.0
  %648 = vmatprep.mubr.f32.mxu0 0.0
  %649 = vmatmul.mubr.f32.gmra.mxu0 %v576
  %v650 = vpop.f32.mrf.mxu0
  %v651 = vadd.f32 0.0, %v650
  %v652 = vpop.f32.mrf.mxu0
  %v653 = vadd.f32 0.0, %v652
  %654 = vdwg.mxu0
  %v655 = vadd.f32 %v549, %v651
  %v656 = vadd.f32 %v550, %v653
  %657 = vrot.lane.b32.xlu0 %v43, 113
  %v658 = vpop.permute.xlu0 %657
  %659 = vrot.lane.b32.xlu0 %v44, 113
  %v660 = vpop.permute.xlu0 %659
  %vm661 = vcmp.lt.s32.totalorder %v52, 113
  %v662 = vsel %vm661, %v658, %v660
  %v663 = vsel %vm661, %v660, %v658
  %s664 = scalar_lea.vmem %s2, 12
  %v665 = vld [vmem:[%s664] sm:$0x3]
  %v667 = vlaneseq
  %v668 = vshrl.u32 %v667, 7
  %v669 = vsub.s32 0, %v668
  %v670 = vrot.slane %v665, %v669
  %v671 = vlaneseq
  %v672 = vshrl.u32 %v671, 7
  %v673 = vsub.s32 1, %v672
  %v674 = vrot.slane %v665, %v673
  %v677 = vmul.f32 %v662, %v670
  %v678 = vmul.f32 %v663, %v674
  %s679 = scalar_lea.vmem %s3, 48
  %v680 = vld [vmem:[%s679] sm:$0xff]
  %v682 = vsel %vm95, %v680, 0
  %v685 = vsel %vm99, %v677, 0
  %v688 = vsel %vm99, %v678, 0
  %690 = vmatprep.subr.mxu0 0.0
  %691 = vmatpush1.msra.mxu0 0.0
  %692 = vmatprep.subr.mxu0 0.0
  %693 = vmatpush1.msra.mxu0 0.0
  %694 = vmatprep.subr.mxu0 0.0
  %695 = vmatpush1.msra.mxu0 0.0
  %696 = vmatprep.subr.mxu0 0.0
  %697 = vmatpush1.msra.mxu0 0.0
  %698 = vmatprep.subr.mxu0 0.0
  %699 = vmatpush1.msra.mxu0 0.0
  %700 = vmatprep.subr.mxu0 0.0
  %701 = vmatpush1.msra.mxu0 0.0
  %702 = vmatprep.subr.mxu0 0.0
  %703 = vmatpush1.msra.mxu0 0.0
  %704 = vmatprep.subr.mxu0 0.0
  %705 = vmatpush1.msra.mxu0 0.0
  %706 = vmatprep.subr.mxu0 0.0
  %707 = vmatpush1.msra.mxu0 0.0
  %708 = vmatprep.subr.mxu0 0.0
  %709 = vmatpush1.msra.mxu0 0.0
  %710 = vmatprep.subr.mxu0 0.0
  %711 = vmatpush1.msra.mxu0 0.0
  %712 = vmatprep.subr.mxu0 0.0
  %713 = vmatpush1.msra.mxu0 0.0
  %714 = vmatprep.subr.mxu0 0.0
  %715 = vmatpush1.msra.mxu0 0.0
  %716 = vmatprep.subr.mxu0 0.0
  %717 = vmatpush1.msra.mxu0 0.0
  %718 = vmatprep.subr.mxu0 0.0
  %719 = vmatpush1.msra.mxu0 0.0
  %720 = vmatprep.subr.mxu0 %v688
  %721 = vmatpush1.msra.mxu0 %v685
  %722 = vmatprep.subr.mxu0 0.0
  %723 = vmatpush2.msra.mxu0 0.0
  %724 = vmatprep.subr.mxu0 0.0
  %725 = vmatpush2.msra.mxu0 0.0
  %726 = vmatprep.subr.mxu0 0.0
  %727 = vmatpush2.msra.mxu0 0.0
  %728 = vmatprep.subr.mxu0 0.0
  %729 = vmatpush2.msra.mxu0 0.0
  %730 = vmatprep.subr.mxu0 0.0
  %731 = vmatpush2.msra.mxu0 0.0
  %732 = vmatprep.subr.mxu0 0.0
  %733 = vmatpush2.msra.mxu0 0.0
  %734 = vmatprep.subr.mxu0 0.0
  %735 = vmatpush2.msra.mxu0 0.0
  %736 = vmatprep.subr.mxu0 0.0
  %737 = vmatpush2.msra.mxu0 0.0
  %738 = vmatprep.subr.mxu0 0.0
  %739 = vmatpush2.msra.mxu0 0.0
  %740 = vmatprep.subr.mxu0 0.0
  %741 = vmatpush2.msra.mxu0 0.0
  %742 = vmatprep.subr.mxu0 0.0
  %743 = vmatpush2.msra.mxu0 0.0
  %744 = vmatprep.subr.mxu0 0.0
  %745 = vmatpush2.msra.mxu0 0.0
  %746 = vmatprep.subr.mxu0 0.0
  %747 = vmatpush2.msra.mxu0 0.0
  %748 = vmatprep.subr.mxu0 0.0
  %749 = vmatpush2.msra.mxu0 0.0
  %750 = vmatprep.subr.mxu0 0.0
  %751 = vmatpush2.msra.mxu0 0.0
  %752 = vmatprep.subr.mxu0 0.0
  %753 = vmatpush2.msra.mxu0 0.0
  %754 = vmatprep.mubr.f32.mxu0 0.0
  %755 = vmatmul.mubr.f32.gmra.mxu0 %v682
  %v756 = vpop.f32.mrf.mxu0
  %v757 = vadd.f32 0.0, %v756
  %v758 = vpop.f32.mrf.mxu0
  %v759 = vadd.f32 0.0, %v758
  %760 = vdwg.mxu0
  %v761 = vadd.f32 %v655, %v757
  %v762 = vadd.f32 %v656, %v759
  %763 = vrot.lane.b32.xlu0 %v43, 112
  %v764 = vpop.permute.xlu0 %763
  %765 = vrot.lane.b32.xlu0 %v44, 112
  %v766 = vpop.permute.xlu0 %765
  %vm767 = vcmp.lt.s32.totalorder %v52, 112
  %v768 = vsel %vm767, %v764, %v766
  %v769 = vsel %vm767, %v766, %v764
  %s770 = scalar_lea.vmem %s2, 14
  %v771 = vld [vmem:[%s770] sm:$0x3]
  %v773 = vlaneseq
  %v774 = vshrl.u32 %v773, 7
  %v775 = vsub.s32 0, %v774
  %v776 = vrot.slane %v771, %v775
  %v777 = vlaneseq
  %v778 = vshrl.u32 %v777, 7
  %v779 = vsub.s32 1, %v778
  %v780 = vrot.slane %v771, %v779
  %v783 = vmul.f32 %v768, %v776
  %v784 = vmul.f32 %v769, %v780
  %s785 = scalar_lea.vmem %s3, 56
  %v786 = vld [vmem:[%s785] sm:$0xff]
  %v788 = vsel %vm95, %v786, 0
  %v791 = vsel %vm99, %v783, 0
  %v794 = vsel %vm99, %v784, 0
  %796 = vmatprep.subr.mxu0 0.0
  %797 = vmatpush1.msra.mxu0 0.0
  %798 = vmatprep.subr.mxu0 0.0
  %799 = vmatpush1.msra.mxu0 0.0
  %800 = vmatprep.subr.mxu0 0.0
  %801 = vmatpush1.msra.mxu0 0.0
  %802 = vmatprep.subr.mxu0 0.0
  %803 = vmatpush1.msra.mxu0 0.0
  %804 = vmatprep.subr.mxu0 0.0
  %805 = vmatpush1.msra.mxu0 0.0
  %806 = vmatprep.subr.mxu0 0.0
  %807 = vmatpush1.msra.mxu0 0.0
  %808 = vmatprep.subr.mxu0 0.0
  %809 = vmatpush1.msra.mxu0 0.0
  %810 = vmatprep.subr.mxu0 0.0
  %811 = vmatpush1.msra.mxu0 0.0
  %812 = vmatprep.subr.mxu0 0.0
  %813 = vmatpush1.msra.mxu0 0.0
  %814 = vmatprep.subr.mxu0 0.0
  %815 = vmatpush1.msra.mxu0 0.0
  %816 = vmatprep.subr.mxu0 0.0
  %817 = vmatpush1.msra.mxu0 0.0
  %818 = vmatprep.subr.mxu0 0.0
  %819 = vmatpush1.msra.mxu0 0.0
  %820 = vmatprep.subr.mxu0 0.0
  %821 = vmatpush1.msra.mxu0 0.0
  %822 = vmatprep.subr.mxu0 0.0
  %823 = vmatpush1.msra.mxu0 0.0
  %824 = vmatprep.subr.mxu0 0.0
  %825 = vmatpush1.msra.mxu0 0.0
  %826 = vmatprep.subr.mxu0 %v794
  %827 = vmatpush1.msra.mxu0 %v791
  %828 = vmatprep.subr.mxu0 0.0
  %829 = vmatpush2.msra.mxu0 0.0
  %830 = vmatprep.subr.mxu0 0.0
  %831 = vmatpush2.msra.mxu0 0.0
  %832 = vmatprep.subr.mxu0 0.0
  %833 = vmatpush2.msra.mxu0 0.0
  %834 = vmatprep.subr.mxu0 0.0
  %835 = vmatpush2.msra.mxu0 0.0
  %836 = vmatprep.subr.mxu0 0.0
  %837 = vmatpush2.msra.mxu0 0.0
  %838 = vmatprep.subr.mxu0 0.0
  %839 = vmatpush2.msra.mxu0 0.0
  %840 = vmatprep.subr.mxu0 0.0
  %841 = vmatpush2.msra.mxu0 0.0
  %842 = vmatprep.subr.mxu0 0.0
  %843 = vmatpush2.msra.mxu0 0.0
  %844 = vmatprep.subr.mxu0 0.0
  %845 = vmatpush2.msra.mxu0 0.0
  %846 = vmatprep.subr.mxu0 0.0
  %847 = vmatpush2.msra.mxu0 0.0
  %848 = vmatprep.subr.mxu0 0.0
  %849 = vmatpush2.msra.mxu0 0.0
  %850 = vmatprep.subr.mxu0 0.0
  %851 = vmatpush2.msra.mxu0 0.0
  %852 = vmatprep.subr.mxu0 0.0
  %853 = vmatpush2.msra.mxu0 0.0
  %854 = vmatprep.subr.mxu0 0.0
  %855 = vmatpush2.msra.mxu0 0.0
  %856 = vmatprep.subr.mxu0 0.0
  %857 = vmatpush2.msra.mxu0 0.0
  %858 = vmatprep.subr.mxu0 0.0
  %859 = vmatpush2.msra.mxu0 0.0
  %860 = vmatprep.mubr.f32.mxu0 0.0
  %861 = vmatmul.mubr.f32.gmra.mxu0 %v788
  %v862 = vpop.f32.mrf.mxu0
  %v863 = vadd.f32 0.0, %v862
  %v864 = vpop.f32.mrf.mxu0
  %v865 = vadd.f32 0.0, %v864
  %866 = vdwg.mxu0
  %v867 = vadd.f32 %v761, %v863
  %v868 = vadd.f32 %v762, %v865
  %869 = vrot.lane.b32.xlu0 %v43, 111
  %v870 = vpop.permute.xlu0 %869
  %871 = vrot.lane.b32.xlu0 %v44, 111
  %v872 = vpop.permute.xlu0 %871
  %vm873 = vcmp.lt.s32.totalorder %v52, 111
  %v874 = vsel %vm873, %v870, %v872
  %v875 = vsel %vm873, %v872, %v870
  %s876 = scalar_lea.vmem %s2, 16
  %v877 = vld [vmem:[%s876] sm:$0x3]
  %v879 = vlaneseq
  %v880 = vshrl.u32 %v879, 7
  %v881 = vsub.s32 0, %v880
  %v882 = vrot.slane %v877, %v881
  %v883 = vlaneseq
  %v884 = vshrl.u32 %v883, 7
  %v885 = vsub.s32 1, %v884
  %v886 = vrot.slane %v877, %v885
  %v889 = vmul.f32 %v874, %v882
  %v890 = vmul.f32 %v875, %v886
  %s891 = scalar_lea.vmem %s3, 64
  %v892 = vld [vmem:[%s891] sm:$0xff]
  %v894 = vsel %vm95, %v892, 0
  %v897 = vsel %vm99, %v889, 0
  %v900 = vsel %vm99, %v890, 0
  %902 = vmatprep.subr.mxu0 0.0
  %903 = vmatpush1.msra.mxu0 0.0
  %904 = vmatprep.subr.mxu0 0.0
  %905 = vmatpush1.msra.mxu0 0.0
  %906 = vmatprep.subr.mxu0 0.0
  %907 = vmatpush1.msra.mxu0 0.0
  %908 = vmatprep.subr.mxu0 0.0
  %909 = vmatpush1.msra.mxu0 0.0
  %910 = vmatprep.subr.mxu0 0.0
  %911 = vmatpush1.msra.mxu0 0.0
  %912 = vmatprep.subr.mxu0 0.0
  %913 = vmatpush1.msra.mxu0 0.0
  %914 = vmatprep.subr.mxu0 0.0
  %915 = vmatpush1.msra.mxu0 0.0
  %916 = vmatprep.subr.mxu0 0.0
  %917 = vmatpush1.msra.mxu0 0.0
  %918 = vmatprep.subr.mxu0 0.0
  %919 = vmatpush1.msra.mxu0 0.0
  %920 = vmatprep.subr.mxu0 0.0
  %921 = vmatpush1.msra.mxu0 0.0
  %922 = vmatprep.subr.mxu0 0.0
  %923 = vmatpush1.msra.mxu0 0.0
  %924 = vmatprep.subr.mxu0 0.0
  %925 = vmatpush1.msra.mxu0 0.0
  %926 = vmatprep.subr.mxu0 0.0
  %927 = vmatpush1.msra.mxu0 0.0
  %928 = vmatprep.subr.mxu0 0.0
  %929 = vmatpush1.msra.mxu0 0.0
  %930 = vmatprep.subr.mxu0 0.0
  %931 = vmatpush1.msra.mxu0 0.0
  %932 = vmatprep.subr.mxu0 %v900
  %933 = vmatpush1.msra.mxu0 %v897
  %934 = vmatprep.subr.mxu0 0.0
  %935 = vmatpush2.msra.mxu0 0.0
  %936 = vmatprep.subr.mxu0 0.0
  %937 = vmatpush2.msra.mxu0 0.0
  %938 = vmatprep.subr.mxu0 0.0
  %939 = vmatpush2.msra.mxu0 0.0
  %940 = vmatprep.subr.mxu0 0.0
  %941 = vmatpush2.msra.mxu0 0.0
  %942 = vmatprep.subr.mxu0 0.0
  %943 = vmatpush2.msra.mxu0 0.0
  %944 = vmatprep.subr.mxu0 0.0
  %945 = vmatpush2.msra.mxu0 0.0
  %946 = vmatprep.subr.mxu0 0.0
  %947 = vmatpush2.msra.mxu0 0.0
  %948 = vmatprep.subr.mxu0 0.0
  %949 = vmatpush2.msra.mxu0 0.0
  %950 = vmatprep.subr.mxu0 0.0
  %951 = vmatpush2.msra.mxu0 0.0
  %952 = vmatprep.subr.mxu0 0.0
  %953 = vmatpush2.msra.mxu0 0.0
  %954 = vmatprep.subr.mxu0 0.0
  %955 = vmatpush2.msra.mxu0 0.0
  %956 = vmatprep.subr.mxu0 0.0
  %957 = vmatpush2.msra.mxu0 0.0
  %958 = vmatprep.subr.mxu0 0.0
  %959 = vmatpush2.msra.mxu0 0.0
  %960 = vmatprep.subr.mxu0 0.0
  %961 = vmatpush2.msra.mxu0 0.0
  %962 = vmatprep.subr.mxu0 0.0
  %963 = vmatpush2.msra.mxu0 0.0
  %964 = vmatprep.subr.mxu0 0.0
  %965 = vmatpush2.msra.mxu0 0.0
  %966 = vmatprep.mubr.f32.mxu0 0.0
  %967 = vmatmul.mubr.f32.gmra.mxu0 %v894
  %v968 = vpop.f32.mrf.mxu0
  %v969 = vadd.f32 0.0, %v968
  %v970 = vpop.f32.mrf.mxu0
  %v971 = vadd.f32 0.0, %v970
  %972 = vdwg.mxu0
  %v973 = vadd.f32 %v867, %v969
  %v974 = vadd.f32 %v868, %v971
  %v975 = vld [vmem:[%s4] sm:$0xff]
  %977 = vset.pattern.permute.xlu0 0
  %978 = vperm.xlu0 %977, %v975
  %v979 = vpop.permute.xlu0 %978
  %v981 = vadd.f32 %v973, %v979
  %v982 = vadd.f32 %v974, %v979
  %v983 = vmax.f32 %v981, 0.0
  %v984 = vmax.f32 %v982, 0.0
  %985 = vrot.lane.b32.xlu0 %v983, 17
  %v986 = vpop.permute.xlu0 %985
  %987 = vrot.lane.b32.xlu0 %v984, 17
  %v988 = vpop.permute.xlu0 %987
  %v989 = vsel %vm53, %v986, %v988
  %v990 = vsel %vm53, %v988, %v986
  %v991 = vmul.f32 %v990, %v61
  %v992 = vmul.f32 %v989, %v65
  %v993 = vld [vmem:[%s5] sm:$0xff]
  %994 = vrot.lane.b32.xlu0 %v983, 16
  %v995 = vpop.permute.xlu0 %994
  %996 = vrot.lane.b32.xlu0 %v984, 16
  %v997 = vpop.permute.xlu0 %996
  %v998 = vsel %vm75, %v995, %v997
  %v999 = vsel %vm75, %v997, %v995
  %v1000 = vmul.f32 %v999, %v84
  %v1001 = vmul.f32 %v998, %v88
  %s1002 = scalar_lea.vmem %s5, 8
  %v1003 = vld [vmem:[%s1002] sm:$0xff]
  %vm1004 = vcmask 64512
  %v1006 = vsel %vm1004, %v1003, 0
  %1008 = vmatprep.subr.mxu0 0.0
  %1009 = vmatpush1.msra.mxu0 0.0
  %1010 = vmatprep.subr.mxu0 0.0
  %1011 = vmatpush1.msra.mxu0 0.0
  %1012 = vmatprep.subr.mxu0 0.0
  %1013 = vmatpush1.msra.mxu0 0.0
  %1014 = vmatprep.subr.mxu0 0.0
  %1015 = vmatpush1.msra.mxu0 0.0
  %1016 = vmatprep.subr.mxu0 0.0
  %1017 = vmatpush1.msra.mxu0 0.0
  %1018 = vmatprep.subr.mxu0 0.0
  %1019 = vmatpush1.msra.mxu0 0.0
  %1020 = vmatprep.subr.mxu0 0.0
  %1021 = vmatpush1.msra.mxu0 0.0
  %1022 = vmatprep.subr.mxu0 0.0
  %1023 = vmatpush1.msra.mxu0 0.0
  %1024 = vmatprep.subr.mxu0 0.0
  %1025 = vmatpush1.msra.mxu0 0.0
  %1026 = vmatprep.subr.mxu0 0.0
  %1027 = vmatpush1.msra.mxu0 0.0
  %1028 = vmatprep.subr.mxu0 0.0
  %1029 = vmatpush1.msra.mxu0 0.0
  %1030 = vmatprep.subr.mxu0 0.0
  %1031 = vmatpush1.msra.mxu0 0.0
  %1032 = vmatprep.subr.mxu0 0.0
  %1033 = vmatpush1.msra.mxu0 0.0
  %1034 = vmatprep.subr.mxu0 0.0
  %1035 = vmatpush1.msra.mxu0 0.0
  %1036 = vmatprep.subr.mxu0 0.0
  %1037 = vmatpush1.msra.mxu0 0.0
  %1038 = vmatprep.subr.mxu0 %v1001
  %1039 = vmatpush1.msra.mxu0 %v1000
  %1040 = vmatprep.subr.mxu0 0.0
  %1041 = vmatpush2.msra.mxu0 0.0
  %1042 = vmatprep.subr.mxu0 0.0
  %1043 = vmatpush2.msra.mxu0 0.0
  %1044 = vmatprep.subr.mxu0 0.0
  %1045 = vmatpush2.msra.mxu0 0.0
  %1046 = vmatprep.subr.mxu0 0.0
  %1047 = vmatpush2.msra.mxu0 0.0
  %1048 = vmatprep.subr.mxu0 0.0
  %1049 = vmatpush2.msra.mxu0 0.0
  %1050 = vmatprep.subr.mxu0 0.0
  %1051 = vmatpush2.msra.mxu0 0.0
  %1052 = vmatprep.subr.mxu0 0.0
  %1053 = vmatpush2.msra.mxu0 0.0
  %1054 = vmatprep.subr.mxu0 0.0
  %1055 = vmatpush2.msra.mxu0 0.0
  %1056 = vmatprep.subr.mxu0 0.0
  %1057 = vmatpush2.msra.mxu0 0.0
  %1058 = vmatprep.subr.mxu0 0.0
  %1059 = vmatpush2.msra.mxu0 0.0
  %1060 = vmatprep.subr.mxu0 0.0
  %1061 = vmatpush2.msra.mxu0 0.0
  %1062 = vmatprep.subr.mxu0 0.0
  %1063 = vmatpush2.msra.mxu0 0.0
  %1064 = vmatprep.subr.mxu0 0.0
  %1065 = vmatpush2.msra.mxu0 0.0
  %1066 = vmatprep.subr.mxu0 0.0
  %1067 = vmatpush2.msra.mxu0 0.0
  %1068 = vmatprep.subr.mxu0 0.0
  %1069 = vmatpush2.msra.mxu0 0.0
  %1070 = vmatprep.subr.mxu0 0.0
  %1071 = vmatpush2.msra.mxu0 0.0
  %1072 = vmatprep.mubr.f32.mxu0 0.0
  %1073 = vmatmul.mubr.f32.gmra.mxu0 %v1006
  %v1074 = vpop.f32.mrf.mxu0
  %v1075 = vadd.f32 0.0, %v1074
  %v1076 = vpop.f32.mrf.mxu0
  %v1077 = vadd.f32 0.0, %v1076
  %1078 = vdwg.mxu0
  %v1080 = vsel %vm1004, %v993, 0
  %1082 = vmatprep.subr.mxu0 0.0
  %1083 = vmatpush1.msra.mxu0 0.0
  %1084 = vmatprep.subr.mxu0 0.0
  %1085 = vmatpush1.msra.mxu0 0.0
  %1086 = vmatprep.subr.mxu0 0.0
  %1087 = vmatpush1.msra.mxu0 0.0
  %1088 = vmatprep.subr.mxu0 0.0
  %1089 = vmatpush1.msra.mxu0 0.0
  %1090 = vmatprep.subr.mxu0 0.0
  %1091 = vmatpush1.msra.mxu0 0.0
  %1092 = vmatprep.subr.mxu0 0.0
  %1093 = vmatpush1.msra.mxu0 0.0
  %1094 = vmatprep.subr.mxu0 0.0
  %1095 = vmatpush1.msra.mxu0 0.0
  %1096 = vmatprep.subr.mxu0 0.0
  %1097 = vmatpush1.msra.mxu0 0.0
  %1098 = vmatprep.subr.mxu0 0.0
  %1099 = vmatpush1.msra.mxu0 0.0
  %1100 = vmatprep.subr.mxu0 0.0
  %1101 = vmatpush1.msra.mxu0 0.0
  %1102 = vmatprep.subr.mxu0 0.0
  %1103 = vmatpush1.msra.mxu0 0.0
  %1104 = vmatprep.subr.mxu0 0.0
  %1105 = vmatpush1.msra.mxu0 0.0
  %1106 = vmatprep.subr.mxu0 0.0
  %1107 = vmatpush1.msra.mxu0 0.0
  %1108 = vmatprep.subr.mxu0 0.0
  %1109 = vmatpush1.msra.mxu0 0.0
  %1110 = vmatprep.subr.mxu0 0.0
  %1111 = vmatpush1.msra.mxu0 0.0
  %1112 = vmatprep.subr.mxu0 %v992
  %1113 = vmatpush1.msra.mxu0 %v991
  %1114 = vmatprep.subr.mxu0 0.0
  %1115 = vmatpush2.msra.mxu0 0.0
  %1116 = vmatprep.subr.mxu0 0.0
  %1117 = vmatpush2.msra.mxu0 0.0
  %1118 = vmatprep.subr.mxu0 0.0
  %1119 = vmatpush2.msra.mxu0 0.0
  %1120 = vmatprep.subr.mxu0 0.0
  %1121 = vmatpush2.msra.mxu0 0.0
  %1122 = vmatprep.subr.mxu0 0.0
  %1123 = vmatpush2.msra.mxu0 0.0
  %1124 = vmatprep.subr.mxu0 0.0
  %1125 = vmatpush2.msra.mxu0 0.0
  %1126 = vmatprep.subr.mxu0 0.0
  %1127 = vmatpush2.msra.mxu0 0.0
  %1128 = vmatprep.subr.mxu0 0.0
  %1129 = vmatpush2.msra.mxu0 0.0
  %1130 = vmatprep.subr.mxu0 0.0
  %1131 = vmatpush2.msra.mxu0 0.0
  %1132 = vmatprep.subr.mxu0 0.0
  %1133 = vmatpush2.msra.mxu0 0.0
  %1134 = vmatprep.subr.mxu0 0.0
  %1135 = vmatpush2.msra.mxu0 0.0
  %1136 = vmatprep.subr.mxu0 0.0
  %1137 = vmatpush2.msra.mxu0 0.0
  %1138 = vmatprep.subr.mxu0 0.0
  %1139 = vmatpush2.msra.mxu0 0.0
  %1140 = vmatprep.subr.mxu0 0.0
  %1141 = vmatpush2.msra.mxu0 0.0
  %1142 = vmatprep.subr.mxu0 0.0
  %1143 = vmatpush2.msra.mxu0 0.0
  %1144 = vmatprep.subr.mxu0 0.0
  %1145 = vmatpush2.msra.mxu0 0.0
  %1146 = vmatprep.mubr.f32.mxu0 0.0
  %1147 = vmatmul.mubr.f32.gmra.mxu0 %v1080
  %v1148 = vpop.f32.mrf.mxu0
  %v1149 = vadd.f32 %v1075, %v1148
  %v1150 = vpop.f32.mrf.mxu0
  %v1151 = vadd.f32 %v1077, %v1150
  %1152 = vdwg.mxu0
  %1153 = vrot.lane.b32.xlu0 %v983, 15
  %v1154 = vpop.permute.xlu0 %1153
  %1155 = vrot.lane.b32.xlu0 %v984, 15
  %v1156 = vpop.permute.xlu0 %1155
  %v1157 = vsel %vm261, %v1154, %v1156
  %v1158 = vsel %vm261, %v1156, %v1154
  %v1159 = vmul.f32 %v1158, %v270
  %v1160 = vmul.f32 %v1157, %v274
  %s1161 = scalar_lea.vmem %s5, 16
  %v1162 = vld [vmem:[%s1161] sm:$0xff]
  %v1164 = vsel %vm1004, %v1162, 0
  %1166 = vmatprep.subr.mxu0 0.0
  %1167 = vmatpush1.msra.mxu0 0.0
  %1168 = vmatprep.subr.mxu0 0.0
  %1169 = vmatpush1.msra.mxu0 0.0
  %1170 = vmatprep.subr.mxu0 0.0
  %1171 = vmatpush1.msra.mxu0 0.0
  %1172 = vmatprep.subr.mxu0 0.0
  %1173 = vmatpush1.msra.mxu0 0.0
  %1174 = vmatprep.subr.mxu0 0.0
  %1175 = vmatpush1.msra.mxu0 0.0
  %1176 = vmatprep.subr.mxu0 0.0
  %1177 = vmatpush1.msra.mxu0 0.0
  %1178 = vmatprep.subr.mxu0 0.0
  %1179 = vmatpush1.msra.mxu0 0.0
  %1180 = vmatprep.subr.mxu0 0.0
  %1181 = vmatpush1.msra.mxu0 0.0
  %1182 = vmatprep.subr.mxu0 0.0
  %1183 = vmatpush1.msra.mxu0 0.0
  %1184 = vmatprep.subr.mxu0 0.0
  %1185 = vmatpush1.msra.mxu0 0.0
  %1186 = vmatprep.subr.mxu0 0.0
  %1187 = vmatpush1.msra.mxu0 0.0
  %1188 = vmatprep.subr.mxu0 0.0
  %1189 = vmatpush1.msra.mxu0 0.0
  %1190 = vmatprep.subr.mxu0 0.0
  %1191 = vmatpush1.msra.mxu0 0.0
  %1192 = vmatprep.subr.mxu0 0.0
  %1193 = vmatpush1.msra.mxu0 0.0
  %1194 = vmatprep.subr.mxu0 0.0
  %1195 = vmatpush1.msra.mxu0 0.0
  %1196 = vmatprep.subr.mxu0 %v1160
  %1197 = vmatpush1.msra.mxu0 %v1159
  %1198 = vmatprep.subr.mxu0 0.0
  %1199 = vmatpush2.msra.mxu0 0.0
  %1200 = vmatprep.subr.mxu0 0.0
  %1201 = vmatpush2.msra.mxu0 0.0
  %1202 = vmatprep.subr.mxu0 0.0
  %1203 = vmatpush2.msra.mxu0 0.0
  %1204 = vmatprep.subr.mxu0 0.0
  %1205 = vmatpush2.msra.mxu0 0.0
  %1206 = vmatprep.subr.mxu0 0.0
  %1207 = vmatpush2.msra.mxu0 0.0
  %1208 = vmatprep.subr.mxu0 0.0
  %1209 = vmatpush2.msra.mxu0 0.0
  %1210 = vmatprep.subr.mxu0 0.0
  %1211 = vmatpush2.msra.mxu0 0.0
  %1212 = vmatprep.subr.mxu0 0.0
  %1213 = vmatpush2.msra.mxu0 0.0
  %1214 = vmatprep.subr.mxu0 0.0
  %1215 = vmatpush2.msra.mxu0 0.0
  %1216 = vmatprep.subr.mxu0 0.0
  %1217 = vmatpush2.msra.mxu0 0.0
  %1218 = vmatprep.subr.mxu0 0.0
  %1219 = vmatpush2.msra.mxu0 0.0
  %1220 = vmatprep.subr.mxu0 0.0
  %1221 = vmatpush2.msra.mxu0 0.0
  %1222 = vmatprep.subr.mxu0 0.0
  %1223 = vmatpush2.msra.mxu0 0.0
  %1224 = vmatprep.subr.mxu0 0.0
  %1225 = vmatpush2.msra.mxu0 0.0
  %1226 = vmatprep.subr.mxu0 0.0
  %1227 = vmatpush2.msra.mxu0 0.0
  %1228 = vmatprep.subr.mxu0 0.0
  %1229 = vmatpush2.msra.mxu0 0.0
  %1230 = vmatprep.mubr.f32.mxu0 0.0
  %1231 = vmatmul.mubr.f32.gmra.mxu0 %v1164
  %v1232 = vpop.f32.mrf.mxu0
  %v1233 = vadd.f32 0.0, %v1232
  %v1234 = vpop.f32.mrf.mxu0
  %v1235 = vadd.f32 0.0, %v1234
  %1236 = vdwg.mxu0
  %v1237 = vadd.f32 %v1149, %v1233
  %v1238 = vadd.f32 %v1151, %v1235
  %1239 = vrot.lane.b32.xlu0 %v983, 1
  %v1240 = vpop.permute.xlu0 %1239
  %1241 = vrot.lane.b32.xlu0 %v984, 1
  %v1242 = vpop.permute.xlu0 %1241
  %v1243 = vsel %vm367, %v1240, %v1242
  %v1244 = vsel %vm367, %v1242, %v1240
  %v1245 = vmul.f32 %v1244, %v376
  %v1246 = vmul.f32 %v1243, %v380
  %s1247 = scalar_lea.vmem %s5, 24
  %v1248 = vld [vmem:[%s1247] sm:$0xff]
  %v1250 = vsel %vm1004, %v1248, 0
  %1252 = vmatprep.subr.mxu0 0.0
  %1253 = vmatpush1.msra.mxu0 0.0
  %1254 = vmatprep.subr.mxu0 0.0
  %1255 = vmatpush1.msra.mxu0 0.0
  %1256 = vmatprep.subr.mxu0 0.0
  %1257 = vmatpush1.msra.mxu0 0.0
  %1258 = vmatprep.subr.mxu0 0.0
  %1259 = vmatpush1.msra.mxu0 0.0
  %1260 = vmatprep.subr.mxu0 0.0
  %1261 = vmatpush1.msra.mxu0 0.0
  %1262 = vmatprep.subr.mxu0 0.0
  %1263 = vmatpush1.msra.mxu0 0.0
  %1264 = vmatprep.subr.mxu0 0.0
  %1265 = vmatpush1.msra.mxu0 0.0
  %1266 = vmatprep.subr.mxu0 0.0
  %1267 = vmatpush1.msra.mxu0 0.0
  %1268 = vmatprep.subr.mxu0 0.0
  %1269 = vmatpush1.msra.mxu0 0.0
  %1270 = vmatprep.subr.mxu0 0.0
  %1271 = vmatpush1.msra.mxu0 0.0
  %1272 = vmatprep.subr.mxu0 0.0
  %1273 = vmatpush1.msra.mxu0 0.0
  %1274 = vmatprep.subr.mxu0 0.0
  %1275 = vmatpush1.msra.mxu0 0.0
  %1276 = vmatprep.subr.mxu0 0.0
  %1277 = vmatpush1.msra.mxu0 0.0
  %1278 = vmatprep.subr.mxu0 0.0
  %1279 = vmatpush1.msra.mxu0 0.0
  %1280 = vmatprep.subr.mxu0 0.0
  %1281 = vmatpush1.msra.mxu0 0.0
  %1282 = vmatprep.subr.mxu0 %v1246
  %1283 = vmatpush1.msra.mxu0 %v1245
  %1284 = vmatprep.subr.mxu0 0.0
  %1285 = vmatpush2.msra.mxu0 0.0
  %1286 = vmatprep.subr.mxu0 0.0
  %1287 = vmatpush2.msra.mxu0 0.0
  %1288 = vmatprep.subr.mxu0 0.0
  %1289 = vmatpush2.msra.mxu0 0.0
  %1290 = vmatprep.subr.mxu0 0.0
  %1291 = vmatpush2.msra.mxu0 0.0
  %1292 = vmatprep.subr.mxu0 0.0
  %1293 = vmatpush2.msra.mxu0 0.0
  %1294 = vmatprep.subr.mxu0 0.0
  %1295 = vmatpush2.msra.mxu0 0.0
  %1296 = vmatprep.subr.mxu0 0.0
  %1297 = vmatpush2.msra.mxu0 0.0
  %1298 = vmatprep.subr.mxu0 0.0
  %1299 = vmatpush2.msra.mxu0 0.0
  %1300 = vmatprep.subr.mxu0 0.0
  %1301 = vmatpush2.msra.mxu0 0.0
  %1302 = vmatprep.subr.mxu0 0.0
  %1303 = vmatpush2.msra.mxu0 0.0
  %1304 = vmatprep.subr.mxu0 0.0
  %1305 = vmatpush2.msra.mxu0 0.0
  %1306 = vmatprep.subr.mxu0 0.0
  %1307 = vmatpush2.msra.mxu0 0.0
  %1308 = vmatprep.subr.mxu0 0.0
  %1309 = vmatpush2.msra.mxu0 0.0
  %1310 = vmatprep.subr.mxu0 0.0
  %1311 = vmatpush2.msra.mxu0 0.0
  %1312 = vmatprep.subr.mxu0 0.0
  %1313 = vmatpush2.msra.mxu0 0.0
  %1314 = vmatprep.subr.mxu0 0.0
  %1315 = vmatpush2.msra.mxu0 0.0
  %1316 = vmatprep.mubr.f32.mxu0 0.0
  %1317 = vmatmul.mubr.f32.gmra.mxu0 %v1250
  %v1318 = vpop.f32.mrf.mxu0
  %v1319 = vadd.f32 0.0, %v1318
  %v1320 = vpop.f32.mrf.mxu0
  %v1321 = vadd.f32 0.0, %v1320
  %1322 = vdwg.mxu0
  %v1323 = vadd.f32 %v1237, %v1319
  %v1324 = vadd.f32 %v1238, %v1321
  %s1325 = scalar_lea.vmem %s5, 32
  %v1326 = vld [vmem:[%s1325] sm:$0xff]
  %v1328 = vsel %vm1004, %v1326, 0
  %1330 = vmatprep.subr.mxu0 0.0
  %1331 = vmatpush1.msra.mxu0 0.0
  %1332 = vmatprep.subr.mxu0 0.0
  %1333 = vmatpush1.msra.mxu0 0.0
  %1334 = vmatprep.subr.mxu0 0.0
  %1335 = vmatpush1.msra.mxu0 0.0
  %1336 = vmatprep.subr.mxu0 0.0
  %1337 = vmatpush1.msra.mxu0 0.0
  %1338 = vmatprep.subr.mxu0 0.0
  %1339 = vmatpush1.msra.mxu0 0.0
  %1340 = vmatprep.subr.mxu0 0.0
  %1341 = vmatpush1.msra.mxu0 0.0
  %1342 = vmatprep.subr.mxu0 0.0
  %1343 = vmatpush1.msra.mxu0 0.0
  %1344 = vmatprep.subr.mxu0 0.0
  %1345 = vmatpush1.msra.mxu0 0.0
  %1346 = vmatprep.subr.mxu0 0.0
  %1347 = vmatpush1.msra.mxu0 0.0
  %1348 = vmatprep.subr.mxu0 0.0
  %1349 = vmatpush1.msra.mxu0 0.0
  %1350 = vmatprep.subr.mxu0 0.0
  %1351 = vmatpush1.msra.mxu0 0.0
  %1352 = vmatprep.subr.mxu0 0.0
  %1353 = vmatpush1.msra.mxu0 0.0
  %1354 = vmatprep.subr.mxu0 0.0
  %1355 = vmatpush1.msra.mxu0 0.0
  %1356 = vmatprep.subr.mxu0 0.0
  %1357 = vmatpush1.msra.mxu0 0.0
  %1358 = vmatprep.subr.mxu0 0.0
  %1359 = vmatpush1.msra.mxu0 0.0
  %1360 = vmatprep.subr.mxu0 %v984
  %1361 = vmatpush1.msra.mxu0 %v983
  %1362 = vmatprep.subr.mxu0 0.0
  %1363 = vmatpush2.msra.mxu0 0.0
  %1364 = vmatprep.subr.mxu0 0.0
  %1365 = vmatpush2.msra.mxu0 0.0
  %1366 = vmatprep.subr.mxu0 0.0
  %1367 = vmatpush2.msra.mxu0 0.0
  %1368 = vmatprep.subr.mxu0 0.0
  %1369 = vmatpush2.msra.mxu0 0.0
  %1370 = vmatprep.subr.mxu0 0.0
  %1371 = vmatpush2.msra.mxu0 0.0
  %1372 = vmatprep.subr.mxu0 0.0
  %1373 = vmatpush2.msra.mxu0 0.0
  %1374 = vmatprep.subr.mxu0 0.0
  %1375 = vmatpush2.msra.mxu0 0.0
  %1376 = vmatprep.subr.mxu0 0.0
  %1377 = vmatpush2.msra.mxu0 0.0
  %1378 = vmatprep.subr.mxu0 0.0
  %1379 = vmatpush2.msra.mxu0 0.0
  %1380 = vmatprep.subr.mxu0 0.0
  %1381 = vmatpush2.msra.mxu0 0.0
  %1382 = vmatprep.subr.mxu0 0.0
  %1383 = vmatpush2.msra.mxu0 0.0
  %1384 = vmatprep.subr.mxu0 0.0
  %1385 = vmatpush2.msra.mxu0 0.0
  %1386 = vmatprep.subr.mxu0 0.0
  %1387 = vmatpush2.msra.mxu0 0.0
  %1388 = vmatprep.subr.mxu0 0.0
  %1389 = vmatpush2.msra.mxu0 0.0
  %1390 = vmatprep.subr.mxu0 0.0
  %1391 = vmatpush2.msra.mxu0 0.0
  %1392 = vmatprep.subr.mxu0 0.0
  %1393 = vmatpush2.msra.mxu0 0.0
  %1394 = vmatprep.mubr.f32.mxu0 0.0
  %1395 = vmatmul.mubr.f32.gmra.mxu0 %v1328
  %v1396 = vpop.f32.mrf.mxu0
  %v1397 = vadd.f32 0.0, %v1396
  %v1398 = vpop.f32.mrf.mxu0
  %v1399 = vadd.f32 0.0, %v1398
  %1400 = vdwg.mxu0
  %v1401 = vadd.f32 %v1323, %v1397
  %v1402 = vadd.f32 %v1324, %v1399
  %1403 = vrot.lane.b32.xlu0 %v983, 127
  %v1404 = vpop.permute.xlu0 %1403
  %1405 = vrot.lane.b32.xlu0 %v984, 127
  %v1406 = vpop.permute.xlu0 %1405
  %v1407 = vsel %vm555, %v1404, %v1406
  %v1408 = vsel %vm555, %v1406, %v1404
  %v1409 = vmul.f32 %v1407, %v564
  %v1410 = vmul.f32 %v1408, %v568
  %s1411 = scalar_lea.vmem %s5, 40
  %v1412 = vld [vmem:[%s1411] sm:$0xff]
  %v1414 = vsel %vm1004, %v1412, 0
  %1416 = vmatprep.subr.mxu0 0.0
  %1417 = vmatpush1.msra.mxu0 0.0
  %1418 = vmatprep.subr.mxu0 0.0
  %1419 = vmatpush1.msra.mxu0 0.0
  %1420 = vmatprep.subr.mxu0 0.0
  %1421 = vmatpush1.msra.mxu0 0.0
  %1422 = vmatprep.subr.mxu0 0.0
  %1423 = vmatpush1.msra.mxu0 0.0
  %1424 = vmatprep.subr.mxu0 0.0
  %1425 = vmatpush1.msra.mxu0 0.0
  %1426 = vmatprep.subr.mxu0 0.0
  %1427 = vmatpush1.msra.mxu0 0.0
  %1428 = vmatprep.subr.mxu0 0.0
  %1429 = vmatpush1.msra.mxu0 0.0
  %1430 = vmatprep.subr.mxu0 0.0
  %1431 = vmatpush1.msra.mxu0 0.0
  %1432 = vmatprep.subr.mxu0 0.0
  %1433 = vmatpush1.msra.mxu0 0.0
  %1434 = vmatprep.subr.mxu0 0.0
  %1435 = vmatpush1.msra.mxu0 0.0
  %1436 = vmatprep.subr.mxu0 0.0
  %1437 = vmatpush1.msra.mxu0 0.0
  %1438 = vmatprep.subr.mxu0 0.0
  %1439 = vmatpush1.msra.mxu0 0.0
  %1440 = vmatprep.subr.mxu0 0.0
  %1441 = vmatpush1.msra.mxu0 0.0
  %1442 = vmatprep.subr.mxu0 0.0
  %1443 = vmatpush1.msra.mxu0 0.0
  %1444 = vmatprep.subr.mxu0 0.0
  %1445 = vmatpush1.msra.mxu0 0.0
  %1446 = vmatprep.subr.mxu0 %v1410
  %1447 = vmatpush1.msra.mxu0 %v1409
  %1448 = vmatprep.subr.mxu0 0.0
  %1449 = vmatpush2.msra.mxu0 0.0
  %1450 = vmatprep.subr.mxu0 0.0
  %1451 = vmatpush2.msra.mxu0 0.0
  %1452 = vmatprep.subr.mxu0 0.0
  %1453 = vmatpush2.msra.mxu0 0.0
  %1454 = vmatprep.subr.mxu0 0.0
  %1455 = vmatpush2.msra.mxu0 0.0
  %1456 = vmatprep.subr.mxu0 0.0
  %1457 = vmatpush2.msra.mxu0 0.0
  %1458 = vmatprep.subr.mxu0 0.0
  %1459 = vmatpush2.msra.mxu0 0.0
  %1460 = vmatprep.subr.mxu0 0.0
  %1461 = vmatpush2.msra.mxu0 0.0
  %1462 = vmatprep.subr.mxu0 0.0
  %1463 = vmatpush2.msra.mxu0 0.0
  %1464 = vmatprep.subr.mxu0 0.0
  %1465 = vmatpush2.msra.mxu0 0.0
  %1466 = vmatprep.subr.mxu0 0.0
  %1467 = vmatpush2.msra.mxu0 0.0
  %1468 = vmatprep.subr.mxu0 0.0
  %1469 = vmatpush2.msra.mxu0 0.0
  %1470 = vmatprep.subr.mxu0 0.0
  %1471 = vmatpush2.msra.mxu0 0.0
  %1472 = vmatprep.subr.mxu0 0.0
  %1473 = vmatpush2.msra.mxu0 0.0
  %1474 = vmatprep.subr.mxu0 0.0
  %1475 = vmatpush2.msra.mxu0 0.0
  %1476 = vmatprep.subr.mxu0 0.0
  %1477 = vmatpush2.msra.mxu0 0.0
  %1478 = vmatprep.subr.mxu0 0.0
  %1479 = vmatpush2.msra.mxu0 0.0
  %1480 = vmatprep.mubr.f32.mxu0 0.0
  %1481 = vmatmul.mubr.f32.gmra.mxu0 %v1414
  %v1482 = vpop.f32.mrf.mxu0
  %v1483 = vadd.f32 0.0, %v1482
  %v1484 = vpop.f32.mrf.mxu0
  %v1485 = vadd.f32 0.0, %v1484
  %1486 = vdwg.mxu0
  %v1487 = vadd.f32 %v1401, %v1483
  %v1488 = vadd.f32 %v1402, %v1485
  %1489 = vrot.lane.b32.xlu0 %v983, 113
  %v1490 = vpop.permute.xlu0 %1489
  %1491 = vrot.lane.b32.xlu0 %v984, 113
  %v1492 = vpop.permute.xlu0 %1491
  %v1493 = vsel %vm661, %v1490, %v1492
  %v1494 = vsel %vm661, %v1492, %v1490
  %v1495 = vmul.f32 %v1493, %v670
  %v1496 = vmul.f32 %v1494, %v674
  %s1497 = scalar_lea.vmem %s5, 48
  %v1498 = vld [vmem:[%s1497] sm:$0xff]
  %v1500 = vsel %vm1004, %v1498, 0
  %1502 = vmatprep.subr.mxu0 0.0
  %1503 = vmatpush1.msra.mxu0 0.0
  %1504 = vmatprep.subr.mxu0 0.0
  %1505 = vmatpush1.msra.mxu0 0.0
  %1506 = vmatprep.subr.mxu0 0.0
  %1507 = vmatpush1.msra.mxu0 0.0
  %1508 = vmatprep.subr.mxu0 0.0
  %1509 = vmatpush1.msra.mxu0 0.0
  %1510 = vmatprep.subr.mxu0 0.0
  %1511 = vmatpush1.msra.mxu0 0.0
  %1512 = vmatprep.subr.mxu0 0.0
  %1513 = vmatpush1.msra.mxu0 0.0
  %1514 = vmatprep.subr.mxu0 0.0
  %1515 = vmatpush1.msra.mxu0 0.0
  %1516 = vmatprep.subr.mxu0 0.0
  %1517 = vmatpush1.msra.mxu0 0.0
  %1518 = vmatprep.subr.mxu0 0.0
  %1519 = vmatpush1.msra.mxu0 0.0
  %1520 = vmatprep.subr.mxu0 0.0
  %1521 = vmatpush1.msra.mxu0 0.0
  %1522 = vmatprep.subr.mxu0 0.0
  %1523 = vmatpush1.msra.mxu0 0.0
  %1524 = vmatprep.subr.mxu0 0.0
  %1525 = vmatpush1.msra.mxu0 0.0
  %1526 = vmatprep.subr.mxu0 0.0
  %1527 = vmatpush1.msra.mxu0 0.0
  %1528 = vmatprep.subr.mxu0 0.0
  %1529 = vmatpush1.msra.mxu0 0.0
  %1530 = vmatprep.subr.mxu0 0.0
  %1531 = vmatpush1.msra.mxu0 0.0
  %1532 = vmatprep.subr.mxu0 %v1496
  %1533 = vmatpush1.msra.mxu0 %v1495
  %1534 = vmatprep.subr.mxu0 0.0
  %1535 = vmatpush2.msra.mxu0 0.0
  %1536 = vmatprep.subr.mxu0 0.0
  %1537 = vmatpush2.msra.mxu0 0.0
  %1538 = vmatprep.subr.mxu0 0.0
  %1539 = vmatpush2.msra.mxu0 0.0
  %1540 = vmatprep.subr.mxu0 0.0
  %1541 = vmatpush2.msra.mxu0 0.0
  %1542 = vmatprep.subr.mxu0 0.0
  %1543 = vmatpush2.msra.mxu0 0.0
  %1544 = vmatprep.subr.mxu0 0.0
  %1545 = vmatpush2.msra.mxu0 0.0
  %1546 = vmatprep.subr.mxu0 0.0
  %1547 = vmatpush2.msra.mxu0 0.0
  %1548 = vmatprep.subr.mxu0 0.0
  %1549 = vmatpush2.msra.mxu0 0.0
  %1550 = vmatprep.subr.mxu0 0.0
  %1551 = vmatpush2.msra.mxu0 0.0
  %1552 = vmatprep.subr.mxu0 0.0
  %1553 = vmatpush2.msra.mxu0 0.0
  %1554 = vmatprep.subr.mxu0 0.0
  %1555 = vmatpush2.msra.mxu0 0.0
  %1556 = vmatprep.subr.mxu0 0.0
  %1557 = vmatpush2.msra.mxu0 0.0
  %1558 = vmatprep.subr.mxu0 0.0
  %1559 = vmatpush2.msra.mxu0 0.0
  %1560 = vmatprep.subr.mxu0 0.0
  %1561 = vmatpush2.msra.mxu0 0.0
  %1562 = vmatprep.subr.mxu0 0.0
  %1563 = vmatpush2.msra.mxu0 0.0
  %1564 = vmatprep.subr.mxu0 0.0
  %1565 = vmatpush2.msra.mxu0 0.0
  %1566 = vmatprep.mubr.f32.mxu0 0.0
  %1567 = vmatmul.mubr.f32.gmra.mxu0 %v1500
  %v1568 = vpop.f32.mrf.mxu0
  %v1569 = vadd.f32 0.0, %v1568
  %v1570 = vpop.f32.mrf.mxu0
  %v1571 = vadd.f32 0.0, %v1570
  %1572 = vdwg.mxu0
  %v1573 = vadd.f32 %v1487, %v1569
  %v1574 = vadd.f32 %v1488, %v1571
  %1575 = vrot.lane.b32.xlu0 %v983, 112
  %v1576 = vpop.permute.xlu0 %1575
  %1577 = vrot.lane.b32.xlu0 %v984, 112
  %v1578 = vpop.permute.xlu0 %1577
  %v1579 = vsel %vm767, %v1576, %v1578
  %v1580 = vsel %vm767, %v1578, %v1576
  %v1581 = vmul.f32 %v1579, %v776
  %v1582 = vmul.f32 %v1580, %v780
  %s1583 = scalar_lea.vmem %s5, 56
  %v1584 = vld [vmem:[%s1583] sm:$0xff]
  %v1586 = vsel %vm1004, %v1584, 0
  %1588 = vmatprep.subr.mxu0 0.0
  %1589 = vmatpush1.msra.mxu0 0.0
  %1590 = vmatprep.subr.mxu0 0.0
  %1591 = vmatpush1.msra.mxu0 0.0
  %1592 = vmatprep.subr.mxu0 0.0
  %1593 = vmatpush1.msra.mxu0 0.0
  %1594 = vmatprep.subr.mxu0 0.0
  %1595 = vmatpush1.msra.mxu0 0.0
  %1596 = vmatprep.subr.mxu0 0.0
  %1597 = vmatpush1.msra.mxu0 0.0
  %1598 = vmatprep.subr.mxu0 0.0
  %1599 = vmatpush1.msra.mxu0 0.0
  %1600 = vmatprep.subr.mxu0 0.0
  %1601 = vmatpush1.msra.mxu0 0.0
  %1602 = vmatprep.subr.mxu0 0.0
  %1603 = vmatpush1.msra.mxu0 0.0
  %1604 = vmatprep.subr.mxu0 0.0
  %1605 = vmatpush1.msra.mxu0 0.0
  %1606 = vmatprep.subr.mxu0 0.0
  %1607 = vmatpush1.msra.mxu0 0.0
  %1608 = vmatprep.subr.mxu0 0.0
  %1609 = vmatpush1.msra.mxu0 0.0
  %1610 = vmatprep.subr.mxu0 0.0
  %1611 = vmatpush1.msra.mxu0 0.0
  %1612 = vmatprep.subr.mxu0 0.0
  %1613 = vmatpush1.msra.mxu0 0.0
  %1614 = vmatprep.subr.mxu0 0.0
  %1615 = vmatpush1.msra.mxu0 0.0
  %1616 = vmatprep.subr.mxu0 0.0
  %1617 = vmatpush1.msra.mxu0 0.0
  %1618 = vmatprep.subr.mxu0 %v1582
  %1619 = vmatpush1.msra.mxu0 %v1581
  %1620 = vmatprep.subr.mxu0 0.0
  %1621 = vmatpush2.msra.mxu0 0.0
  %1622 = vmatprep.subr.mxu0 0.0
  %1623 = vmatpush2.msra.mxu0 0.0
  %1624 = vmatprep.subr.mxu0 0.0
  %1625 = vmatpush2.msra.mxu0 0.0
  %1626 = vmatprep.subr.mxu0 0.0
  %1627 = vmatpush2.msra.mxu0 0.0
  %1628 = vmatprep.subr.mxu0 0.0
  %1629 = vmatpush2.msra.mxu0 0.0
  %1630 = vmatprep.subr.mxu0 0.0
  %1631 = vmatpush2.msra.mxu0 0.0
  %1632 = vmatprep.subr.mxu0 0.0
  %1633 = vmatpush2.msra.mxu0 0.0
  %1634 = vmatprep.subr.mxu0 0.0
  %1635 = vmatpush2.msra.mxu0 0.0
  %1636 = vmatprep.subr.mxu0 0.0
  %1637 = vmatpush2.msra.mxu0 0.0
  %1638 = vmatprep.subr.mxu0 0.0
  %1639 = vmatpush2.msra.mxu0 0.0
  %1640 = vmatprep.subr.mxu0 0.0
  %1641 = vmatpush2.msra.mxu0 0.0
  %1642 = vmatprep.subr.mxu0 0.0
  %1643 = vmatpush2.msra.mxu0 0.0
  %1644 = vmatprep.subr.mxu0 0.0
  %1645 = vmatpush2.msra.mxu0 0.0
  %1646 = vmatprep.subr.mxu0 0.0
  %1647 = vmatpush2.msra.mxu0 0.0
  %1648 = vmatprep.subr.mxu0 0.0
  %1649 = vmatpush2.msra.mxu0 0.0
  %1650 = vmatprep.subr.mxu0 0.0
  %1651 = vmatpush2.msra.mxu0 0.0
  %1652 = vmatprep.mubr.f32.mxu0 0.0
  %1653 = vmatmul.mubr.f32.gmra.mxu0 %v1586
  %v1654 = vpop.f32.mrf.mxu0
  %v1655 = vadd.f32 0.0, %v1654
  %v1656 = vpop.f32.mrf.mxu0
  %v1657 = vadd.f32 0.0, %v1656
  %1658 = vdwg.mxu0
  %v1659 = vadd.f32 %v1573, %v1655
  %v1660 = vadd.f32 %v1574, %v1657
  %1661 = vrot.lane.b32.xlu0 %v983, 111
  %v1662 = vpop.permute.xlu0 %1661
  %1663 = vrot.lane.b32.xlu0 %v984, 111
  %v1664 = vpop.permute.xlu0 %1663
  %v1665 = vsel %vm873, %v1662, %v1664
  %v1666 = vsel %vm873, %v1664, %v1662
  %v1667 = vmul.f32 %v1665, %v882
  %v1668 = vmul.f32 %v1666, %v886
  %s1669 = scalar_lea.vmem %s5, 64
  %v1670 = vld [vmem:[%s1669] sm:$0xff]
  %v1672 = vsel %vm1004, %v1670, 0
  %1674 = vmatprep.subr.mxu0 0.0
  %1675 = vmatpush1.msra.mxu0 0.0
  %1676 = vmatprep.subr.mxu0 0.0
  %1677 = vmatpush1.msra.mxu0 0.0
  %1678 = vmatprep.subr.mxu0 0.0
  %1679 = vmatpush1.msra.mxu0 0.0
  %1680 = vmatprep.subr.mxu0 0.0
  %1681 = vmatpush1.msra.mxu0 0.0
  %1682 = vmatprep.subr.mxu0 0.0
  %1683 = vmatpush1.msra.mxu0 0.0
  %1684 = vmatprep.subr.mxu0 0.0
  %1685 = vmatpush1.msra.mxu0 0.0
  %1686 = vmatprep.subr.mxu0 0.0
  %1687 = vmatpush1.msra.mxu0 0.0
  %1688 = vmatprep.subr.mxu0 0.0
  %1689 = vmatpush1.msra.mxu0 0.0
  %1690 = vmatprep.subr.mxu0 0.0
  %1691 = vmatpush1.msra.mxu0 0.0
  %1692 = vmatprep.subr.mxu0 0.0
  %1693 = vmatpush1.msra.mxu0 0.0
  %1694 = vmatprep.subr.mxu0 0.0
  %1695 = vmatpush1.msra.mxu0 0.0
  %1696 = vmatprep.subr.mxu0 0.0
  %1697 = vmatpush1.msra.mxu0 0.0
  %1698 = vmatprep.subr.mxu0 0.0
  %1699 = vmatpush1.msra.mxu0 0.0
  %1700 = vmatprep.subr.mxu0 0.0
  %1701 = vmatpush1.msra.mxu0 0.0
  %1702 = vmatprep.subr.mxu0 0.0
  %1703 = vmatpush1.msra.mxu0 0.0
  %1704 = vmatprep.subr.mxu0 %v1668
  %1705 = vmatpush1.msra.mxu0 %v1667
  %1706 = vmatprep.subr.mxu0 0.0
  %1707 = vmatpush2.msra.mxu0 0.0
  %1708 = vmatprep.subr.mxu0 0.0
  %1709 = vmatpush2.msra.mxu0 0.0
  %1710 = vmatprep.subr.mxu0 0.0
  %1711 = vmatpush2.msra.mxu0 0.0
  %1712 = vmatprep.subr.mxu0 0.0
  %1713 = vmatpush2.msra.mxu0 0.0
  %1714 = vmatprep.subr.mxu0 0.0
  %1715 = vmatpush2.msra.mxu0 0.0
  %1716 = vmatprep.subr.mxu0 0.0
  %1717 = vmatpush2.msra.mxu0 0.0
  %1718 = vmatprep.subr.mxu0 0.0
  %1719 = vmatpush2.msra.mxu0 0.0
  %1720 = vmatprep.subr.mxu0 0.0
  %1721 = vmatpush2.msra.mxu0 0.0
  %1722 = vmatprep.subr.mxu0 0.0
  %1723 = vmatpush2.msra.mxu0 0.0
  %1724 = vmatprep.subr.mxu0 0.0
  %1725 = vmatpush2.msra.mxu0 0.0
  %1726 = vmatprep.subr.mxu0 0.0
  %1727 = vmatpush2.msra.mxu0 0.0
  %1728 = vmatprep.subr.mxu0 0.0
  %1729 = vmatpush2.msra.mxu0 0.0
  %1730 = vmatprep.subr.mxu0 0.0
  %1731 = vmatpush2.msra.mxu0 0.0
  %1732 = vmatprep.subr.mxu0 0.0
  %1733 = vmatpush2.msra.mxu0 0.0
  %1734 = vmatprep.subr.mxu0 0.0
  %1735 = vmatpush2.msra.mxu0 0.0
  %1736 = vmatprep.subr.mxu0 0.0
  %1737 = vmatpush2.msra.mxu0 0.0
  %1738 = vmatprep.mubr.f32.mxu0 0.0
  %1739 = vmatmul.mubr.f32.gmra.mxu0 %v1672
  %v1740 = vpop.f32.mrf.mxu0
  %v1741 = vadd.f32 0.0, %v1740
  %v1742 = vpop.f32.mrf.mxu0
  %v1743 = vadd.f32 0.0, %v1742
  %1744 = vdwg.mxu0
  %v1745 = vadd.f32 %v1659, %v1741
  %v1746 = vadd.f32 %v1660, %v1743
  %v1747 = vld [vmem:[%s6] sm:$0xff]
  %1749 = vset.pattern.permute.xlu0 0
  %1750 = vperm.xlu0 %1749, %v1747
  %v1751 = vpop.permute.xlu0 %1750
  %v1753 = vadd.f32 %v1745, %v1751
  %v1754 = vadd.f32 %v1746, %v1751
  %v1755 = vmax.f32 %v1753, 0.0
  %v1756 = vmax.f32 %v1754, 0.0
  %1757 = vrot.lane.b32.xlu0 %v1755, 17
  %v1758 = vpop.permute.xlu0 %1757
  %1759 = vrot.lane.b32.xlu0 %v1756, 17
  %v1760 = vpop.permute.xlu0 %1759
  %v1761 = vsel %vm53, %v1758, %v1760
  %v1762 = vsel %vm53, %v1760, %v1758
  %v1763 = vmul.f32 %v1762, %v61
  %v1764 = vmul.f32 %v1761, %v65
  %v1765 = vld [vmem:[%s7] sm:$0x3]
  %1766 = vrot.lane.b32.xlu0 %v1755, 16
  %v1767 = vpop.permute.xlu0 %1766
  %1768 = vrot.lane.b32.xlu0 %v1756, 16
  %v1769 = vpop.permute.xlu0 %1768
  %v1770 = vsel %vm75, %v1767, %v1769
  %v1771 = vsel %vm75, %v1769, %v1767
  %v1772 = vmul.f32 %v1771, %v84
  %v1773 = vmul.f32 %v1770, %v88
  %s1774 = scalar_lea.vmem %s7, 2
  %v1775 = vld [vmem:[%s1774] sm:$0x3]
  %v1777 = vsel %vm1004, %v1775, 0
  %1779 = vmatprep.subr.mxu0 0.0
  %1780 = vmatpush1.msra.mxu0 0.0
  %1781 = vmatprep.subr.mxu0 0.0
  %1782 = vmatpush1.msra.mxu0 0.0
  %1783 = vmatprep.subr.mxu0 0.0
  %1784 = vmatpush1.msra.mxu0 0.0
  %1785 = vmatprep.subr.mxu0 0.0
  %1786 = vmatpush1.msra.mxu0 0.0
  %1787 = vmatprep.subr.mxu0 0.0
  %1788 = vmatpush1.msra.mxu0 0.0
  %1789 = vmatprep.subr.mxu0 0.0
  %1790 = vmatpush1.msra.mxu0 0.0
  %1791 = vmatprep.subr.mxu0 0.0
  %1792 = vmatpush1.msra.mxu0 0.0
  %1793 = vmatprep.subr.mxu0 0.0
  %1794 = vmatpush1.msra.mxu0 0.0
  %1795 = vmatprep.subr.mxu0 0.0
  %1796 = vmatpush1.msra.mxu0 0.0
  %1797 = vmatprep.subr.mxu0 0.0
  %1798 = vmatpush1.msra.mxu0 0.0
  %1799 = vmatprep.subr.mxu0 0.0
  %1800 = vmatpush1.msra.mxu0 0.0
  %1801 = vmatprep.subr.mxu0 0.0
  %1802 = vmatpush1.msra.mxu0 0.0
  %1803 = vmatprep.subr.mxu0 0.0
  %1804 = vmatpush1.msra.mxu0 0.0
  %1805 = vmatprep.subr.mxu0 0.0
  %1806 = vmatpush1.msra.mxu0 0.0
  %1807 = vmatprep.subr.mxu0 0.0
  %1808 = vmatpush1.msra.mxu0 0.0
  %1809 = vmatprep.subr.mxu0 %v1773
  %1810 = vmatpush1.msra.mxu0 %v1772
  %1811 = vmatprep.subr.mxu0 0.0
  %1812 = vmatpush2.msra.mxu0 0.0
  %1813 = vmatprep.subr.mxu0 0.0
  %1814 = vmatpush2.msra.mxu0 0.0
  %1815 = vmatprep.subr.mxu0 0.0
  %1816 = vmatpush2.msra.mxu0 0.0
  %1817 = vmatprep.subr.mxu0 0.0
  %1818 = vmatpush2.msra.mxu0 0.0
  %1819 = vmatprep.subr.mxu0 0.0
  %1820 = vmatpush2.msra.mxu0 0.0
  %1821 = vmatprep.subr.mxu0 0.0
  %1822 = vmatpush2.msra.mxu0 0.0
  %1823 = vmatprep.subr.mxu0 0.0
  %1824 = vmatpush2.msra.mxu0 0.0
  %1825 = vmatprep.subr.mxu0 0.0
  %1826 = vmatpush2.msra.mxu0 0.0
  %1827 = vmatprep.subr.mxu0 0.0
  %1828 = vmatpush2.msra.mxu0 0.0
  %1829 = vmatprep.subr.mxu0 0.0
  %1830 = vmatpush2.msra.mxu0 0.0
  %1831 = vmatprep.subr.mxu0 0.0
  %1832 = vmatpush2.msra.mxu0 0.0
  %1833 = vmatprep.subr.mxu0 0.0
  %1834 = vmatpush2.msra.mxu0 0.0
  %1835 = vmatprep.subr.mxu0 0.0
  %1836 = vmatpush2.msra.mxu0 0.0
  %1837 = vmatprep.subr.mxu0 0.0
  %1838 = vmatpush2.msra.mxu0 0.0
  %1839 = vmatprep.subr.mxu0 0.0
  %1840 = vmatpush2.msra.mxu0 0.0
  %1841 = vmatprep.subr.mxu0 0.0
  %1842 = vmatpush2.msra.mxu0 0.0
  %1843 = vmatprep.mubr.f32.mxu0 0.0
  %1844 = vmatmul.mubr.f32.gmra.mxu0 %v1777
  %v1845 = vpop.f32.mrf.mxu0
  %v1846 = vadd.f32 0.0, %v1845
  %v1847 = vpop.f32.mrf.mxu0
  %v1848 = vadd.f32 0.0, %v1847
  %1849 = vdwg.mxu0
  %v1851 = vsel %vm1004, %v1765, 0
  %1853 = vmatprep.subr.mxu0 0.0
  %1854 = vmatpush1.msra.mxu0 0.0
  %1855 = vmatprep.subr.mxu0 0.0
  %1856 = vmatpush1.msra.mxu0 0.0
  %1857 = vmatprep.subr.mxu0 0.0
  %1858 = vmatpush1.msra.mxu0 0.0
  %1859 = vmatprep.subr.mxu0 0.0
  %1860 = vmatpush1.msra.mxu0 0.0
  %1861 = vmatprep.subr.mxu0 0.0
  %1862 = vmatpush1.msra.mxu0 0.0
  %1863 = vmatprep.subr.mxu0 0.0
  %1864 = vmatpush1.msra.mxu0 0.0
  %1865 = vmatprep.subr.mxu0 0.0
  %1866 = vmatpush1.msra.mxu0 0.0
  %1867 = vmatprep.subr.mxu0 0.0
  %1868 = vmatpush1.msra.mxu0 0.0
  %1869 = vmatprep.subr.mxu0 0.0
  %1870 = vmatpush1.msra.mxu0 0.0
  %1871 = vmatprep.subr.mxu0 0.0
  %1872 = vmatpush1.msra.mxu0 0.0
  %1873 = vmatprep.subr.mxu0 0.0
  %1874 = vmatpush1.msra.mxu0 0.0
  %1875 = vmatprep.subr.mxu0 0.0
  %1876 = vmatpush1.msra.mxu0 0.0
  %1877 = vmatprep.subr.mxu0 0.0
  %1878 = vmatpush1.msra.mxu0 0.0
  %1879 = vmatprep.subr.mxu0 0.0
  %1880 = vmatpush1.msra.mxu0 0.0
  %1881 = vmatprep.subr.mxu0 0.0
  %1882 = vmatpush1.msra.mxu0 0.0
  %1883 = vmatprep.subr.mxu0 %v1764
  %1884 = vmatpush1.msra.mxu0 %v1763
  %1885 = vmatprep.subr.mxu0 0.0
  %1886 = vmatpush2.msra.mxu0 0.0
  %1887 = vmatprep.subr.mxu0 0.0
  %1888 = vmatpush2.msra.mxu0 0.0
  %1889 = vmatprep.subr.mxu0 0.0
  %1890 = vmatpush2.msra.mxu0 0.0
  %1891 = vmatprep.subr.mxu0 0.0
  %1892 = vmatpush2.msra.mxu0 0.0
  %1893 = vmatprep.subr.mxu0 0.0
  %1894 = vmatpush2.msra.mxu0 0.0
  %1895 = vmatprep.subr.mxu0 0.0
  %1896 = vmatpush2.msra.mxu0 0.0
  %1897 = vmatprep.subr.mxu0 0.0
  %1898 = vmatpush2.msra.mxu0 0.0
  %1899 = vmatprep.subr.mxu0 0.0
  %1900 = vmatpush2.msra.mxu0 0.0
  %1901 = vmatprep.subr.mxu0 0.0
  %1902 = vmatpush2.msra.mxu0 0.0
  %1903 = vmatprep.subr.mxu0 0.0
  %1904 = vmatpush2.msra.mxu0 0.0
  %1905 = vmatprep.subr.mxu0 0.0
  %1906 = vmatpush2.msra.mxu0 0.0
  %1907 = vmatprep.subr.mxu0 0.0
  %1908 = vmatpush2.msra.mxu0 0.0
  %1909 = vmatprep.subr.mxu0 0.0
  %1910 = vmatpush2.msra.mxu0 0.0
  %1911 = vmatprep.subr.mxu0 0.0
  %1912 = vmatpush2.msra.mxu0 0.0
  %1913 = vmatprep.subr.mxu0 0.0
  %1914 = vmatpush2.msra.mxu0 0.0
  %1915 = vmatprep.subr.mxu0 0.0
  %1916 = vmatpush2.msra.mxu0 0.0
  %1917 = vmatprep.mubr.f32.mxu0 0.0
  %1918 = vmatmul.mubr.f32.gmra.mxu0 %v1851
  %v1919 = vpop.f32.mrf.mxu0
  %v1920 = vadd.f32 %v1846, %v1919
  %v1921 = vpop.f32.mrf.mxu0
  %v1922 = vadd.f32 %v1848, %v1921
  %1923 = vdwg.mxu0
  %1924 = vrot.lane.b32.xlu0 %v1755, 15
  %v1925 = vpop.permute.xlu0 %1924
  %1926 = vrot.lane.b32.xlu0 %v1756, 15
  %v1927 = vpop.permute.xlu0 %1926
  %v1928 = vsel %vm261, %v1925, %v1927
  %v1929 = vsel %vm261, %v1927, %v1925
  %v1930 = vmul.f32 %v1929, %v270
  %v1931 = vmul.f32 %v1928, %v274
  %s1932 = scalar_lea.vmem %s7, 4
  %v1933 = vld [vmem:[%s1932] sm:$0x3]
  %v1935 = vsel %vm1004, %v1933, 0
  %1937 = vmatprep.subr.mxu0 0.0
  %1938 = vmatpush1.msra.mxu0 0.0
  %1939 = vmatprep.subr.mxu0 0.0
  %1940 = vmatpush1.msra.mxu0 0.0
  %1941 = vmatprep.subr.mxu0 0.0
  %1942 = vmatpush1.msra.mxu0 0.0
  %1943 = vmatprep.subr.mxu0 0.0
  %1944 = vmatpush1.msra.mxu0 0.0
  %1945 = vmatprep.subr.mxu0 0.0
  %1946 = vmatpush1.msra.mxu0 0.0
  %1947 = vmatprep.subr.mxu0 0.0
  %1948 = vmatpush1.msra.mxu0 0.0
  %1949 = vmatprep.subr.mxu0 0.0
  %1950 = vmatpush1.msra.mxu0 0.0
  %1951 = vmatprep.subr.mxu0 0.0
  %1952 = vmatpush1.msra.mxu0 0.0
  %1953 = vmatprep.subr.mxu0 0.0
  %1954 = vmatpush1.msra.mxu0 0.0
  %1955 = vmatprep.subr.mxu0 0.0
  %1956 = vmatpush1.msra.mxu0 0.0
  %1957 = vmatprep.subr.mxu0 0.0
  %1958 = vmatpush1.msra.mxu0 0.0
  %1959 = vmatprep.subr.mxu0 0.0
  %1960 = vmatpush1.msra.mxu0 0.0
  %1961 = vmatprep.subr.mxu0 0.0
  %1962 = vmatpush1.msra.mxu0 0.0
  %1963 = vmatprep.subr.mxu0 0.0
  %1964 = vmatpush1.msra.mxu0 0.0
  %1965 = vmatprep.subr.mxu0 0.0
  %1966 = vmatpush1.msra.mxu0 0.0
  %1967 = vmatprep.subr.mxu0 %v1931
  %1968 = vmatpush1.msra.mxu0 %v1930
  %1969 = vmatprep.subr.mxu0 0.0
  %1970 = vmatpush2.msra.mxu0 0.0
  %1971 = vmatprep.subr.mxu0 0.0
  %1972 = vmatpush2.msra.mxu0 0.0
  %1973 = vmatprep.subr.mxu0 0.0
  %1974 = vmatpush2.msra.mxu0 0.0
  %1975 = vmatprep.subr.mxu0 0.0
  %1976 = vmatpush2.msra.mxu0 0.0
  %1977 = vmatprep.subr.mxu0 0.0
  %1978 = vmatpush2.msra.mxu0 0.0
  %1979 = vmatprep.subr.mxu0 0.0
  %1980 = vmatpush2.msra.mxu0 0.0
  %1981 = vmatprep.subr.mxu0 0.0
  %1982 = vmatpush2.msra.mxu0 0.0
  %1983 = vmatprep.subr.mxu0 0.0
  %1984 = vmatpush2.msra.mxu0 0.0
  %1985 = vmatprep.subr.mxu0 0.0
  %1986 = vmatpush2.msra.mxu0 0.0
  %1987 = vmatprep.subr.mxu0 0.0
  %1988 = vmatpush2.msra.mxu0 0.0
  %1989 = vmatprep.subr.mxu0 0.0
  %1990 = vmatpush2.msra.mxu0 0.0
  %1991 = vmatprep.subr.mxu0 0.0
  %1992 = vmatpush2.msra.mxu0 0.0
  %1993 = vmatprep.subr.mxu0 0.0
  %1994 = vmatpush2.msra.mxu0 0.0
  %1995 = vmatprep.subr.mxu0 0.0
  %1996 = vmatpush2.msra.mxu0 0.0
  %1997 = vmatprep.subr.mxu0 0.0
  %1998 = vmatpush2.msra.mxu0 0.0
  %1999 = vmatprep.subr.mxu0 0.0
  %2000 = vmatpush2.msra.mxu0 0.0
  %2001 = vmatprep.mubr.f32.mxu0 0.0
  %2002 = vmatmul.mubr.f32.gmra.mxu0 %v1935
  %v2003 = vpop.f32.mrf.mxu0
  %v2004 = vadd.f32 0.0, %v2003
  %v2005 = vpop.f32.mrf.mxu0
  %v2006 = vadd.f32 0.0, %v2005
  %2007 = vdwg.mxu0
  %v2008 = vadd.f32 %v1920, %v2004
  %v2009 = vadd.f32 %v1922, %v2006
  %2010 = vrot.lane.b32.xlu0 %v1755, 1
  %v2011 = vpop.permute.xlu0 %2010
  %2012 = vrot.lane.b32.xlu0 %v1756, 1
  %v2013 = vpop.permute.xlu0 %2012
  %v2014 = vsel %vm367, %v2011, %v2013
  %v2015 = vsel %vm367, %v2013, %v2011
  %v2016 = vmul.f32 %v2015, %v376
  %v2017 = vmul.f32 %v2014, %v380
  %s2018 = scalar_lea.vmem %s7, 6
  %v2019 = vld [vmem:[%s2018] sm:$0x3]
  %v2021 = vsel %vm1004, %v2019, 0
  %2023 = vmatprep.subr.mxu0 0.0
  %2024 = vmatpush1.msra.mxu0 0.0
  %2025 = vmatprep.subr.mxu0 0.0
  %2026 = vmatpush1.msra.mxu0 0.0
  %2027 = vmatprep.subr.mxu0 0.0
  %2028 = vmatpush1.msra.mxu0 0.0
  %2029 = vmatprep.subr.mxu0 0.0
  %2030 = vmatpush1.msra.mxu0 0.0
  %2031 = vmatprep.subr.mxu0 0.0
  %2032 = vmatpush1.msra.mxu0 0.0
  %2033 = vmatprep.subr.mxu0 0.0
  %2034 = vmatpush1.msra.mxu0 0.0
  %2035 = vmatprep.subr.mxu0 0.0
  %2036 = vmatpush1.msra.mxu0 0.0
  %2037 = vmatprep.subr.mxu0 0.0
  %2038 = vmatpush1.msra.mxu0 0.0
  %2039 = vmatprep.subr.mxu0 0.0
  %2040 = vmatpush1.msra.mxu0 0.0
  %2041 = vmatprep.subr.mxu0 0.0
  %2042 = vmatpush1.msra.mxu0 0.0
  %2043 = vmatprep.subr.mxu0 0.0
  %2044 = vmatpush1.msra.mxu0 0.0
  %2045 = vmatprep.subr.mxu0 0.0
  %2046 = vmatpush1.msra.mxu0 0.0
  %2047 = vmatprep.subr.mxu0 0.0
  %2048 = vmatpush1.msra.mxu0 0.0
  %2049 = vmatprep.subr.mxu0 0.0
  %2050 = vmatpush1.msra.mxu0 0.0
  %2051 = vmatprep.subr.mxu0 0.0
  %2052 = vmatpush1.msra.mxu0 0.0
  %2053 = vmatprep.subr.mxu0 %v2017
  %2054 = vmatpush1.msra.mxu0 %v2016
  %2055 = vmatprep.subr.mxu0 0.0
  %2056 = vmatpush2.msra.mxu0 0.0
  %2057 = vmatprep.subr.mxu0 0.0
  %2058 = vmatpush2.msra.mxu0 0.0
  %2059 = vmatprep.subr.mxu0 0.0
  %2060 = vmatpush2.msra.mxu0 0.0
  %2061 = vmatprep.subr.mxu0 0.0
  %2062 = vmatpush2.msra.mxu0 0.0
  %2063 = vmatprep.subr.mxu0 0.0
  %2064 = vmatpush2.msra.mxu0 0.0
  %2065 = vmatprep.subr.mxu0 0.0
  %2066 = vmatpush2.msra.mxu0 0.0
  %2067 = vmatprep.subr.mxu0 0.0
  %2068 = vmatpush2.msra.mxu0 0.0
  %2069 = vmatprep.subr.mxu0 0.0
  %2070 = vmatpush2.msra.mxu0 0.0
  %2071 = vmatprep.subr.mxu0 0.0
  %2072 = vmatpush2.msra.mxu0 0.0
  %2073 = vmatprep.subr.mxu0 0.0
  %2074 = vmatpush2.msra.mxu0 0.0
  %2075 = vmatprep.subr.mxu0 0.0
  %2076 = vmatpush2.msra.mxu0 0.0
  %2077 = vmatprep.subr.mxu0 0.0
  %2078 = vmatpush2.msra.mxu0 0.0
  %2079 = vmatprep.subr.mxu0 0.0
  %2080 = vmatpush2.msra.mxu0 0.0
  %2081 = vmatprep.subr.mxu0 0.0
  %2082 = vmatpush2.msra.mxu0 0.0
  %2083 = vmatprep.subr.mxu0 0.0
  %2084 = vmatpush2.msra.mxu0 0.0
  %2085 = vmatprep.subr.mxu0 0.0
  %2086 = vmatpush2.msra.mxu0 0.0
  %2087 = vmatprep.mubr.f32.mxu0 0.0
  %2088 = vmatmul.mubr.f32.gmra.mxu0 %v2021
  %v2089 = vpop.f32.mrf.mxu0
  %v2090 = vadd.f32 0.0, %v2089
  %v2091 = vpop.f32.mrf.mxu0
  %v2092 = vadd.f32 0.0, %v2091
  %2093 = vdwg.mxu0
  %v2094 = vadd.f32 %v2008, %v2090
  %v2095 = vadd.f32 %v2009, %v2092
  %s2096 = scalar_lea.vmem %s7, 8
  %v2097 = vld [vmem:[%s2096] sm:$0x3]
  %v2099 = vsel %vm1004, %v2097, 0
  %2101 = vmatprep.subr.mxu0 0.0
  %2102 = vmatpush1.msra.mxu0 0.0
  %2103 = vmatprep.subr.mxu0 0.0
  %2104 = vmatpush1.msra.mxu0 0.0
  %2105 = vmatprep.subr.mxu0 0.0
  %2106 = vmatpush1.msra.mxu0 0.0
  %2107 = vmatprep.subr.mxu0 0.0
  %2108 = vmatpush1.msra.mxu0 0.0
  %2109 = vmatprep.subr.mxu0 0.0
  %2110 = vmatpush1.msra.mxu0 0.0
  %2111 = vmatprep.subr.mxu0 0.0
  %2112 = vmatpush1.msra.mxu0 0.0
  %2113 = vmatprep.subr.mxu0 0.0
  %2114 = vmatpush1.msra.mxu0 0.0
  %2115 = vmatprep.subr.mxu0 0.0
  %2116 = vmatpush1.msra.mxu0 0.0
  %2117 = vmatprep.subr.mxu0 0.0
  %2118 = vmatpush1.msra.mxu0 0.0
  %2119 = vmatprep.subr.mxu0 0.0
  %2120 = vmatpush1.msra.mxu0 0.0
  %2121 = vmatprep.subr.mxu0 0.0
  %2122 = vmatpush1.msra.mxu0 0.0
  %2123 = vmatprep.subr.mxu0 0.0
  %2124 = vmatpush1.msra.mxu0 0.0
  %2125 = vmatprep.subr.mxu0 0.0
  %2126 = vmatpush1.msra.mxu0 0.0
  %2127 = vmatprep.subr.mxu0 0.0
  %2128 = vmatpush1.msra.mxu0 0.0
  %2129 = vmatprep.subr.mxu0 0.0
  %2130 = vmatpush1.msra.mxu0 0.0
  %2131 = vmatprep.subr.mxu0 %v1756
  %2132 = vmatpush1.msra.mxu0 %v1755
  %2133 = vmatprep.subr.mxu0 0.0
  %2134 = vmatpush2.msra.mxu0 0.0
  %2135 = vmatprep.subr.mxu0 0.0
  %2136 = vmatpush2.msra.mxu0 0.0
  %2137 = vmatprep.subr.mxu0 0.0
  %2138 = vmatpush2.msra.mxu0 0.0
  %2139 = vmatprep.subr.mxu0 0.0
  %2140 = vmatpush2.msra.mxu0 0.0
  %2141 = vmatprep.subr.mxu0 0.0
  %2142 = vmatpush2.msra.mxu0 0.0
  %2143 = vmatprep.subr.mxu0 0.0
  %2144 = vmatpush2.msra.mxu0 0.0
  %2145 = vmatprep.subr.mxu0 0.0
  %2146 = vmatpush2.msra.mxu0 0.0
  %2147 = vmatprep.subr.mxu0 0.0
  %2148 = vmatpush2.msra.mxu0 0.0
  %2149 = vmatprep.subr.mxu0 0.0
  %2150 = vmatpush2.msra.mxu0 0.0
  %2151 = vmatprep.subr.mxu0 0.0
  %2152 = vmatpush2.msra.mxu0 0.0
  %2153 = vmatprep.subr.mxu0 0.0
  %2154 = vmatpush2.msra.mxu0 0.0
  %2155 = vmatprep.subr.mxu0 0.0
  %2156 = vmatpush2.msra.mxu0 0.0
  %2157 = vmatprep.subr.mxu0 0.0
  %2158 = vmatpush2.msra.mxu0 0.0
  %2159 = vmatprep.subr.mxu0 0.0
  %2160 = vmatpush2.msra.mxu0 0.0
  %2161 = vmatprep.subr.mxu0 0.0
  %2162 = vmatpush2.msra.mxu0 0.0
  %2163 = vmatprep.subr.mxu0 0.0
  %2164 = vmatpush2.msra.mxu0 0.0
  %2165 = vmatprep.mubr.f32.mxu0 0.0
  %2166 = vmatmul.mubr.f32.gmra.mxu0 %v2099
  %v2167 = vpop.f32.mrf.mxu0
  %v2168 = vadd.f32 0.0, %v2167
  %v2169 = vpop.f32.mrf.mxu0
  %v2170 = vadd.f32 0.0, %v2169
  %2171 = vdwg.mxu0
  %v2172 = vadd.f32 %v2094, %v2168
  %v2173 = vadd.f32 %v2095, %v2170
  %2174 = vrot.lane.b32.xlu0 %v1755, 127
  %v2175 = vpop.permute.xlu0 %2174
  %2176 = vrot.lane.b32.xlu0 %v1756, 127
  %v2177 = vpop.permute.xlu0 %2176
  %v2178 = vsel %vm555, %v2175, %v2177
  %v2179 = vsel %vm555, %v2177, %v2175
  %v2180 = vmul.f32 %v2178, %v564
  %v2181 = vmul.f32 %v2179, %v568
  %s2182 = scalar_lea.vmem %s7, 10
  %v2183 = vld [vmem:[%s2182] sm:$0x3]
  %v2185 = vsel %vm1004, %v2183, 0
  %2187 = vmatprep.subr.mxu0 0.0
  %2188 = vmatpush1.msra.mxu0 0.0
  %2189 = vmatprep.subr.mxu0 0.0
  %2190 = vmatpush1.msra.mxu0 0.0
  %2191 = vmatprep.subr.mxu0 0.0
  %2192 = vmatpush1.msra.mxu0 0.0
  %2193 = vmatprep.subr.mxu0 0.0
  %2194 = vmatpush1.msra.mxu0 0.0
  %2195 = vmatprep.subr.mxu0 0.0
  %2196 = vmatpush1.msra.mxu0 0.0
  %2197 = vmatprep.subr.mxu0 0.0
  %2198 = vmatpush1.msra.mxu0 0.0
  %2199 = vmatprep.subr.mxu0 0.0
  %2200 = vmatpush1.msra.mxu0 0.0
  %2201 = vmatprep.subr.mxu0 0.0
  %2202 = vmatpush1.msra.mxu0 0.0
  %2203 = vmatprep.subr.mxu0 0.0
  %2204 = vmatpush1.msra.mxu0 0.0
  %2205 = vmatprep.subr.mxu0 0.0
  %2206 = vmatpush1.msra.mxu0 0.0
  %2207 = vmatprep.subr.mxu0 0.0
  %2208 = vmatpush1.msra.mxu0 0.0
  %2209 = vmatprep.subr.mxu0 0.0
  %2210 = vmatpush1.msra.mxu0 0.0
  %2211 = vmatprep.subr.mxu0 0.0
  %2212 = vmatpush1.msra.mxu0 0.0
  %2213 = vmatprep.subr.mxu0 0.0
  %2214 = vmatpush1.msra.mxu0 0.0
  %2215 = vmatprep.subr.mxu0 0.0
  %2216 = vmatpush1.msra.mxu0 0.0
  %2217 = vmatprep.subr.mxu0 %v2181
  %2218 = vmatpush1.msra.mxu0 %v2180
  %2219 = vmatprep.subr.mxu0 0.0
  %2220 = vmatpush2.msra.mxu0 0.0
  %2221 = vmatprep.subr.mxu0 0.0
  %2222 = vmatpush2.msra.mxu0 0.0
  %2223 = vmatprep.subr.mxu0 0.0
  %2224 = vmatpush2.msra.mxu0 0.0
  %2225 = vmatprep.subr.mxu0 0.0
  %2226 = vmatpush2.msra.mxu0 0.0
  %2227 = vmatprep.subr.mxu0 0.0
  %2228 = vmatpush2.msra.mxu0 0.0
  %2229 = vmatprep.subr.mxu0 0.0
  %2230 = vmatpush2.msra.mxu0 0.0
  %2231 = vmatprep.subr.mxu0 0.0
  %2232 = vmatpush2.msra.mxu0 0.0
  %2233 = vmatprep.subr.mxu0 0.0
  %2234 = vmatpush2.msra.mxu0 0.0
  %2235 = vmatprep.subr.mxu0 0.0
  %2236 = vmatpush2.msra.mxu0 0.0
  %2237 = vmatprep.subr.mxu0 0.0
  %2238 = vmatpush2.msra.mxu0 0.0
  %2239 = vmatprep.subr.mxu0 0.0
  %2240 = vmatpush2.msra.mxu0 0.0
  %2241 = vmatprep.subr.mxu0 0.0
  %2242 = vmatpush2.msra.mxu0 0.0
  %2243 = vmatprep.subr.mxu0 0.0
  %2244 = vmatpush2.msra.mxu0 0.0
  %2245 = vmatprep.subr.mxu0 0.0
  %2246 = vmatpush2.msra.mxu0 0.0
  %2247 = vmatprep.subr.mxu0 0.0
  %2248 = vmatpush2.msra.mxu0 0.0
  %2249 = vmatprep.subr.mxu0 0.0
  %2250 = vmatpush2.msra.mxu0 0.0
  %2251 = vmatprep.mubr.f32.mxu0 0.0
  %2252 = vmatmul.mubr.f32.gmra.mxu0 %v2185
  %v2253 = vpop.f32.mrf.mxu0
  %v2254 = vadd.f32 0.0, %v2253
  %v2255 = vpop.f32.mrf.mxu0
  %v2256 = vadd.f32 0.0, %v2255
  %2257 = vdwg.mxu0
  %v2258 = vadd.f32 %v2172, %v2254
  %v2259 = vadd.f32 %v2173, %v2256
  %2260 = vrot.lane.b32.xlu0 %v1755, 113
  %v2261 = vpop.permute.xlu0 %2260
  %2262 = vrot.lane.b32.xlu0 %v1756, 113
  %v2263 = vpop.permute.xlu0 %2262
  %v2264 = vsel %vm661, %v2261, %v2263
  %v2265 = vsel %vm661, %v2263, %v2261
  %v2266 = vmul.f32 %v2264, %v670
  %v2267 = vmul.f32 %v2265, %v674
  %s2268 = scalar_lea.vmem %s7, 12
  %v2269 = vld [vmem:[%s2268] sm:$0x3]
  %v2271 = vsel %vm1004, %v2269, 0
  %2273 = vmatprep.subr.mxu0 0.0
  %2274 = vmatpush1.msra.mxu0 0.0
  %2275 = vmatprep.subr.mxu0 0.0
  %2276 = vmatpush1.msra.mxu0 0.0
  %2277 = vmatprep.subr.mxu0 0.0
  %2278 = vmatpush1.msra.mxu0 0.0
  %2279 = vmatprep.subr.mxu0 0.0
  %2280 = vmatpush1.msra.mxu0 0.0
  %2281 = vmatprep.subr.mxu0 0.0
  %2282 = vmatpush1.msra.mxu0 0.0
  %2283 = vmatprep.subr.mxu0 0.0
  %2284 = vmatpush1.msra.mxu0 0.0
  %2285 = vmatprep.subr.mxu0 0.0
  %2286 = vmatpush1.msra.mxu0 0.0
  %2287 = vmatprep.subr.mxu0 0.0
  %2288 = vmatpush1.msra.mxu0 0.0
  %2289 = vmatprep.subr.mxu0 0.0
  %2290 = vmatpush1.msra.mxu0 0.0
  %2291 = vmatprep.subr.mxu0 0.0
  %2292 = vmatpush1.msra.mxu0 0.0
  %2293 = vmatprep.subr.mxu0 0.0
  %2294 = vmatpush1.msra.mxu0 0.0
  %2295 = vmatprep.subr.mxu0 0.0
  %2296 = vmatpush1.msra.mxu0 0.0
  %2297 = vmatprep.subr.mxu0 0.0
  %2298 = vmatpush1.msra.mxu0 0.0
  %2299 = vmatprep.subr.mxu0 0.0
  %2300 = vmatpush1.msra.mxu0 0.0
  %2301 = vmatprep.subr.mxu0 0.0
  %2302 = vmatpush1.msra.mxu0 0.0
  %2303 = vmatprep.subr.mxu0 %v2267
  %2304 = vmatpush1.msra.mxu0 %v2266
  %2305 = vmatprep.subr.mxu0 0.0
  %2306 = vmatpush2.msra.mxu0 0.0
  %2307 = vmatprep.subr.mxu0 0.0
  %2308 = vmatpush2.msra.mxu0 0.0
  %2309 = vmatprep.subr.mxu0 0.0
  %2310 = vmatpush2.msra.mxu0 0.0
  %2311 = vmatprep.subr.mxu0 0.0
  %2312 = vmatpush2.msra.mxu0 0.0
  %2313 = vmatprep.subr.mxu0 0.0
  %2314 = vmatpush2.msra.mxu0 0.0
  %2315 = vmatprep.subr.mxu0 0.0
  %2316 = vmatpush2.msra.mxu0 0.0
  %2317 = vmatprep.subr.mxu0 0.0
  %2318 = vmatpush2.msra.mxu0 0.0
  %2319 = vmatprep.subr.mxu0 0.0
  %2320 = vmatpush2.msra.mxu0 0.0
  %2321 = vmatprep.subr.mxu0 0.0
  %2322 = vmatpush2.msra.mxu0 0.0
  %2323 = vmatprep.subr.mxu0 0.0
  %2324 = vmatpush2.msra.mxu0 0.0
  %2325 = vmatprep.subr.mxu0 0.0
  %2326 = vmatpush2.msra.mxu0 0.0
  %2327 = vmatprep.subr.mxu0 0.0
  %2328 = vmatpush2.msra.mxu0 0.0
  %2329 = vmatprep.subr.mxu0 0.0
  %2330 = vmatpush2.msra.mxu0 0.0
  %2331 = vmatprep.subr.mxu0 0.0
  %2332 = vmatpush2.msra.mxu0 0.0
  %2333 = vmatprep.subr.mxu0 0.0
  %2334 = vmatpush2.msra.mxu0 0.0
  %2335 = vmatprep.subr.mxu0 0.0
  %2336 = vmatpush2.msra.mxu0 0.0
  %2337 = vmatprep.mubr.f32.mxu0 0.0
  %2338 = vmatmul.mubr.f32.gmra.mxu0 %v2271
  %v2339 = vpop.f32.mrf.mxu0
  %v2340 = vadd.f32 0.0, %v2339
  %v2341 = vpop.f32.mrf.mxu0
  %v2342 = vadd.f32 0.0, %v2341
  %2343 = vdwg.mxu0
  %v2344 = vadd.f32 %v2258, %v2340
  %v2345 = vadd.f32 %v2259, %v2342
  %2346 = vrot.lane.b32.xlu0 %v1755, 112
  %v2347 = vpop.permute.xlu0 %2346
  %2348 = vrot.lane.b32.xlu0 %v1756, 112
  %v2349 = vpop.permute.xlu0 %2348
  %v2350 = vsel %vm767, %v2347, %v2349
  %v2351 = vsel %vm767, %v2349, %v2347
  %v2352 = vmul.f32 %v2350, %v776
  %v2353 = vmul.f32 %v2351, %v780
  %s2354 = scalar_lea.vmem %s7, 14
  %v2355 = vld [vmem:[%s2354] sm:$0x3]
  %v2357 = vsel %vm1004, %v2355, 0
  %2359 = vmatprep.subr.mxu0 0.0
  %2360 = vmatpush1.msra.mxu0 0.0
  %2361 = vmatprep.subr.mxu0 0.0
  %2362 = vmatpush1.msra.mxu0 0.0
  %2363 = vmatprep.subr.mxu0 0.0
  %2364 = vmatpush1.msra.mxu0 0.0
  %2365 = vmatprep.subr.mxu0 0.0
  %2366 = vmatpush1.msra.mxu0 0.0
  %2367 = vmatprep.subr.mxu0 0.0
  %2368 = vmatpush1.msra.mxu0 0.0
  %2369 = vmatprep.subr.mxu0 0.0
  %2370 = vmatpush1.msra.mxu0 0.0
  %2371 = vmatprep.subr.mxu0 0.0
  %2372 = vmatpush1.msra.mxu0 0.0
  %2373 = vmatprep.subr.mxu0 0.0
  %2374 = vmatpush1.msra.mxu0 0.0
  %2375 = vmatprep.subr.mxu0 0.0
  %2376 = vmatpush1.msra.mxu0 0.0
  %2377 = vmatprep.subr.mxu0 0.0
  %2378 = vmatpush1.msra.mxu0 0.0
  %2379 = vmatprep.subr.mxu0 0.0
  %2380 = vmatpush1.msra.mxu0 0.0
  %2381 = vmatprep.subr.mxu0 0.0
  %2382 = vmatpush1.msra.mxu0 0.0
  %2383 = vmatprep.subr.mxu0 0.0
  %2384 = vmatpush1.msra.mxu0 0.0
  %2385 = vmatprep.subr.mxu0 0.0
  %2386 = vmatpush1.msra.mxu0 0.0
  %2387 = vmatprep.subr.mxu0 0.0
  %2388 = vmatpush1.msra.mxu0 0.0
  %2389 = vmatprep.subr.mxu0 %v2353
  %2390 = vmatpush1.msra.mxu0 %v2352
  %2391 = vmatprep.subr.mxu0 0.0
  %2392 = vmatpush2.msra.mxu0 0.0
  %2393 = vmatprep.subr.mxu0 0.0
  %2394 = vmatpush2.msra.mxu0 0.0
  %2395 = vmatprep.subr.mxu0 0.0
  %2396 = vmatpush2.msra.mxu0 0.0
  %2397 = vmatprep.subr.mxu0 0.0
  %2398 = vmatpush2.msra.mxu0 0.0
  %2399 = vmatprep.subr.mxu0 0.0
  %2400 = vmatpush2.msra.mxu0 0.0
  %2401 = vmatprep.subr.mxu0 0.0
  %2402 = vmatpush2.msra.mxu0 0.0
  %2403 = vmatprep.subr.mxu0 0.0
  %2404 = vmatpush2.msra.mxu0 0.0
  %2405 = vmatprep.subr.mxu0 0.0
  %2406 = vmatpush2.msra.mxu0 0.0
  %2407 = vmatprep.subr.mxu0 0.0
  %2408 = vmatpush2.msra.mxu0 0.0
  %2409 = vmatprep.subr.mxu0 0.0
  %2410 = vmatpush2.msra.mxu0 0.0
  %2411 = vmatprep.subr.mxu0 0.0
  %2412 = vmatpush2.msra.mxu0 0.0
  %2413 = vmatprep.subr.mxu0 0.0
  %2414 = vmatpush2.msra.mxu0 0.0
  %2415 = vmatprep.subr.mxu0 0.0
  %2416 = vmatpush2.msra.mxu0 0.0
  %2417 = vmatprep.subr.mxu0 0.0
  %2418 = vmatpush2.msra.mxu0 0.0
  %2419 = vmatprep.subr.mxu0 0.0
  %2420 = vmatpush2.msra.mxu0 0.0
  %2421 = vmatprep.subr.mxu0 0.0
  %2422 = vmatpush2.msra.mxu0 0.0
  %2423 = vmatprep.mubr.f32.mxu0 0.0
  %2424 = vmatmul.mubr.f32.gmra.mxu0 %v2357
  %v2425 = vpop.f32.mrf.mxu0
  %v2426 = vadd.f32 0.0, %v2425
  %v2427 = vpop.f32.mrf.mxu0
  %v2428 = vadd.f32 0.0, %v2427
  %2429 = vdwg.mxu0
  %v2430 = vadd.f32 %v2344, %v2426
  %v2431 = vadd.f32 %v2345, %v2428
  %2432 = vrot.lane.b32.xlu0 %v1755, 111
  %v2433 = vpop.permute.xlu0 %2432
  %2434 = vrot.lane.b32.xlu0 %v1756, 111
  %v2435 = vpop.permute.xlu0 %2434
  %v2436 = vsel %vm873, %v2433, %v2435
  %v2437 = vsel %vm873, %v2435, %v2433
  %v2438 = vmul.f32 %v2436, %v882
  %v2439 = vmul.f32 %v2437, %v886
  %s2440 = scalar_lea.vmem %s7, 16
  %v2441 = vld [vmem:[%s2440] sm:$0x3]
  %v2443 = vsel %vm1004, %v2441, 0
  %2445 = vmatprep.subr.mxu0 0.0
  %2446 = vmatpush1.msra.mxu0 0.0
  %2447 = vmatprep.subr.mxu0 0.0
  %2448 = vmatpush1.msra.mxu0 0.0
  %2449 = vmatprep.subr.mxu0 0.0
  %2450 = vmatpush1.msra.mxu0 0.0
  %2451 = vmatprep.subr.mxu0 0.0
  %2452 = vmatpush1.msra.mxu0 0.0
  %2453 = vmatprep.subr.mxu0 0.0
  %2454 = vmatpush1.msra.mxu0 0.0
  %2455 = vmatprep.subr.mxu0 0.0
  %2456 = vmatpush1.msra.mxu0 0.0
  %2457 = vmatprep.subr.mxu0 0.0
  %2458 = vmatpush1.msra.mxu0 0.0
  %2459 = vmatprep.subr.mxu0 0.0
  %2460 = vmatpush1.msra.mxu0 0.0
  %2461 = vmatprep.subr.mxu0 0.0
  %2462 = vmatpush1.msra.mxu0 0.0
  %2463 = vmatprep.subr.mxu0 0.0
  %2464 = vmatpush1.msra.mxu0 0.0
  %2465 = vmatprep.subr.mxu0 0.0
  %2466 = vmatpush1.msra.mxu0 0.0
  %2467 = vmatprep.subr.mxu0 0.0
  %2468 = vmatpush1.msra.mxu0 0.0
  %2469 = vmatprep.subr.mxu0 0.0
  %2470 = vmatpush1.msra.mxu0 0.0
  %2471 = vmatprep.subr.mxu0 0.0
  %2472 = vmatpush1.msra.mxu0 0.0
  %2473 = vmatprep.subr.mxu0 0.0
  %2474 = vmatpush1.msra.mxu0 0.0
  %2475 = vmatprep.subr.mxu0 %v2439
  %2476 = vmatpush1.msra.mxu0 %v2438
  %2477 = vmatprep.subr.mxu0 0.0
  %2478 = vmatpush2.msra.mxu0 0.0
  %2479 = vmatprep.subr.mxu0 0.0
  %2480 = vmatpush2.msra.mxu0 0.0
  %2481 = vmatprep.subr.mxu0 0.0
  %2482 = vmatpush2.msra.mxu0 0.0
  %2483 = vmatprep.subr.mxu0 0.0
  %2484 = vmatpush2.msra.mxu0 0.0
  %2485 = vmatprep.subr.mxu0 0.0
  %2486 = vmatpush2.msra.mxu0 0.0
  %2487 = vmatprep.subr.mxu0 0.0
  %2488 = vmatpush2.msra.mxu0 0.0
  %2489 = vmatprep.subr.mxu0 0.0
  %2490 = vmatpush2.msra.mxu0 0.0
  %2491 = vmatprep.subr.mxu0 0.0
  %2492 = vmatpush2.msra.mxu0 0.0
  %2493 = vmatprep.subr.mxu0 0.0
  %2494 = vmatpush2.msra.mxu0 0.0
  %2495 = vmatprep.subr.mxu0 0.0
  %2496 = vmatpush2.msra.mxu0 0.0
  %2497 = vmatprep.subr.mxu0 0.0
  %2498 = vmatpush2.msra.mxu0 0.0
  %2499 = vmatprep.subr.mxu0 0.0
  %2500 = vmatpush2.msra.mxu0 0.0
  %2501 = vmatprep.subr.mxu0 0.0
  %2502 = vmatpush2.msra.mxu0 0.0
  %2503 = vmatprep.subr.mxu0 0.0
  %2504 = vmatpush2.msra.mxu0 0.0
  %2505 = vmatprep.subr.mxu0 0.0
  %2506 = vmatpush2.msra.mxu0 0.0
  %2507 = vmatprep.subr.mxu0 0.0
  %2508 = vmatpush2.msra.mxu0 0.0
  %2509 = vmatprep.mubr.f32.mxu0 0.0
  %2510 = vmatmul.mubr.f32.gmra.mxu0 %v2443
  %v2511 = vpop.f32.mrf.mxu0
  %v2512 = vadd.f32 0.0, %v2511
  %v2513 = vpop.f32.mrf.mxu0
  %v2514 = vadd.f32 0.0, %v2513
  %2515 = vdwg.mxu0
  %v2516 = vadd.f32 %v2430, %v2512
  %v2517 = vadd.f32 %v2431, %v2514
  %v2518 = vld [vmem:[%s8] sm:$0x3]
  %2520 = vset.pattern.permute.xlu0 0
  %2521 = vperm.xlu0 %2520, %v2518
  %v2522 = vpop.permute.xlu0 %2521
  %v2524 = vadd.f32 %v2516, %v2522
  %v2525 = vadd.f32 %v2517, %v2522
  %v2526 = vpack.c.bf16 %v2524, %v2524
  %v2527 = vpack.c.bf16 %v2525, %v2525
  %v2528 = vld [vmem:[%s9] sm:$0xff]
  %v2529 = vld [vmem:[%s9 + $0x8] sm:$0xff]
  %v2530 = vld [vmem:[%s9 + $0x10] sm:$0xff]
  %v2531 = vld [vmem:[%s9 + $0x18] sm:$0xff]
  %v2532 = vld [vmem:[%s9 + $0x20] sm:$0xff]
  %v2533 = vld [vmem:[%s9 + $0x28] sm:$0xff]
  %v2534 = vld [vmem:[%s9 + $0x30] sm:$0xff]
  %v2535 = vld [vmem:[%s9 + $0x38] sm:$0xff]
  %v2536 = vld [vmem:[%s9 + $0x40] sm:$0xff]
  %v2537 = vld [vmem:[%s9 + $0x48] sm:$0xff]
  %v2538 = vld [vmem:[%s9 + $0x50] sm:$0xff]
  %v2539 = vld [vmem:[%s9 + $0x58] sm:$0xff]
  %v2540 = vld [vmem:[%s9 + $0x60] sm:$0xff]
  %v2541 = vld [vmem:[%s9 + $0x68] sm:$0xff]
  %v2542 = vld [vmem:[%s9 + $0x70] sm:$0xff]
  %v2543 = vld [vmem:[%s9 + $0x78] sm:$0xff]
  %v2544 = vld [vmem:[%s9 + $0x80] sm:$0xff]
  %v2545 = vld [vmem:[%s9 + $0x88] sm:$0xff]
  %v2546 = vld [vmem:[%s9 + $0x90] sm:$0xff]
  %v2547 = vld [vmem:[%s9 + $0x98] sm:$0xff]
  %v2548 = vld [vmem:[%s9 + $0xa0] sm:$0xff]
  %v2549 = vld [vmem:[%s9 + $0xa8] sm:$0xff]
  %v2550 = vld [vmem:[%s9 + $0xb0] sm:$0xff]
  %v2551 = vld [vmem:[%s9 + $0xb8] sm:$0xff]
  %v2552 = vld [vmem:[%s9 + $0xc0] sm:$0xff]
  %v2553 = vld [vmem:[%s9 + $0xc8] sm:$0xff]
  %v2554 = vld [vmem:[%s9 + $0xd0] sm:$0xff]
  %v2555 = vld [vmem:[%s9 + $0xd8] sm:$0xff]
  %v2556 = vld [vmem:[%s9 + $0xe0] sm:$0xff]
  %v2557 = vld [vmem:[%s9 + $0xe8] sm:$0xff]
  %v2558 = vld [vmem:[%s9 + $0xf0] sm:$0xff]
  %v2559 = vld [vmem:[%s9 + $0xf8] sm:$0xff]
  %v2560 = vld [vmem:[%s1] sm:$0xf]
  %v2593 = vunpack.c.l.b16 %v2528
  %v2594 = vunpack.c.h.b16 %v2528
  %v2595 = vunpack.c.l.b16 %v2529
  %v2596 = vunpack.c.h.b16 %v2529
  %v2597 = vunpack.c.l.b16 %v2530
  %v2598 = vunpack.c.h.b16 %v2530
  %v2599 = vunpack.c.l.b16 %v2531
  %v2600 = vunpack.c.h.b16 %v2531
  %v2601 = vunpack.c.l.b16 %v2532
  %v2602 = vunpack.c.h.b16 %v2532
  %v2603 = vunpack.c.l.b16 %v2533
  %v2604 = vunpack.c.h.b16 %v2533
  %v2605 = vunpack.c.l.b16 %v2534
  %v2606 = vunpack.c.h.b16 %v2534
  %v2607 = vunpack.c.l.b16 %v2535
  %v2608 = vunpack.c.h.b16 %v2535
  %v2609 = vunpack.c.l.b16 %v2536
  %v2610 = vunpack.c.h.b16 %v2536
  %v2611 = vunpack.c.l.b16 %v2537
  %v2612 = vunpack.c.h.b16 %v2537
  %v2613 = vunpack.c.l.b16 %v2538
  %v2614 = vunpack.c.h.b16 %v2538
  %v2615 = vunpack.c.l.b16 %v2539
  %v2616 = vunpack.c.h.b16 %v2539
  %v2617 = vunpack.c.l.b16 %v2540
  %v2618 = vunpack.c.h.b16 %v2540
  %v2619 = vunpack.c.l.b16 %v2541
  %v2620 = vunpack.c.h.b16 %v2541
  %v2621 = vunpack.c.l.b16 %v2542
  %v2622 = vunpack.c.h.b16 %v2542
  %v2623 = vunpack.c.l.b16 %v2543
  %v2624 = vunpack.c.h.b16 %v2543
  %v2625 = vunpack.c.l.b16 %v2544
  %v2626 = vunpack.c.h.b16 %v2544
  %v2627 = vunpack.c.l.b16 %v2545
  %v2628 = vunpack.c.h.b16 %v2545
  %v2629 = vunpack.c.l.b16 %v2546
  %v2630 = vunpack.c.h.b16 %v2546
  %v2631 = vunpack.c.l.b16 %v2547
  %v2632 = vunpack.c.h.b16 %v2547
  %v2633 = vunpack.c.l.b16 %v2548
  %v2634 = vunpack.c.h.b16 %v2548
  %v2635 = vunpack.c.l.b16 %v2549
  %v2636 = vunpack.c.h.b16 %v2549
  %v2637 = vunpack.c.l.b16 %v2550
  %v2638 = vunpack.c.h.b16 %v2550
  %v2639 = vunpack.c.l.b16 %v2551
  %v2640 = vunpack.c.h.b16 %v2551
  %v2641 = vunpack.c.l.b16 %v2552
  %v2642 = vunpack.c.h.b16 %v2552
  %v2643 = vunpack.c.l.b16 %v2553
  %v2644 = vunpack.c.h.b16 %v2553
  %v2645 = vunpack.c.l.b16 %v2554
  %v2646 = vunpack.c.h.b16 %v2554
  %v2647 = vunpack.c.l.b16 %v2555
  %v2648 = vunpack.c.h.b16 %v2555
  %v2649 = vunpack.c.l.b16 %v2556
  %v2650 = vunpack.c.h.b16 %v2556
  %v2651 = vunpack.c.l.b16 %v2557
  %v2652 = vunpack.c.h.b16 %v2557
  %v2653 = vunpack.c.l.b16 %v2558
  %v2654 = vunpack.c.h.b16 %v2558
  %v2655 = vunpack.c.l.b16 %v2559
  %v2656 = vunpack.c.h.b16 %v2559
  %v2657 = vpack.c.b16 %v2595, %v2593
  %v2658 = vpack.c.b16 %v2596, %v2594
  %v2659 = vpack.c.b16 %v2599, %v2597
  %v2660 = vpack.c.b16 %v2600, %v2598
  %v2661 = vpack.c.b16 %v2603, %v2601
  %v2662 = vpack.c.b16 %v2604, %v2602
  %v2663 = vpack.c.b16 %v2607, %v2605
  %v2664 = vpack.c.b16 %v2608, %v2606
  %v2665 = vpack.c.b16 %v2611, %v2609
  %v2666 = vpack.c.b16 %v2612, %v2610
  %v2667 = vpack.c.b16 %v2615, %v2613
  %v2668 = vpack.c.b16 %v2616, %v2614
  %v2669 = vpack.c.b16 %v2619, %v2617
  %v2670 = vpack.c.b16 %v2620, %v2618
  %v2671 = vpack.c.b16 %v2623, %v2621
  %v2672 = vpack.c.b16 %v2624, %v2622
  %v2673 = vpack.c.b16 %v2627, %v2625
  %v2674 = vpack.c.b16 %v2628, %v2626
  %v2675 = vpack.c.b16 %v2631, %v2629
  %v2676 = vpack.c.b16 %v2632, %v2630
  %v2677 = vpack.c.b16 %v2635, %v2633
  %v2678 = vpack.c.b16 %v2636, %v2634
  %v2679 = vpack.c.b16 %v2639, %v2637
  %v2680 = vpack.c.b16 %v2640, %v2638
  %v2681 = vpack.c.b16 %v2643, %v2641
  %v2682 = vpack.c.b16 %v2644, %v2642
  %v2683 = vpack.c.b16 %v2647, %v2645
  %v2684 = vpack.c.b16 %v2648, %v2646
  %v2685 = vpack.c.b16 %v2651, %v2649
  %v2686 = vpack.c.b16 %v2652, %v2650
  %v2687 = vpack.c.b16 %v2655, %v2653
  %v2688 = vpack.c.b16 %v2656, %v2654
  %v2723 = vunpack.c.l.s4 1983009808
  %v2724 = vunpack.c.0.s8 %v2723
  %v2725 = vlaneseq
  %v2726 = vshrl.u32 %v2725, 7
  %v2727 = vsub.s32 %v2724, %v2726
  %v2728 = vrot.slane %v2560, %v2727
  %v2729 = vcombine.high %v2728, %v2728
  %2732 = vmatprep.subr.bf16.mxu0 %v2672
  %2733 = vmatpush1.bf16.msra.mxu0 %v2671
  %2734 = vmatprep.subr.bf16.mxu0 %v2670
  %2735 = vmatpush1.bf16.msra.mxu0 %v2669
  %2736 = vmatprep.subr.bf16.mxu0 %v2668
  %2737 = vmatpush1.bf16.msra.mxu0 %v2667
  %2738 = vmatprep.subr.bf16.mxu0 %v2666
  %2739 = vmatpush1.bf16.msra.mxu0 %v2665
  %2740 = vmatprep.subr.bf16.mxu0 %v2664
  %2741 = vmatpush1.bf16.msra.mxu0 %v2663
  %2742 = vmatprep.subr.bf16.mxu0 %v2662
  %2743 = vmatpush1.bf16.msra.mxu0 %v2661
  %2744 = vmatprep.subr.bf16.mxu0 %v2660
  %2745 = vmatpush1.bf16.msra.mxu0 %v2659
  %2746 = vmatprep.subr.bf16.mxu0 %v2658
  %2747 = vmatpush1.bf16.msra.mxu0 %v2657
  %2748 = vmatprep.subr.bf16.mxu0 %v2688
  %2749 = vmatpush2.bf16.msra.mxu0 %v2687
  %2750 = vmatprep.subr.bf16.mxu0 %v2686
  %2751 = vmatpush2.bf16.msra.mxu0 %v2685
  %2752 = vmatprep.subr.bf16.mxu0 %v2684
  %2753 = vmatpush2.bf16.msra.mxu0 %v2683
  %2754 = vmatprep.subr.bf16.mxu0 %v2682
  %2755 = vmatpush2.bf16.msra.mxu0 %v2681
  %2756 = vmatprep.subr.bf16.mxu0 %v2680
  %2757 = vmatpush2.bf16.msra.mxu0 %v2679
  %2758 = vmatprep.subr.bf16.mxu0 %v2678
  %2759 = vmatpush2.bf16.msra.mxu0 %v2677
  %2760 = vmatprep.subr.bf16.mxu0 %v2676
  %2761 = vmatpush2.bf16.msra.mxu0 %v2675
  %2762 = vmatprep.subr.bf16.mxu0 %v2674
  %2763 = vmatpush2.bf16.msra.mxu0 %v2673
  %2764 = vmatprep.mubr.bf16.mxu0 %v2527
  %2765 = vmatmul.mubr.bf16.gmra.mxu0 %v2526
  %v2766 = vpop.f32.mrf.mxu0
  %v2767 = vadd.f32 %v2728, %v2766
  %v2768 = vpop.f32.mrf.mxu0
  %v2769 = vadd.f32 %v2729, %v2768
  %v2770 = vpop.f32.mrf.mxu0
  %v2771 = vpop.f32.mrf.mxu0
  %2772 = vdwg.mxu0
  %v2775 = vcombine.low %v2767, %v2769
  %v2777 = vunpack.c.l.s4 1983009808
  %v2778 = vunpack.c.0.s8 %v2777
  %v2779 = vlaneseq
  %v2780 = vshrl.u32 %v2779, 7
  %v2781 = vsub.s32 %v2778, %v2780
  %v2782 = vrot.slane %v2775, %v2781
  %2784 = vst [vmem:[%s10] sm:$0xf] %v2782
  // Predicated region
  $region42: #{forward.6} parent=0 // pred_check
    _
  $region43: #{forward.6} parent=0 // pred_check_branch
    %2786 = sbr.rel (0) target = $region45
  $region44: #{forward.6} parent=0 // pred_region
    _
  $region45: #{forward.6} parent=0 // pred_fallthru
    _
  // Predicated region
  $region46: #{forward.6} parent=0 // pred_check
    _
  $region47: #{forward.6} parent=0 // pred_check_branch
    %2788 = sbr.rel (0) target = $region49
  $region48: #{forward.6} parent=0 // pred_region
    _
  $region49: #{forward.6} parent=0 // pred_fallthru
    _

</llo_original>
